<compile_context>
chip_gen: v6e
topology: v6e:2x2x1
jax: 0.10.0
libtpu: 0.0.40
codegen_flags: <defaults>
</compile_context>

<pallas_src>
import functools

import jax
import jax.numpy as jnp
from jax.experimental import pallas as pl
from jax.experimental.pallas import tpu as pltpu

_PROJ_CFG = {2: (6, 2, 2), 4: (8, 4, 2), 8: (12, 8, 2), 16: (20, 16, 2)}
_MIB = 1024 * 1024


def _round_up(x, m):
    return ((x + m - 1) // m) * m


def _chip_tuning():
    """Generation-aware knobs: (vmem_limit_bytes, max_row_tile)."""
    vmem_cap = None
    try:
        vmem_cap = int(pltpu.get_tpu_info().vmem_capacity_bytes)
    except Exception:
        pass
    if vmem_cap is None:
        kind = ""
        try:
            kind = jax.devices()[0].device_kind.lower()
        except Exception:
            pass
        vmem_cap = 64 * _MIB if "v7" in kind else 128 * _MIB
    if vmem_cap <= 64 * _MIB:      # v7x: 64 MiB per TensorCore, 2 TCs per chip
        return 40 * _MIB, 1024
    return 96 * _MIB, 2048         # v5e / v6e: 128 MiB


_VMEM_LIMIT, _TM_MAX = _chip_tuning()


# ----------------------------------------------------------------------------
# Pallas kernel 1: matmul + bias + optional PReLU (MXU, bf16 operands, f32 acc)
# ----------------------------------------------------------------------------
def _matmul_bias_act_kernel(*refs, use_prelu):
    if use_prelu:
        a_ref, w_ref, b_ref, alpha_ref, o_ref = refs
    else:
        a_ref, w_ref, b_ref, o_ref = refs
    y = jnp.dot(a_ref[...], w_ref[...], preferred_element_type=jnp.float32)
    y = y + b_ref[...]
    if use_prelu:
        y = jnp.where(y >= 0, y, alpha_ref[...] * y)
    o_ref[...] = y.astype(o_ref.dtype)


def matmul_bias_act(a, w, bias, alpha=None, *, out_dtype=jnp.bfloat16):
    """(M, K) @ (K, N) + bias[N], optional per-column PReLU (alpha[N]).

    bf16 MXU operands, f32 accumulation + f32 epilogue.  Output columns are zero-padded
    to a multiple of 128 so every store is lane-dense (unmasked vst); the row tile is as
    large as the per-chip cap allows while keeping >=2 grid steps (2 TCs on v7x).
    """
    M, K = a.shape
    K2, N = w.shape
    assert K == K2
    use_prelu = alpha is not None

    Np = _round_up(N, 128)                       # lane-dense output columns
    if Np != N:
        w = jnp.pad(w, ((0, 0), (0, Np - N)))
        bias = jnp.pad(bias, (0, Np - N))
        if use_prelu:
            alpha = jnp.pad(alpha, (0, Np - N))

    tm = min(_TM_MAX, _round_up(M, 16))          # 16: bf16 sublane packing
    if M > 16 and pl.cdiv(M, tm) < 2:
        tm = _round_up(pl.cdiv(M, 2), 16)
    Mp = _round_up(M, tm)
    if Mp != M:
        a = jnp.pad(a, ((0, Mp - M), (0, 0)))

    # TODO(synk): add a K grid axis ("arbitrary") + VMEM f32 accumulator once K grows
    #             beyond a VMEM-friendly single block (K <= 576 here).
    inputs = [a.astype(jnp.bfloat16), w.astype(jnp.bfloat16),
              bias.reshape(1, Np).astype(jnp.float32)]
    in_specs = [
        pl.BlockSpec((tm, K), lambda i: (i, 0)),
        pl.BlockSpec((K, Np), lambda i: (0, 0)),
        pl.BlockSpec((1, Np), lambda i: (0, 0)),
    ]
    if use_prelu:
        inputs.append(alpha.reshape(1, Np).astype(jnp.float32))
        in_specs.append(pl.BlockSpec((1, Np), lambda i: (0, 0)))

    out = pl.pallas_call(
        functools.partial(_matmul_bias_act_kernel, use_prelu=use_prelu),
        out_shape=jax.ShapeDtypeStruct((Mp, Np), out_dtype),
        grid_spec=pltpu.PrefetchScalarGridSpec(
            num_scalar_prefetch=0,
            grid=(Mp // tm,),
            in_specs=in_specs,
            out_specs=pl.BlockSpec((tm, Np), lambda i: (i, 0)),
        ),
        compiler_params=pltpu.CompilerParams(
            dimension_semantics=("parallel",),
            vmem_limit_bytes=_VMEM_LIMIT),
    )(*inputs)
    return out[:M, :N]


# ----------------------------------------------------------------------------
# Pallas kernel 2: fused SK branches, lane-flattened (H, W*C) layout
#   branch 0 (3x3) fully, then branch 1 (5x5); folded bias/BN + ReLU; two separate
#   lane-dense bf16 slabs + per-row partial GAP sums — one pass over the feature map.
# ----------------------------------------------------------------------------
def _sk_branches_kernel(x_ref, w3_ref, w5_ref, sb_ref, f0_ref, f1_ref, gap_ref, *, H, W, C):
    WC = W * C
    x = x_ref[...]                                 # (H+4, (W+4)*C) f32, loaded once

    # ---- branch 0: 3x3 depthwise, computed end-to-end before branch 1 (low vreg peak) --
    acc = jnp.zeros((H, WC), jnp.float32)
    for di in range(3):
        for dj in range(3):
            t = di * 3 + dj
            a0, c0 = 1 + di, (1 + dj) * C          # static sublane / lane offsets
            acc = acc + x[a0:a0 + H, c0:c0 + WC] * w3_ref[t:t + 1, :]
    f0 = jnp.maximum(acc * sb_ref[0:1, :] + sb_ref[1:2, :], 0.0)
    f0_ref[...] = f0.astype(f0_ref.dtype)
    gap0 = jnp.sum(f0, axis=0, keepdims=True)      # (1, W*C) partial GAP sums

    # ---- branch 1: 5x5 depthwise -------------------------------------------------------
    acc = jnp.zeros((H, WC), jnp.float32)
    for di in range(5):
        for dj in range(5):
            t = di * 5 + dj
            c0 = dj * C
            acc = acc + x[di:di + H, c0:c0 + WC] * w5_ref[t:t + 1, :]
    f1 = jnp.maximum(acc * sb_ref[2:3, :] + sb_ref[3:4, :], 0.0)
    f1_ref[...] = f1.astype(f1_ref.dtype)
    gap_ref[...] = gap0 + jnp.sum(f1, axis=0, keepdims=True)


def sk_branches(params, x_nhwc):
    """Returns (f0, f1) as (B, H*W, C) bf16 slabs and the per-batch GAP sum (B, C) f32."""
    B, H, W, C = x_nhwc.shape
    WC = W * C
    xp = jnp.pad(x_nhwc.astype(jnp.float32), ((0, 0), (2, 2), (2, 2), (0, 0)))
    xf = xp.reshape(B, H + 4, (W + 4) * C)         # lane-flatten (w, c) into the last dim

    # Fold bias + inference-mode BN into (scale, shift); tile weights/scales across W so
    # they broadcast directly against the lane-flattened accumulator.
    # TODO(synk): reference uses train-mode BatchNorm (batch stats); running stats here.
    rows = []
    for i in range(2):
        scale = params[f"bn_gamma{i}"] / jnp.sqrt(params[f"bn_var{i}"] + 1e-5)
        shift = params[f"bn_beta{i}"] + (params[f"dw_b{i}"] - params[f"bn_mean{i}"]) * scale
        rows += [scale, shift]
    sbt = jnp.tile(jnp.stack(rows, axis=0), (1, W))                    # (4,  W*C)
    w3t = jnp.tile(params["dw_w0"].astype(jnp.float32), (1, W))        # (9,  W*C)
    w5t = jnp.tile(params["dw_w1"].astype(jnp.float32), (1, W))        # (25, W*C)

    # TODO(synk): whole-(padded)-image-per-batch blocks are fine at these sizes; add an
    #             H-tile axis with halo (manual DMA) at production spatial sizes / B==1
    #             so both v7x TensorCores always get work.
    f0, f1, gap = pl.pallas_call(
        functools.partial(_sk_branches_kernel, H=H, W=W, C=C),
        out_shape=(jax.ShapeDtypeStruct((B, H, WC), jnp.bfloat16),
                   jax.ShapeDtypeStruct((B, H, WC), jnp.bfloat16),
                   jax.ShapeDtypeStruct((B, 1, WC), jnp.float32)),
        grid_spec=pltpu.PrefetchScalarGridSpec(
            num_scalar_prefetch=0,
            grid=(B,),
            in_specs=[
                pl.BlockSpec((None, H + 4, (W + 4) * C), lambda b: (b, 0, 0)),
                pl.BlockSpec((9, WC), lambda b: (0, 0)),
                pl.BlockSpec((25, WC), lambda b: (0, 0)),
                pl.BlockSpec((4, WC), lambda b: (0, 0)),
            ],
            out_specs=[
                pl.BlockSpec((None, H, WC), lambda b: (b, 0, 0)),
                pl.BlockSpec((None, H, WC), lambda b: (b, 0, 0)),
                pl.BlockSpec((None, 1, WC), lambda b: (b, 0, 0)),
            ],
        ),
        compiler_params=pltpu.CompilerParams(
            dimension_semantics=("parallel",),
            vmem_limit_bytes=_VMEM_LIMIT),
    )(xf, w3t, w5t, sbt)

    gap_c = gap.reshape(B, W, C).sum(axis=1)        # finish GAP: reduce W groups of C lanes
    return f0.reshape(B, H * W, C), f1.reshape(B, H * W, C), gap_c


# ----------------------------------------------------------------------------
# Pallas kernel 3: attention-weighted branch sum fused with the 1x1 conv
#   (attention applied to activations; batch-independent, VMEM-resident 1x1 weight)
# ----------------------------------------------------------------------------
def _sk_combine_conv_kernel(f0_ref, f1_ref, att_ref, w_ref, b_ref, o_ref, *, C):
    att = att_ref[...]                              # (1, 2C) f32 = [att0 | att1]
    fv = (f0_ref[...].astype(jnp.float32) * att[:, :C]
          + f1_ref[...].astype(jnp.float32) * att[:, C:])
    y = jnp.dot(fv.astype(jnp.bfloat16), w_ref[...], preferred_element_type=jnp.float32)
    o_ref[...] = (y + b_ref[...]).astype(o_ref.dtype)


def sk_combine_conv1x1(f0, f1, att, w1x1, bias, *, out_dtype=jnp.bfloat16):
    """out[b] = (att0[b]*f0[b] + att1[b]*f1[b]) @ w1x1 + bias.

    f0/f1: (B, HW, C) bf16, att: (B, 2C) f32, w1x1: (C, Cout).  Output columns are padded
    to 128 for lane-dense stores and sliced back.
    """
    B, HW, C = f0.shape
    Cout = w1x1.shape[-1]
    Np = _round_up(Cout, 128)
    wp = jnp.pad(w1x1.astype(jnp.bfloat16), ((0, 0), (0, Np - Cout)))
    bp = jnp.pad(bias.astype(jnp.float32), (0, Np - Cout)).reshape(1, Np)

    tr = min(_TM_MAX, _round_up(HW, 16))
    HWp = _round_up(HW, tr)
    if HWp != HW:
        f0 = jnp.pad(f0, ((0, 0), (0, HWp - HW), (0, 0)))
        f1 = jnp.pad(f1, ((0, 0), (0, HWp - HW), (0, 0)))

    out = pl.pallas_call(
        functools.partial(_sk_combine_conv_kernel, C=C),
        out_shape=jax.ShapeDtypeStruct((B, HWp, Np), out_dtype),
        grid_spec=pltpu.PrefetchScalarGridSpec(
            num_scalar_prefetch=0,
            grid=(B, HWp // tr),
            in_specs=[
                pl.BlockSpec((None, tr, C), lambda b, i: (b, i, 0)),
                pl.BlockSpec((None, tr, C), lambda b, i: (b, i, 0)),
                pl.BlockSpec((None, 1, 2 * C), lambda b, i: (b, 0, 0)),
                pl.BlockSpec((C, Np), lambda b, i: (0, 0)),     # batch-independent, resident
                pl.BlockSpec((1, Np), lambda b, i: (0, 0)),
            ],
            out_specs=pl.BlockSpec((None, tr, Np), lambda b, i: (b, i, 0)),
        ),
        compiler_params=pltpu.CompilerParams(
            dimension_semantics=("parallel", "parallel"),
            vmem_limit_bytes=_VMEM_LIMIT),
    )(f0.astype(jnp.bfloat16), f1.astype(jnp.bfloat16),
      att.reshape(B, 1, 2 * C).astype(jnp.float32), wp, bp)
    return out[:, :HW, :Cout]


# ----------------------------------------------------------------------------
# Conv wrappers (im2col / sub-pixel glue in JAX, matmul in Pallas)
# ----------------------------------------------------------------------------
def conv2d(x_nhwc, w_hwio, bias, alpha, stride, pad):
    # TODO(synk): im2col is still materialized in XLA; fuse patch construction into the
    #             matmul kernel (halo-ed spatial blocks) to drop the k^2 x HBM blow-up.
    B, H, W, Cin = x_nhwc.shape
    kh, kw, _, Cout = w_hwio.shape
    xp = jnp.pad(x_nhwc, ((0, 0), (pad, pad), (pad, pad), (0, 0)))
    Ho = (H + 2 * pad - kh) // stride + 1
    Wo = (W + 2 * pad - kw) // stride + 1
    cols = [xp[:, di:di + stride * Ho:stride, dj:dj + stride * Wo:stride, :]
            for di in range(kh) for dj in range(kw)]
    patches = jnp.stack(cols, axis=3).reshape(B * Ho * Wo, kh * kw * Cin)
    y = matmul_bias_act(patches, w_hwio.reshape(kh * kw * Cin, Cout), bias, alpha)
    return y.reshape(B, Ho, Wo, Cout)


def _transposed_conv_weight(w_hwio, k, s, p):
    """Fold ConvTranspose (k, stride s, pad p) into a 3x3 stride-1 conv producing
    s*s output phases: returns a (9*Cin, s*s*Cout) weight (zero at invalid taps)."""
    Cin, Cout = w_hwio.shape[2], w_hwio.shape[3]
    P = k - 1 - p
    delta = jnp.arange(3) - 1                       # input tap offset in {-1, 0, 1}
    r = jnp.arange(s)                               # output phase
    a = P + s * delta[:, None] - r[None, :]         # (3, s) kernel tap index
    valid = (a >= 0) & (a < k)
    a_cl = jnp.clip(a, 0, k - 1)
    wg = w_hwio[a_cl][:, :, a_cl]                   # (ti, ri, tj, rj, Cin, Cout)
    mask = valid[:, :, None, None, None, None] & valid[None, None, :, :, None, None]
    wg = jnp.where(mask, wg, 0.0)
    return jnp.transpose(wg, (0, 2, 4, 1, 3, 5)).reshape(9 * Cin, s * s * Cout)


def conv_transpose2d(x_nhwc, w_hwio, bias, alpha, stride, pad, k):
    """Exact ConvTranspose2d via sub-pixel phase decomposition: one 3x3-window im2col
    on the un-dilated input + one matmul (s*s*Cout columns) + pixel shuffle."""
    B, H, W, Cin = x_nhwc.shape
    Cout = w_hwio.shape[3]
    s = stride
    assert k <= 2 * s + 2, "phase decomposition assumes all taps fit a 3x3 window"
    wc = _transposed_conv_weight(w_hwio, k, s, pad)
    xp = jnp.pad(x_nhwc, ((0, 0), (1, 1), (1, 1), (0, 0)))
    cols = [xp[:, di:di + H, dj:dj + W, :] for di in range(3) for dj in range(3)]
    patches = jnp.stack(cols, axis=3).reshape(B * H * W, 9 * Cin)
    y = matmul_bias_act(patches, wc, jnp.tile(bias, s * s),
                        None if alpha is None else jnp.tile(alpha, s * s))
    y = y.reshape(B, H, W, s, s, Cout)
    y = jnp.transpose(y, (0, 1, 3, 2, 4, 5)).reshape(B, H * s, W * s, Cout)
    return y


# ----------------------------------------------------------------------------
# Module forward passes
# ----------------------------------------------------------------------------
def dense_projection(params, x_nhwc):
    k, s, p, up = params["k"], params["s"], params["p"], params["up"]

    def proj(x, w, b, a, go_up):
        if go_up:
            return conv_transpose2d(x, w, b, a, s, p, k)
        return conv2d(x, w, b, a, s, p)

    a0 = proj(x_nhwc, params["w1"], params["b1"], params["alpha1"], up)
    b0 = proj(a0, params["w2"], params["b2"], params["alpha2"], not up)
    e = b0 - x_nhwc
    a1 = proj(e, params["w3"], params["b3"], params["alpha3"], up)
    return a0 + a1


def skconv_m_with_conv(params, x_nhwc, conv_w, conv_b):
    """SKConv_M followed by the SKMBlock 1x1 conv (fused into the combine kernel)."""
    B, H, W, C = x_nhwc.shape
    f0, f1, gap = sk_branches(params, x_nhwc)                   # fused branches + GAP sums

    # Squeeze-excite path: tiny (B x C) math -> plain XLA, no kernel launches.
    fea_s = gap / float(H * W)                                  # (B, C)
    fea_z = fea_s @ params["fc_w"] + params["fc_b"]             # (B, d)
    fcs_w = jnp.concatenate([params["fcs_w0"], params["fcs_w1"]], axis=1)   # (d, 2C)
    fcs_b = jnp.concatenate([params["fcs_b0"], params["fcs_b1"]], axis=0)
    att = jax.nn.softmax((fea_z @ fcs_w + fcs_b).reshape(B, 2, C), axis=1)  # (B, 2, C)

    out = sk_combine_conv1x1(f0, f1, att.reshape(B, 2 * C),
                             conv_w.reshape(C, -1), conv_b)     # (B, HW, Cout)
    return out.reshape(B, H, W, -1)


def skm_block_forward(params, depth_nchw, gui_nchw):
    depth = jnp.transpose(depth_nchw, (0, 2, 3, 1))
    gui = jnp.transpose(gui_nchw, (0, 2, 3, 1))
    lst_up = dense_projection(params["lst_up"], depth)
    sk_in = jnp.concatenate([lst_up.astype(jnp.float32), gui.astype(jnp.float32)], axis=-1)
    feats = skconv_m_with_conv(params["sk_m"], sk_in, params["conv_w"], params["conv_b"])
    down_in = jnp.concatenate([feats.astype(jnp.bfloat16), lst_up.astype(jnp.bfloat16)], axis=-1)
    out = dense_projection(params["down"], down_in)
    return jnp.transpose(out, (0, 3, 1, 2)).astype(jnp.float32)   # back to NCHW, f32 result


# ----------------------------------------------------------------------------
# Deterministic parameter init (synthetic, no checkpoint load)
# ----------------------------------------------------------------------------
def _init_dense_projection(key, in_ch, nr, scale, up):
    k, s, p = _PROJ_CFG[scale]
    ks = jax.random.split(key, 6)

    def w(kk, cin, cout):
        return jax.random.normal(kk, (k, k, cin, cout), jnp.float32) * 0.05

    def b(kk, c):
        return jax.random.normal(kk, (c,), jnp.float32) * 0.05

    return {
        "k": k, "s": s, "p": p, "up": up,
        "w1": w(ks[0], in_ch, nr), "b1": b(ks[3], nr),
        "alpha1": jnp.full((nr,), 0.25, jnp.float32),
        "w2": w(ks[1], nr, in_ch), "b2": b(ks[4], in_ch),
        "alpha2": jnp.full((in_ch,), 0.25, jnp.float32),
        "w3": w(ks[2], in_ch, nr), "b3": b(ks[5], nr),
        "alpha3": jnp.full((nr,), 0.25, jnp.float32),
    }


def _init_skconv_m(key, features, r=2, L=32):
    d = max(features // r, L)
    ks = jax.random.split(key, 16)
    params = {}
    for i in range(2):
        k = 3 + 2 * i
        params[f"dw_w{i}"] = jax.random.normal(ks[4 * i + 0], (k * k, features), jnp.float32) * 0.1
        params[f"dw_b{i}"] = jax.random.normal(ks[4 * i + 1], (features,), jnp.float32) * 0.05
        params[f"bn_gamma{i}"] = 1.0 + 0.1 * jax.random.normal(ks[4 * i + 2], (features,), jnp.float32)
        params[f"bn_beta{i}"] = 0.1 * jax.random.normal(ks[4 * i + 3], (features,), jnp.float32)
        params[f"bn_mean{i}"] = jnp.zeros((features,), jnp.float32)
        params[f"bn_var{i}"] = jnp.ones((features,), jnp.float32)
    params["fc_w"] = jax.random.normal(ks[8], (features, d), jnp.float32) * 0.1
    params["fc_b"] = jax.random.normal(ks[9], (d,), jnp.float32) * 0.05
    params["fcs_w0"] = jax.random.normal(ks[10], (d, features), jnp.float32) * 0.1
    params["fcs_b0"] = jax.random.normal(ks[11], (features,), jnp.float32) * 0.05
    params["fcs_w1"] = jax.random.normal(ks[12], (d, features), jnp.float32) * 0.1
    params["fcs_b1"] = jax.random.normal(ks[13], (features,), jnp.float32) * 0.05
    return params


def init_skm_block(key, lst_dim, gui_dim, scale):
    k0, k1, k2, k3, k4 = jax.random.split(key, 5)
    return {
        "lst_up": _init_dense_projection(k0, lst_dim, gui_dim, scale, up=True),
        "sk_m": _init_skconv_m(k1, 2 * gui_dim),
        "conv_w": jax.random.normal(k2, (1, 1, 2 * gui_dim, gui_dim), jnp.float32) * 0.1,
        "conv_b": jax.random.normal(k3, (gui_dim,), jnp.float32) * 0.05,
        "down": _init_dense_projection(k4, 2 * gui_dim, lst_dim + gui_dim, scale, up=False),
    }


# ----------------------------------------------------------------------------
if __name__ == "__main__":
    lst_dim, gui_dim, scale = 4, 8, 2
    B, H, W = 2, 8, 8

    key = jax.random.PRNGKey(0)
    kp, kd, kg = jax.random.split(key, 3)
    params = init_skm_block(kp, lst_dim, gui_dim, scale)

    depth = jax.random.normal(kd, (B, lst_dim, H, W), jnp.float32)                # NCHW
    gui = jax.random.normal(kg, (B, gui_dim, H * scale, W * scale), jnp.float32)  # NCHW

    fwd = jax.jit(functools.partial(skm_block_forward, params))
    out = jax.block_until_ready(fwd(depth, gui))

    assert out.shape == (B, lst_dim + gui_dim, H, W), out.shape
    assert bool(jnp.all(jnp.isfinite(out)))
    print("KERNEL_OK")
</pallas_src>

<mosaic_0001>
module attributes {stable_mosaic.version = 11 : i64} {
  func.func @_matmul_bias_act_kernel(%arg0: i32, %arg1: memref<64x36xbf16, #tpu.memory_space<vmem>>, %arg2: memref<36x128xbf16, #tpu.memory_space<vmem>>, %arg3: memref<1x128xf32, #tpu.memory_space<vmem>>, %arg4: memref<1x128xf32, #tpu.memory_space<vmem>>, %arg5: memref<64x128xbf16, #tpu.memory_space<vmem>>) attributes {dimension_semantics = [#tpu.dimension_semantics<parallel>], iteration_bounds = array<i64: 2>, scalar_prefetch = 0 : i64, scratch_operands = 0 : i64, tpu.core_type = #tpu.core_type<tc>, window_params = [{transform_indices = @transform_0, window_bounds = array<i64: 64, 36>}, {pipeline_mode = #tpu.pipeline_mode<synchronous>, transform_indices = @transform_1, window_bounds = array<i64: 36, 128>}, {pipeline_mode = #tpu.pipeline_mode<synchronous>, transform_indices = @transform_2, window_bounds = array<i64: 1, 128>}, {pipeline_mode = #tpu.pipeline_mode<synchronous>, transform_indices = @transform_3, window_bounds = array<i64: 1, 128>}, {transform_indices = @transform_4, window_bounds = array<i64: 64, 128>}]} {
    %c0 = arith.constant 0 : index
    %c0_0 = arith.constant 0 : index
    %0 = vector.load %arg1[%c0, %c0_0] : memref<64x36xbf16, #tpu.memory_space<vmem>>, vector<64x36xbf16>
    %c0_1 = arith.constant 0 : index
    %c0_2 = arith.constant 0 : index
    %1 = vector.load %arg2[%c0_1, %c0_2] : memref<36x128xbf16, #tpu.memory_space<vmem>>, vector<36x128xbf16>
    %cst = arith.constant dense<0.000000e+00> : vector<64x128xf32>
    %2 = tpu.matmul %0, %1, %cst {dimension_numbers = #tpu.dot_dimension_numbers<[1], [0], [0], [1], [0, 0, 1, 1], [], []>} : vector<64x36xbf16>, vector<36x128xbf16>, vector<64x128xf32> -> vector<64x128xf32>
    %c0_3 = arith.constant 0 : index
    %c0_4 = arith.constant 0 : index
    %3 = vector.load %arg3[%c0_3, %c0_4] : memref<1x128xf32, #tpu.memory_space<vmem>>, vector<1x128xf32>
    %4 = vector.broadcast %3 : vector<1x128xf32> to vector<64x128xf32>
    %5 = arith.addf %2, %4 : vector<64x128xf32>
    %cst_5 = arith.constant 0.000000e+00 : f32
    %6 = vector.broadcast %cst_5 : f32 to vector<64x128xf32>
    %7 = arith.cmpf oge, %5, %6 : vector<64x128xf32>
    %c0_6 = arith.constant 0 : index
    %c0_7 = arith.constant 0 : index
    %8 = vector.load %arg4[%c0_6, %c0_7] : memref<1x128xf32, #tpu.memory_space<vmem>>, vector<1x128xf32>
    %9 = vector.broadcast %8 : vector<1x128xf32> to vector<64x128xf32>
    %10 = arith.mulf %9, %5 : vector<64x128xf32>
    %11 = arith.select %7, %5, %10 : vector<64x128xi1>, vector<64x128xf32>
    %12 = arith.truncf %11 : vector<64x128xf32> to vector<64x128xbf16>
    %c0_8 = arith.constant 0 : index
    %c0_9 = arith.constant 0 : index
    %13 = vector.load %arg5[%c0_8, %c0_9] : memref<64x128xbf16, #tpu.memory_space<vmem>>, vector<64x128xbf16>
    tpu.vector_store %arg5[%c0_8, %c0_9], %12 {strides = array<i32>} : memref<64x128xbf16, #tpu.memory_space<vmem>>, vector<64x128xbf16>,
    return
  }
  func.func @transform_0(%arg0: i32) -> (i32, i32) {
    %c0_i32 = arith.constant 0 : i32
    %c0_i32_0 = arith.constant 0 : i32
    return %arg0, %c0_i32 : i32, i32
  }
  func.func @transform_1(%arg0: i32) -> (i32, i32) {
    %c0_i32 = arith.constant 0 : i32
    %c0_i32_0 = arith.constant 0 : i32
    %c0_i32_1 = arith.constant 0 : i32
    return %c0_i32, %c0_i32_0 : i32, i32
  }
  func.func @transform_2(%arg0: i32) -> (i32, i32) {
    %c0_i32 = arith.constant 0 : i32
    %c0_i32_0 = arith.constant 0 : i32
    %c0_i32_1 = arith.constant 0 : i32
    return %c0_i32, %c0_i32_0 : i32, i32
  }
  func.func @transform_3(%arg0: i32) -> (i32, i32) {
    %c0_i32 = arith.constant 0 : i32
    %c0_i32_0 = arith.constant 0 : i32
    %c0_i32_1 = arith.constant 0 : i32
    return %c0_i32, %c0_i32_0 : i32, i32
  }
  func.func @transform_4(%arg0: i32) -> (i32, i32) {
    %c0_i32 = arith.constant 0 : i32
    %c0_i32_0 = arith.constant 0 : i32
    return %arg0, %c0_i32 : i32, i32
  }
}

module attributes {stable_mosaic.version = 11 : i64} {
  func.func @_matmul_bias_act_kernel(%arg0: i32, %arg1: memref<64x288xbf16, #tpu.memory_space<vmem>>, %arg2: memref<288x128xbf16, #tpu.memory_space<vmem>>, %arg3: memref<1x128xf32, #tpu.memory_space<vmem>>, %arg4: memref<1x128xf32, #tpu.memory_space<vmem>>, %arg5: memref<64x128xbf16, #tpu.memory_space<vmem>>) attributes {dimension_semantics = [#tpu.dimension_semantics<parallel>], iteration_bounds = array<i64: 2>, scalar_prefetch = 0 : i64, scratch_operands = 0 : i64, tpu.core_type = #tpu.core_type<tc>, window_params = [{transform_indices = @transform_0, window_bounds = array<i64: 64, 288>}, {pipeline_mode = #tpu.pipeline_mode<synchronous>, transform_indices = @transform_1, window_bounds = array<i64: 288, 128>}, {pipeline_mode = #tpu.pipeline_mode<synchronous>, transform_indices = @transform_2, window_bounds = array<i64: 1, 128>}, {pipeline_mode = #tpu.pipeline_mode<synchronous>, transform_indices = @transform_3, window_bounds = array<i64: 1, 128>}, {transform_indices = @transform_4, window_bounds = array<i64: 64, 128>}]} {
    %c0 = arith.constant 0 : index
    %c0_0 = arith.constant 0 : index
    %0 = vector.load %arg1[%c0, %c0_0] : memref<64x288xbf16, #tpu.memory_space<vmem>>, vector<64x288xbf16>
    %c0_1 = arith.constant 0 : index
    %c0_2 = arith.constant 0 : index
    %1 = vector.load %arg2[%c0_1, %c0_2] : memref<288x128xbf16, #tpu.memory_space<vmem>>, vector<288x128xbf16>
    %cst = arith.constant dense<0.000000e+00> : vector<64x128xf32>
    %2 = tpu.matmul %0, %1, %cst {dimension_numbers = #tpu.dot_dimension_numbers<[1], [0], [0], [1], [0, 0, 1, 1], [], []>} : vector<64x288xbf16>, vector<288x128xbf16>, vector<64x128xf32> -> vector<64x128xf32>
    %c0_3 = arith.constant 0 : index
    %c0_4 = arith.constant 0 : index
    %3 = vector.load %arg3[%c0_3, %c0_4] : memref<1x128xf32, #tpu.memory_space<vmem>>, vector<1x128xf32>
    %4 = vector.broadcast %3 : vector<1x128xf32> to vector<64x128xf32>
    %5 = arith.addf %2, %4 : vector<64x128xf32>
    %cst_5 = arith.constant 0.000000e+00 : f32
    %6 = vector.broadcast %cst_5 : f32 to vector<64x128xf32>
    %7 = arith.cmpf oge, %5, %6 : vector<64x128xf32>
    %c0_6 = arith.constant 0 : index
    %c0_7 = arith.constant 0 : index
    %8 = vector.load %arg4[%c0_6, %c0_7] : memref<1x128xf32, #tpu.memory_space<vmem>>, vector<1x128xf32>
    %9 = vector.broadcast %8 : vector<1x128xf32> to vector<64x128xf32>
    %10 = arith.mulf %9, %5 : vector<64x128xf32>
    %11 = arith.select %7, %5, %10 : vector<64x128xi1>, vector<64x128xf32>
    %12 = arith.truncf %11 : vector<64x128xf32> to vector<64x128xbf16>
    %c0_8 = arith.constant 0 : index
    %c0_9 = arith.constant 0 : index
    %13 = vector.load %arg5[%c0_8, %c0_9] : memref<64x128xbf16, #tpu.memory_space<vmem>>, vector<64x128xbf16>
    tpu.vector_store %arg5[%c0_8, %c0_9], %12 {strides = array<i32>} : memref<64x128xbf16, #tpu.memory_space<vmem>>, vector<64x128xbf16>,
    return
  }
  func.func @transform_0(%arg0: i32) -> (i32, i32) {
    %c0_i32 = arith.constant 0 : i32
    %c0_i32_0 = arith.constant 0 : i32
    return %arg0, %c0_i32 : i32, i32
  }
  func.func @transform_1(%arg0: i32) -> (i32, i32) {
    %c0_i32 = arith.constant 0 : i32
    %c0_i32_0 = arith.constant 0 : i32
    %c0_i32_1 = arith.constant 0 : i32
    return %c0_i32, %c0_i32_0 : i32, i32
  }
  func.func @transform_2(%arg0: i32) -> (i32, i32) {
    %c0_i32 = arith.constant 0 : i32
    %c0_i32_0 = arith.constant 0 : i32
    %c0_i32_1 = arith.constant 0 : i32
    return %c0_i32, %c0_i32_0 : i32, i32
  }
  func.func @transform_3(%arg0: i32) -> (i32, i32) {
    %c0_i32 = arith.constant 0 : i32
    %c0_i32_0 = arith.constant 0 : i32
    %c0_i32_1 = arith.constant 0 : i32
    return %c0_i32, %c0_i32_0 : i32, i32
  }
  func.func @transform_4(%arg0: i32) -> (i32, i32) {
    %c0_i32 = arith.constant 0 : i32
    %c0_i32_0 = arith.constant 0 : i32
    return %arg0, %c0_i32 : i32, i32
  }
}

module attributes {stable_mosaic.version = 11 : i64} {
  func.func @_sk_branches_kernel(%arg0: i32, %arg1: memref<1x20x320xf32, #tpu.memory_space<vmem>>, %arg2: memref<9x256xf32, #tpu.memory_space<vmem>>, %arg3: memref<25x256xf32, #tpu.memory_space<vmem>>, %arg4: memref<4x256xf32, #tpu.memory_space<vmem>>, %arg5: memref<1x16x256xbf16, #tpu.memory_space<vmem>>, %arg6: memref<1x16x256xbf16, #tpu.memory_space<vmem>>, %arg7: memref<1x1x256xf32, #tpu.memory_space<vmem>>) attributes {dimension_semantics = [#tpu.dimension_semantics<parallel>], iteration_bounds = array<i64: 2>, scalar_prefetch = 0 : i64, scratch_operands = 0 : i64, tpu.core_type = #tpu.core_type<tc>, window_params = [{transform_indices = @transform_0, window_bounds = array<i64: 1, 20, 320>}, {pipeline_mode = #tpu.pipeline_mode<synchronous>, transform_indices = @transform_1, window_bounds = array<i64: 9, 256>}, {pipeline_mode = #tpu.pipeline_mode<synchronous>, transform_indices = @transform_2, window_bounds = array<i64: 25, 256>}, {pipeline_mode = #tpu.pipeline_mode<synchronous>, transform_indices = @transform_3, window_bounds = array<i64: 4, 256>}, {transform_indices = @transform_4, window_bounds = array<i64: 1, 16, 256>}, {transform_indices = @transform_5, window_bounds = array<i64: 1, 16, 256>}, {transform_indices = @transform_6, window_bounds = array<i64: 1, 1, 256>}]} {
    %c0 = arith.constant 0 : index
    %c0_0 = arith.constant 0 : index
    %c0_1 = arith.constant 0 : index
    %0 = vector.load %arg1[%c0, %c0_0, %c0_1] : memref<1x20x320xf32, #tpu.memory_space<vmem>>, vector<1x20x320xf32>
    %1 = vector.shape_cast %0 : vector<1x20x320xf32> to vector<20x320xf32>
    %cst = arith.constant 0.000000e+00 : f32
    %2 = vector.broadcast %cst : f32 to vector<16x256xf32>
    %3 = vector.extract_strided_slice %1 {offsets = [1, 16], sizes = [16, 256], strides = [1, 1]} : vector<20x320xf32> to vector<16x256xf32>
    %c0_2 = arith.constant 0 : index
    %c0_3 = arith.constant 0 : index
    %4 = vector.load %arg2[%c0_2, %c0_3] : memref<9x256xf32, #tpu.memory_space<vmem>>, vector<1x256xf32>
    %5 = vector.broadcast %4 : vector<1x256xf32> to vector<16x256xf32>
    %6 = arith.mulf %3, %5 : vector<16x256xf32>
    %7 = arith.addf %2, %6 : vector<16x256xf32>
    %8 = vector.extract_strided_slice %1 {offsets = [1, 32], sizes = [16, 256], strides = [1, 1]} : vector<20x320xf32> to vector<16x256xf32>
    %c1 = arith.constant 1 : index
    %c0_4 = arith.constant 0 : index
    %9 = vector.load %arg2[%c1, %c0_4] : memref<9x256xf32, #tpu.memory_space<vmem>>, vector<1x256xf32>
    %10 = vector.broadcast %9 : vector<1x256xf32> to vector<16x256xf32>
    %11 = arith.mulf %8, %10 : vector<16x256xf32>
    %12 = arith.addf %7, %11 : vector<16x256xf32>
    %13 = vector.extract_strided_slice %1 {offsets = [1, 48], sizes = [16, 256], strides = [1, 1]} : vector<20x320xf32> to vector<16x256xf32>
    %c2 = arith.constant 2 : index
    %c0_5 = arith.constant 0 : index
    %14 = vector.load %arg2[%c2, %c0_5] : memref<9x256xf32, #tpu.memory_space<vmem>>, vector<1x256xf32>
    %15 = vector.broadcast %14 : vector<1x256xf32> to vector<16x256xf32>
    %16 = arith.mulf %13, %15 : vector<16x256xf32>
    %17 = arith.addf %12, %16 : vector<16x256xf32>
    %18 = vector.extract_strided_slice %1 {offsets = [2, 16], sizes = [16, 256], strides = [1, 1]} : vector<20x320xf32> to vector<16x256xf32>
    %c3 = arith.constant 3 : index
    %c0_6 = arith.constant 0 : index
    %19 = vector.load %arg2[%c3, %c0_6] : memref<9x256xf32, #tpu.memory_space<vmem>>, vector<1x256xf32>
    %20 = vector.broadcast %19 : vector<1x256xf32> to vector<16x256xf32>
    %21 = arith.mulf %18, %20 : vector<16x256xf32>
    %22 = arith.addf %17, %21 : vector<16x256xf32>
    %23 = vector.extract_strided_slice %1 {offsets = [2, 32], sizes = [16, 256], strides = [1, 1]} : vector<20x320xf32> to vector<16x256xf32>
    %c4 = arith.constant 4 : index
    %c0_7 = arith.constant 0 : index
    %24 = vector.load %arg2[%c4, %c0_7] : memref<9x256xf32, #tpu.memory_space<vmem>>, vector<1x256xf32>
    %25 = vector.broadcast %24 : vector<1x256xf32> to vector<16x256xf32>
    %26 = arith.mulf %23, %25 : vector<16x256xf32>
    %27 = arith.addf %22, %26 : vector<16x256xf32>
    %28 = vector.extract_strided_slice %1 {offsets = [2, 48], sizes = [16, 256], strides = [1, 1]} : vector<20x320xf32> to vector<16x256xf32>
    %c5 = arith.constant 5 : index
    %c0_8 = arith.constant 0 : index
    %29 = vector.load %arg2[%c5, %c0_8] : memref<9x256xf32, #tpu.memory_space<vmem>>, vector<1x256xf32>
    %30 = vector.broadcast %29 : vector<1x256xf32> to vector<16x256xf32>
    %31 = arith.mulf %28, %30 : vector<16x256xf32>
    %32 = arith.addf %27, %31 : vector<16x256xf32>
    %33 = vector.extract_strided_slice %1 {offsets = [3, 16], sizes = [16, 256], strides = [1, 1]} : vector<20x320xf32> to vector<16x256xf32>
    %c6 = arith.constant 6 : index
    %c0_9 = arith.constant 0 : index
    %34 = vector.load %arg2[%c6, %c0_9] : memref<9x256xf32, #tpu.memory_space<vmem>>, vector<1x256xf32>
    %35 = vector.broadcast %34 : vector<1x256xf32> to vector<16x256xf32>
    %36 = arith.mulf %33, %35 : vector<16x256xf32>
    %37 = arith.addf %32, %36 : vector<16x256xf32>
    %38 = vector.extract_strided_slice %1 {offsets = [3, 32], sizes = [16, 256], strides = [1, 1]} : vector<20x320xf32> to vector<16x256xf32>
    %c7 = arith.constant 7 : index
    %c0_10 = arith.constant 0 : index
    %39 = vector.load %arg2[%c7, %c0_10] : memref<9x256xf32, #tpu.memory_space<vmem>>, vector<1x256xf32>
    %40 = vector.broadcast %39 : vector<1x256xf32> to vector<16x256xf32>
    %41 = arith.mulf %38, %40 : vector<16x256xf32>
    %42 = arith.addf %37, %41 : vector<16x256xf32>
    %43 = vector.extract_strided_slice %1 {offsets = [3, 48], sizes = [16, 256], strides = [1, 1]} : vector<20x320xf32> to vector<16x256xf32>
    %c8 = arith.constant 8 : index
    %c0_11 = arith.constant 0 : index
    %44 = vector.load %arg2[%c8, %c0_11] : memref<9x256xf32, #tpu.memory_space<vmem>>, vector<1x256xf32>
    %45 = vector.broadcast %44 : vector<1x256xf32> to vector<16x256xf32>
    %46 = arith.mulf %43, %45 : vector<16x256xf32>
    %47 = arith.addf %42, %46 : vector<16x256xf32>
    %c0_12 = arith.constant 0 : index
    %c0_13 = arith.constant 0 : index
    %48 = vector.load %arg4[%c0_12, %c0_13] : memref<4x256xf32, #tpu.memory_space<vmem>>, vector<1x256xf32>
    %49 = vector.broadcast %48 : vector<1x256xf32> to vector<16x256xf32>
    %50 = arith.mulf %47, %49 : vector<16x256xf32>
    %c1_14 = arith.constant 1 : index
    %c0_15 = arith.constant 0 : index
    %51 = vector.load %arg4[%c1_14, %c0_15] : memref<4x256xf32, #tpu.memory_space<vmem>>, vector<1x256xf32>
    %52 = vector.broadcast %51 : vector<1x256xf32> to vector<16x256xf32>
    %53 = arith.addf %50, %52 : vector<16x256xf32>
    %cst_16 = arith.constant 0.000000e+00 : f32
    %54 = vector.broadcast %cst_16 : f32 to vector<16x256xf32>
    %55 = arith.maximumf %53, %54 : vector<16x256xf32>
    %56 = arith.truncf %55 : vector<16x256xf32> to vector<16x256xbf16>
    %c0_17 = arith.constant 0 : index
    %c0_18 = arith.constant 0 : index
    %c0_19 = arith.constant 0 : index
    %57 = vector.load %arg5[%c0_17, %c0_18, %c0_19] : memref<1x16x256xbf16, #tpu.memory_space<vmem>>, vector<1x16x256xbf16>
    %58 = vector.shape_cast %57 : vector<1x16x256xbf16> to vector<16x256xbf16>
    %59 = vector.shape_cast %56 : vector<16x256xbf16> to vector<1x16x256xbf16>
    tpu.vector_store %arg5[%c0_17, %c0_18, %c0_19], %59 {strides = array<i32>} : memref<1x16x256xbf16, #tpu.memory_space<vmem>>, vector<1x16x256xbf16>,
    %cst_20 = arith.constant dense<0.000000e+00> : vector<256xf32>
    %60 = vector.multi_reduction <add>, %55, %cst_20 [0] : vector<16x256xf32> to vector<256xf32>
    %61 = vector.shape_cast %60 : vector<256xf32> to vector<1x256xf32>
    %cst_21 = arith.constant 0.000000e+00 : f32
    %62 = vector.broadcast %cst_21 : f32 to vector<16x256xf32>
    %63 = vector.extract_strided_slice %1 {offsets = [0, 0], sizes = [16, 256], strides = [1, 1]} : vector<20x320xf32> to vector<16x256xf32>
    %c0_22 = arith.constant 0 : index
    %c0_23 = arith.constant 0 : index
    %64 = vector.load %arg3[%c0_22, %c0_23] : memref<25x256xf32, #tpu.memory_space<vmem>>, vector<1x256xf32>
    %65 = vector.broadcast %64 : vector<1x256xf32> to vector<16x256xf32>
    %66 = arith.mulf %63, %65 : vector<16x256xf32>
    %67 = arith.addf %62, %66 : vector<16x256xf32>
    %68 = vector.extract_strided_slice %1 {offsets = [0, 16], sizes = [16, 256], strides = [1, 1]} : vector<20x320xf32> to vector<16x256xf32>
    %c1_24 = arith.constant 1 : index
    %c0_25 = arith.constant 0 : index
    %69 = vector.load %arg3[%c1_24, %c0_25] : memref<25x256xf32, #tpu.memory_space<vmem>>, vector<1x256xf32>
    %70 = vector.broadcast %69 : vector<1x256xf32> to vector<16x256xf32>
    %71 = arith.mulf %68, %70 : vector<16x256xf32>
    %72 = arith.addf %67, %71 : vector<16x256xf32>
    %73 = vector.extract_strided_slice %1 {offsets = [0, 32], sizes = [16, 256], strides = [1, 1]} : vector<20x320xf32> to vector<16x256xf32>
    %c2_26 = arith.constant 2 : index
    %c0_27 = arith.constant 0 : index
    %74 = vector.load %arg3[%c2_26, %c0_27] : memref<25x256xf32, #tpu.memory_space<vmem>>, vector<1x256xf32>
    %75 = vector.broadcast %74 : vector<1x256xf32> to vector<16x256xf32>
    %76 = arith.mulf %73, %75 : vector<16x256xf32>
    %77 = arith.addf %72, %76 : vector<16x256xf32>
    %78 = vector.extract_strided_slice %1 {offsets = [0, 48], sizes = [16, 256], strides = [1, 1]} : vector<20x320xf32> to vector<16x256xf32>
    %c3_28 = arith.constant 3 : index
    %c0_29 = arith.constant 0 : index
    %79 = vector.load %arg3[%c3_28, %c0_29] : memref<25x256xf32, #tpu.memory_space<vmem>>, vector<1x256xf32>
    %80 = vector.broadcast %79 : vector<1x256xf32> to vector<16x256xf32>
    %81 = arith.mulf %78, %80 : vector<16x256xf32>
    %82 = arith.addf %77, %81 : vector<16x256xf32>
    %83 = vector.extract_strided_slice %1 {offsets = [0, 64], sizes = [16, 256], strides = [1, 1]} : vector<20x320xf32> to vector<16x256xf32>
    %c4_30 = arith.constant 4 : index
    %c0_31 = arith.constant 0 : index
    %84 = vector.load %arg3[%c4_30, %c0_31] : memref<25x256xf32, #tpu.memory_space<vmem>>, vector<1x256xf32>
    %85 = vector.broadcast %84 : vector<1x256xf32> to vector<16x256xf32>
    %86 = arith.mulf %83, %85 : vector<16x256xf32>
    %87 = arith.addf %82, %86 : vector<16x256xf32>
    %88 = vector.extract_strided_slice %1 {offsets = [1, 0], sizes = [16, 256], strides = [1, 1]} : vector<20x320xf32> to vector<16x256xf32>
    %c5_32 = arith.constant 5 : index
    %c0_33 = arith.constant 0 : index
    %89 = vector.load %arg3[%c5_32, %c0_33] : memref<25x256xf32, #tpu.memory_space<vmem>>, vector<1x256xf32>
    %90 = vector.broadcast %89 : vector<1x256xf32> to vector<16x256xf32>
    %91 = arith.mulf %88, %90 : vector<16x256xf32>
    %92 = arith.addf %87, %91 : vector<16x256xf32>
    %93 = vector.extract_strided_slice %1 {offsets = [1, 16], sizes = [16, 256], strides = [1, 1]} : vector<20x320xf32> to vector<16x256xf32>
    %c6_34 = arith.constant 6 : index
    %c0_35 = arith.constant 0 : index
    %94 = vector.load %arg3[%c6_34, %c0_35] : memref<25x256xf32, #tpu.memory_space<vmem>>, vector<1x256xf32>
    %95 = vector.broadcast %94 : vector<1x256xf32> to vector<16x256xf32>
    %96 = arith.mulf %93, %95 : vector<16x256xf32>
    %97 = arith.addf %92, %96 : vector<16x256xf32>
    %98 = vector.extract_strided_slice %1 {offsets = [1, 32], sizes = [16, 256], strides = [1, 1]} : vector<20x320xf32> to vector<16x256xf32>
    %c7_36 = arith.constant 7 : index
    %c0_37 = arith.constant 0 : index
    %99 = vector.load %arg3[%c7_36, %c0_37] : memref<25x256xf32, #tpu.memory_space<vmem>>, vector<1x256xf32>
    %100 = vector.broadcast %99 : vector<1x256xf32> to vector<16x256xf32>
    %101 = arith.mulf %98, %100 : vector<16x256xf32>
    %102 = arith.addf %97, %101 : vector<16x256xf32>
    %103 = vector.extract_strided_slice %1 {offsets = [1, 48], sizes = [16, 256], strides = [1, 1]} : vector<20x320xf32> to vector<16x256xf32>
    %c8_38 = arith.constant 8 : index
    %c0_39 = arith.constant 0 : index
    %104 = vector.load %arg3[%c8_38, %c0_39] : memref<25x256xf32, #tpu.memory_space<vmem>>, vector<1x256xf32>
    %105 = vector.broadcast %104 : vector<1x256xf32> to vector<16x256xf32>
    %106 = arith.mulf %103, %105 : vector<16x256xf32>
    %107 = arith.addf %102, %106 : vector<16x256xf32>
    %108 = vector.extract_strided_slice %1 {offsets = [1, 64], sizes = [16, 256], strides = [1, 1]} : vector<20x320xf32> to vector<16x256xf32>
    %c9 = arith.constant 9 : index
    %c0_40 = arith.constant 0 : index
    %109 = vector.load %arg3[%c9, %c0_40] : memref<25x256xf32, #tpu.memory_space<vmem>>, vector<1x256xf32>
    %110 = vector.broadcast %109 : vector<1x256xf32> to vector<16x256xf32>
    %111 = arith.mulf %108, %110 : vector<16x256xf32>
    %112 = arith.addf %107, %111 : vector<16x256xf32>
    %113 = vector.extract_strided_slice %1 {offsets = [2, 0], sizes = [16, 256], strides = [1, 1]} : vector<20x320xf32> to vector<16x256xf32>
    %c10 = arith.constant 10 : index
    %c0_41 = arith.constant 0 : index
    %114 = vector.load %arg3[%c10, %c0_41] : memref<25x256xf32, #tpu.memory_space<vmem>>, vector<1x256xf32>
    %115 = vector.broadcast %114 : vector<1x256xf32> to vector<16x256xf32>
    %116 = arith.mulf %113, %115 : vector<16x256xf32>
    %117 = arith.addf %112, %116 : vector<16x256xf32>
    %118 = vector.extract_strided_slice %1 {offsets = [2, 16], sizes = [16, 256], strides = [1, 1]} : vector<20x320xf32> to vector<16x256xf32>
    %c11 = arith.constant 11 : index
    %c0_42 = arith.constant 0 : index
    %119 = vector.load %arg3[%c11, %c0_42] : memref<25x256xf32, #tpu.memory_space<vmem>>, vector<1x256xf32>
    %120 = vector.broadcast %119 : vector<1x256xf32> to vector<16x256xf32>
    %121 = arith.mulf %118, %120 : vector<16x256xf32>
    %122 = arith.addf %117, %121 : vector<16x256xf32>
    %123 = vector.extract_strided_slice %1 {offsets = [2, 32], sizes = [16, 256], strides = [1, 1]} : vector<20x320xf32> to vector<16x256xf32>
    %c12 = arith.constant 12 : index
    %c0_43 = arith.constant 0 : index
    %124 = vector.load %arg3[%c12, %c0_43] : memref<25x256xf32, #tpu.memory_space<vmem>>, vector<1x256xf32>
    %125 = vector.broadcast %124 : vector<1x256xf32> to vector<16x256xf32>
    %126 = arith.mulf %123, %125 : vector<16x256xf32>
    %127 = arith.addf %122, %126 : vector<16x256xf32>
    %128 = vector.extract_strided_slice %1 {offsets = [2, 48], sizes = [16, 256], strides = [1, 1]} : vector<20x320xf32> to vector<16x256xf32>
    %c13 = arith.constant 13 : index
    %c0_44 = arith.constant 0 : index
    %129 = vector.load %arg3[%c13, %c0_44] : memref<25x256xf32, #tpu.memory_space<vmem>>, vector<1x256xf32>
    %130 = vector.broadcast %129 : vector<1x256xf32> to vector<16x256xf32>
    %131 = arith.mulf %128, %130 : vector<16x256xf32>
    %132 = arith.addf %127, %131 : vector<16x256xf32>
    %133 = vector.extract_strided_slice %1 {offsets = [2, 64], sizes = [16, 256], strides = [1, 1]} : vector<20x320xf32> to vector<16x256xf32>
    %c14 = arith.constant 14 : index
    %c0_45 = arith.constant 0 : index
    %134 = vector.load %arg3[%c14, %c0_45] : memref<25x256xf32, #tpu.memory_space<vmem>>, vector<1x256xf32>
    %135 = vector.broadcast %134 : vector<1x256xf32> to vector<16x256xf32>
    %136 = arith.mulf %133, %135 : vector<16x256xf32>
    %137 = arith.addf %132, %136 : vector<16x256xf32>
    %138 = vector.extract_strided_slice %1 {offsets = [3, 0], sizes = [16, 256], strides = [1, 1]} : vector<20x320xf32> to vector<16x256xf32>
    %c15 = arith.constant 15 : index
    %c0_46 = arith.constant 0 : index
    %139 = vector.load %arg3[%c15, %c0_46] : memref<25x256xf32, #tpu.memory_space<vmem>>, vector<1x256xf32>
    %140 = vector.broadcast %139 : vector<1x256xf32> to vector<16x256xf32>
    %141 = arith.mulf %138, %140 : vector<16x256xf32>
    %142 = arith.addf %137, %141 : vector<16x256xf32>
    %143 = vector.extract_strided_slice %1 {offsets = [3, 16], sizes = [16, 256], strides = [1, 1]} : vector<20x320xf32> to vector<16x256xf32>
    %c16 = arith.constant 16 : index
    %c0_47 = arith.constant 0 : index
    %144 = vector.load %arg3[%c16, %c0_47] : memref<25x256xf32, #tpu.memory_space<vmem>>, vector<1x256xf32>
    %145 = vector.broadcast %144 : vector<1x256xf32> to vector<16x256xf32>
    %146 = arith.mulf %143, %145 : vector<16x256xf32>
    %147 = arith.addf %142, %146 : vector<16x256xf32>
    %148 = vector.extract_strided_slice %1 {offsets = [3, 32], sizes = [16, 256], strides = [1, 1]} : vector<20x320xf32> to vector<16x256xf32>
    %c17 = arith.constant 17 : index
    %c0_48 = arith.constant 0 : index
    %149 = vector.load %arg3[%c17, %c0_48] : memref<25x256xf32, #tpu.memory_space<vmem>>, vector<1x256xf32>
    %150 = vector.broadcast %149 : vector<1x256xf32> to vector<16x256xf32>
    %151 = arith.mulf %148, %150 : vector<16x256xf32>
    %152 = arith.addf %147, %151 : vector<16x256xf32>
    %153 = vector.extract_strided_slice %1 {offsets = [3, 48], sizes = [16, 256], strides = [1, 1]} : vector<20x320xf32> to vector<16x256xf32>
    %c18 = arith.constant 18 : index
    %c0_49 = arith.constant 0 : index
    %154 = vector.load %arg3[%c18, %c0_49] : memref<25x256xf32, #tpu.memory_space<vmem>>, vector<1x256xf32>
    %155 = vector.broadcast %154 : vector<1x256xf32> to vector<16x256xf32>
    %156 = arith.mulf %153, %155 : vector<16x256xf32>
    %157 = arith.addf %152, %156 : vector<16x256xf32>
    %158 = vector.extract_strided_slice %1 {offsets = [3, 64], sizes = [16, 256], strides = [1, 1]} : vector<20x320xf32> to vector<16x256xf32>
    %c19 = arith.constant 19 : index
    %c0_50 = arith.constant 0 : index
    %159 = vector.load %arg3[%c19, %c0_50] : memref<25x256xf32, #tpu.memory_space<vmem>>, vector<1x256xf32>
    %160 = vector.broadcast %159 : vector<1x256xf32> to vector<16x256xf32>
    %161 = arith.mulf %158, %160 : vector<16x256xf32>
    %162 = arith.addf %157, %161 : vector<16x256xf32>
    %163 = vector.extract_strided_slice %1 {offsets = [4, 0], sizes = [16, 256], strides = [1, 1]} : vector<20x320xf32> to vector<16x256xf32>
    %c20 = arith.constant 20 : index
    %c0_51 = arith.constant 0 : index
    %164 = vector.load %arg3[%c20, %c0_51] : memref<25x256xf32, #tpu.memory_space<vmem>>, vector<1x256xf32>
    %165 = vector.broadcast %164 : vector<1x256xf32> to vector<16x256xf32>
    %166 = arith.mulf %163, %165 : vector<16x256xf32>
    %167 = arith.addf %162, %166 : vector<16x256xf32>
    %168 = vector.extract_strided_slice %1 {offsets = [4, 16], sizes = [16, 256], strides = [1, 1]} : vector<20x320xf32> to vector<16x256xf32>
    %c21 = arith.constant 21 : index
    %c0_52 = arith.constant 0 : index
    %169 = vector.load %arg3[%c21, %c0_52] : memref<25x256xf32, #tpu.memory_space<vmem>>, vector<1x256xf32>
    %170 = vector.broadcast %169 : vector<1x256xf32> to vector<16x256xf32>
    %171 = arith.mulf %168, %170 : vector<16x256xf32>
    %172 = arith.addf %167, %171 : vector<16x256xf32>
    %173 = vector.extract_strided_slice %1 {offsets = [4, 32], sizes = [16, 256], strides = [1, 1]} : vector<20x320xf32> to vector<16x256xf32>
    %c22 = arith.constant 22 : index
    %c0_53 = arith.constant 0 : index
    %174 = vector.load %arg3[%c22, %c0_53] : memref<25x256xf32, #tpu.memory_space<vmem>>, vector<1x256xf32>
    %175 = vector.broadcast %174 : vector<1x256xf32> to vector<16x256xf32>
    %176 = arith.mulf %173, %175 : vector<16x256xf32>
    %177 = arith.addf %172, %176 : vector<16x256xf32>
    %178 = vector.extract_strided_slice %1 {offsets = [4, 48], sizes = [16, 256], strides = [1, 1]} : vector<20x320xf32> to vector<16x256xf32>
    %c23 = arith.constant 23 : index
    %c0_54 = arith.constant 0 : index
    %179 = vector.load %arg3[%c23, %c0_54] : memref<25x256xf32, #tpu.memory_space<vmem>>, vector<1x256xf32>
    %180 = vector.broadcast %179 : vector<1x256xf32> to vector<16x256xf32>
    %181 = arith.mulf %178, %180 : vector<16x256xf32>
    %182 = arith.addf %177, %181 : vector<16x256xf32>
    %183 = vector.extract_strided_slice %1 {offsets = [4, 64], sizes = [16, 256], strides = [1, 1]} : vector<20x320xf32> to vector<16x256xf32>
    %c24 = arith.constant 24 : index
    %c0_55 = arith.constant 0 : index
    %184 = vector.load %arg3[%c24, %c0_55] : memref<25x256xf32, #tpu.memory_space<vmem>>, vector<1x256xf32>
    %185 = vector.broadcast %184 : vector<1x256xf32> to vector<16x256xf32>
    %186 = arith.mulf %183, %185 : vector<16x256xf32>
    %187 = arith.addf %182, %186 : vector<16x256xf32>
    %c2_56 = arith.constant 2 : index
    %c0_57 = arith.constant 0 : index
    %188 = vector.load %arg4[%c2_56, %c0_57] : memref<4x256xf32, #tpu.memory_space<vmem>>, vector<1x256xf32>
    %189 = vector.broadcast %188 : vector<1x256xf32> to vector<16x256xf32>
    %190 = arith.mulf %187, %189 : vector<16x256xf32>
    %c3_58 = arith.constant 3 : index
    %c0_59 = arith.constant 0 : index
    %191 = vector.load %arg4[%c3_58, %c0_59] : memref<4x256xf32, #tpu.memory_space<vmem>>, vector<1x256xf32>
    %192 = vector.broadcast %191 : vector<1x256xf32> to vector<16x256xf32>
    %193 = arith.addf %190, %192 : vector<16x256xf32>
    %cst_60 = arith.constant 0.000000e+00 : f32
    %194 = vector.broadcast %cst_60 : f32 to vector<16x256xf32>
    %195 = arith.maximumf %193, %194 : vector<16x256xf32>
    %196 = arith.truncf %195 : vector<16x256xf32> to vector<16x256xbf16>
    %c0_61 = arith.constant 0 : index
    %c0_62 = arith.constant 0 : index
    %c0_63 = arith.constant 0 : index
    %197 = vector.load %arg6[%c0_61, %c0_62, %c0_63] : memref<1x16x256xbf16, #tpu.memory_space<vmem>>, vector<1x16x256xbf16>
    %198 = vector.shape_cast %197 : vector<1x16x256xbf16> to vector<16x256xbf16>
    %199 = vector.shape_cast %196 : vector<16x256xbf16> to vector<1x16x256xbf16>
    tpu.vector_store %arg6[%c0_61, %c0_62, %c0_63], %199 {strides = array<i32>} : memref<1x16x256xbf16, #tpu.memory_space<vmem>>, vector<1x16x256xbf16>,
    %cst_64 = arith.constant dense<0.000000e+00> : vector<256xf32>
    %200 = vector.multi_reduction <add>, %195, %cst_64 [0] : vector<16x256xf32> to vector<256xf32>
    %201 = vector.shape_cast %200 : vector<256xf32> to vector<1x256xf32>
    %202 = arith.addf %61, %201 : vector<1x256xf32>
    %c0_65 = arith.constant 0 : index
    %c0_66 = arith.constant 0 : index
    %c0_67 = arith.constant 0 : index
    %203 = vector.load %arg7[%c0_65, %c0_66, %c0_67] : memref<1x1x256xf32, #tpu.memory_space<vmem>>, vector<1x1x256xf32>
    %204 = vector.shape_cast %203 : vector<1x1x256xf32> to vector<1x256xf32>
    %205 = vector.shape_cast %202 : vector<1x256xf32> to vector<1x1x256xf32>
    tpu.vector_store %arg7[%c0_65, %c0_66, %c0_67], %205 {strides = array<i32>} : memref<1x1x256xf32, #tpu.memory_space<vmem>>, vector<1x1x256xf32>,
    return
  }
  func.func @transform_0(%arg0: i32) -> (i32, i32, i32) {
    %c0_i32 = arith.constant 0 : i32
    %c0_i32_0 = arith.constant 0 : i32
    %c0_i32_1 = arith.constant 0 : i32
    return %arg0, %c0_i32, %c0_i32_0 : i32, i32, i32
  }
  func.func @transform_1(%arg0: i32) -> (i32, i32) {
    %c0_i32 = arith.constant 0 : i32
    %c0_i32_0 = arith.constant 0 : i32
    %c0_i32_1 = arith.constant 0 : i32
    return %c0_i32, %c0_i32_0 : i32, i32
  }
  func.func @transform_2(%arg0: i32) -> (i32, i32) {
    %c0_i32 = arith.constant 0 : i32
    %c0_i32_0 = arith.constant 0 : i32
    %c0_i32_1 = arith.constant 0 : i32
    return %c0_i32, %c0_i32_0 : i32, i32
  }
  func.func @transform_3(%arg0: i32) -> (i32, i32) {
    %c0_i32 = arith.constant 0 : i32
    %c0_i32_0 = arith.constant 0 : i32
    %c0_i32_1 = arith.constant 0 : i32
    return %c0_i32, %c0_i32_0 : i32, i32
  }
  func.func @transform_4(%arg0: i32) -> (i32, i32, i32) {
    %c0_i32 = arith.constant 0 : i32
    %c0_i32_0 = arith.constant 0 : i32
    %c0_i32_1 = arith.constant 0 : i32
    return %arg0, %c0_i32, %c0_i32_0 : i32, i32, i32
  }
  func.func @transform_5(%arg0: i32) -> (i32, i32, i32) {
    %c0_i32 = arith.constant 0 : i32
    %c0_i32_0 = arith.constant 0 : i32
    %c0_i32_1 = arith.constant 0 : i32
    return %arg0, %c0_i32, %c0_i32_0 : i32, i32, i32
  }
  func.func @transform_6(%arg0: i32) -> (i32, i32, i32) {
    %c0_i32 = arith.constant 0 : i32
    %c0_i32_0 = arith.constant 0 : i32
    %c0_i32_1 = arith.constant 0 : i32
    return %arg0, %c0_i32, %c0_i32_0 : i32, i32, i32
  }
}

module attributes {stable_mosaic.version = 11 : i64} {
  func.func @_sk_combine_conv_kernel(%arg0: i32, %arg1: i32, %arg2: memref<1x256x16xbf16, #tpu.memory_space<vmem>>, %arg3: memref<1x256x16xbf16, #tpu.memory_space<vmem>>, %arg4: memref<1x1x32xf32, #tpu.memory_space<vmem>>, %arg5: memref<16x128xbf16, #tpu.memory_space<vmem>>, %arg6: memref<1x128xf32, #tpu.memory_space<vmem>>, %arg7: memref<1x256x128xbf16, #tpu.memory_space<vmem>>) attributes {dimension_semantics = [#tpu.dimension_semantics<parallel>, #tpu.dimension_semantics<parallel>], iteration_bounds = array<i64: 2, 1>, scalar_prefetch = 0 : i64, scratch_operands = 0 : i64, tpu.core_type = #tpu.core_type<tc>, window_params = [{transform_indices = @transform_0, window_bounds = array<i64: 1, 256, 16>}, {transform_indices = @transform_1, window_bounds = array<i64: 1, 256, 16>}, {transform_indices = @transform_2, window_bounds = array<i64: 1, 1, 32>}, {pipeline_mode = #tpu.pipeline_mode<synchronous>, transform_indices = @transform_3, window_bounds = array<i64: 16, 128>}, {pipeline_mode = #tpu.pipeline_mode<synchronous>, transform_indices = @transform_4, window_bounds = array<i64: 1, 128>}, {transform_indices = @transform_5, window_bounds = array<i64: 1, 256, 128>}]} {
    %c0 = arith.constant 0 : index
    %c0_0 = arith.constant 0 : index
    %c0_1 = arith.constant 0 : index
    %0 = vector.load %arg4[%c0, %c0_0, %c0_1] : memref<1x1x32xf32, #tpu.memory_space<vmem>>, vector<1x1x32xf32>
    %1 = vector.shape_cast %0 : vector<1x1x32xf32> to vector<1x32xf32>
    %c0_2 = arith.constant 0 : index
    %c0_3 = arith.constant 0 : index
    %c0_4 = arith.constant 0 : index
    %2 = vector.load %arg2[%c0_2, %c0_3, %c0_4] : memref<1x256x16xbf16, #tpu.memory_space<vmem>>, vector<1x256x16xbf16>
    %3 = vector.shape_cast %2 : vector<1x256x16xbf16> to vector<256x16xbf16>
    %4 = arith.extf %3 : vector<256x16xbf16> to vector<256x16xf32>
    %5 = vector.extract_strided_slice %1 {offsets = [0, 0], sizes = [1, 16], strides = [1, 1]} : vector<1x32xf32> to vector<1x16xf32>
    %6 = vector.broadcast %5 : vector<1x16xf32> to vector<256x16xf32>
    %7 = arith.mulf %4, %6 : vector<256x16xf32>
    %c0_5 = arith.constant 0 : index
    %c0_6 = arith.constant 0 : index
    %c0_7 = arith.constant 0 : index
    %8 = vector.load %arg3[%c0_5, %c0_6, %c0_7] : memref<1x256x16xbf16, #tpu.memory_space<vmem>>, vector<1x256x16xbf16>
    %9 = vector.shape_cast %8 : vector<1x256x16xbf16> to vector<256x16xbf16>
    %10 = arith.extf %9 : vector<256x16xbf16> to vector<256x16xf32>
    %11 = vector.extract_strided_slice %1 {offsets = [0, 16], sizes = [1, 16], strides = [1, 1]} : vector<1x32xf32> to vector<1x16xf32>
    %12 = vector.broadcast %11 : vector<1x16xf32> to vector<256x16xf32>
    %13 = arith.mulf %10, %12 : vector<256x16xf32>
    %14 = arith.addf %7, %13 : vector<256x16xf32>
    %15 = arith.truncf %14 : vector<256x16xf32> to vector<256x16xbf16>
    %c0_8 = arith.constant 0 : index
    %c0_9 = arith.constant 0 : index
    %16 = vector.load %arg5[%c0_8, %c0_9] : memref<16x128xbf16, #tpu.memory_space<vmem>>, vector<16x128xbf16>
    %cst = arith.constant dense<0.000000e+00> : vector<256x128xf32>
    %17 = tpu.matmul %15, %16, %cst {dimension_numbers = #tpu.dot_dimension_numbers<[1], [0], [0], [1], [0, 0, 1, 1], [], []>} : vector<256x16xbf16>, vector<16x128xbf16>, vector<256x128xf32> -> vector<256x128xf32>
    %c0_10 = arith.constant 0 : index
    %c0_11 = arith.constant 0 : index
    %18 = vector.load %arg6[%c0_10, %c0_11] : memref<1x128xf32, #tpu.memory_space<vmem>>, vector<1x128xf32>
    %19 = vector.broadcast %18 : vector<1x128xf32> to vector<256x128xf32>
    %20 = arith.addf %17, %19 : vector<256x128xf32>
    %21 = arith.truncf %20 : vector<256x128xf32> to vector<256x128xbf16>
    %c0_12 = arith.constant 0 : index
    %c0_13 = arith.constant 0 : index
    %c0_14 = arith.constant 0 : index
    %22 = vector.load %arg7[%c0_12, %c0_13, %c0_14] : memref<1x256x128xbf16, #tpu.memory_space<vmem>>, vector<1x256x128xbf16>
    %23 = vector.shape_cast %22 : vector<1x256x128xbf16> to vector<256x128xbf16>
    %24 = vector.shape_cast %21 : vector<256x128xbf16> to vector<1x256x128xbf16>
    tpu.vector_store %arg7[%c0_12, %c0_13, %c0_14], %24 {strides = array<i32>} : memref<1x256x128xbf16, #tpu.memory_space<vmem>>, vector<1x256x128xbf16>,
    return
  }
  func.func @transform_0(%arg0: i32, %arg1: i32) -> (i32, i32, i32) {
    %c0_i32 = arith.constant 0 : i32
    %c0_i32_0 = arith.constant 0 : i32
    return %arg0, %arg1, %c0_i32 : i32, i32, i32
  }
  func.func @transform_1(%arg0: i32, %arg1: i32) -> (i32, i32, i32) {
    %c0_i32 = arith.constant 0 : i32
    %c0_i32_0 = arith.constant 0 : i32
    return %arg0, %arg1, %c0_i32 : i32, i32, i32
  }
  func.func @transform_2(%arg0: i32, %arg1: i32) -> (i32, i32, i32) {
    %c0_i32 = arith.constant 0 : i32
    %c0_i32_0 = arith.constant 0 : i32
    %c0_i32_1 = arith.constant 0 : i32
    return %arg0, %c0_i32, %c0_i32_0 : i32, i32, i32
  }
  func.func @transform_3(%arg0: i32, %arg1: i32) -> (i32, i32) {
    %c0_i32 = arith.constant 0 : i32
    %c0_i32_0 = arith.constant 0 : i32
    %c0_i32_1 = arith.constant 0 : i32
    return %c0_i32, %c0_i32_0 : i32, i32
  }
  func.func @transform_4(%arg0: i32, %arg1: i32) -> (i32, i32) {
    %c0_i32 = arith.constant 0 : i32
    %c0_i32_0 = arith.constant 0 : i32
    %c0_i32_1 = arith.constant 0 : i32
    return %c0_i32, %c0_i32_0 : i32, i32
  }
  func.func @transform_5(%arg0: i32, %arg1: i32) -> (i32, i32, i32) {
    %c0_i32 = arith.constant 0 : i32
    %c0_i32_0 = arith.constant 0 : i32
    return %arg0, %arg1, %c0_i32 : i32, i32, i32
  }
}

module attributes {stable_mosaic.version = 11 : i64} {
  func.func @_matmul_bias_act_kernel(%arg0: i32, %arg1: memref<64x576xbf16, #tpu.memory_space<vmem>>, %arg2: memref<576x128xbf16, #tpu.memory_space<vmem>>, %arg3: memref<1x128xf32, #tpu.memory_space<vmem>>, %arg4: memref<1x128xf32, #tpu.memory_space<vmem>>, %arg5: memref<64x128xbf16, #tpu.memory_space<vmem>>) attributes {dimension_semantics = [#tpu.dimension_semantics<parallel>], iteration_bounds = array<i64: 2>, scalar_prefetch = 0 : i64, scratch_operands = 0 : i64, tpu.core_type = #tpu.core_type<tc>, window_params = [{transform_indices = @transform_0, window_bounds = array<i64: 64, 576>}, {pipeline_mode = #tpu.pipeline_mode<synchronous>, transform_indices = @transform_1, window_bounds = array<i64: 576, 128>}, {pipeline_mode = #tpu.pipeline_mode<synchronous>, transform_indices = @transform_2, window_bounds = array<i64: 1, 128>}, {pipeline_mode = #tpu.pipeline_mode<synchronous>, transform_indices = @transform_3, window_bounds = array<i64: 1, 128>}, {transform_indices = @transform_4, window_bounds = array<i64: 64, 128>}]} {
    %c0 = arith.constant 0 : index
    %c0_0 = arith.constant 0 : index
    %0 = vector.load %arg1[%c0, %c0_0] : memref<64x576xbf16, #tpu.memory_space<vmem>>, vector<64x576xbf16>
    %c0_1 = arith.constant 0 : index
    %c0_2 = arith.constant 0 : index
    %1 = vector.load %arg2[%c0_1, %c0_2] : memref<576x128xbf16, #tpu.memory_space<vmem>>, vector<576x128xbf16>
    %cst = arith.constant dense<0.000000e+00> : vector<64x128xf32>
    %2 = tpu.matmul %0, %1, %cst {dimension_numbers = #tpu.dot_dimension_numbers<[1], [0], [0], [1], [0, 0, 1, 1], [], []>} : vector<64x576xbf16>, vector<576x128xbf16>, vector<64x128xf32> -> vector<64x128xf32>
    %c0_3 = arith.constant 0 : index
    %c0_4 = arith.constant 0 : index
    %3 = vector.load %arg3[%c0_3, %c0_4] : memref<1x128xf32, #tpu.memory_space<vmem>>, vector<1x128xf32>
    %4 = vector.broadcast %3 : vector<1x128xf32> to vector<64x128xf32>
    %5 = arith.addf %2, %4 : vector<64x128xf32>
    %cst_5 = arith.constant 0.000000e+00 : f32
    %6 = vector.broadcast %cst_5 : f32 to vector<64x128xf32>
    %7 = arith.cmpf oge, %5, %6 : vector<64x128xf32>
    %c0_6 = arith.constant 0 : index
    %c0_7 = arith.constant 0 : index
    %8 = vector.load %arg4[%c0_6, %c0_7] : memref<1x128xf32, #tpu.memory_space<vmem>>, vector<1x128xf32>
    %9 = vector.broadcast %8 : vector<1x128xf32> to vector<64x128xf32>
    %10 = arith.mulf %9, %5 : vector<64x128xf32>
    %11 = arith.select %7, %5, %10 : vector<64x128xi1>, vector<64x128xf32>
    %12 = arith.truncf %11 : vector<64x128xf32> to vector<64x128xbf16>
    %c0_8 = arith.constant 0 : index
    %c0_9 = arith.constant 0 : index
    %13 = vector.load %arg5[%c0_8, %c0_9] : memref<64x128xbf16, #tpu.memory_space<vmem>>, vector<64x128xbf16>
    tpu.vector_store %arg5[%c0_8, %c0_9], %12 {strides = array<i32>} : memref<64x128xbf16, #tpu.memory_space<vmem>>, vector<64x128xbf16>,
    return
  }
  func.func @transform_0(%arg0: i32) -> (i32, i32) {
    %c0_i32 = arith.constant 0 : i32
    %c0_i32_0 = arith.constant 0 : i32
    return %arg0, %c0_i32 : i32, i32
  }
  func.func @transform_1(%arg0: i32) -> (i32, i32) {
    %c0_i32 = arith.constant 0 : i32
    %c0_i32_0 = arith.constant 0 : i32
    %c0_i32_1 = arith.constant 0 : i32
    return %c0_i32, %c0_i32_0 : i32, i32
  }
  func.func @transform_2(%arg0: i32) -> (i32, i32) {
    %c0_i32 = arith.constant 0 : i32
    %c0_i32_0 = arith.constant 0 : i32
    %c0_i32_1 = arith.constant 0 : i32
    return %c0_i32, %c0_i32_0 : i32, i32
  }
  func.func @transform_3(%arg0: i32) -> (i32, i32) {
    %c0_i32 = arith.constant 0 : i32
    %c0_i32_0 = arith.constant 0 : i32
    %c0_i32_1 = arith.constant 0 : i32
    return %c0_i32, %c0_i32_0 : i32, i32
  }
  func.func @transform_4(%arg0: i32) -> (i32, i32) {
    %c0_i32 = arith.constant 0 : i32
    %c0_i32_0 = arith.constant 0 : i32
    return %arg0, %c0_i32 : i32, i32
  }
}

module attributes {stable_mosaic.version = 11 : i64} {
  func.func @_matmul_bias_act_kernel(%arg0: i32, %arg1: memref<64x108xbf16, #tpu.memory_space<vmem>>, %arg2: memref<108x128xbf16, #tpu.memory_space<vmem>>, %arg3: memref<1x128xf32, #tpu.memory_space<vmem>>, %arg4: memref<1x128xf32, #tpu.memory_space<vmem>>, %arg5: memref<64x128xbf16, #tpu.memory_space<vmem>>) attributes {dimension_semantics = [#tpu.dimension_semantics<parallel>], iteration_bounds = array<i64: 2>, scalar_prefetch = 0 : i64, scratch_operands = 0 : i64, tpu.core_type = #tpu.core_type<tc>, window_params = [{transform_indices = @transform_0, window_bounds = array<i64: 64, 108>}, {pipeline_mode = #tpu.pipeline_mode<synchronous>, transform_indices = @transform_1, window_bounds = array<i64: 108, 128>}, {pipeline_mode = #tpu.pipeline_mode<synchronous>, transform_indices = @transform_2, window_bounds = array<i64: 1, 128>}, {pipeline_mode = #tpu.pipeline_mode<synchronous>, transform_indices = @transform_3, window_bounds = array<i64: 1, 128>}, {transform_indices = @transform_4, window_bounds = array<i64: 64, 128>}]} {
    %c0 = arith.constant 0 : index
    %c0_0 = arith.constant 0 : index
    %0 = vector.load %arg1[%c0, %c0_0] : memref<64x108xbf16, #tpu.memory_space<vmem>>, vector<64x108xbf16>
    %c0_1 = arith.constant 0 : index
    %c0_2 = arith.constant 0 : index
    %1 = vector.load %arg2[%c0_1, %c0_2] : memref<108x128xbf16, #tpu.memory_space<vmem>>, vector<108x128xbf16>
    %cst = arith.constant dense<0.000000e+00> : vector<64x128xf32>
    %2 = tpu.matmul %0, %1, %cst {dimension_numbers = #tpu.dot_dimension_numbers<[1], [0], [0], [1], [0, 0, 1, 1], [], []>} : vector<64x108xbf16>, vector<108x128xbf16>, vector<64x128xf32> -> vector<64x128xf32>
    %c0_3 = arith.constant 0 : index
    %c0_4 = arith.constant 0 : index
    %3 = vector.load %arg3[%c0_3, %c0_4] : memref<1x128xf32, #tpu.memory_space<vmem>>, vector<1x128xf32>
    %4 = vector.broadcast %3 : vector<1x128xf32> to vector<64x128xf32>
    %5 = arith.addf %2, %4 : vector<64x128xf32>
    %cst_5 = arith.constant 0.000000e+00 : f32
    %6 = vector.broadcast %cst_5 : f32 to vector<64x128xf32>
    %7 = arith.cmpf oge, %5, %6 : vector<64x128xf32>
    %c0_6 = arith.constant 0 : index
    %c0_7 = arith.constant 0 : index
    %8 = vector.load %arg4[%c0_6, %c0_7] : memref<1x128xf32, #tpu.memory_space<vmem>>, vector<1x128xf32>
    %9 = vector.broadcast %8 : vector<1x128xf32> to vector<64x128xf32>
    %10 = arith.mulf %9, %5 : vector<64x128xf32>
    %11 = arith.select %7, %5, %10 : vector<64x128xi1>, vector<64x128xf32>
    %12 = arith.truncf %11 : vector<64x128xf32> to vector<64x128xbf16>
    %c0_8 = arith.constant 0 : index
    %c0_9 = arith.constant 0 : index
    %13 = vector.load %arg5[%c0_8, %c0_9] : memref<64x128xbf16, #tpu.memory_space<vmem>>, vector<64x128xbf16>
    tpu.vector_store %arg5[%c0_8, %c0_9], %12 {strides = array<i32>} : memref<64x128xbf16, #tpu.memory_space<vmem>>, vector<64x128xbf16>,
    return
  }
  func.func @transform_0(%arg0: i32) -> (i32, i32) {
    %c0_i32 = arith.constant 0 : i32
    %c0_i32_0 = arith.constant 0 : i32
    return %arg0, %c0_i32 : i32, i32
  }
  func.func @transform_1(%arg0: i32) -> (i32, i32) {
    %c0_i32 = arith.constant 0 : i32
    %c0_i32_0 = arith.constant 0 : i32
    %c0_i32_1 = arith.constant 0 : i32
    return %c0_i32, %c0_i32_0 : i32, i32
  }
  func.func @transform_2(%arg0: i32) -> (i32, i32) {
    %c0_i32 = arith.constant 0 : i32
    %c0_i32_0 = arith.constant 0 : i32
    %c0_i32_1 = arith.constant 0 : i32
    return %c0_i32, %c0_i32_0 : i32, i32
  }
  func.func @transform_3(%arg0: i32) -> (i32, i32) {
    %c0_i32 = arith.constant 0 : i32
    %c0_i32_0 = arith.constant 0 : i32
    %c0_i32_1 = arith.constant 0 : i32
    return %c0_i32, %c0_i32_0 : i32, i32
  }
  func.func @transform_4(%arg0: i32) -> (i32, i32) {
    %c0_i32 = arith.constant 0 : i32
    %c0_i32_0 = arith.constant 0 : i32
    return %arg0, %c0_i32 : i32, i32
  }
}

</mosaic_0001>

<llo_original>
// kernel: tile.28
$region0: #{tile.28}
  #allocation0 [shape = 's32[1]{0}', space=sflag, size = 0x4, scoped, tag = 'scoped memory for tile.28']
  %s0 = inlined_call_operand.vmem [shape: f32[8], index: 0, kind: input, shape index: {}]
  %s1 = inlined_call_operand.vmem [shape: f32[4,8], index: 1, kind: output, shape index: {}]
  // Predicated region
  $region2: #{tile.28} parent=0 // pred_check
    _
  $region3: #{tile.28} parent=0 // pred_check_branch
    %3 = sbr.rel (0) target = $region5
  $region4: #{tile.28} parent=0 // pred_region
    _
  $region5: #{tile.28} parent=0 // pred_fallthru
    _
  %v4 = vld [vmem:[%s0] ss:$0 sm:$0xff]
  %5 = vst [vmem:[%s1] sm:$0xf] %v4

// kernel: tile.29
$region0: #{tile.29}
  %s0 = inlined_call_operand.vmem [shape: f32[4,8], index: 0, kind: input, shape index: {}]
  %s1 = inlined_call_operand.vmem [shape: f32[32], index: 1, kind: output, shape index: {}]
  $region1: #{tile.29} parent=0
    #allocation0 [shape = 'u8[4096]{0}', space=vmem, size = 0x1000, scoped, tag = 'scoped mem for output reshape']
    #allocation1 [shape = 'u8[4096]{0}', space=vmem, size = 0x1000, scoped, tag = 'scoped mem for input reshape']
    %s3 = sshll.u32 1, 4
    %s4 = ssub.s32 %s3, 1
    %v5 = vld [vmem:[%s0] sm:%s4]
    %6 = vst [vmem:[#allocation1] sm:%s4] %v5
    %v7 = vld [vmem:[#allocation1] sm:$0x1]
    %vm8 = vcmask 64512
    %9 = vst.msk [vmem:[#allocation0] sm:$0x1] %vm8, %v7
    %s10 = scalar_lea.vmem [#allocation1], 3
    %v11 = vld [vmem:[%s10] sm:$0x1]
    %12 = vrot.lane.b32.xlu0 %v11, 24
    %v13 = vpop.permute.xlu0 %12
    %vm14 = vcmask 261312
    %15 = vst.msk [vmem:[#allocation0] sm:$0x1] %vm14, %v13
    %s16 = scalar_lea.vmem [#allocation1], 2
    %v17 = vld [vmem:[%s16] sm:$0x1]
    %18 = vrot.lane.b32.xlu0 %v17, 16
    %v19 = vpop.permute.xlu0 %18
    %vm20 = vcmask 195712
    %21 = vst.msk [vmem:[#allocation0] sm:$0x1] %vm20, %v19
    %s22 = scalar_lea.vmem [#allocation1], 1
    %v23 = vld [vmem:[%s22] sm:$0x1]
    %24 = vrot.lane.b32.xlu0 %v23, 8
    %v25 = vpop.permute.xlu0 %24
    %vm26 = vcmask 130112
    %27 = vst.msk [vmem:[#allocation0] sm:$0x1] %vm26, %v25
    %s29 = sshll.u32 1, 1
    %s30 = ssub.s32 %s29, 1
    %v32 = vld [vmem:[#allocation0] sm:%s30]
    %s33 = sshll.u32 1, 1
    %s34 = ssub.s32 %s33, 1
    %35 = vst [vmem:[%s1] sm:%s34] %v32

// kernel: skm_block_forward.8
$region0: #{skm_block_forward.8}
  #allocation0 [shape = 'u32[]', space=smem, size = 0x4, offset = 0x4, fixed_abs, tag = 'smem constant byte address 0x4 - core index']
  #allocation1 [shape = 'u32[144,128]{1,0:T(1,128)}', space=vmem, size = 0x12000, scoped, tag = 'internal scratch']
  %s0 = inlined_call_operand.vmem [shape: bf16[128,36], index: 0, kind: input, shape index: {}]
  %s1 = inlined_call_operand.vmem [shape: bf16[36,128], index: 1, kind: input, shape index: {}]
  %s2 = inlined_call_operand.vmem [shape: f32[1,128], index: 2, kind: input, shape index: {}]
  %s3 = inlined_call_operand.vmem [shape: f32[1,128], index: 3, kind: input, shape index: {}]
  %s4 = inlined_call_operand.vmem [shape: bf16[128,128], index: 4, kind: output, shape index: {}]
  %s5 = sld [smem:[#allocation0]]
  $region49: #{skm_block_forward.8} parent=0
    _
  %s7 = ssub.s32 1, %s5
  %s8 = scalar_select 0, %s7, %s5
  loop: start=0, step=1, limit=4
  $region2: #{skm_block_forward.8} parent=0 // loop_pre_header
    _
  $region3: #{skm_block_forward.8} parent=0 // loop_header
    %s10 = sphi 0, %s14
    %p11 = scmp.ge.s32.totalorder %s10, 4
    %s20 = sphi 0, %s22
    %s23 = sphi 0, %s20
    %s24 = sphi 0, %s23
    %s40 = sphi 0, %s24
    %s44 = sphi 0, %s44
    %s46 = sphi 0, %s44
    %s47 = sphi 0, %s46
    %s61 = sphi 0, %s47
    %s65 = sphi 0, %s65
    %s67 = sphi 0, %s65
    %s68 = sphi 0, %s67
    %s82 = sphi 0, %s68
    %s86 = sphi 0, %s86
    %s88 = sphi 0, %s86
    %s89 = sphi 0, %s88
    %s103 = sphi 0, %s89
    %s109 = sphi 0, %s111
    %s112 = sphi 0, %s109
    %s113 = sphi 0, %s112
    %s129 = sphi 0, %s113
  $region4: #{skm_block_forward.8} parent=0 // loop_header_branch
    %13 = sbr.rel (%p11) target = $region8
  $region5: #{skm_block_forward.8} parent=0 // loop_body
    %s15 = ssub.s32 %s10, 1
    %s16 = ssub.s32 %s10, 2
    %s17 = sadd.s32 %s10, 1
    %s18 = ssub.s32 %s10, %s17
    %p19 = scmp.eq.s32.totalorder %s18, 0
    %s21 = sadd.s32 %s20, 1
    %s22 = scalar_select %p19, %s20, %s21
    %p25 = pneg %p19
    %p26 = scmp.eq.s32.totalorder %s10, 1
    %p27 = por %p25, %p26
    %p28 = scmp.ne.s32.totalorder %s20, %s23
    %p29 = scmp.eq.s32.totalorder %s10, 0
    %p30 = por %p28, %p29
    %p31 = scmp.ne.s32.totalorder %s20, %s23
    %p32 = scmp.eq.s32.totalorder %s15, 1
    %p33 = por %p31, %p32
    %p34 = scmp.ne.s32.totalorder %s23, %s24
    %p35 = scmp.eq.s32.totalorder %s15, 0
    %p36 = por %p34, %p35
    %p37 = scmp.ne.s32.totalorder %s23, %s24
    %p38 = scmp.eq.s32.totalorder %s16, 1
    %p39 = por %p37, %p38
    %p41 = scmp.ne.s32.totalorder %s24, %s40
    %p42 = scmp.eq.s32.totalorder %s16, 0
    %p43 = por %p41, %p42
    %s45 = sadd.s32 %s44, 1
    %p48 = scmp.eq.s32.totalorder %s10, 1
    %p49 = scmp.ne.s32.totalorder %s44, %s46
    %p50 = scmp.eq.s32.totalorder %s10, 0
    %p51 = por %p49, %p50
    %p52 = scmp.ne.s32.totalorder %s44, %s46
    %p53 = scmp.eq.s32.totalorder %s15, 1
    %p54 = por %p52, %p53
    %p55 = scmp.ne.s32.totalorder %s46, %s47
    %p56 = scmp.eq.s32.totalorder %s15, 0
    %p57 = por %p55, %p56
    %p58 = scmp.ne.s32.totalorder %s46, %s47
    %p59 = scmp.eq.s32.totalorder %s16, 1
    %p60 = por %p58, %p59
    %p62 = scmp.ne.s32.totalorder %s47, %s61
    %p63 = scmp.eq.s32.totalorder %s16, 0
    %p64 = por %p62, %p63
    %s66 = sadd.s32 %s65, 1
    %p69 = scmp.eq.s32.totalorder %s10, 1
    %p70 = scmp.ne.s32.totalorder %s65, %s67
    %p71 = scmp.eq.s32.totalorder %s10, 0
    %p72 = por %p70, %p71
    %p73 = scmp.ne.s32.totalorder %s65, %s67
    %p74 = scmp.eq.s32.totalorder %s15, 1
    %p75 = por %p73, %p74
    %p76 = scmp.ne.s32.totalorder %s67, %s68
    %p77 = scmp.eq.s32.totalorder %s15, 0
    %p78 = por %p76, %p77
    %p79 = scmp.ne.s32.totalorder %s67, %s68
    %p80 = scmp.eq.s32.totalorder %s16, 1
    %p81 = por %p79, %p80
    %p83 = scmp.ne.s32.totalorder %s68, %s82
    %p84 = scmp.eq.s32.totalorder %s16, 0
    %p85 = por %p83, %p84
    %s87 = sadd.s32 %s86, 1
    %p90 = scmp.eq.s32.totalorder %s10, 1
    %p91 = scmp.ne.s32.totalorder %s86, %s88
    %p92 = scmp.eq.s32.totalorder %s10, 0
    %p93 = por %p91, %p92
    %p94 = scmp.ne.s32.totalorder %s86, %s88
    %p95 = scmp.eq.s32.totalorder %s15, 1
    %p96 = por %p94, %p95
    %p97 = scmp.ne.s32.totalorder %s88, %s89
    %p98 = scmp.eq.s32.totalorder %s15, 0
    %p99 = por %p97, %p98
    %p100 = scmp.ne.s32.totalorder %s88, %s89
    %p101 = scmp.eq.s32.totalorder %s16, 1
    %p102 = por %p100, %p101
    %p104 = scmp.ne.s32.totalorder %s89, %s103
    %p105 = scmp.eq.s32.totalorder %s16, 0
    %p106 = por %p104, %p105
    %s107 = ssub.s32 %s10, %s17
    %p108 = scmp.eq.s32.totalorder %s107, 0
    %s110 = sadd.s32 %s109, 1
    %s111 = scalar_select %p108, %s109, %s110
    %p114 = pneg %p108
    %p115 = scmp.eq.s32.totalorder %s10, 1
    %p116 = por %p114, %p115
    %p117 = scmp.ne.s32.totalorder %s109, %s112
    %p118 = scmp.eq.s32.totalorder %s10, 0
    %p119 = por %p117, %p118
    %p120 = scmp.ne.s32.totalorder %s109, %s112
    %p121 = scmp.eq.s32.totalorder %s15, 1
    %p122 = por %p120, %p121
    %p123 = scmp.ne.s32.totalorder %s112, %s113
    %p124 = scmp.eq.s32.totalorder %s15, 0
    %p125 = por %p123, %p124
    %p126 = scmp.ne.s32.totalorder %s112, %s113
    %p127 = scmp.eq.s32.totalorder %s16, 1
    %p128 = por %p126, %p127
    %p130 = scmp.ne.s32.totalorder %s113, %s129
    %p131 = scmp.eq.s32.totalorder %s16, 0
    %p132 = por %p130, %p131
    %p133 = scmp.le.s32.totalorder 1, %s10
    %p134 = scmp.lt.s32.totalorder %s10, 3
    %p135 = pnand %p133, %p134
    %p136 = pneg %p135
    // Predicated region
    $region9: #{skm_block_forward.8} parent=5 // pred_check
      _
    $region10: #{skm_block_forward.8} parent=5 // pred_check_branch
      %138 = sbr.rel (%p135) target = $region12
    $region11: #{skm_block_forward.8} parent=5 // pred_region
      %s139 = ssub.s32 %s10, 1
      // Predicated region
      $region13: #{skm_block_forward.8} parent=11 // pred_check
        %p140 = pneg %p57
      $region14: #{skm_block_forward.8} parent=11 // pred_check_branch
        %142 = sbr.rel (%p140) target = $region16
      $region15: #{skm_block_forward.8} parent=11 // pred_region
        _
      $region16: #{skm_block_forward.8} parent=11 // pred_fallthru
        _
      // Predicated region
      $region17: #{skm_block_forward.8} parent=11 // pred_check
        %p143 = pneg %p78
      $region18: #{skm_block_forward.8} parent=11 // pred_check_branch
        %145 = sbr.rel (%p143) target = $region20
      $region19: #{skm_block_forward.8} parent=11 // pred_region
        _
      $region20: #{skm_block_forward.8} parent=11 // pred_fallthru
        _
      // Predicated region
      $region21: #{skm_block_forward.8} parent=11 // pred_check
        %p146 = pneg %p99
      $region22: #{skm_block_forward.8} parent=11 // pred_check_branch
        %148 = sbr.rel (%p146) target = $region24
      $region23: #{skm_block_forward.8} parent=11 // pred_region
        _
      $region24: #{skm_block_forward.8} parent=11 // pred_fallthru
        _
    $region12: #{skm_block_forward.8} parent=5 // pred_fallthru
      _
    %p149 = scmp.lt.s32.totalorder %s10, 2
    // Predicated region
    $region25: #{skm_block_forward.8} parent=5 // pred_check
      %p150 = pneg %p149
    $region26: #{skm_block_forward.8} parent=5 // pred_check_branch
      %152 = sbr.rel (%p150) target = $region28
    $region27: #{skm_block_forward.8} parent=5 // pred_region
      // Predicated region
      $region29: #{skm_block_forward.8} parent=27 // pred_check
        %p153 = pneg %p30
      $region30: #{skm_block_forward.8} parent=27 // pred_check_branch
        %155 = sbr.rel (%p153) target = $region32
      $region31: #{skm_block_forward.8} parent=27 // pred_region
        %s156 = smul.u32 8, %s10
        %p157 = scmp.lt.s32.totalorder %s156, 15
        %s158 = scalar_select %p157, %s156, 15
        %s159 = smul.addr %s158, 4
        %s160 = scalar_lea.vmem %s0, %s159
        %s161 = smul.u32 8, %s10
      $region32: #{skm_block_forward.8} parent=27 // pred_fallthru
        _
    $region28: #{skm_block_forward.8} parent=5 // pred_fallthru
      _
    %p162 = scmp.le.s32.totalorder 1, %s10
    %p163 = scmp.lt.s32.totalorder %s10, 3
    %p164 = pnand %p162, %p163
    %p165 = pneg %p164
    // Predicated region
    $region33: #{skm_block_forward.8} parent=5 // pred_check
      _
    $region34: #{skm_block_forward.8} parent=5 // pred_check_branch
      %167 = sbr.rel (%p164) target = $region36
    $region35: #{skm_block_forward.8} parent=5 // pred_region
      %s168 = ssub.s32 %s10, 1
      %s169 = smul.u32 8, %s15
      %p170 = scmp.lt.s32.totalorder %s169, 15
      %s171 = scalar_select %p170, %s169, 15
      %s172 = smul.addr %s171, 4
      %s173 = scalar_lea.vmem %s0, %s172
      %p174 = pneg %p36
      %p175 = pneg %p33
      %p176 = pneg %p57
      %p177 = pneg %p54
      %p178 = pneg %p78
      %p179 = pneg %p75
      %p180 = pneg %p99
      %p181 = pneg %p96
      %p182 = pneg %p125
      %p183 = pneg %p122
      %s184 = smul.u32 8, %s15
      %p185 = scmp.lt.s32.totalorder %s184, 15
      %s186 = scalar_select %p185, %s184, 15
      %s187 = smul.addr %s186, 4
      %s188 = scalar_lea.vmem %s4, %s187
      %s189 = smul.u32 8, %s15
      %p190 = scmp.lt.s32.totalorder %s189, 15
      %s191 = scalar_select %p190, %s189, 15
      %s192 = smul.addr %s191, 4
      %s193 = scalar_lea.vmem %s0, %s192
      %s194 = smul.u32 8, %s15
      %s195 = smul.u32 8, %s15
      %p196 = scmp.lt.s32.totalorder %s195, 15
      %s197 = scalar_select %p196, %s195, 15
      %s198 = smul.addr %s197, 4
      %s199 = scalar_lea.vmem %s4, %s198
      %s200 = smul.u32 8, %s15
      %v202 = vld [vmem:[%s193] sm:$0xf]
      %v203 = vld [vmem:[%s193 + $0x4] sm:$0xf]
      %v204 = vld [vmem:[%s193 + $0x8] sm:$0xf]
      %v205 = vld [vmem:[%s193 + $0xc] sm:$0xf]
      %v206 = vld [vmem:[%s193 + $0x10] sm:$0xf]
      %v207 = vld [vmem:[%s193 + $0x14] sm:$0xf]
      %v208 = vld [vmem:[%s193 + $0x18] sm:$0xf]
      %v209 = vld [vmem:[%s193 + $0x1c] sm:$0xf]
      %v210 = vld [vmem:[%s1] sm:$0xf]
      %v211 = vld [vmem:[%s1 + $0x4] sm:$0xf]
      %v212 = vld [vmem:[%s1 + $0x8] sm:$0xf]
      %v213 = vld [vmem:[%s1 + $0xc] sm:$0xf]
      %v214 = vld [vmem:[%s1 + $0x10] sm:$0x3]
      %v215 = vld [vmem:[%s2] sm:$0x1]
      %v217 = vlaneseq
      %v218 = vshrl.u32 %v217, 7
      %v219 = vsub.s32 0, %v218
      %v220 = vrot.slane %v215, %v219
      %v230 = vunpack.c.l.b16 %v202
      %v231 = vunpack.c.l.b16 %v203
      %v232 = vunpack.c.l.b16 %v204
      %v233 = vunpack.c.l.b16 %v205
      %v234 = vunpack.c.l.b16 %v206
      %v235 = vunpack.c.l.b16 %v207
      %v236 = vunpack.c.l.b16 %v208
      %v237 = vunpack.c.l.b16 %v209
      %v238 = vpack.c.b16 %v231, %v230
      %v239 = vpack.c.b16 %v233, %v232
      %v240 = vpack.c.b16 %v235, %v234
      %v241 = vpack.c.b16 %v237, %v236
      %v247 = vunpack.c.l.b16 %v210
      %v248 = vunpack.c.l.b16 %v211
      %v249 = vunpack.c.l.b16 %v212
      %v250 = vunpack.c.l.b16 %v213
      %v251 = vunpack.c.l.b16 %v214
      %v252 = vpack.c.b16 %v248, %v247
      %v253 = vpack.c.b16 %v250, %v249
      %v254 = vpack.c.b16 %v251, %v251
      %vm257 = vcmask 293888
      %v259 = vsel %vm257, %v238, 0
      %v262 = vsel %vm257, %v239, 0
      %v265 = vsel %vm257, %v240, 0
      %v268 = vsel %vm257, %v241, 0
      %vm270 = vcmask 1041408
      %v272 = vsel %vm270, %v254, 0
      %274 = vmatprep.subr.bf16.mxu0 0
      %275 = vmatpush1.bf16.msra.mxu0 0
      %276 = vmatprep.subr.bf16.mxu0 0
      %277 = vmatpush1.bf16.msra.mxu0 0
      %278 = vmatprep.subr.bf16.mxu0 0
      %279 = vmatpush1.bf16.msra.mxu0 0
      %280 = vmatprep.subr.bf16.mxu0 0
      %281 = vmatpush1.bf16.msra.mxu0 0
      %282 = vmatprep.subr.bf16.mxu0 0
      %283 = vmatpush1.bf16.msra.mxu0 0
      %284 = vmatprep.subr.bf16.mxu0 0
      %285 = vmatpush1.bf16.msra.mxu0 %v272
      %286 = vmatprep.subr.bf16.mxu0 0
      %287 = vmatpush1.bf16.msra.mxu0 %v253
      %288 = vmatprep.subr.bf16.mxu0 0
      %289 = vmatpush1.bf16.msra.mxu0 %v252
      %290 = vmatprep.subr.bf16.mxu0 0
      %291 = vmatpush2.bf16.msra.mxu0 0
      %292 = vmatprep.subr.bf16.mxu0 0
      %293 = vmatpush2.bf16.msra.mxu0 0
      %294 = vmatprep.subr.bf16.mxu0 0
      %295 = vmatpush2.bf16.msra.mxu0 0
      %296 = vmatprep.subr.bf16.mxu0 0
      %297 = vmatpush2.bf16.msra.mxu0 0
      %298 = vmatprep.subr.bf16.mxu0 0
      %299 = vmatpush2.bf16.msra.mxu0 0
      %300 = vmatprep.subr.bf16.mxu0 0
      %301 = vmatpush2.bf16.msra.mxu0 0
      %302 = vmatprep.subr.bf16.mxu0 0
      %303 = vmatpush2.bf16.msra.mxu0 0
      %304 = vmatprep.subr.bf16.mxu0 0
      %305 = vmatpush2.bf16.msra.mxu0 0
      %306 = vmatprep.mubr.bf16.mxu0 0
      %307 = vmatmul.mubr.bf16.gmra.mxu0 %v259
      %v308 = vpop.f32.mrf.mxu0
      %v309 = vadd.f32 %v220, %v308
      %v310 = vpop.f32.mrf.mxu0
      %v311 = vpop.f32.mrf.mxu0
      %v312 = vadd.f32 %v220, %v311
      %v313 = vpop.f32.mrf.mxu0
      %314 = vmatprep.mubr.bf16.mxu0 0
      %315 = vmatmul.mubr.bf16.gmra.mxu0 %v262
      %v316 = vpop.f32.mrf.mxu0
      %v317 = vadd.f32 %v220, %v316
      %v318 = vpop.f32.mrf.mxu0
      %v319 = vpop.f32.mrf.mxu0
      %v320 = vadd.f32 %v220, %v319
      %v321 = vpop.f32.mrf.mxu0
      %322 = vmatprep.mubr.bf16.mxu0 0
      %323 = vmatmul.mubr.bf16.gmra.mxu0 %v265
      %v324 = vpop.f32.mrf.mxu0
      %v325 = vadd.f32 %v220, %v324
      %v326 = vpop.f32.mrf.mxu0
      %v327 = vpop.f32.mrf.mxu0
      %v328 = vadd.f32 %v220, %v327
      %v329 = vpop.f32.mrf.mxu0
      %330 = vmatprep.mubr.bf16.mxu0 0
      %331 = vmatmul.mubr.bf16.gmra.mxu0 %v268
      %v332 = vpop.f32.mrf.mxu0
      %v333 = vadd.f32 %v220, %v332
      %v334 = vpop.f32.mrf.mxu0
      %v335 = vpop.f32.mrf.mxu0
      %v336 = vadd.f32 %v220, %v335
      %v337 = vpop.f32.mrf.mxu0
      %338 = vdwg.mxu0
      %vm339 = vcmp.ge.f32.partialorder %v309, 0.0
      %vm340 = vcmp.ge.f32.partialorder %v312, 0.0
      %vm341 = vcmp.ge.f32.partialorder %v317, 0.0
      %vm342 = vcmp.ge.f32.partialorder %v320, 0.0
      %vm343 = vcmp.ge.f32.partialorder %v325, 0.0
      %vm344 = vcmp.ge.f32.partialorder %v328, 0.0
      %vm345 = vcmp.ge.f32.partialorder %v333, 0.0
      %vm346 = vcmp.ge.f32.partialorder %v336, 0.0
      %v347 = vld [vmem:[%s3] sm:$0x1]
      %v349 = vlaneseq
      %v350 = vshrl.u32 %v349, 7
      %v351 = vsub.s32 0, %v350
      %v352 = vrot.slane %v347, %v351
      %v354 = vmul.f32 %v352, %v309
      %v355 = vmul.f32 %v352, %v312
      %v356 = vmul.f32 %v352, %v317
      %v357 = vmul.f32 %v352, %v320
      %v358 = vmul.f32 %v352, %v325
      %v359 = vmul.f32 %v352, %v328
      %v360 = vmul.f32 %v352, %v333
      %v361 = vmul.f32 %v352, %v336
      %v362 = vsel %vm339, %v309, %v354
      %v363 = vsel %vm340, %v312, %v355
      %v364 = vsel %vm341, %v317, %v356
      %v365 = vsel %vm342, %v320, %v357
      %v366 = vsel %vm343, %v325, %v358
      %v367 = vsel %vm344, %v328, %v359
      %v368 = vsel %vm345, %v333, %v360
      %v369 = vsel %vm346, %v336, %v361
      %v370 = vpack.c.bf16 %v363, %v362
      %v371 = vpack.c.bf16 %v365, %v364
      %v372 = vpack.c.bf16 %v367, %v366
      %v373 = vpack.c.bf16 %v369, %v368
      %v378 = vunpack.c.l.b16 %v370
      %v379 = vunpack.c.h.b16 %v370
      %v380 = vunpack.c.l.b16 %v371
      %v381 = vunpack.c.h.b16 %v371
      %v382 = vunpack.c.l.b16 %v372
      %v383 = vunpack.c.h.b16 %v372
      %v384 = vunpack.c.l.b16 %v373
      %v385 = vunpack.c.h.b16 %v373
      %v386 = vpack.c.b16 %v378, %v378
      %v387 = vpack.c.b16 %v379, %v379
      %v388 = vpack.c.b16 %v380, %v380
      %v389 = vpack.c.b16 %v381, %v381
      %v390 = vpack.c.b16 %v382, %v382
      %v391 = vpack.c.b16 %v383, %v383
      %v392 = vpack.c.b16 %v384, %v384
      %v393 = vpack.c.b16 %v385, %v385
      %402 = vst [vmem:[%s199] sm:$0xf] %v386
      %403 = vst [vmem:[%s199 + $0x4] sm:$0xf] %v387
      %404 = vst [vmem:[%s199 + $0x8] sm:$0xf] %v388
      %405 = vst [vmem:[%s199 + $0xc] sm:$0xf] %v389
      %406 = vst [vmem:[%s199 + $0x10] sm:$0xf] %v390
      %407 = vst [vmem:[%s199 + $0x14] sm:$0xf] %v391
      %408 = vst [vmem:[%s199 + $0x18] sm:$0xf] %v392
      %409 = vst [vmem:[%s199 + $0x1c] sm:$0xf] %v393
      %s410 = smul.u32 8, %s15
      %p411 = scmp.lt.s32.totalorder %s410, 15
      %s412 = scalar_select %p411, %s410, 15
      %s413 = smul.addr %s412, 4
      %s414 = scalar_lea.vmem %s4, %s413
      // Predicated region
      $region37: #{skm_block_forward.8} parent=35 // pred_check
        %p415 = pneg %p122
      $region38: #{skm_block_forward.8} parent=35 // pred_check_branch
        %417 = sbr.rel (%p415) target = $region40
      $region39: #{skm_block_forward.8} parent=35 // pred_region
        %s418 = smul.u32 8, %s15
      $region40: #{skm_block_forward.8} parent=35 // pred_fallthru
        _
    $region36: #{skm_block_forward.8} parent=5 // pred_fallthru
      _
    %p419 = scmp.le.s32.totalorder 2, %s10
    // Predicated region
    $region41: #{skm_block_forward.8} parent=5 // pred_check
      %p420 = pneg %p419
    $region42: #{skm_block_forward.8} parent=5 // pred_check_branch
      %422 = sbr.rel (%p420) target = $region44
    $region43: #{skm_block_forward.8} parent=5 // pred_region
      %s423 = ssub.s32 %s10, 2
      // Predicated region
      $region45: #{skm_block_forward.8} parent=43 // pred_check
        %p424 = pneg %p128
      $region46: #{skm_block_forward.8} parent=43 // pred_check_branch
        %426 = sbr.rel (%p424) target = $region48
      $region47: #{skm_block_forward.8} parent=43 // pred_region
        %s427 = smul.u32 8, %s16
        %p428 = scmp.lt.s32.totalorder %s427, 15
        %s429 = scalar_select %p428, %s427, 15
        %s430 = smul.addr %s429, 4
        %s431 = scalar_lea.vmem %s4, %s430
      $region48: #{skm_block_forward.8} parent=43 // pred_fallthru
        _
    $region44: #{skm_block_forward.8} parent=5 // pred_fallthru
      _
  $region6: #{skm_block_forward.8} parent=0 // loop_footer
    %s14 = sadd.s32 1, %s10
  $region7: #{skm_block_forward.8} parent=0 // loop_footer_branch
    %9 = sbr.rel target = $region3
  $region8: #{skm_block_forward.8} parent=0 // loop_exit
    _

// kernel: skm_block_forward.9
$region0: #{skm_block_forward.9}
  #allocation0 [shape = 'u32[]', space=smem, size = 0x4, offset = 0x4, fixed_abs, tag = 'smem constant byte address 0x4 - core index']
  #allocation1 [shape = 'u32[144,128]{1,0:T(1,128)}', space=vmem, size = 0x12000, scoped, tag = 'internal scratch']
  %s0 = inlined_call_operand.vmem [shape: bf16[128,288], index: 0, kind: input, shape index: {}]
  %s1 = inlined_call_operand.vmem [shape: bf16[288,128], index: 1, kind: input, shape index: {}]
  %s2 = inlined_call_operand.vmem [shape: f32[1,128], index: 2, kind: input, shape index: {}]
  %s3 = inlined_call_operand.vmem [shape: f32[1,128], index: 3, kind: input, shape index: {}]
  %s4 = inlined_call_operand.vmem [shape: bf16[128,128], index: 4, kind: output, shape index: {}]
  %s5 = sld [smem:[#allocation0]]
  $region49: #{skm_block_forward.9} parent=0
    _
  %s7 = ssub.s32 1, %s5
  %s8 = scalar_select 0, %s7, %s5
  loop: start=0, step=1, limit=4
  $region2: #{skm_block_forward.9} parent=0 // loop_pre_header
    _
  $region3: #{skm_block_forward.9} parent=0 // loop_header
    %s10 = sphi 0, %s14
    %p11 = scmp.ge.s32.totalorder %s10, 4
    %s20 = sphi 0, %s22
    %s23 = sphi 0, %s20
    %s24 = sphi 0, %s23
    %s40 = sphi 0, %s24
    %s44 = sphi 0, %s44
    %s46 = sphi 0, %s44
    %s47 = sphi 0, %s46
    %s61 = sphi 0, %s47
    %s65 = sphi 0, %s65
    %s67 = sphi 0, %s65
    %s68 = sphi 0, %s67
    %s82 = sphi 0, %s68
    %s86 = sphi 0, %s86
    %s88 = sphi 0, %s86
    %s89 = sphi 0, %s88
    %s103 = sphi 0, %s89
    %s109 = sphi 0, %s111
    %s112 = sphi 0, %s109
    %s113 = sphi 0, %s112
    %s129 = sphi 0, %s113
  $region4: #{skm_block_forward.9} parent=0 // loop_header_branch
    %13 = sbr.rel (%p11) target = $region8
  $region5: #{skm_block_forward.9} parent=0 // loop_body
    %s15 = ssub.s32 %s10, 1
    %s16 = ssub.s32 %s10, 2
    %s17 = sadd.s32 %s10, 1
    %s18 = ssub.s32 %s10, %s17
    %p19 = scmp.eq.s32.totalorder %s18, 0
    %s21 = sadd.s32 %s20, 1
    %s22 = scalar_select %p19, %s20, %s21
    %p25 = pneg %p19
    %p26 = scmp.eq.s32.totalorder %s10, 1
    %p27 = por %p25, %p26
    %p28 = scmp.ne.s32.totalorder %s20, %s23
    %p29 = scmp.eq.s32.totalorder %s10, 0
    %p30 = por %p28, %p29
    %p31 = scmp.ne.s32.totalorder %s20, %s23
    %p32 = scmp.eq.s32.totalorder %s15, 1
    %p33 = por %p31, %p32
    %p34 = scmp.ne.s32.totalorder %s23, %s24
    %p35 = scmp.eq.s32.totalorder %s15, 0
    %p36 = por %p34, %p35
    %p37 = scmp.ne.s32.totalorder %s23, %s24
    %p38 = scmp.eq.s32.totalorder %s16, 1
    %p39 = por %p37, %p38
    %p41 = scmp.ne.s32.totalorder %s24, %s40
    %p42 = scmp.eq.s32.totalorder %s16, 0
    %p43 = por %p41, %p42
    %s45 = sadd.s32 %s44, 1
    %p48 = scmp.eq.s32.totalorder %s10, 1
    %p49 = scmp.ne.s32.totalorder %s44, %s46
    %p50 = scmp.eq.s32.totalorder %s10, 0
    %p51 = por %p49, %p50
    %p52 = scmp.ne.s32.totalorder %s44, %s46
    %p53 = scmp.eq.s32.totalorder %s15, 1
    %p54 = por %p52, %p53
    %p55 = scmp.ne.s32.totalorder %s46, %s47
    %p56 = scmp.eq.s32.totalorder %s15, 0
    %p57 = por %p55, %p56
    %p58 = scmp.ne.s32.totalorder %s46, %s47
    %p59 = scmp.eq.s32.totalorder %s16, 1
    %p60 = por %p58, %p59
    %p62 = scmp.ne.s32.totalorder %s47, %s61
    %p63 = scmp.eq.s32.totalorder %s16, 0
    %p64 = por %p62, %p63
    %s66 = sadd.s32 %s65, 1
    %p69 = scmp.eq.s32.totalorder %s10, 1
    %p70 = scmp.ne.s32.totalorder %s65, %s67
    %p71 = scmp.eq.s32.totalorder %s10, 0
    %p72 = por %p70, %p71
    %p73 = scmp.ne.s32.totalorder %s65, %s67
    %p74 = scmp.eq.s32.totalorder %s15, 1
    %p75 = por %p73, %p74
    %p76 = scmp.ne.s32.totalorder %s67, %s68
    %p77 = scmp.eq.s32.totalorder %s15, 0
    %p78 = por %p76, %p77
    %p79 = scmp.ne.s32.totalorder %s67, %s68
    %p80 = scmp.eq.s32.totalorder %s16, 1
    %p81 = por %p79, %p80
    %p83 = scmp.ne.s32.totalorder %s68, %s82
    %p84 = scmp.eq.s32.totalorder %s16, 0
    %p85 = por %p83, %p84
    %s87 = sadd.s32 %s86, 1
    %p90 = scmp.eq.s32.totalorder %s10, 1
    %p91 = scmp.ne.s32.totalorder %s86, %s88
    %p92 = scmp.eq.s32.totalorder %s10, 0
    %p93 = por %p91, %p92
    %p94 = scmp.ne.s32.totalorder %s86, %s88
    %p95 = scmp.eq.s32.totalorder %s15, 1
    %p96 = por %p94, %p95
    %p97 = scmp.ne.s32.totalorder %s88, %s89
    %p98 = scmp.eq.s32.totalorder %s15, 0
    %p99 = por %p97, %p98
    %p100 = scmp.ne.s32.totalorder %s88, %s89
    %p101 = scmp.eq.s32.totalorder %s16, 1
    %p102 = por %p100, %p101
    %p104 = scmp.ne.s32.totalorder %s89, %s103
    %p105 = scmp.eq.s32.totalorder %s16, 0
    %p106 = por %p104, %p105
    %s107 = ssub.s32 %s10, %s17
    %p108 = scmp.eq.s32.totalorder %s107, 0
    %s110 = sadd.s32 %s109, 1
    %s111 = scalar_select %p108, %s109, %s110
    %p114 = pneg %p108
    %p115 = scmp.eq.s32.totalorder %s10, 1
    %p116 = por %p114, %p115
    %p117 = scmp.ne.s32.totalorder %s109, %s112
    %p118 = scmp.eq.s32.totalorder %s10, 0
    %p119 = por %p117, %p118
    %p120 = scmp.ne.s32.totalorder %s109, %s112
    %p121 = scmp.eq.s32.totalorder %s15, 1
    %p122 = por %p120, %p121
    %p123 = scmp.ne.s32.totalorder %s112, %s113
    %p124 = scmp.eq.s32.totalorder %s15, 0
    %p125 = por %p123, %p124
    %p126 = scmp.ne.s32.totalorder %s112, %s113
    %p127 = scmp.eq.s32.totalorder %s16, 1
    %p128 = por %p126, %p127
    %p130 = scmp.ne.s32.totalorder %s113, %s129
    %p131 = scmp.eq.s32.totalorder %s16, 0
    %p132 = por %p130, %p131
    %p133 = scmp.le.s32.totalorder 1, %s10
    %p134 = scmp.lt.s32.totalorder %s10, 3
    %p135 = pnand %p133, %p134
    %p136 = pneg %p135
    // Predicated region
    $region9: #{skm_block_forward.9} parent=5 // pred_check
      _
    $region10: #{skm_block_forward.9} parent=5 // pred_check_branch
      %138 = sbr.rel (%p135) target = $region12
    $region11: #{skm_block_forward.9} parent=5 // pred_region
      %s139 = ssub.s32 %s10, 1
      // Predicated region
      $region13: #{skm_block_forward.9} parent=11 // pred_check
        %p140 = pneg %p57
      $region14: #{skm_block_forward.9} parent=11 // pred_check_branch
        %142 = sbr.rel (%p140) target = $region16
      $region15: #{skm_block_forward.9} parent=11 // pred_region
        _
      $region16: #{skm_block_forward.9} parent=11 // pred_fallthru
        _
      // Predicated region
      $region17: #{skm_block_forward.9} parent=11 // pred_check
        %p143 = pneg %p78
      $region18: #{skm_block_forward.9} parent=11 // pred_check_branch
        %145 = sbr.rel (%p143) target = $region20
      $region19: #{skm_block_forward.9} parent=11 // pred_region
        _
      $region20: #{skm_block_forward.9} parent=11 // pred_fallthru
        _
      // Predicated region
      $region21: #{skm_block_forward.9} parent=11 // pred_check
        %p146 = pneg %p99
      $region22: #{skm_block_forward.9} parent=11 // pred_check_branch
        %148 = sbr.rel (%p146) target = $region24
      $region23: #{skm_block_forward.9} parent=11 // pred_region
        _
      $region24: #{skm_block_forward.9} parent=11 // pred_fallthru
        _
    $region12: #{skm_block_forward.9} parent=5 // pred_fallthru
      _
    %p149 = scmp.lt.s32.totalorder %s10, 2
    // Predicated region
    $region25: #{skm_block_forward.9} parent=5 // pred_check
      %p150 = pneg %p149
    $region26: #{skm_block_forward.9} parent=5 // pred_check_branch
      %152 = sbr.rel (%p150) target = $region28
    $region27: #{skm_block_forward.9} parent=5 // pred_region
      // Predicated region
      $region29: #{skm_block_forward.9} parent=27 // pred_check
        %p153 = pneg %p30
      $region30: #{skm_block_forward.9} parent=27 // pred_check_branch
        %155 = sbr.rel (%p153) target = $region32
      $region31: #{skm_block_forward.9} parent=27 // pred_region
        %s156 = smul.u32 8, %s10
        %p157 = scmp.lt.s32.totalorder %s156, 15
        %s158 = scalar_select %p157, %s156, 15
        %s159 = smul.addr %s158, 3
        %s160 = smul.addr %s159, 4
        %s161 = scalar_lea.vmem %s0, %s160
        %s162 = smul.u32 8, %s10
      $region32: #{skm_block_forward.9} parent=27 // pred_fallthru
        _
    $region28: #{skm_block_forward.9} parent=5 // pred_fallthru
      _
    %p163 = scmp.le.s32.totalorder 1, %s10
    %p164 = scmp.lt.s32.totalorder %s10, 3
    %p165 = pnand %p163, %p164
    %p166 = pneg %p165
    // Predicated region
    $region33: #{skm_block_forward.9} parent=5 // pred_check
      _
    $region34: #{skm_block_forward.9} parent=5 // pred_check_branch
      %168 = sbr.rel (%p165) target = $region36
    $region35: #{skm_block_forward.9} parent=5 // pred_region
      %s169 = ssub.s32 %s10, 1
      %s170 = smul.u32 8, %s15
      %p171 = scmp.lt.s32.totalorder %s170, 15
      %s172 = scalar_select %p171, %s170, 15
      %s173 = smul.addr %s172, 3
      %s174 = smul.addr %s173, 4
      %s175 = scalar_lea.vmem %s0, %s174
      %p176 = pneg %p36
      %p177 = pneg %p33
      %p178 = pneg %p57
      %p179 = pneg %p54
      %p180 = pneg %p78
      %p181 = pneg %p75
      %p182 = pneg %p99
      %p183 = pneg %p96
      %p184 = pneg %p125
      %p185 = pneg %p122
      %s186 = smul.u32 8, %s15
      %p187 = scmp.lt.s32.totalorder %s186, 15
      %s188 = scalar_select %p187, %s186, 15
      %s189 = smul.addr %s188, 4
      %s190 = scalar_lea.vmem %s4, %s189
      %s191 = smul.u32 8, %s15
      %p192 = scmp.lt.s32.totalorder %s191, 15
      %s193 = scalar_select %p192, %s191, 15
      %s194 = smul.addr %s193, 3
      %s195 = smul.addr %s194, 4
      %s196 = scalar_lea.vmem %s0, %s195
      %s197 = smul.u32 8, %s15
      %s198 = smul.u32 8, %s15
      %p199 = scmp.lt.s32.totalorder %s198, 15
      %s200 = scalar_select %p199, %s198, 15
      %s201 = smul.addr %s200, 4
      %s202 = scalar_lea.vmem %s4, %s201
      %s203 = smul.u32 8, %s15
      %v205 = vld [vmem:[%s196] sm:$0xff]
      %v206 = vld [vmem:[%s196 + $0x8] sm:$0xf]
      %v207 = vld [vmem:[%s196 + $0xc] sm:$0xff]
      %v208 = vld [vmem:[%s196 + $0x14] sm:$0xf]
      %v209 = vld [vmem:[%s196 + $0x18] sm:$0xff]
      %v210 = vld [vmem:[%s196 + $0x20] sm:$0xf]
      %v211 = vld [vmem:[%s196 + $0x24] sm:$0xff]
      %v212 = vld [vmem:[%s196 + $0x2c] sm:$0xf]
      %v213 = vld [vmem:[%s196 + $0x30] sm:$0xff]
      %v214 = vld [vmem:[%s196 + $0x38] sm:$0xf]
      %v215 = vld [vmem:[%s196 + $0x3c] sm:$0xff]
      %v216 = vld [vmem:[%s196 + $0x44] sm:$0xf]
      %v217 = vld [vmem:[%s196 + $0x48] sm:$0xff]
      %v218 = vld [vmem:[%s196 + $0x50] sm:$0xf]
      %v219 = vld [vmem:[%s196 + $0x54] sm:$0xff]
      %v220 = vld [vmem:[%s196 + $0x5c] sm:$0xf]
      %v221 = vld [vmem:[%s1] sm:$0xf]
      %v222 = vld [vmem:[%s1 + $0x4] sm:$0xf]
      %v223 = vld [vmem:[%s1 + $0x8] sm:$0xf]
      %v224 = vld [vmem:[%s1 + $0xc] sm:$0xf]
      %v225 = vld [vmem:[%s1 + $0x10] sm:$0xf]
      %v226 = vld [vmem:[%s1 + $0x14] sm:$0xf]
      %v227 = vld [vmem:[%s1 + $0x18] sm:$0xf]
      %v228 = vld [vmem:[%s1 + $0x1c] sm:$0xf]
      %v229 = vld [vmem:[%s1 + $0x20] sm:$0xf]
      %v230 = vld [vmem:[%s1 + $0x24] sm:$0xf]
      %v231 = vld [vmem:[%s1 + $0x28] sm:$0xf]
      %v232 = vld [vmem:[%s1 + $0x2c] sm:$0xf]
      %v233 = vld [vmem:[%s1 + $0x30] sm:$0xf]
      %v234 = vld [vmem:[%s1 + $0x34] sm:$0xf]
      %v235 = vld [vmem:[%s1 + $0x38] sm:$0xf]
      %v236 = vld [vmem:[%s1 + $0x3c] sm:$0xf]
      %v237 = vld [vmem:[%s1 + $0x40] sm:$0xf]
      %v238 = vld [vmem:[%s1 + $0x44] sm:$0xf]
      %v239 = vld [vmem:[%s1 + $0x48] sm:$0xf]
      %v240 = vld [vmem:[%s1 + $0x4c] sm:$0xf]
      %v241 = vld [vmem:[%s1 + $0x50] sm:$0xf]
      %v242 = vld [vmem:[%s1 + $0x54] sm:$0xf]
      %v243 = vld [vmem:[%s1 + $0x58] sm:$0xf]
      %v244 = vld [vmem:[%s1 + $0x5c] sm:$0xf]
      %v245 = vld [vmem:[%s1 + $0x60] sm:$0xf]
      %v246 = vld [vmem:[%s1 + $0x64] sm:$0xf]
      %v247 = vld [vmem:[%s1 + $0x68] sm:$0xf]
      %v248 = vld [vmem:[%s1 + $0x6c] sm:$0xf]
      %v249 = vld [vmem:[%s1 + $0x70] sm:$0xf]
      %v250 = vld [vmem:[%s1 + $0x74] sm:$0xf]
      %v251 = vld [vmem:[%s1 + $0x78] sm:$0xf]
      %v252 = vld [vmem:[%s1 + $0x7c] sm:$0xf]
      %v253 = vld [vmem:[%s1 + $0x80] sm:$0xf]
      %v254 = vld [vmem:[%s1 + $0x84] sm:$0xf]
      %v255 = vld [vmem:[%s1 + $0x88] sm:$0xf]
      %v256 = vld [vmem:[%s1 + $0x8c] sm:$0xf]
      %v257 = vld [vmem:[%s2] sm:$0x1]
      %v259 = vlaneseq
      %v260 = vshrl.u32 %v259, 7
      %v261 = vsub.s32 0, %v260
      %v262 = vrot.slane %v257, %v261
      %v280 = vunpack.c.l.b16 %v205
      %v281 = vunpack.c.h.b16 %v205
      %v282 = vunpack.c.l.b16 %v206
      %v283 = vunpack.c.l.b16 %v207
      %v284 = vunpack.c.h.b16 %v207
      %v285 = vunpack.c.l.b16 %v208
      %v286 = vunpack.c.l.b16 %v209
      %v287 = vunpack.c.h.b16 %v209
      %v288 = vunpack.c.l.b16 %v210
      %v289 = vunpack.c.l.b16 %v211
      %v290 = vunpack.c.h.b16 %v211
      %v291 = vunpack.c.l.b16 %v212
      %v292 = vunpack.c.l.b16 %v213
      %v293 = vunpack.c.h.b16 %v213
      %v294 = vunpack.c.l.b16 %v214
      %v295 = vunpack.c.l.b16 %v215
      %v296 = vunpack.c.h.b16 %v215
      %v297 = vunpack.c.l.b16 %v216
      %v298 = vunpack.c.l.b16 %v217
      %v299 = vunpack.c.h.b16 %v217
      %v300 = vunpack.c.l.b16 %v218
      %v301 = vunpack.c.l.b16 %v219
      %v302 = vunpack.c.h.b16 %v219
      %v303 = vunpack.c.l.b16 %v220
      %v304 = vpack.c.b16 %v283, %v280
      %v305 = vpack.c.b16 %v284, %v281
      %v306 = vpack.c.b16 %v285, %v282
      %v307 = vpack.c.b16 %v289, %v286
      %v308 = vpack.c.b16 %v290, %v287
      %v309 = vpack.c.b16 %v291, %v288
      %v310 = vpack.c.b16 %v295, %v292
      %v311 = vpack.c.b16 %v296, %v293
      %v312 = vpack.c.b16 %v297, %v294
      %v313 = vpack.c.b16 %v301, %v298
      %v314 = vpack.c.b16 %v302, %v299
      %v315 = vpack.c.b16 %v303, %v300
      %v360 = vunpack.c.l.b16 %v221
      %v361 = vunpack.c.l.b16 %v222
      %v362 = vunpack.c.l.b16 %v223
      %v363 = vunpack.c.l.b16 %v224
      %v364 = vunpack.c.l.b16 %v225
      %v365 = vunpack.c.l.b16 %v226
      %v366 = vunpack.c.l.b16 %v227
      %v367 = vunpack.c.l.b16 %v228
      %v368 = vunpack.c.l.b16 %v229
      %v369 = vunpack.c.l.b16 %v230
      %v370 = vunpack.c.l.b16 %v231
      %v371 = vunpack.c.l.b16 %v232
      %v372 = vunpack.c.l.b16 %v233
      %v373 = vunpack.c.l.b16 %v234
      %v374 = vunpack.c.l.b16 %v235
      %v375 = vunpack.c.l.b16 %v236
      %v376 = vunpack.c.l.b16 %v237
      %v377 = vunpack.c.l.b16 %v238
      %v378 = vunpack.c.l.b16 %v239
      %v379 = vunpack.c.l.b16 %v240
      %v380 = vunpack.c.l.b16 %v241
      %v381 = vunpack.c.l.b16 %v242
      %v382 = vunpack.c.l.b16 %v243
      %v383 = vunpack.c.l.b16 %v244
      %v384 = vunpack.c.l.b16 %v245
      %v385 = vunpack.c.l.b16 %v246
      %v386 = vunpack.c.l.b16 %v247
      %v387 = vunpack.c.l.b16 %v248
      %v388 = vunpack.c.l.b16 %v249
      %v389 = vunpack.c.l.b16 %v250
      %v390 = vunpack.c.l.b16 %v251
      %v391 = vunpack.c.l.b16 %v252
      %v392 = vunpack.c.l.b16 %v253
      %v393 = vunpack.c.l.b16 %v254
      %v394 = vunpack.c.l.b16 %v255
      %v395 = vunpack.c.l.b16 %v256
      %v396 = vpack.c.b16 %v361, %v360
      %v397 = vpack.c.b16 %v363, %v362
      %v398 = vpack.c.b16 %v365, %v364
      %v399 = vpack.c.b16 %v367, %v366
      %v400 = vpack.c.b16 %v369, %v368
      %v401 = vpack.c.b16 %v371, %v370
      %v402 = vpack.c.b16 %v373, %v372
      %v403 = vpack.c.b16 %v375, %v374
      %v404 = vpack.c.b16 %v377, %v376
      %v405 = vpack.c.b16 %v379, %v378
      %v406 = vpack.c.b16 %v381, %v380
      %v407 = vpack.c.b16 %v383, %v382
      %v408 = vpack.c.b16 %v385, %v384
      %v409 = vpack.c.b16 %v387, %v386
      %v410 = vpack.c.b16 %v389, %v388
      %v411 = vpack.c.b16 %v391, %v390
      %v412 = vpack.c.b16 %v393, %v392
      %v413 = vpack.c.b16 %v395, %v394
      %vm432 = vcmask 261120
      %v434 = vsel %vm432, %v306, 0
      %v437 = vsel %vm432, %v309, 0
      %v440 = vsel %vm432, %v312, 0
      %v443 = vsel %vm432, %v315, 0
      %445 = vmatprep.subr.bf16.mxu0 0
      %446 = vmatpush1.bf16.msra.mxu0 %v403
      %447 = vmatprep.subr.bf16.mxu0 0
      %448 = vmatpush1.bf16.msra.mxu0 %v402
      %449 = vmatprep.subr.bf16.mxu0 0
      %450 = vmatpush1.bf16.msra.mxu0 %v401
      %451 = vmatprep.subr.bf16.mxu0 0
      %452 = vmatpush1.bf16.msra.mxu0 %v400
      %453 = vmatprep.subr.bf16.mxu0 0
      %454 = vmatpush1.bf16.msra.mxu0 %v399
      %455 = vmatprep.subr.bf16.mxu0 0
      %456 = vmatpush1.bf16.msra.mxu0 %v398
      %457 = vmatprep.subr.bf16.mxu0 0
      %458 = vmatpush1.bf16.msra.mxu0 %v397
      %459 = vmatprep.subr.bf16.mxu0 0
      %460 = vmatpush1.bf16.msra.mxu0 %v396
      %461 = vmatprep.subr.bf16.mxu0 0
      %462 = vmatpush2.bf16.msra.mxu0 %v411
      %463 = vmatprep.subr.bf16.mxu0 0
      %464 = vmatpush2.bf16.msra.mxu0 %v410
      %465 = vmatprep.subr.bf16.mxu0 0
      %466 = vmatpush2.bf16.msra.mxu0 %v409
      %467 = vmatprep.subr.bf16.mxu0 0
      %468 = vmatpush2.bf16.msra.mxu0 %v408
      %469 = vmatprep.subr.bf16.mxu0 0
      %470 = vmatpush2.bf16.msra.mxu0 %v407
      %471 = vmatprep.subr.bf16.mxu0 0
      %472 = vmatpush2.bf16.msra.mxu0 %v406
      %473 = vmatprep.subr.bf16.mxu0 0
      %474 = vmatpush2.bf16.msra.mxu0 %v405
      %475 = vmatprep.subr.bf16.mxu0 0
      %476 = vmatpush2.bf16.msra.mxu0 %v404
      %477 = vmatprep.mubr.bf16.mxu0 %v305
      %478 = vmatmul.mubr.bf16.gmra.mxu0 %v304
      %v479 = vpop.f32.mrf.mxu0
      %v480 = vadd.f32 %v262, %v479
      %v481 = vpop.f32.mrf.mxu0
      %v482 = vpop.f32.mrf.mxu0
      %v483 = vadd.f32 %v262, %v482
      %v484 = vpop.f32.mrf.mxu0
      %485 = vmatprep.mubr.bf16.mxu0 %v308
      %486 = vmatmul.mubr.bf16.gmra.mxu0 %v307
      %v487 = vpop.f32.mrf.mxu0
      %v488 = vadd.f32 %v262, %v487
      %v489 = vpop.f32.mrf.mxu0
      %v490 = vpop.f32.mrf.mxu0
      %v491 = vadd.f32 %v262, %v490
      %v492 = vpop.f32.mrf.mxu0
      %493 = vmatprep.mubr.bf16.mxu0 %v311
      %494 = vmatmul.mubr.bf16.gmra.mxu0 %v310
      %v495 = vpop.f32.mrf.mxu0
      %v496 = vadd.f32 %v262, %v495
      %v497 = vpop.f32.mrf.mxu0
      %v498 = vpop.f32.mrf.mxu0
      %v499 = vadd.f32 %v262, %v498
      %v500 = vpop.f32.mrf.mxu0
      %501 = vmatprep.mubr.bf16.mxu0 %v314
      %502 = vmatmul.mubr.bf16.gmra.mxu0 %v313
      %v503 = vpop.f32.mrf.mxu0
      %v504 = vadd.f32 %v262, %v503
      %v505 = vpop.f32.mrf.mxu0
      %v506 = vpop.f32.mrf.mxu0
      %v507 = vadd.f32 %v262, %v506
      %v508 = vpop.f32.mrf.mxu0
      %509 = vdwg.mxu0
      %510 = vmatprep.subr.bf16.mxu0 0
      %511 = vmatpush1.bf16.msra.mxu0 0
      %512 = vmatprep.subr.bf16.mxu0 0
      %513 = vmatpush1.bf16.msra.mxu0 0
      %514 = vmatprep.subr.bf16.mxu0 0
      %515 = vmatpush1.bf16.msra.mxu0 0
      %516 = vmatprep.subr.bf16.mxu0 0
      %517 = vmatpush1.bf16.msra.mxu0 0
      %518 = vmatprep.subr.bf16.mxu0 0
      %519 = vmatpush1.bf16.msra.mxu0 0
      %520 = vmatprep.subr.bf16.mxu0 0
      %521 = vmatpush1.bf16.msra.mxu0 0
      %522 = vmatprep.subr.bf16.mxu0 0
      %523 = vmatpush1.bf16.msra.mxu0 %v413
      %524 = vmatprep.subr.bf16.mxu0 0
      %525 = vmatpush1.bf16.msra.mxu0 %v412
      %526 = vmatprep.subr.bf16.mxu0 0
      %527 = vmatpush2.bf16.msra.mxu0 0
      %528 = vmatprep.subr.bf16.mxu0 0
      %529 = vmatpush2.bf16.msra.mxu0 0
      %530 = vmatprep.subr.bf16.mxu0 0
      %531 = vmatpush2.bf16.msra.mxu0 0
      %532 = vmatprep.subr.bf16.mxu0 0
      %533 = vmatpush2.bf16.msra.mxu0 0
      %534 = vmatprep.subr.bf16.mxu0 0
      %535 = vmatpush2.bf16.msra.mxu0 0
      %536 = vmatprep.subr.bf16.mxu0 0
      %537 = vmatpush2.bf16.msra.mxu0 0
      %538 = vmatprep.subr.bf16.mxu0 0
      %539 = vmatpush2.bf16.msra.mxu0 0
      %540 = vmatprep.subr.bf16.mxu0 0
      %541 = vmatpush2.bf16.msra.mxu0 0
      %542 = vmatprep.mubr.bf16.mxu0 0
      %543 = vmatmul.mubr.bf16.gmra.mxu0 %v434
      %v544 = vpop.f32.mrf.mxu0
      %v545 = vadd.f32 %v480, %v544
      %v546 = vpop.f32.mrf.mxu0
      %v547 = vpop.f32.mrf.mxu0
      %v548 = vadd.f32 %v483, %v547
      %v549 = vpop.f32.mrf.mxu0
      %550 = vmatprep.mubr.bf16.mxu0 0
      %551 = vmatmul.mubr.bf16.gmra.mxu0 %v437
      %v552 = vpop.f32.mrf.mxu0
      %v553 = vadd.f32 %v488, %v552
      %v554 = vpop.f32.mrf.mxu0
      %v555 = vpop.f32.mrf.mxu0
      %v556 = vadd.f32 %v491, %v555
      %v557 = vpop.f32.mrf.mxu0
      %558 = vmatprep.mubr.bf16.mxu0 0
      %559 = vmatmul.mubr.bf16.gmra.mxu0 %v440
      %v560 = vpop.f32.mrf.mxu0
      %v561 = vadd.f32 %v496, %v560
      %v562 = vpop.f32.mrf.mxu0
      %v563 = vpop.f32.mrf.mxu0
      %v564 = vadd.f32 %v499, %v563
      %v565 = vpop.f32.mrf.mxu0
      %566 = vmatprep.mubr.bf16.mxu0 0
      %567 = vmatmul.mubr.bf16.gmra.mxu0 %v443
      %v568 = vpop.f32.mrf.mxu0
      %v569 = vadd.f32 %v504, %v568
      %v570 = vpop.f32.mrf.mxu0
      %v571 = vpop.f32.mrf.mxu0
      %v572 = vadd.f32 %v507, %v571
      %v573 = vpop.f32.mrf.mxu0
      %574 = vdwg.mxu0
      %vm575 = vcmp.ge.f32.partialorder %v545, 0.0
      %vm576 = vcmp.ge.f32.partialorder %v548, 0.0
      %vm577 = vcmp.ge.f32.partialorder %v553, 0.0
      %vm578 = vcmp.ge.f32.partialorder %v556, 0.0
      %vm579 = vcmp.ge.f32.partialorder %v561, 0.0
      %vm580 = vcmp.ge.f32.partialorder %v564, 0.0
      %vm581 = vcmp.ge.f32.partialorder %v569, 0.0
      %vm582 = vcmp.ge.f32.partialorder %v572, 0.0
      %v583 = vld [vmem:[%s3] sm:$0x1]
      %v585 = vlaneseq
      %v586 = vshrl.u32 %v585, 7
      %v587 = vsub.s32 0, %v586
      %v588 = vrot.slane %v583, %v587
      %v590 = vmul.f32 %v588, %v545
      %v591 = vmul.f32 %v588, %v548
      %v592 = vmul.f32 %v588, %v553
      %v593 = vmul.f32 %v588, %v556
      %v594 = vmul.f32 %v588, %v561
      %v595 = vmul.f32 %v588, %v564
      %v596 = vmul.f32 %v588, %v569
      %v597 = vmul.f32 %v588, %v572
      %v598 = vsel %vm575, %v545, %v590
      %v599 = vsel %vm576, %v548, %v591
      %v600 = vsel %vm577, %v553, %v592
      %v601 = vsel %vm578, %v556, %v593
      %v602 = vsel %vm579, %v561, %v594
      %v603 = vsel %vm580, %v564, %v595
      %v604 = vsel %vm581, %v569, %v596
      %v605 = vsel %vm582, %v572, %v597
      %v606 = vpack.c.bf16 %v599, %v598
      %v607 = vpack.c.bf16 %v601, %v600
      %v608 = vpack.c.bf16 %v603, %v602
      %v609 = vpack.c.bf16 %v605, %v604
      %v614 = vunpack.c.l.b16 %v606
      %v615 = vunpack.c.h.b16 %v606
      %v616 = vunpack.c.l.b16 %v607
      %v617 = vunpack.c.h.b16 %v607
      %v618 = vunpack.c.l.b16 %v608
      %v619 = vunpack.c.h.b16 %v608
      %v620 = vunpack.c.l.b16 %v609
      %v621 = vunpack.c.h.b16 %v609
      %v622 = vpack.c.b16 %v614, %v614
      %v623 = vpack.c.b16 %v615, %v615
      %v624 = vpack.c.b16 %v616, %v616
      %v625 = vpack.c.b16 %v617, %v617
      %v626 = vpack.c.b16 %v618, %v618
      %v627 = vpack.c.b16 %v619, %v619
      %v628 = vpack.c.b16 %v620, %v620
      %v629 = vpack.c.b16 %v621, %v621
      %638 = vst [vmem:[%s202] sm:$0xf] %v622
      %639 = vst [vmem:[%s202 + $0x4] sm:$0xf] %v623
      %640 = vst [vmem:[%s202 + $0x8] sm:$0xf] %v624
      %641 = vst [vmem:[%s202 + $0xc] sm:$0xf] %v625
      %642 = vst [vmem:[%s202 + $0x10] sm:$0xf] %v626
      %643 = vst [vmem:[%s202 + $0x14] sm:$0xf] %v627
      %644 = vst [vmem:[%s202 + $0x18] sm:$0xf] %v628
      %645 = vst [vmem:[%s202 + $0x1c] sm:$0xf] %v629
      %s646 = smul.u32 8, %s15
      %p647 = scmp.lt.s32.totalorder %s646, 15
      %s648 = scalar_select %p647, %s646, 15
      %s649 = smul.addr %s648, 4
      %s650 = scalar_lea.vmem %s4, %s649
      // Predicated region
      $region37: #{skm_block_forward.9} parent=35 // pred_check
        %p651 = pneg %p122
      $region38: #{skm_block_forward.9} parent=35 // pred_check_branch
        %653 = sbr.rel (%p651) target = $region40
      $region39: #{skm_block_forward.9} parent=35 // pred_region
        %s654 = smul.u32 8, %s15
      $region40: #{skm_block_forward.9} parent=35 // pred_fallthru
        _
    $region36: #{skm_block_forward.9} parent=5 // pred_fallthru
      _
    %p655 = scmp.le.s32.totalorder 2, %s10
    // Predicated region
    $region41: #{skm_block_forward.9} parent=5 // pred_check
      %p656 = pneg %p655
    $region42: #{skm_block_forward.9} parent=5 // pred_check_branch
      %658 = sbr.rel (%p656) target = $region44
    $region43: #{skm_block_forward.9} parent=5 // pred_region
      %s659 = ssub.s32 %s10, 2
      // Predicated region
      $region45: #{skm_block_forward.9} parent=43 // pred_check
        %p660 = pneg %p128
      $region46: #{skm_block_forward.9} parent=43 // pred_check_branch
        %662 = sbr.rel (%p660) target = $region48
      $region47: #{skm_block_forward.9} parent=43 // pred_region
        %s663 = smul.u32 8, %s16
        %p664 = scmp.lt.s32.totalorder %s663, 15
        %s665 = scalar_select %p664, %s663, 15
        %s666 = smul.addr %s665, 4
        %s667 = scalar_lea.vmem %s4, %s666
      $region48: #{skm_block_forward.9} parent=43 // pred_fallthru
        _
    $region44: #{skm_block_forward.9} parent=5 // pred_fallthru
      _
  $region6: #{skm_block_forward.9} parent=0 // loop_footer
    %s14 = sadd.s32 1, %s10
  $region7: #{skm_block_forward.9} parent=0 // loop_footer_branch
    %9 = sbr.rel target = $region3
  $region8: #{skm_block_forward.9} parent=0 // loop_exit
    _

// kernel: tile.45
$region0: #{tile.45}
  %s0 = inlined_call_operand.vmem [shape: f32[25,16,16], index: 0, kind: input, shape index: {}]
  %s1 = inlined_call_operand.vmem [shape: f32[25,256], index: 1, kind: output, shape index: {}]
  %v2 = vld [vmem:[%s0] ss:$8 sm:$0xf]
  %v3 = vld [vmem:[%s0] ss:$8 sm:$0xf0]
  %vm4 = vcmask 1047556
  %v5 = vsel %vm4, %v3, %v2
  %vm6 = vcmask 130048
  %7 = vst.msk [vmem:[%s1] ss:$8 sm:$0x3] %vm6, %v5
  %s8 = scalar_lea.vmem %s1, 4294967281
  %9 = vst.msk [vmem:[%s8] ss:$8 sm:$0xc] %vm6, %v5
  %s10 = scalar_lea.vmem %s1, 4294967266
  %11 = vst.msk [vmem:[%s10] ss:$8 sm:$0x30] %vm6, %v5
  %s12 = scalar_lea.vmem %s1, 4294967251
  %13 = vst.msk [vmem:[%s12] ss:$8 sm:$0xc0] %vm6, %v5
  %s14 = scalar_lea.vmem %s0, 64
  %v15 = vld [vmem:[%s14] ss:$8 sm:$0xf]
  %s16 = scalar_lea.vmem %s0, 64
  %v17 = vld [vmem:[%s16] ss:$8 sm:$0xf0]
  %vm18 = vcmask 1047556
  %v19 = vsel %vm18, %v17, %v15
  %vm20 = vcmask 130048
  %s21 = scalar_lea.vmem %s1, 4
  %22 = vst.msk [vmem:[%s21] ss:$8 sm:$0x3] %vm20, %v19
  %s23 = scalar_lea.vmem %s1, 4294967285
  %24 = vst.msk [vmem:[%s23] ss:$8 sm:$0xc] %vm20, %v19
  %s25 = scalar_lea.vmem %s1, 4294967270
  %26 = vst.msk [vmem:[%s25] ss:$8 sm:$0x30] %vm20, %v19
  %s27 = scalar_lea.vmem %s1, 4294967255
  %28 = vst.msk [vmem:[%s27] ss:$8 sm:$0xc0] %vm20, %v19
  %s29 = scalar_lea.vmem %s0, 128
  %v30 = vld [vmem:[%s29] ss:$8 sm:$0xf]
  %s31 = scalar_lea.vmem %s0, 128
  %v32 = vld [vmem:[%s31] ss:$8 sm:$0xf0]
  %vm33 = vcmask 1047556
  %v34 = vsel %vm33, %v32, %v30
  %vm35 = vcmask 130048
  %s36 = scalar_lea.vmem %s1, 16
  %37 = vst.msk [vmem:[%s36] ss:$8 sm:$0x3] %vm35, %v34
  %s38 = scalar_lea.vmem %s1, 1
  %39 = vst.msk [vmem:[%s38] ss:$8 sm:$0xc] %vm35, %v34
  %s40 = scalar_lea.vmem %s1, 4294967282
  %41 = vst.msk [vmem:[%s40] ss:$8 sm:$0x30] %vm35, %v34
  %s42 = scalar_lea.vmem %s1, 4294967267
  %43 = vst.msk [vmem:[%s42] ss:$8 sm:$0xc0] %vm35, %v34
  %s44 = scalar_lea.vmem %s0, 192
  %v45 = vld [vmem:[%s44] ss:$8 sm:$0xf]
  %s46 = scalar_lea.vmem %s0, 192
  %v47 = vld [vmem:[%s46] ss:$8 sm:$0xf0]
  %vm48 = vcmask 1047556
  %v49 = vsel %vm48, %v47, %v45
  %vm50 = vcmask 130048
  %s51 = scalar_lea.vmem %s1, 20
  %52 = vst.msk [vmem:[%s51] ss:$8 sm:$0x3] %vm50, %v49
  %s53 = scalar_lea.vmem %s1, 5
  %54 = vst.msk [vmem:[%s53] ss:$8 sm:$0xc] %vm50, %v49
  %s55 = scalar_lea.vmem %s1, 4294967286
  %56 = vst.msk [vmem:[%s55] ss:$8 sm:$0x30] %vm50, %v49
  %s57 = scalar_lea.vmem %s1, 4294967271
  %58 = vst.msk [vmem:[%s57] ss:$8 sm:$0xc0] %vm50, %v49
  %s59 = scalar_lea.vmem %s0, 256
  %v60 = vld [vmem:[%s59] ss:$8 sm:$0xf]
  %s61 = scalar_lea.vmem %s0, 256
  %v62 = vld [vmem:[%s61] ss:$8 sm:$0xf0]
  %vm63 = vcmask 1047556
  %v64 = vsel %vm63, %v62, %v60
  %vm65 = vcmask 130048
  %s66 = scalar_lea.vmem %s1, 32
  %67 = vst.msk [vmem:[%s66] ss:$8 sm:$0x3] %vm65, %v64
  %s68 = scalar_lea.vmem %s1, 17
  %69 = vst.msk [vmem:[%s68] ss:$8 sm:$0xc] %vm65, %v64
  %s70 = scalar_lea.vmem %s1, 2
  %71 = vst.msk [vmem:[%s70] ss:$8 sm:$0x30] %vm65, %v64
  %s72 = scalar_lea.vmem %s1, 4294967283
  %73 = vst.msk [vmem:[%s72] ss:$8 sm:$0xc0] %vm65, %v64
  %s74 = scalar_lea.vmem %s0, 320
  %v75 = vld [vmem:[%s74] ss:$8 sm:$0xf]
  %s76 = scalar_lea.vmem %s0, 320
  %v77 = vld [vmem:[%s76] ss:$8 sm:$0xf0]
  %vm78 = vcmask 1047556
  %v79 = vsel %vm78, %v77, %v75
  %vm80 = vcmask 130048
  %s81 = scalar_lea.vmem %s1, 36
  %82 = vst.msk [vmem:[%s81] ss:$8 sm:$0x3] %vm80, %v79
  %s83 = scalar_lea.vmem %s1, 21
  %84 = vst.msk [vmem:[%s83] ss:$8 sm:$0xc] %vm80, %v79
  %s85 = scalar_lea.vmem %s1, 6
  %86 = vst.msk [vmem:[%s85] ss:$8 sm:$0x30] %vm80, %v79
  %s87 = scalar_lea.vmem %s1, 4294967287
  %88 = vst.msk [vmem:[%s87] ss:$8 sm:$0xc0] %vm80, %v79
  %s89 = scalar_lea.vmem %s0, 384
  %s90 = smov 3
  %v91 = vld [vmem:[%s89] ss:$8 sm:%s90]
  %vm92 = vcmask 130048
  %s93 = scalar_lea.vmem %s1, 48
  %94 = vst.msk [vmem:[%s93] ss:$8 sm:$0x3] %vm92, %v91
  %s95 = scalar_lea.vmem %s0, 7
  %s96 = smov 3
  %v97 = vld [vmem:[%s95] ss:$16 sm:%s96]
  %s98 = scalar_lea.vmem %s0, 7
  %s99 = smov 12
  %v100 = vld [vmem:[%s98] ss:$16 sm:%s99]
  %vm101 = vcmask 1043458
  %v102 = vsel %vm101, %v100, %v97
  %s103 = scalar_lea.vmem %s0, 7
  %s104 = smov 48
  %v105 = vld [vmem:[%s103] ss:$16 sm:%s104]
  %vm106 = vcmask 1045508
  %v107 = vsel %vm106, %v105, %v102
  %s108 = scalar_lea.vmem %s0, 7
  %s109 = smov 192
  %v110 = vld [vmem:[%s108] ss:$16 sm:%s109]
  %vm111 = vcmask 1047558
  %v112 = vsel %vm111, %v110, %v107
  %113 = vrot.lane.b32.xlu0 %v112, 112
  %v114 = vpop.permute.xlu0 %113
  %vm115 = vcmask 1048448
  %116 = vst.msk [vmem:[%s1] sm:$0xff] %vm115, %v114
  %s117 = scalar_lea.vmem %s0, 263
  %s118 = smov 3
  %v119 = vld [vmem:[%s117] ss:$16 sm:%s118]
  %s120 = scalar_lea.vmem %s0, 263
  %s121 = smov 12
  %v122 = vld [vmem:[%s120] ss:$16 sm:%s121]
  %vm123 = vcmask 1043458
  %v124 = vsel %vm123, %v122, %v119
  %s125 = scalar_lea.vmem %s0, 263
  %s126 = smov 48
  %v127 = vld [vmem:[%s125] ss:$16 sm:%s126]
  %vm128 = vcmask 1045508
  %v129 = vsel %vm128, %v127, %v124
  %s130 = scalar_lea.vmem %s0, 263
  %s131 = smov 192
  %v132 = vld [vmem:[%s130] ss:$16 sm:%s131]
  %vm133 = vcmask 1047558
  %v134 = vsel %vm133, %v132, %v129
  %135 = vrot.lane.b32.xlu0 %v134, 112
  %v136 = vpop.permute.xlu0 %135
  %vm137 = vcmask 1048448
  %s138 = scalar_lea.vmem %s1, 32
  %139 = vst.msk [vmem:[%s138] sm:$0xff] %vm137, %v136
  %s140 = scalar_lea.vmem %s0, 15
  %s141 = smov 3
  %v142 = vld [vmem:[%s140] ss:$16 sm:%s141]
  %s143 = scalar_lea.vmem %s0, 15
  %s144 = smov 12
  %v145 = vld [vmem:[%s143] ss:$16 sm:%s144]
  %vm146 = vcmask 1043458
  %v147 = vsel %vm146, %v145, %v142
  %s148 = scalar_lea.vmem %s0, 15
  %s149 = smov 48
  %v150 = vld [vmem:[%s148] ss:$16 sm:%s149]
  %vm151 = vcmask 1045508
  %v152 = vsel %vm151, %v150, %v147
  %s153 = scalar_lea.vmem %s0, 15
  %s154 = smov 192
  %v155 = vld [vmem:[%s153] ss:$16 sm:%s154]
  %vm156 = vcmask 1047558
  %v157 = vsel %vm156, %v155, %v152
  %158 = vrot.lane.b32.xlu0 %v157, 112
  %v159 = vpop.permute.xlu0 %158
  %vm160 = vcmask 1048448
  %s161 = scalar_lea.vmem %s1, 8
  %162 = vst.msk [vmem:[%s161] sm:$0xff] %vm160, %v159
  %s163 = scalar_lea.vmem %s0, 271
  %s164 = smov 3
  %v165 = vld [vmem:[%s163] ss:$16 sm:%s164]
  %s166 = scalar_lea.vmem %s0, 271
  %s167 = smov 12
  %v168 = vld [vmem:[%s166] ss:$16 sm:%s167]
  %vm169 = vcmask 1043458
  %v170 = vsel %vm169, %v168, %v165
  %s171 = scalar_lea.vmem %s0, 271
  %s172 = smov 48
  %v173 = vld [vmem:[%s171] ss:$16 sm:%s172]
  %vm174 = vcmask 1045508
  %v175 = vsel %vm174, %v173, %v170
  %s176 = scalar_lea.vmem %s0, 271
  %s177 = smov 192
  %v178 = vld [vmem:[%s176] ss:$16 sm:%s177]
  %vm179 = vcmask 1047558
  %v180 = vsel %vm179, %v178, %v175
  %181 = vrot.lane.b32.xlu0 %v180, 112
  %v182 = vpop.permute.xlu0 %181
  %vm183 = vcmask 1048448
  %s184 = scalar_lea.vmem %s1, 40
  %185 = vst.msk [vmem:[%s184] sm:$0xff] %vm183, %v182
  %s186 = scalar_lea.vmem %s0, 135
  %s187 = smov 3
  %v188 = vld [vmem:[%s186] ss:$16 sm:%s187]
  %s189 = scalar_lea.vmem %s0, 135
  %s190 = smov 12
  %v191 = vld [vmem:[%s189] ss:$16 sm:%s190]
  %vm192 = vcmask 1043458
  %v193 = vsel %vm192, %v191, %v188
  %s194 = scalar_lea.vmem %s0, 135
  %s195 = smov 48
  %v196 = vld [vmem:[%s194] ss:$16 sm:%s195]
  %vm197 = vcmask 1045508
  %v198 = vsel %vm197, %v196, %v193
  %s199 = scalar_lea.vmem %s0, 135
  %s200 = smov 192
  %v201 = vld [vmem:[%s199] ss:$16 sm:%s200]
  %vm202 = vcmask 1047558
  %v203 = vsel %vm202, %v201, %v198
  %204 = vrot.lane.b32.xlu0 %v203, 112
  %v205 = vpop.permute.xlu0 %204
  %vm206 = vcmask 1048448
  %s207 = scalar_lea.vmem %s1, 16
  %208 = vst.msk [vmem:[%s207] sm:$0xff] %vm206, %v205
  %s209 = scalar_lea.vmem %s0, 391
  %s210 = smov 3
  %v211 = vld [vmem:[%s209] ss:$-248 sm:%s210]
  %s212 = scalar_lea.vmem %s0, 127
  %s213 = smov 12
  %v214 = vld [vmem:[%s212] ss:$16 sm:%s213]
  %vm215 = vcmask 1043458
  %v216 = vsel %vm215, %v214, %v211
  %s217 = scalar_lea.vmem %s0, 127
  %s218 = smov 48
  %v219 = vld [vmem:[%s217] ss:$16 sm:%s218]
  %vm220 = vcmask 1045508
  %v221 = vsel %vm220, %v219, %v216
  %s222 = scalar_lea.vmem %s0, 127
  %s223 = smov 192
  %v224 = vld [vmem:[%s222] ss:$16 sm:%s223]
  %vm225 = vcmask 1047558
  %v226 = vsel %vm225, %v224, %v221
  %227 = vrot.lane.b32.xlu0 %v226, 112
  %v228 = vpop.permute.xlu0 %227
  %vm229 = vcmask 1048448
  %s230 = scalar_lea.vmem %s1, 48
  %231 = vst.msk [vmem:[%s230] ss:$-24 sm:$0x3] %vm229, %v228
  %s232 = scalar_lea.vmem %s1, 23
  %233 = vst.msk [vmem:[%s232] sm:$0xfc] %vm229, %v228
  %s234 = scalar_lea.vmem %s0, 399
  %s235 = smov 3
  %v236 = vld [vmem:[%s234] ss:$-144 sm:%s235]
  %237 = vrot.lane.b32.xlu0 %v236, 112
  %v238 = vpop.permute.xlu0 %237
  %vm239 = vcmask 1048448
  %s240 = scalar_lea.vmem %s1, 56
  %241 = vst.msk [vmem:[%s240] ss:$-25 sm:$0x3] %vm239, %v238
  %s242 = scalar_lea.vmem %s0, 6
  %s243 = smov 3
  %v244 = vld [vmem:[%s242] ss:$16 sm:%s243]
  %s245 = scalar_lea.vmem %s0, 6
  %s246 = smov 12
  %v247 = vld [vmem:[%s245] ss:$16 sm:%s246]
  %vm248 = vcmask 1043458
  %v249 = vsel %vm248, %v247, %v244
  %s250 = scalar_lea.vmem %s0, 6
  %s251 = smov 48
  %v252 = vld [vmem:[%s250] ss:$16 sm:%s251]
  %vm253 = vcmask 1045508
  %v254 = vsel %vm253, %v252, %v249
  %s255 = scalar_lea.vmem %s0, 6
  %s256 = smov 192
  %v257 = vld [vmem:[%s255] ss:$16 sm:%s256]
  %vm258 = vcmask 1047558
  %v259 = vsel %vm258, %v257, %v254
  %260 = vrot.lane.b32.xlu0 %v259, 96
  %v261 = vpop.permute.xlu0 %260
  %vm262 = vcmask 917248
  %263 = vst.msk [vmem:[%s1] sm:$0xff] %vm262, %v261
  %s264 = scalar_lea.vmem %s0, 262
  %s265 = smov 3
  %v266 = vld [vmem:[%s264] ss:$16 sm:%s265]
  %s267 = scalar_lea.vmem %s0, 262
  %s268 = smov 12
  %v269 = vld [vmem:[%s267] ss:$16 sm:%s268]
  %vm270 = vcmask 1043458
  %v271 = vsel %vm270, %v269, %v266
  %s272 = scalar_lea.vmem %s0, 262
  %s273 = smov 48
  %v274 = vld [vmem:[%s272] ss:$16 sm:%s273]
  %vm275 = vcmask 1045508
  %v276 = vsel %vm275, %v274, %v271
  %s277 = scalar_lea.vmem %s0, 262
  %s278 = smov 192
  %v279 = vld [vmem:[%s277] ss:$16 sm:%s278]
  %vm280 = vcmask 1047558
  %v281 = vsel %vm280, %v279, %v276
  %282 = vrot.lane.b32.xlu0 %v281, 96
  %v283 = vpop.permute.xlu0 %282
  %vm284 = vcmask 917248
  %s285 = scalar_lea.vmem %s1, 32
  %286 = vst.msk [vmem:[%s285] sm:$0xff] %vm284, %v283
  %s287 = scalar_lea.vmem %s0, 14
  %s288 = smov 3
  %v289 = vld [vmem:[%s287] ss:$16 sm:%s288]
  %s290 = scalar_lea.vmem %s0, 14
  %s291 = smov 12
  %v292 = vld [vmem:[%s290] ss:$16 sm:%s291]
  %vm293 = vcmask 1043458
  %v294 = vsel %vm293, %v292, %v289
  %s295 = scalar_lea.vmem %s0, 14
  %s296 = smov 48
  %v297 = vld [vmem:[%s295] ss:$16 sm:%s296]
  %vm298 = vcmask 1045508
  %v299 = vsel %vm298, %v297, %v294
  %s300 = scalar_lea.vmem %s0, 14
  %s301 = smov 192
  %v302 = vld [vmem:[%s300] ss:$16 sm:%s301]
  %vm303 = vcmask 1047558
  %v304 = vsel %vm303, %v302, %v299
  %305 = vrot.lane.b32.xlu0 %v304, 96
  %v306 = vpop.permute.xlu0 %305
  %vm307 = vcmask 917248
  %s308 = scalar_lea.vmem %s1, 8
  %309 = vst.msk [vmem:[%s308] sm:$0xff] %vm307, %v306
  %s310 = scalar_lea.vmem %s0, 270
  %s311 = smov 3
  %v312 = vld [vmem:[%s310] ss:$16 sm:%s311]
  %s313 = scalar_lea.vmem %s0, 270
  %s314 = smov 12
  %v315 = vld [vmem:[%s313] ss:$16 sm:%s314]
  %vm316 = vcmask 1043458
  %v317 = vsel %vm316, %v315, %v312
  %s318 = scalar_lea.vmem %s0, 270
  %s319 = smov 48
  %v320 = vld [vmem:[%s318] ss:$16 sm:%s319]
  %vm321 = vcmask 1045508
  %v322 = vsel %vm321, %v320, %v317
  %s323 = scalar_lea.vmem %s0, 270
  %s324 = smov 192
  %v325 = vld [vmem:[%s323] ss:$16 sm:%s324]
  %vm326 = vcmask 1047558
  %v327 = vsel %vm326, %v325, %v322
  %328 = vrot.lane.b32.xlu0 %v327, 96
  %v329 = vpop.permute.xlu0 %328
  %vm330 = vcmask 917248
  %s331 = scalar_lea.vmem %s1, 40
  %332 = vst.msk [vmem:[%s331] sm:$0xff] %vm330, %v329
  %s333 = scalar_lea.vmem %s0, 134
  %s334 = smov 3
  %v335 = vld [vmem:[%s333] ss:$16 sm:%s334]
  %s336 = scalar_lea.vmem %s0, 134
  %s337 = smov 12
  %v338 = vld [vmem:[%s336] ss:$16 sm:%s337]
  %vm339 = vcmask 1043458
  %v340 = vsel %vm339, %v338, %v335
  %s341 = scalar_lea.vmem %s0, 134
  %s342 = smov 48
  %v343 = vld [vmem:[%s341] ss:$16 sm:%s342]
  %vm344 = vcmask 1045508
  %v345 = vsel %vm344, %v343, %v340
  %s346 = scalar_lea.vmem %s0, 134
  %s347 = smov 192
  %v348 = vld [vmem:[%s346] ss:$16 sm:%s347]
  %vm349 = vcmask 1047558
  %v350 = vsel %vm349, %v348, %v345
  %351 = vrot.lane.b32.xlu0 %v350, 96
  %v352 = vpop.permute.xlu0 %351
  %vm353 = vcmask 917248
  %s354 = scalar_lea.vmem %s1, 16
  %355 = vst.msk [vmem:[%s354] sm:$0xff] %vm353, %v352
  %s356 = scalar_lea.vmem %s0, 390
  %s357 = smov 3
  %v358 = vld [vmem:[%s356] ss:$-248 sm:%s357]
  %s359 = scalar_lea.vmem %s0, 126
  %s360 = smov 12
  %v361 = vld [vmem:[%s359] ss:$16 sm:%s360]
  %vm362 = vcmask 1043458
  %v363 = vsel %vm362, %v361, %v358
  %s364 = scalar_lea.vmem %s0, 126
  %s365 = smov 48
  %v366 = vld [vmem:[%s364] ss:$16 sm:%s365]
  %vm367 = vcmask 1045508
  %v368 = vsel %vm367, %v366, %v363
  %s369 = scalar_lea.vmem %s0, 126
  %s370 = smov 192
  %v371 = vld [vmem:[%s369] ss:$16 sm:%s370]
  %vm372 = vcmask 1047558
  %v373 = vsel %vm372, %v371, %v368
  %374 = vrot.lane.b32.xlu0 %v373, 96
  %v375 = vpop.permute.xlu0 %374
  %vm376 = vcmask 917248
  %s377 = scalar_lea.vmem %s1, 48
  %378 = vst.msk [vmem:[%s377] ss:$-24 sm:$0x3] %vm376, %v375
  %s379 = scalar_lea.vmem %s1, 23
  %380 = vst.msk [vmem:[%s379] sm:$0xfc] %vm376, %v375
  %s381 = scalar_lea.vmem %s0, 398
  %s382 = smov 3
  %v383 = vld [vmem:[%s381] ss:$-144 sm:%s382]
  %384 = vrot.lane.b32.xlu0 %v383, 96
  %v385 = vpop.permute.xlu0 %384
  %vm386 = vcmask 917248
  %s387 = scalar_lea.vmem %s1, 56
  %388 = vst.msk [vmem:[%s387] ss:$-25 sm:$0x3] %vm386, %v385
  %s389 = scalar_lea.vmem %s0, 5
  %s390 = smov 3
  %v391 = vld [vmem:[%s389] ss:$16 sm:%s390]
  %s392 = scalar_lea.vmem %s0, 5
  %s393 = smov 12
  %v394 = vld [vmem:[%s392] ss:$16 sm:%s393]
  %vm395 = vcmask 1043458
  %v396 = vsel %vm395, %v394, %v391
  %s397 = scalar_lea.vmem %s0, 5
  %s398 = smov 48
  %v399 = vld [vmem:[%s397] ss:$16 sm:%s398]
  %vm400 = vcmask 1045508
  %v401 = vsel %vm400, %v399, %v396
  %s402 = scalar_lea.vmem %s0, 5
  %s403 = smov 192
  %v404 = vld [vmem:[%s402] ss:$16 sm:%s403]
  %vm405 = vcmask 1047558
  %v406 = vsel %vm405, %v404, %v401
  %407 = vrot.lane.b32.xlu0 %v406, 80
  %v408 = vpop.permute.xlu0 %407
  %vm409 = vcmask 786048
  %410 = vst.msk [vmem:[%s1] sm:$0xff] %vm409, %v408
  %s411 = scalar_lea.vmem %s0, 261
  %s412 = smov 3
  %v413 = vld [vmem:[%s411] ss:$16 sm:%s412]
  %s414 = scalar_lea.vmem %s0, 261
  %s415 = smov 12
  %v416 = vld [vmem:[%s414] ss:$16 sm:%s415]
  %vm417 = vcmask 1043458
  %v418 = vsel %vm417, %v416, %v413
  %s419 = scalar_lea.vmem %s0, 261
  %s420 = smov 48
  %v421 = vld [vmem:[%s419] ss:$16 sm:%s420]
  %vm422 = vcmask 1045508
  %v423 = vsel %vm422, %v421, %v418
  %s424 = scalar_lea.vmem %s0, 261
  %s425 = smov 192
  %v426 = vld [vmem:[%s424] ss:$16 sm:%s425]
  %vm427 = vcmask 1047558
  %v428 = vsel %vm427, %v426, %v423
  %429 = vrot.lane.b32.xlu0 %v428, 80
  %v430 = vpop.permute.xlu0 %429
  %vm431 = vcmask 786048
  %s432 = scalar_lea.vmem %s1, 32
  %433 = vst.msk [vmem:[%s432] sm:$0xff] %vm431, %v430
  %s434 = scalar_lea.vmem %s0, 13
  %s435 = smov 3
  %v436 = vld [vmem:[%s434] ss:$16 sm:%s435]
  %s437 = scalar_lea.vmem %s0, 13
  %s438 = smov 12
  %v439 = vld [vmem:[%s437] ss:$16 sm:%s438]
  %vm440 = vcmask 1043458
  %v441 = vsel %vm440, %v439, %v436
  %s442 = scalar_lea.vmem %s0, 13
  %s443 = smov 48
  %v444 = vld [vmem:[%s442] ss:$16 sm:%s443]
  %vm445 = vcmask 1045508
  %v446 = vsel %vm445, %v444, %v441
  %s447 = scalar_lea.vmem %s0, 13
  %s448 = smov 192
  %v449 = vld [vmem:[%s447] ss:$16 sm:%s448]
  %vm450 = vcmask 1047558
  %v451 = vsel %vm450, %v449, %v446
  %452 = vrot.lane.b32.xlu0 %v451, 80
  %v453 = vpop.permute.xlu0 %452
  %vm454 = vcmask 786048
  %s455 = scalar_lea.vmem %s1, 8
  %456 = vst.msk [vmem:[%s455] sm:$0xff] %vm454, %v453
  %s457 = scalar_lea.vmem %s0, 269
  %s458 = smov 3
  %v459 = vld [vmem:[%s457] ss:$16 sm:%s458]
  %s460 = scalar_lea.vmem %s0, 269
  %s461 = smov 12
  %v462 = vld [vmem:[%s460] ss:$16 sm:%s461]
  %vm463 = vcmask 1043458
  %v464 = vsel %vm463, %v462, %v459
  %s465 = scalar_lea.vmem %s0, 269
  %s466 = smov 48
  %v467 = vld [vmem:[%s465] ss:$16 sm:%s466]
  %vm468 = vcmask 1045508
  %v469 = vsel %vm468, %v467, %v464
  %s470 = scalar_lea.vmem %s0, 269
  %s471 = smov 192
  %v472 = vld [vmem:[%s470] ss:$16 sm:%s471]
  %vm473 = vcmask 1047558
  %v474 = vsel %vm473, %v472, %v469
  %475 = vrot.lane.b32.xlu0 %v474, 80
  %v476 = vpop.permute.xlu0 %475
  %vm477 = vcmask 786048
  %s478 = scalar_lea.vmem %s1, 40
  %479 = vst.msk [vmem:[%s478] sm:$0xff] %vm477, %v476
  %s480 = scalar_lea.vmem %s0, 133
  %s481 = smov 3
  %v482 = vld [vmem:[%s480] ss:$16 sm:%s481]
  %s483 = scalar_lea.vmem %s0, 133
  %s484 = smov 12
  %v485 = vld [vmem:[%s483] ss:$16 sm:%s484]
  %vm486 = vcmask 1043458
  %v487 = vsel %vm486, %v485, %v482
  %s488 = scalar_lea.vmem %s0, 133
  %s489 = smov 48
  %v490 = vld [vmem:[%s488] ss:$16 sm:%s489]
  %vm491 = vcmask 1045508
  %v492 = vsel %vm491, %v490, %v487
  %s493 = scalar_lea.vmem %s0, 133
  %s494 = smov 192
  %v495 = vld [vmem:[%s493] ss:$16 sm:%s494]
  %vm496 = vcmask 1047558
  %v497 = vsel %vm496, %v495, %v492
  %498 = vrot.lane.b32.xlu0 %v497, 80
  %v499 = vpop.permute.xlu0 %498
  %vm500 = vcmask 786048
  %s501 = scalar_lea.vmem %s1, 16
  %502 = vst.msk [vmem:[%s501] sm:$0xff] %vm500, %v499
  %s503 = scalar_lea.vmem %s0, 389
  %s504 = smov 3
  %v505 = vld [vmem:[%s503] ss:$-248 sm:%s504]
  %s506 = scalar_lea.vmem %s0, 125
  %s507 = smov 12
  %v508 = vld [vmem:[%s506] ss:$16 sm:%s507]
  %vm509 = vcmask 1043458
  %v510 = vsel %vm509, %v508, %v505
  %s511 = scalar_lea.vmem %s0, 125
  %s512 = smov 48
  %v513 = vld [vmem:[%s511] ss:$16 sm:%s512]
  %vm514 = vcmask 1045508
  %v515 = vsel %vm514, %v513, %v510
  %s516 = scalar_lea.vmem %s0, 125
  %s517 = smov 192
  %v518 = vld [vmem:[%s516] ss:$16 sm:%s517]
  %vm519 = vcmask 1047558
  %v520 = vsel %vm519, %v518, %v515
  %521 = vrot.lane.b32.xlu0 %v520, 80
  %v522 = vpop.permute.xlu0 %521
  %vm523 = vcmask 786048
  %s524 = scalar_lea.vmem %s1, 48
  %525 = vst.msk [vmem:[%s524] ss:$-24 sm:$0x3] %vm523, %v522
  %s526 = scalar_lea.vmem %s1, 23
  %527 = vst.msk [vmem:[%s526] sm:$0xfc] %vm523, %v522
  %s528 = scalar_lea.vmem %s0, 397
  %s529 = smov 3
  %v530 = vld [vmem:[%s528] ss:$-144 sm:%s529]
  %531 = vrot.lane.b32.xlu0 %v530, 80
  %v532 = vpop.permute.xlu0 %531
  %vm533 = vcmask 786048
  %s534 = scalar_lea.vmem %s1, 56
  %535 = vst.msk [vmem:[%s534] ss:$-25 sm:$0x3] %vm533, %v532
  %s536 = scalar_lea.vmem %s0, 4
  %s537 = smov 3
  %v538 = vld [vmem:[%s536] ss:$16 sm:%s537]
  %s539 = scalar_lea.vmem %s0, 4
  %s540 = smov 12
  %v541 = vld [vmem:[%s539] ss:$16 sm:%s540]
  %vm542 = vcmask 1043458
  %v543 = vsel %vm542, %v541, %v538
  %s544 = scalar_lea.vmem %s0, 4
  %s545 = smov 48
  %v546 = vld [vmem:[%s544] ss:$16 sm:%s545]
  %vm547 = vcmask 1045508
  %v548 = vsel %vm547, %v546, %v543
  %s549 = scalar_lea.vmem %s0, 4
  %s550 = smov 192
  %v551 = vld [vmem:[%s549] ss:$16 sm:%s550]
  %vm552 = vcmask 1047558
  %v553 = vsel %vm552, %v551, %v548
  %554 = vrot.lane.b32.xlu0 %v553, 64
  %v555 = vpop.permute.xlu0 %554
  %vm556 = vcmask 654848
  %557 = vst.msk [vmem:[%s1] sm:$0xff] %vm556, %v555
  %s558 = scalar_lea.vmem %s0, 260
  %s559 = smov 3
  %v560 = vld [vmem:[%s558] ss:$16 sm:%s559]
  %s561 = scalar_lea.vmem %s0, 260
  %s562 = smov 12
  %v563 = vld [vmem:[%s561] ss:$16 sm:%s562]
  %vm564 = vcmask 1043458
  %v565 = vsel %vm564, %v563, %v560
  %s566 = scalar_lea.vmem %s0, 260
  %s567 = smov 48
  %v568 = vld [vmem:[%s566] ss:$16 sm:%s567]
  %vm569 = vcmask 1045508
  %v570 = vsel %vm569, %v568, %v565
  %s571 = scalar_lea.vmem %s0, 260
  %s572 = smov 192
  %v573 = vld [vmem:[%s571] ss:$16 sm:%s572]
  %vm574 = vcmask 1047558
  %v575 = vsel %vm574, %v573, %v570
  %576 = vrot.lane.b32.xlu0 %v575, 64
  %v577 = vpop.permute.xlu0 %576
  %vm578 = vcmask 654848
  %s579 = scalar_lea.vmem %s1, 32
  %580 = vst.msk [vmem:[%s579] sm:$0xff] %vm578, %v577
  %s581 = scalar_lea.vmem %s0, 12
  %s582 = smov 3
  %v583 = vld [vmem:[%s581] ss:$16 sm:%s582]
  %s584 = scalar_lea.vmem %s0, 12
  %s585 = smov 12
  %v586 = vld [vmem:[%s584] ss:$16 sm:%s585]
  %vm587 = vcmask 1043458
  %v588 = vsel %vm587, %v586, %v583
  %s589 = scalar_lea.vmem %s0, 12
  %s590 = smov 48
  %v591 = vld [vmem:[%s589] ss:$16 sm:%s590]
  %vm592 = vcmask 1045508
  %v593 = vsel %vm592, %v591, %v588
  %s594 = scalar_lea.vmem %s0, 12
  %s595 = smov 192
  %v596 = vld [vmem:[%s594] ss:$16 sm:%s595]
  %vm597 = vcmask 1047558
  %v598 = vsel %vm597, %v596, %v593
  %599 = vrot.lane.b32.xlu0 %v598, 64
  %v600 = vpop.permute.xlu0 %599
  %vm601 = vcmask 654848
  %s602 = scalar_lea.vmem %s1, 8
  %603 = vst.msk [vmem:[%s602] sm:$0xff] %vm601, %v600
  %s604 = scalar_lea.vmem %s0, 268
  %s605 = smov 3
  %v606 = vld [vmem:[%s604] ss:$16 sm:%s605]
  %s607 = scalar_lea.vmem %s0, 268
  %s608 = smov 12
  %v609 = vld [vmem:[%s607] ss:$16 sm:%s608]
  %vm610 = vcmask 1043458
  %v611 = vsel %vm610, %v609, %v606
  %s612 = scalar_lea.vmem %s0, 268
  %s613 = smov 48
  %v614 = vld [vmem:[%s612] ss:$16 sm:%s613]
  %vm615 = vcmask 1045508
  %v616 = vsel %vm615, %v614, %v611
  %s617 = scalar_lea.vmem %s0, 268
  %s618 = smov 192
  %v619 = vld [vmem:[%s617] ss:$16 sm:%s618]
  %vm620 = vcmask 1047558
  %v621 = vsel %vm620, %v619, %v616
  %622 = vrot.lane.b32.xlu0 %v621, 64
  %v623 = vpop.permute.xlu0 %622
  %vm624 = vcmask 654848
  %s625 = scalar_lea.vmem %s1, 40
  %626 = vst.msk [vmem:[%s625] sm:$0xff] %vm624, %v623
  %s627 = scalar_lea.vmem %s0, 132
  %s628 = smov 3
  %v629 = vld [vmem:[%s627] ss:$16 sm:%s628]
  %s630 = scalar_lea.vmem %s0, 132
  %s631 = smov 12
  %v632 = vld [vmem:[%s630] ss:$16 sm:%s631]
  %vm633 = vcmask 1043458
  %v634 = vsel %vm633, %v632, %v629
  %s635 = scalar_lea.vmem %s0, 132
  %s636 = smov 48
  %v637 = vld [vmem:[%s635] ss:$16 sm:%s636]
  %vm638 = vcmask 1045508
  %v639 = vsel %vm638, %v637, %v634
  %s640 = scalar_lea.vmem %s0, 132
  %s641 = smov 192
  %v642 = vld [vmem:[%s640] ss:$16 sm:%s641]
  %vm643 = vcmask 1047558
  %v644 = vsel %vm643, %v642, %v639
  %645 = vrot.lane.b32.xlu0 %v644, 64
  %v646 = vpop.permute.xlu0 %645
  %vm647 = vcmask 654848
  %s648 = scalar_lea.vmem %s1, 16
  %649 = vst.msk [vmem:[%s648] sm:$0xff] %vm647, %v646
  %s650 = scalar_lea.vmem %s0, 388
  %s651 = smov 3
  %v652 = vld [vmem:[%s650] ss:$-248 sm:%s651]
  %s653 = scalar_lea.vmem %s0, 124
  %s654 = smov 12
  %v655 = vld [vmem:[%s653] ss:$16 sm:%s654]
  %vm656 = vcmask 1043458
  %v657 = vsel %vm656, %v655, %v652
  %s658 = scalar_lea.vmem %s0, 124
  %s659 = smov 48
  %v660 = vld [vmem:[%s658] ss:$16 sm:%s659]
  %vm661 = vcmask 1045508
  %v662 = vsel %vm661, %v660, %v657
  %s663 = scalar_lea.vmem %s0, 124
  %s664 = smov 192
  %v665 = vld [vmem:[%s663] ss:$16 sm:%s664]
  %vm666 = vcmask 1047558
  %v667 = vsel %vm666, %v665, %v662
  %668 = vrot.lane.b32.xlu0 %v667, 64
  %v669 = vpop.permute.xlu0 %668
  %vm670 = vcmask 654848
  %s671 = scalar_lea.vmem %s1, 48
  %672 = vst.msk [vmem:[%s671] ss:$-24 sm:$0x3] %vm670, %v669
  %s673 = scalar_lea.vmem %s1, 23
  %674 = vst.msk [vmem:[%s673] sm:$0xfc] %vm670, %v669
  %s675 = scalar_lea.vmem %s0, 396
  %s676 = smov 3
  %v677 = vld [vmem:[%s675] ss:$-144 sm:%s676]
  %678 = vrot.lane.b32.xlu0 %v677, 64
  %v679 = vpop.permute.xlu0 %678
  %vm680 = vcmask 654848
  %s681 = scalar_lea.vmem %s1, 56
  %682 = vst.msk [vmem:[%s681] ss:$-25 sm:$0x3] %vm680, %v679
  %s683 = scalar_lea.vmem %s0, 3
  %s684 = smov 3
  %v685 = vld [vmem:[%s683] ss:$16 sm:%s684]
  %s686 = scalar_lea.vmem %s0, 3
  %s687 = smov 12
  %v688 = vld [vmem:[%s686] ss:$16 sm:%s687]
  %vm689 = vcmask 1043458
  %v690 = vsel %vm689, %v688, %v685
  %s691 = scalar_lea.vmem %s0, 3
  %s692 = smov 48
  %v693 = vld [vmem:[%s691] ss:$16 sm:%s692]
  %vm694 = vcmask 1045508
  %v695 = vsel %vm694, %v693, %v690
  %s696 = scalar_lea.vmem %s0, 3
  %s697 = smov 192
  %v698 = vld [vmem:[%s696] ss:$16 sm:%s697]
  %vm699 = vcmask 1047558
  %v700 = vsel %vm699, %v698, %v695
  %701 = vrot.lane.b32.xlu0 %v700, 48
  %v702 = vpop.permute.xlu0 %701
  %vm703 = vcmask 523648
  %704 = vst.msk [vmem:[%s1] sm:$0xff] %vm703, %v702
  %s705 = scalar_lea.vmem %s0, 259
  %s706 = smov 3
  %v707 = vld [vmem:[%s705] ss:$16 sm:%s706]
  %s708 = scalar_lea.vmem %s0, 259
  %s709 = smov 12
  %v710 = vld [vmem:[%s708] ss:$16 sm:%s709]
  %vm711 = vcmask 1043458
  %v712 = vsel %vm711, %v710, %v707
  %s713 = scalar_lea.vmem %s0, 259
  %s714 = smov 48
  %v715 = vld [vmem:[%s713] ss:$16 sm:%s714]
  %vm716 = vcmask 1045508
  %v717 = vsel %vm716, %v715, %v712
  %s718 = scalar_lea.vmem %s0, 259
  %s719 = smov 192
  %v720 = vld [vmem:[%s718] ss:$16 sm:%s719]
  %vm721 = vcmask 1047558
  %v722 = vsel %vm721, %v720, %v717
  %723 = vrot.lane.b32.xlu0 %v722, 48
  %v724 = vpop.permute.xlu0 %723
  %vm725 = vcmask 523648
  %s726 = scalar_lea.vmem %s1, 32
  %727 = vst.msk [vmem:[%s726] sm:$0xff] %vm725, %v724
  %s728 = scalar_lea.vmem %s0, 11
  %s729 = smov 3
  %v730 = vld [vmem:[%s728] ss:$16 sm:%s729]
  %s731 = scalar_lea.vmem %s0, 11
  %s732 = smov 12
  %v733 = vld [vmem:[%s731] ss:$16 sm:%s732]
  %vm734 = vcmask 1043458
  %v735 = vsel %vm734, %v733, %v730
  %s736 = scalar_lea.vmem %s0, 11
  %s737 = smov 48
  %v738 = vld [vmem:[%s736] ss:$16 sm:%s737]
  %vm739 = vcmask 1045508
  %v740 = vsel %vm739, %v738, %v735
  %s741 = scalar_lea.vmem %s0, 11
  %s742 = smov 192
  %v743 = vld [vmem:[%s741] ss:$16 sm:%s742]
  %vm744 = vcmask 1047558
  %v745 = vsel %vm744, %v743, %v740
  %746 = vrot.lane.b32.xlu0 %v745, 48
  %v747 = vpop.permute.xlu0 %746
  %vm748 = vcmask 523648
  %s749 = scalar_lea.vmem %s1, 8
  %750 = vst.msk [vmem:[%s749] sm:$0xff] %vm748, %v747
  %s751 = scalar_lea.vmem %s0, 267
  %s752 = smov 3
  %v753 = vld [vmem:[%s751] ss:$16 sm:%s752]
  %s754 = scalar_lea.vmem %s0, 267
  %s755 = smov 12
  %v756 = vld [vmem:[%s754] ss:$16 sm:%s755]
  %vm757 = vcmask 1043458
  %v758 = vsel %vm757, %v756, %v753
  %s759 = scalar_lea.vmem %s0, 267
  %s760 = smov 48
  %v761 = vld [vmem:[%s759] ss:$16 sm:%s760]
  %vm762 = vcmask 1045508
  %v763 = vsel %vm762, %v761, %v758
  %s764 = scalar_lea.vmem %s0, 267
  %s765 = smov 192
  %v766 = vld [vmem:[%s764] ss:$16 sm:%s765]
  %vm767 = vcmask 1047558
  %v768 = vsel %vm767, %v766, %v763
  %769 = vrot.lane.b32.xlu0 %v768, 48
  %v770 = vpop.permute.xlu0 %769
  %vm771 = vcmask 523648
  %s772 = scalar_lea.vmem %s1, 40
  %773 = vst.msk [vmem:[%s772] sm:$0xff] %vm771, %v770
  %s774 = scalar_lea.vmem %s0, 131
  %s775 = smov 3
  %v776 = vld [vmem:[%s774] ss:$16 sm:%s775]
  %s777 = scalar_lea.vmem %s0, 131
  %s778 = smov 12
  %v779 = vld [vmem:[%s777] ss:$16 sm:%s778]
  %vm780 = vcmask 1043458
  %v781 = vsel %vm780, %v779, %v776
  %s782 = scalar_lea.vmem %s0, 131
  %s783 = smov 48
  %v784 = vld [vmem:[%s782] ss:$16 sm:%s783]
  %vm785 = vcmask 1045508
  %v786 = vsel %vm785, %v784, %v781
  %s787 = scalar_lea.vmem %s0, 131
  %s788 = smov 192
  %v789 = vld [vmem:[%s787] ss:$16 sm:%s788]
  %vm790 = vcmask 1047558
  %v791 = vsel %vm790, %v789, %v786
  %792 = vrot.lane.b32.xlu0 %v791, 48
  %v793 = vpop.permute.xlu0 %792
  %vm794 = vcmask 523648
  %s795 = scalar_lea.vmem %s1, 16
  %796 = vst.msk [vmem:[%s795] sm:$0xff] %vm794, %v793
  %s797 = scalar_lea.vmem %s0, 387
  %s798 = smov 3
  %v799 = vld [vmem:[%s797] ss:$-248 sm:%s798]
  %s800 = scalar_lea.vmem %s0, 123
  %s801 = smov 12
  %v802 = vld [vmem:[%s800] ss:$16 sm:%s801]
  %vm803 = vcmask 1043458
  %v804 = vsel %vm803, %v802, %v799
  %s805 = scalar_lea.vmem %s0, 123
  %s806 = smov 48
  %v807 = vld [vmem:[%s805] ss:$16 sm:%s806]
  %vm808 = vcmask 1045508
  %v809 = vsel %vm808, %v807, %v804
  %s810 = scalar_lea.vmem %s0, 123
  %s811 = smov 192
  %v812 = vld [vmem:[%s810] ss:$16 sm:%s811]
  %vm813 = vcmask 1047558
  %v814 = vsel %vm813, %v812, %v809
  %815 = vrot.lane.b32.xlu0 %v814, 48
  %v816 = vpop.permute.xlu0 %815
  %vm817 = vcmask 523648
  %s818 = scalar_lea.vmem %s1, 48
  %819 = vst.msk [vmem:[%s818] ss:$-24 sm:$0x3] %vm817, %v816
  %s820 = scalar_lea.vmem %s1, 23
  %821 = vst.msk [vmem:[%s820] sm:$0xfc] %vm817, %v816
  %s822 = scalar_lea.vmem %s0, 395
  %s823 = smov 3
  %v824 = vld [vmem:[%s822] ss:$-144 sm:%s823]
  %825 = vrot.lane.b32.xlu0 %v824, 48
  %v826 = vpop.permute.xlu0 %825
  %vm827 = vcmask 523648
  %s828 = scalar_lea.vmem %s1, 56
  %829 = vst.msk [vmem:[%s828] ss:$-25 sm:$0x3] %vm827, %v826
  %s830 = scalar_lea.vmem %s0, 2
  %s831 = smov 3
  %v832 = vld [vmem:[%s830] ss:$16 sm:%s831]
  %s833 = scalar_lea.vmem %s0, 2
  %s834 = smov 12
  %v835 = vld [vmem:[%s833] ss:$16 sm:%s834]
  %vm836 = vcmask 1043458
  %v837 = vsel %vm836, %v835, %v832
  %s838 = scalar_lea.vmem %s0, 2
  %s839 = smov 48
  %v840 = vld [vmem:[%s838] ss:$16 sm:%s839]
  %vm841 = vcmask 1045508
  %v842 = vsel %vm841, %v840, %v837
  %s843 = scalar_lea.vmem %s0, 2
  %s844 = smov 192
  %v845 = vld [vmem:[%s843] ss:$16 sm:%s844]
  %vm846 = vcmask 1047558
  %v847 = vsel %vm846, %v845, %v842
  %848 = vrot.lane.b32.xlu0 %v847, 32
  %v849 = vpop.permute.xlu0 %848
  %vm850 = vcmask 392448
  %851 = vst.msk [vmem:[%s1] sm:$0xff] %vm850, %v849
  %s852 = scalar_lea.vmem %s0, 258
  %s853 = smov 3
  %v854 = vld [vmem:[%s852] ss:$16 sm:%s853]
  %s855 = scalar_lea.vmem %s0, 258
  %s856 = smov 12
  %v857 = vld [vmem:[%s855] ss:$16 sm:%s856]
  %vm858 = vcmask 1043458
  %v859 = vsel %vm858, %v857, %v854
  %s860 = scalar_lea.vmem %s0, 258
  %s861 = smov 48
  %v862 = vld [vmem:[%s860] ss:$16 sm:%s861]
  %vm863 = vcmask 1045508
  %v864 = vsel %vm863, %v862, %v859
  %s865 = scalar_lea.vmem %s0, 258
  %s866 = smov 192
  %v867 = vld [vmem:[%s865] ss:$16 sm:%s866]
  %vm868 = vcmask 1047558
  %v869 = vsel %vm868, %v867, %v864
  %870 = vrot.lane.b32.xlu0 %v869, 32
  %v871 = vpop.permute.xlu0 %870
  %vm872 = vcmask 392448
  %s873 = scalar_lea.vmem %s1, 32
  %874 = vst.msk [vmem:[%s873] sm:$0xff] %vm872, %v871
  %s875 = scalar_lea.vmem %s0, 10
  %s876 = smov 3
  %v877 = vld [vmem:[%s875] ss:$16 sm:%s876]
  %s878 = scalar_lea.vmem %s0, 10
  %s879 = smov 12
  %v880 = vld [vmem:[%s878] ss:$16 sm:%s879]
  %vm881 = vcmask 1043458
  %v882 = vsel %vm881, %v880, %v877
  %s883 = scalar_lea.vmem %s0, 10
  %s884 = smov 48
  %v885 = vld [vmem:[%s883] ss:$16 sm:%s884]
  %vm886 = vcmask 1045508
  %v887 = vsel %vm886, %v885, %v882
  %s888 = scalar_lea.vmem %s0, 10
  %s889 = smov 192
  %v890 = vld [vmem:[%s888] ss:$16 sm:%s889]
  %vm891 = vcmask 1047558
  %v892 = vsel %vm891, %v890, %v887
  %893 = vrot.lane.b32.xlu0 %v892, 32
  %v894 = vpop.permute.xlu0 %893
  %vm895 = vcmask 392448
  %s896 = scalar_lea.vmem %s1, 8
  %897 = vst.msk [vmem:[%s896] sm:$0xff] %vm895, %v894
  %s898 = scalar_lea.vmem %s0, 266
  %s899 = smov 3
  %v900 = vld [vmem:[%s898] ss:$16 sm:%s899]
  %s901 = scalar_lea.vmem %s0, 266
  %s902 = smov 12
  %v903 = vld [vmem:[%s901] ss:$16 sm:%s902]
  %vm904 = vcmask 1043458
  %v905 = vsel %vm904, %v903, %v900
  %s906 = scalar_lea.vmem %s0, 266
  %s907 = smov 48
  %v908 = vld [vmem:[%s906] ss:$16 sm:%s907]
  %vm909 = vcmask 1045508
  %v910 = vsel %vm909, %v908, %v905
  %s911 = scalar_lea.vmem %s0, 266
  %s912 = smov 192
  %v913 = vld [vmem:[%s911] ss:$16 sm:%s912]
  %vm914 = vcmask 1047558
  %v915 = vsel %vm914, %v913, %v910
  %916 = vrot.lane.b32.xlu0 %v915, 32
  %v917 = vpop.permute.xlu0 %916
  %vm918 = vcmask 392448
  %s919 = scalar_lea.vmem %s1, 40
  %920 = vst.msk [vmem:[%s919] sm:$0xff] %vm918, %v917
  %s921 = scalar_lea.vmem %s0, 130
  %s922 = smov 3
  %v923 = vld [vmem:[%s921] ss:$16 sm:%s922]
  %s924 = scalar_lea.vmem %s0, 130
  %s925 = smov 12
  %v926 = vld [vmem:[%s924] ss:$16 sm:%s925]
  %vm927 = vcmask 1043458
  %v928 = vsel %vm927, %v926, %v923
  %s929 = scalar_lea.vmem %s0, 130
  %s930 = smov 48
  %v931 = vld [vmem:[%s929] ss:$16 sm:%s930]
  %vm932 = vcmask 1045508
  %v933 = vsel %vm932, %v931, %v928
  %s934 = scalar_lea.vmem %s0, 130
  %s935 = smov 192
  %v936 = vld [vmem:[%s934] ss:$16 sm:%s935]
  %vm937 = vcmask 1047558
  %v938 = vsel %vm937, %v936, %v933
  %939 = vrot.lane.b32.xlu0 %v938, 32
  %v940 = vpop.permute.xlu0 %939
  %vm941 = vcmask 392448
  %s942 = scalar_lea.vmem %s1, 16
  %943 = vst.msk [vmem:[%s942] sm:$0xff] %vm941, %v940
  %s944 = scalar_lea.vmem %s0, 386
  %s945 = smov 3
  %v946 = vld [vmem:[%s944] ss:$-248 sm:%s945]
  %s947 = scalar_lea.vmem %s0, 122
  %s948 = smov 12
  %v949 = vld [vmem:[%s947] ss:$16 sm:%s948]
  %vm950 = vcmask 1043458
  %v951 = vsel %vm950, %v949, %v946
  %s952 = scalar_lea.vmem %s0, 122
  %s953 = smov 48
  %v954 = vld [vmem:[%s952] ss:$16 sm:%s953]
  %vm955 = vcmask 1045508
  %v956 = vsel %vm955, %v954, %v951
  %s957 = scalar_lea.vmem %s0, 122
  %s958 = smov 192
  %v959 = vld [vmem:[%s957] ss:$16 sm:%s958]
  %vm960 = vcmask 1047558
  %v961 = vsel %vm960, %v959, %v956
  %962 = vrot.lane.b32.xlu0 %v961, 32
  %v963 = vpop.permute.xlu0 %962
  %vm964 = vcmask 392448
  %s965 = scalar_lea.vmem %s1, 48
  %966 = vst.msk [vmem:[%s965] ss:$-24 sm:$0x3] %vm964, %v963
  %s967 = scalar_lea.vmem %s1, 23
  %968 = vst.msk [vmem:[%s967] sm:$0xfc] %vm964, %v963
  %s969 = scalar_lea.vmem %s0, 394
  %s970 = smov 3
  %v971 = vld [vmem:[%s969] ss:$-144 sm:%s970]
  %972 = vrot.lane.b32.xlu0 %v971, 32
  %v973 = vpop.permute.xlu0 %972
  %vm974 = vcmask 392448
  %s975 = scalar_lea.vmem %s1, 56
  %976 = vst.msk [vmem:[%s975] ss:$-25 sm:$0x3] %vm974, %v973
  %s977 = scalar_lea.vmem %s0, 1
  %s978 = smov 3
  %v979 = vld [vmem:[%s977] ss:$16 sm:%s978]
  %s980 = scalar_lea.vmem %s0, 1
  %s981 = smov 12
  %v982 = vld [vmem:[%s980] ss:$16 sm:%s981]
  %vm983 = vcmask 1043458
  %v984 = vsel %vm983, %v982, %v979
  %s985 = scalar_lea.vmem %s0, 1
  %s986 = smov 48
  %v987 = vld [vmem:[%s985] ss:$16 sm:%s986]
  %vm988 = vcmask 1045508
  %v989 = vsel %vm988, %v987, %v984
  %s990 = scalar_lea.vmem %s0, 1
  %s991 = smov 192
  %v992 = vld [vmem:[%s990] ss:$16 sm:%s991]
  %vm993 = vcmask 1047558
  %v994 = vsel %vm993, %v992, %v989
  %995 = vrot.lane.b32.xlu0 %v994, 16
  %v996 = vpop.permute.xlu0 %995
  %vm997 = vcmask 261248
  %998 = vst.msk [vmem:[%s1] sm:$0xff] %vm997, %v996
  %s999 = scalar_lea.vmem %s0, 257
  %s1000 = smov 3
  %v1001 = vld [vmem:[%s999] ss:$16 sm:%s1000]
  %s1002 = scalar_lea.vmem %s0, 257
  %s1003 = smov 12
  %v1004 = vld [vmem:[%s1002] ss:$16 sm:%s1003]
  %vm1005 = vcmask 1043458
  %v1006 = vsel %vm1005, %v1004, %v1001
  %s1007 = scalar_lea.vmem %s0, 257
  %s1008 = smov 48
  %v1009 = vld [vmem:[%s1007] ss:$16 sm:%s1008]
  %vm1010 = vcmask 1045508
  %v1011 = vsel %vm1010, %v1009, %v1006
  %s1012 = scalar_lea.vmem %s0, 257
  %s1013 = smov 192
  %v1014 = vld [vmem:[%s1012] ss:$16 sm:%s1013]
  %vm1015 = vcmask 1047558
  %v1016 = vsel %vm1015, %v1014, %v1011
  %1017 = vrot.lane.b32.xlu0 %v1016, 16
  %v1018 = vpop.permute.xlu0 %1017
  %vm1019 = vcmask 261248
  %s1020 = scalar_lea.vmem %s1, 32
  %1021 = vst.msk [vmem:[%s1020] sm:$0xff] %vm1019, %v1018
  %s1022 = scalar_lea.vmem %s0, 9
  %s1023 = smov 3
  %v1024 = vld [vmem:[%s1022] ss:$16 sm:%s1023]
  %s1025 = scalar_lea.vmem %s0, 9
  %s1026 = smov 12
  %v1027 = vld [vmem:[%s1025] ss:$16 sm:%s1026]
  %vm1028 = vcmask 1043458
  %v1029 = vsel %vm1028, %v1027, %v1024
  %s1030 = scalar_lea.vmem %s0, 9
  %s1031 = smov 48
  %v1032 = vld [vmem:[%s1030] ss:$16 sm:%s1031]
  %vm1033 = vcmask 1045508
  %v1034 = vsel %vm1033, %v1032, %v1029
  %s1035 = scalar_lea.vmem %s0, 9
  %s1036 = smov 192
  %v1037 = vld [vmem:[%s1035] ss:$16 sm:%s1036]
  %vm1038 = vcmask 1047558
  %v1039 = vsel %vm1038, %v1037, %v1034
  %1040 = vrot.lane.b32.xlu0 %v1039, 16
  %v1041 = vpop.permute.xlu0 %1040
  %vm1042 = vcmask 261248
  %s1043 = scalar_lea.vmem %s1, 8
  %1044 = vst.msk [vmem:[%s1043] sm:$0xff] %vm1042, %v1041
  %s1045 = scalar_lea.vmem %s0, 265
  %s1046 = smov 3
  %v1047 = vld [vmem:[%s1045] ss:$16 sm:%s1046]
  %s1048 = scalar_lea.vmem %s0, 265
  %s1049 = smov 12
  %v1050 = vld [vmem:[%s1048] ss:$16 sm:%s1049]
  %vm1051 = vcmask 1043458
  %v1052 = vsel %vm1051, %v1050, %v1047
  %s1053 = scalar_lea.vmem %s0, 265
  %s1054 = smov 48
  %v1055 = vld [vmem:[%s1053] ss:$16 sm:%s1054]
  %vm1056 = vcmask 1045508
  %v1057 = vsel %vm1056, %v1055, %v1052
  %s1058 = scalar_lea.vmem %s0, 265
  %s1059 = smov 192
  %v1060 = vld [vmem:[%s1058] ss:$16 sm:%s1059]
  %vm1061 = vcmask 1047558
  %v1062 = vsel %vm1061, %v1060, %v1057
  %1063 = vrot.lane.b32.xlu0 %v1062, 16
  %v1064 = vpop.permute.xlu0 %1063
  %vm1065 = vcmask 261248
  %s1066 = scalar_lea.vmem %s1, 40
  %1067 = vst.msk [vmem:[%s1066] sm:$0xff] %vm1065, %v1064
  %s1068 = scalar_lea.vmem %s0, 129
  %s1069 = smov 3
  %v1070 = vld [vmem:[%s1068] ss:$16 sm:%s1069]
  %s1071 = scalar_lea.vmem %s0, 129
  %s1072 = smov 12
  %v1073 = vld [vmem:[%s1071] ss:$16 sm:%s1072]
  %vm1074 = vcmask 1043458
  %v1075 = vsel %vm1074, %v1073, %v1070
  %s1076 = scalar_lea.vmem %s0, 129
  %s1077 = smov 48
  %v1078 = vld [vmem:[%s1076] ss:$16 sm:%s1077]
  %vm1079 = vcmask 1045508
  %v1080 = vsel %vm1079, %v1078, %v1075
  %s1081 = scalar_lea.vmem %s0, 129
  %s1082 = smov 192
  %v1083 = vld [vmem:[%s1081] ss:$16 sm:%s1082]
  %vm1084 = vcmask 1047558
  %v1085 = vsel %vm1084, %v1083, %v1080
  %1086 = vrot.lane.b32.xlu0 %v1085, 16
  %v1087 = vpop.permute.xlu0 %1086
  %vm1088 = vcmask 261248
  %s1089 = scalar_lea.vmem %s1, 16
  %1090 = vst.msk [vmem:[%s1089] sm:$0xff] %vm1088, %v1087
  %s1091 = scalar_lea.vmem %s0, 385
  %s1092 = smov 3
  %v1093 = vld [vmem:[%s1091] ss:$-248 sm:%s1092]
  %s1094 = scalar_lea.vmem %s0, 121
  %s1095 = smov 12
  %v1096 = vld [vmem:[%s1094] ss:$16 sm:%s1095]
  %vm1097 = vcmask 1043458
  %v1098 = vsel %vm1097, %v1096, %v1093
  %s1099 = scalar_lea.vmem %s0, 121
  %s1100 = smov 48
  %v1101 = vld [vmem:[%s1099] ss:$16 sm:%s1100]
  %vm1102 = vcmask 1045508
  %v1103 = vsel %vm1102, %v1101, %v1098
  %s1104 = scalar_lea.vmem %s0, 121
  %s1105 = smov 192
  %v1106 = vld [vmem:[%s1104] ss:$16 sm:%s1105]
  %vm1107 = vcmask 1047558
  %v1108 = vsel %vm1107, %v1106, %v1103
  %1109 = vrot.lane.b32.xlu0 %v1108, 16
  %v1110 = vpop.permute.xlu0 %1109
  %vm1111 = vcmask 261248
  %s1112 = scalar_lea.vmem %s1, 48
  %1113 = vst.msk [vmem:[%s1112] ss:$-24 sm:$0x3] %vm1111, %v1110
  %s1114 = scalar_lea.vmem %s1, 23
  %1115 = vst.msk [vmem:[%s1114] sm:$0xfc] %vm1111, %v1110
  %s1116 = scalar_lea.vmem %s0, 393
  %s1117 = smov 3
  %v1118 = vld [vmem:[%s1116] ss:$-144 sm:%s1117]
  %1119 = vrot.lane.b32.xlu0 %v1118, 16
  %v1120 = vpop.permute.xlu0 %1119
  %vm1121 = vcmask 261248
  %s1122 = scalar_lea.vmem %s1, 56
  %1123 = vst.msk [vmem:[%s1122] ss:$-25 sm:$0x3] %vm1121, %v1120

// kernel: tile.41
$region0: #{tile.41}
  %s0 = inlined_call_operand.vmem [shape: f32[9,16,16], index: 0, kind: input, shape index: {}]
  %s1 = inlined_call_operand.vmem [shape: f32[9,256], index: 1, kind: output, shape index: {}]
  %v2 = vld [vmem:[%s0] ss:$8 sm:$0xf]
  %v3 = vld [vmem:[%s0] ss:$8 sm:$0xf0]
  %vm4 = vcmask 1047556
  %v5 = vsel %vm4, %v3, %v2
  %vm6 = vcmask 130048
  %7 = vst.msk [vmem:[%s1] ss:$8 sm:$0x3] %vm6, %v5
  %s8 = scalar_lea.vmem %s1, 4294967281
  %9 = vst.msk [vmem:[%s8] ss:$8 sm:$0xc] %vm6, %v5
  %s10 = scalar_lea.vmem %s1, 4294967266
  %11 = vst.msk [vmem:[%s10] ss:$8 sm:$0x30] %vm6, %v5
  %s12 = scalar_lea.vmem %s1, 4294967251
  %13 = vst.msk [vmem:[%s12] ss:$8 sm:$0xc0] %vm6, %v5
  %s14 = scalar_lea.vmem %s0, 64
  %v15 = vld [vmem:[%s14] ss:$8 sm:$0xf]
  %s16 = scalar_lea.vmem %s0, 64
  %v17 = vld [vmem:[%s16] ss:$8 sm:$0xf0]
  %vm18 = vcmask 1047556
  %v19 = vsel %vm18, %v17, %v15
  %vm20 = vcmask 130048
  %s21 = scalar_lea.vmem %s1, 4
  %22 = vst.msk [vmem:[%s21] ss:$8 sm:$0x3] %vm20, %v19
  %s23 = scalar_lea.vmem %s1, 4294967285
  %24 = vst.msk [vmem:[%s23] ss:$8 sm:$0xc] %vm20, %v19
  %s25 = scalar_lea.vmem %s1, 4294967270
  %26 = vst.msk [vmem:[%s25] ss:$8 sm:$0x30] %vm20, %v19
  %s27 = scalar_lea.vmem %s1, 4294967255
  %28 = vst.msk [vmem:[%s27] ss:$8 sm:$0xc0] %vm20, %v19
  %s29 = scalar_lea.vmem %s0, 128
  %s30 = smov 3
  %v31 = vld [vmem:[%s29] ss:$8 sm:%s30]
  %vm32 = vcmask 130048
  %s33 = scalar_lea.vmem %s1, 16
  %34 = vst.msk [vmem:[%s33] ss:$8 sm:$0x3] %vm32, %v31
  %s35 = scalar_lea.vmem %s0, 7
  %s36 = smov 3
  %v37 = vld [vmem:[%s35] ss:$16 sm:%s36]
  %s38 = scalar_lea.vmem %s0, 7
  %s39 = smov 12
  %v40 = vld [vmem:[%s38] ss:$16 sm:%s39]
  %vm41 = vcmask 1043458
  %v42 = vsel %vm41, %v40, %v37
  %s43 = scalar_lea.vmem %s0, 7
  %s44 = smov 48
  %v45 = vld [vmem:[%s43] ss:$16 sm:%s44]
  %vm46 = vcmask 1045508
  %v47 = vsel %vm46, %v45, %v42
  %s48 = scalar_lea.vmem %s0, 7
  %s49 = smov 192
  %v50 = vld [vmem:[%s48] ss:$16 sm:%s49]
  %vm51 = vcmask 1047558
  %v52 = vsel %vm51, %v50, %v47
  %53 = vrot.lane.b32.xlu0 %v52, 112
  %v54 = vpop.permute.xlu0 %53
  %vm55 = vcmask 1048448
  %56 = vst.msk [vmem:[%s1] sm:$0xff] %vm55, %v54
  %s57 = scalar_lea.vmem %s0, 15
  %s58 = smov 3
  %v59 = vld [vmem:[%s57] ss:$16 sm:%s58]
  %s60 = scalar_lea.vmem %s0, 15
  %s61 = smov 12
  %v62 = vld [vmem:[%s60] ss:$16 sm:%s61]
  %vm63 = vcmask 1043458
  %v64 = vsel %vm63, %v62, %v59
  %s65 = scalar_lea.vmem %s0, 15
  %s66 = smov 48
  %v67 = vld [vmem:[%s65] ss:$16 sm:%s66]
  %vm68 = vcmask 1045508
  %v69 = vsel %vm68, %v67, %v64
  %s70 = scalar_lea.vmem %s0, 15
  %s71 = smov 192
  %v72 = vld [vmem:[%s70] ss:$16 sm:%s71]
  %vm73 = vcmask 1047558
  %v74 = vsel %vm73, %v72, %v69
  %75 = vrot.lane.b32.xlu0 %v74, 112
  %v76 = vpop.permute.xlu0 %75
  %vm77 = vcmask 1048448
  %s78 = scalar_lea.vmem %s1, 8
  %79 = vst.msk [vmem:[%s78] sm:$0xff] %vm77, %v76
  %s80 = scalar_lea.vmem %s0, 135
  %s81 = smov 3
  %v82 = vld [vmem:[%s80] ss:$8 sm:%s81]
  %83 = vrot.lane.b32.xlu0 %v82, 112
  %v84 = vpop.permute.xlu0 %83
  %vm85 = vcmask 1048448
  %s86 = scalar_lea.vmem %s1, 16
  %87 = vst.msk [vmem:[%s86] ss:$8 sm:$0x3] %vm85, %v84
  %s88 = scalar_lea.vmem %s0, 6
  %s89 = smov 3
  %v90 = vld [vmem:[%s88] ss:$16 sm:%s89]
  %s91 = scalar_lea.vmem %s0, 6
  %s92 = smov 12
  %v93 = vld [vmem:[%s91] ss:$16 sm:%s92]
  %vm94 = vcmask 1043458
  %v95 = vsel %vm94, %v93, %v90
  %s96 = scalar_lea.vmem %s0, 6
  %s97 = smov 48
  %v98 = vld [vmem:[%s96] ss:$16 sm:%s97]
  %vm99 = vcmask 1045508
  %v100 = vsel %vm99, %v98, %v95
  %s101 = scalar_lea.vmem %s0, 6
  %s102 = smov 192
  %v103 = vld [vmem:[%s101] ss:$16 sm:%s102]
  %vm104 = vcmask 1047558
  %v105 = vsel %vm104, %v103, %v100
  %106 = vrot.lane.b32.xlu0 %v105, 96
  %v107 = vpop.permute.xlu0 %106
  %vm108 = vcmask 917248
  %109 = vst.msk [vmem:[%s1] sm:$0xff] %vm108, %v107
  %s110 = scalar_lea.vmem %s0, 14
  %s111 = smov 3
  %v112 = vld [vmem:[%s110] ss:$16 sm:%s111]
  %s113 = scalar_lea.vmem %s0, 14
  %s114 = smov 12
  %v115 = vld [vmem:[%s113] ss:$16 sm:%s114]
  %vm116 = vcmask 1043458
  %v117 = vsel %vm116, %v115, %v112
  %s118 = scalar_lea.vmem %s0, 14
  %s119 = smov 48
  %v120 = vld [vmem:[%s118] ss:$16 sm:%s119]
  %vm121 = vcmask 1045508
  %v122 = vsel %vm121, %v120, %v117
  %s123 = scalar_lea.vmem %s0, 14
  %s124 = smov 192
  %v125 = vld [vmem:[%s123] ss:$16 sm:%s124]
  %vm126 = vcmask 1047558
  %v127 = vsel %vm126, %v125, %v122
  %128 = vrot.lane.b32.xlu0 %v127, 96
  %v129 = vpop.permute.xlu0 %128
  %vm130 = vcmask 917248
  %s131 = scalar_lea.vmem %s1, 8
  %132 = vst.msk [vmem:[%s131] sm:$0xff] %vm130, %v129
  %s133 = scalar_lea.vmem %s0, 134
  %s134 = smov 3
  %v135 = vld [vmem:[%s133] ss:$8 sm:%s134]
  %136 = vrot.lane.b32.xlu0 %v135, 96
  %v137 = vpop.permute.xlu0 %136
  %vm138 = vcmask 917248
  %s139 = scalar_lea.vmem %s1, 16
  %140 = vst.msk [vmem:[%s139] ss:$8 sm:$0x3] %vm138, %v137
  %s141 = scalar_lea.vmem %s0, 5
  %s142 = smov 3
  %v143 = vld [vmem:[%s141] ss:$16 sm:%s142]
  %s144 = scalar_lea.vmem %s0, 5
  %s145 = smov 12
  %v146 = vld [vmem:[%s144] ss:$16 sm:%s145]
  %vm147 = vcmask 1043458
  %v148 = vsel %vm147, %v146, %v143
  %s149 = scalar_lea.vmem %s0, 5
  %s150 = smov 48
  %v151 = vld [vmem:[%s149] ss:$16 sm:%s150]
  %vm152 = vcmask 1045508
  %v153 = vsel %vm152, %v151, %v148
  %s154 = scalar_lea.vmem %s0, 5
  %s155 = smov 192
  %v156 = vld [vmem:[%s154] ss:$16 sm:%s155]
  %vm157 = vcmask 1047558
  %v158 = vsel %vm157, %v156, %v153
  %159 = vrot.lane.b32.xlu0 %v158, 80
  %v160 = vpop.permute.xlu0 %159
  %vm161 = vcmask 786048
  %162 = vst.msk [vmem:[%s1] sm:$0xff] %vm161, %v160
  %s163 = scalar_lea.vmem %s0, 13
  %s164 = smov 3
  %v165 = vld [vmem:[%s163] ss:$16 sm:%s164]
  %s166 = scalar_lea.vmem %s0, 13
  %s167 = smov 12
  %v168 = vld [vmem:[%s166] ss:$16 sm:%s167]
  %vm169 = vcmask 1043458
  %v170 = vsel %vm169, %v168, %v165
  %s171 = scalar_lea.vmem %s0, 13
  %s172 = smov 48
  %v173 = vld [vmem:[%s171] ss:$16 sm:%s172]
  %vm174 = vcmask 1045508
  %v175 = vsel %vm174, %v173, %v170
  %s176 = scalar_lea.vmem %s0, 13
  %s177 = smov 192
  %v178 = vld [vmem:[%s176] ss:$16 sm:%s177]
  %vm179 = vcmask 1047558
  %v180 = vsel %vm179, %v178, %v175
  %181 = vrot.lane.b32.xlu0 %v180, 80
  %v182 = vpop.permute.xlu0 %181
  %vm183 = vcmask 786048
  %s184 = scalar_lea.vmem %s1, 8
  %185 = vst.msk [vmem:[%s184] sm:$0xff] %vm183, %v182
  %s186 = scalar_lea.vmem %s0, 133
  %s187 = smov 3
  %v188 = vld [vmem:[%s186] ss:$8 sm:%s187]
  %189 = vrot.lane.b32.xlu0 %v188, 80
  %v190 = vpop.permute.xlu0 %189
  %vm191 = vcmask 786048
  %s192 = scalar_lea.vmem %s1, 16
  %193 = vst.msk [vmem:[%s192] ss:$8 sm:$0x3] %vm191, %v190
  %s194 = scalar_lea.vmem %s0, 4
  %s195 = smov 3
  %v196 = vld [vmem:[%s194] ss:$16 sm:%s195]
  %s197 = scalar_lea.vmem %s0, 4
  %s198 = smov 12
  %v199 = vld [vmem:[%s197] ss:$16 sm:%s198]
  %vm200 = vcmask 1043458
  %v201 = vsel %vm200, %v199, %v196
  %s202 = scalar_lea.vmem %s0, 4
  %s203 = smov 48
  %v204 = vld [vmem:[%s202] ss:$16 sm:%s203]
  %vm205 = vcmask 1045508
  %v206 = vsel %vm205, %v204, %v201
  %s207 = scalar_lea.vmem %s0, 4
  %s208 = smov 192
  %v209 = vld [vmem:[%s207] ss:$16 sm:%s208]
  %vm210 = vcmask 1047558
  %v211 = vsel %vm210, %v209, %v206
  %212 = vrot.lane.b32.xlu0 %v211, 64
  %v213 = vpop.permute.xlu0 %212
  %vm214 = vcmask 654848
  %215 = vst.msk [vmem:[%s1] sm:$0xff] %vm214, %v213
  %s216 = scalar_lea.vmem %s0, 12
  %s217 = smov 3
  %v218 = vld [vmem:[%s216] ss:$16 sm:%s217]
  %s219 = scalar_lea.vmem %s0, 12
  %s220 = smov 12
  %v221 = vld [vmem:[%s219] ss:$16 sm:%s220]
  %vm222 = vcmask 1043458
  %v223 = vsel %vm222, %v221, %v218
  %s224 = scalar_lea.vmem %s0, 12
  %s225 = smov 48
  %v226 = vld [vmem:[%s224] ss:$16 sm:%s225]
  %vm227 = vcmask 1045508
  %v228 = vsel %vm227, %v226, %v223
  %s229 = scalar_lea.vmem %s0, 12
  %s230 = smov 192
  %v231 = vld [vmem:[%s229] ss:$16 sm:%s230]
  %vm232 = vcmask 1047558
  %v233 = vsel %vm232, %v231, %v228
  %234 = vrot.lane.b32.xlu0 %v233, 64
  %v235 = vpop.permute.xlu0 %234
  %vm236 = vcmask 654848
  %s237 = scalar_lea.vmem %s1, 8
  %238 = vst.msk [vmem:[%s237] sm:$0xff] %vm236, %v235
  %s239 = scalar_lea.vmem %s0, 132
  %s240 = smov 3
  %v241 = vld [vmem:[%s239] ss:$8 sm:%s240]
  %242 = vrot.lane.b32.xlu0 %v241, 64
  %v243 = vpop.permute.xlu0 %242
  %vm244 = vcmask 654848
  %s245 = scalar_lea.vmem %s1, 16
  %246 = vst.msk [vmem:[%s245] ss:$8 sm:$0x3] %vm244, %v243
  %s247 = scalar_lea.vmem %s0, 3
  %s248 = smov 3
  %v249 = vld [vmem:[%s247] ss:$16 sm:%s248]
  %s250 = scalar_lea.vmem %s0, 3
  %s251 = smov 12
  %v252 = vld [vmem:[%s250] ss:$16 sm:%s251]
  %vm253 = vcmask 1043458
  %v254 = vsel %vm253, %v252, %v249
  %s255 = scalar_lea.vmem %s0, 3
  %s256 = smov 48
  %v257 = vld [vmem:[%s255] ss:$16 sm:%s256]
  %vm258 = vcmask 1045508
  %v259 = vsel %vm258, %v257, %v254
  %s260 = scalar_lea.vmem %s0, 3
  %s261 = smov 192
  %v262 = vld [vmem:[%s260] ss:$16 sm:%s261]
  %vm263 = vcmask 1047558
  %v264 = vsel %vm263, %v262, %v259
  %265 = vrot.lane.b32.xlu0 %v264, 48
  %v266 = vpop.permute.xlu0 %265
  %vm267 = vcmask 523648
  %268 = vst.msk [vmem:[%s1] sm:$0xff] %vm267, %v266
  %s269 = scalar_lea.vmem %s0, 11
  %s270 = smov 3
  %v271 = vld [vmem:[%s269] ss:$16 sm:%s270]
  %s272 = scalar_lea.vmem %s0, 11
  %s273 = smov 12
  %v274 = vld [vmem:[%s272] ss:$16 sm:%s273]
  %vm275 = vcmask 1043458
  %v276 = vsel %vm275, %v274, %v271
  %s277 = scalar_lea.vmem %s0, 11
  %s278 = smov 48
  %v279 = vld [vmem:[%s277] ss:$16 sm:%s278]
  %vm280 = vcmask 1045508
  %v281 = vsel %vm280, %v279, %v276
  %s282 = scalar_lea.vmem %s0, 11
  %s283 = smov 192
  %v284 = vld [vmem:[%s282] ss:$16 sm:%s283]
  %vm285 = vcmask 1047558
  %v286 = vsel %vm285, %v284, %v281
  %287 = vrot.lane.b32.xlu0 %v286, 48
  %v288 = vpop.permute.xlu0 %287
  %vm289 = vcmask 523648
  %s290 = scalar_lea.vmem %s1, 8
  %291 = vst.msk [vmem:[%s290] sm:$0xff] %vm289, %v288
  %s292 = scalar_lea.vmem %s0, 131
  %s293 = smov 3
  %v294 = vld [vmem:[%s292] ss:$8 sm:%s293]
  %295 = vrot.lane.b32.xlu0 %v294, 48
  %v296 = vpop.permute.xlu0 %295
  %vm297 = vcmask 523648
  %s298 = scalar_lea.vmem %s1, 16
  %299 = vst.msk [vmem:[%s298] ss:$8 sm:$0x3] %vm297, %v296
  %s300 = scalar_lea.vmem %s0, 2
  %s301 = smov 3
  %v302 = vld [vmem:[%s300] ss:$16 sm:%s301]
  %s303 = scalar_lea.vmem %s0, 2
  %s304 = smov 12
  %v305 = vld [vmem:[%s303] ss:$16 sm:%s304]
  %vm306 = vcmask 1043458
  %v307 = vsel %vm306, %v305, %v302
  %s308 = scalar_lea.vmem %s0, 2
  %s309 = smov 48
  %v310 = vld [vmem:[%s308] ss:$16 sm:%s309]
  %vm311 = vcmask 1045508
  %v312 = vsel %vm311, %v310, %v307
  %s313 = scalar_lea.vmem %s0, 2
  %s314 = smov 192
  %v315 = vld [vmem:[%s313] ss:$16 sm:%s314]
  %vm316 = vcmask 1047558
  %v317 = vsel %vm316, %v315, %v312
  %318 = vrot.lane.b32.xlu0 %v317, 32
  %v319 = vpop.permute.xlu0 %318
  %vm320 = vcmask 392448
  %321 = vst.msk [vmem:[%s1] sm:$0xff] %vm320, %v319
  %s322 = scalar_lea.vmem %s0, 10
  %s323 = smov 3
  %v324 = vld [vmem:[%s322] ss:$16 sm:%s323]
  %s325 = scalar_lea.vmem %s0, 10
  %s326 = smov 12
  %v327 = vld [vmem:[%s325] ss:$16 sm:%s326]
  %vm328 = vcmask 1043458
  %v329 = vsel %vm328, %v327, %v324
  %s330 = scalar_lea.vmem %s0, 10
  %s331 = smov 48
  %v332 = vld [vmem:[%s330] ss:$16 sm:%s331]
  %vm333 = vcmask 1045508
  %v334 = vsel %vm333, %v332, %v329
  %s335 = scalar_lea.vmem %s0, 10
  %s336 = smov 192
  %v337 = vld [vmem:[%s335] ss:$16 sm:%s336]
  %vm338 = vcmask 1047558
  %v339 = vsel %vm338, %v337, %v334
  %340 = vrot.lane.b32.xlu0 %v339, 32
  %v341 = vpop.permute.xlu0 %340
  %vm342 = vcmask 392448
  %s343 = scalar_lea.vmem %s1, 8
  %344 = vst.msk [vmem:[%s343] sm:$0xff] %vm342, %v341
  %s345 = scalar_lea.vmem %s0, 130
  %s346 = smov 3
  %v347 = vld [vmem:[%s345] ss:$8 sm:%s346]
  %348 = vrot.lane.b32.xlu0 %v347, 32
  %v349 = vpop.permute.xlu0 %348
  %vm350 = vcmask 392448
  %s351 = scalar_lea.vmem %s1, 16
  %352 = vst.msk [vmem:[%s351] ss:$8 sm:$0x3] %vm350, %v349
  %s353 = scalar_lea.vmem %s0, 1
  %s354 = smov 3
  %v355 = vld [vmem:[%s353] ss:$16 sm:%s354]
  %s356 = scalar_lea.vmem %s0, 1
  %s357 = smov 12
  %v358 = vld [vmem:[%s356] ss:$16 sm:%s357]
  %vm359 = vcmask 1043458
  %v360 = vsel %vm359, %v358, %v355
  %s361 = scalar_lea.vmem %s0, 1
  %s362 = smov 48
  %v363 = vld [vmem:[%s361] ss:$16 sm:%s362]
  %vm364 = vcmask 1045508
  %v365 = vsel %vm364, %v363, %v360
  %s366 = scalar_lea.vmem %s0, 1
  %s367 = smov 192
  %v368 = vld [vmem:[%s366] ss:$16 sm:%s367]
  %vm369 = vcmask 1047558
  %v370 = vsel %vm369, %v368, %v365
  %371 = vrot.lane.b32.xlu0 %v370, 16
  %v372 = vpop.permute.xlu0 %371
  %vm373 = vcmask 261248
  %374 = vst.msk [vmem:[%s1] sm:$0xff] %vm373, %v372
  %s375 = scalar_lea.vmem %s0, 9
  %s376 = smov 3
  %v377 = vld [vmem:[%s375] ss:$16 sm:%s376]
  %s378 = scalar_lea.vmem %s0, 9
  %s379 = smov 12
  %v380 = vld [vmem:[%s378] ss:$16 sm:%s379]
  %vm381 = vcmask 1043458
  %v382 = vsel %vm381, %v380, %v377
  %s383 = scalar_lea.vmem %s0, 9
  %s384 = smov 48
  %v385 = vld [vmem:[%s383] ss:$16 sm:%s384]
  %vm386 = vcmask 1045508
  %v387 = vsel %vm386, %v385, %v382
  %s388 = scalar_lea.vmem %s0, 9
  %s389 = smov 192
  %v390 = vld [vmem:[%s388] ss:$16 sm:%s389]
  %vm391 = vcmask 1047558
  %v392 = vsel %vm391, %v390, %v387
  %393 = vrot.lane.b32.xlu0 %v392, 16
  %v394 = vpop.permute.xlu0 %393
  %vm395 = vcmask 261248
  %s396 = scalar_lea.vmem %s1, 8
  %397 = vst.msk [vmem:[%s396] sm:$0xff] %vm395, %v394
  %s398 = scalar_lea.vmem %s0, 129
  %s399 = smov 3
  %v400 = vld [vmem:[%s398] ss:$8 sm:%s399]
  %401 = vrot.lane.b32.xlu0 %v400, 16
  %v402 = vpop.permute.xlu0 %401
  %vm403 = vcmask 261248
  %s404 = scalar_lea.vmem %s1, 16
  %405 = vst.msk [vmem:[%s404] ss:$8 sm:$0x3] %vm403, %v402

// kernel: tile.37
$region0: #{tile.37}
  %s0 = inlined_call_operand.vmem [shape: f32[4,16,16], index: 0, kind: input, shape index: {}]
  %s1 = inlined_call_operand.vmem [shape: f32[4,256], index: 1, kind: output, shape index: {}]
  $region1: #{tile.37} parent=0
    #allocation0 [shape = 'u8[8192]{0}', space=vmem, size = 0x2000, scoped, tag = 'scoped mem for output reshape']
    %v2 = vld [vmem:[%s0] ss:$8 sm:$0xf]
    %v3 = vld [vmem:[%s0] ss:$8 sm:$0xf0]
    %vm4 = vcmask 1047556
    %v5 = vsel %vm4, %v3, %v2
    %vm6 = vcmask 130048
    %7 = vst.msk [vmem:[#allocation0] ss:$8 sm:$0x3] %vm6, %v5
    %s8 = scalar_lea.vmem [#allocation0], 4294967281
    %9 = vst.msk [vmem:[%s8] ss:$8 sm:$0xc] %vm6, %v5
    %s10 = scalar_lea.vmem [#allocation0], 4294967266
    %11 = vst.msk [vmem:[%s10] ss:$8 sm:$0x30] %vm6, %v5
    %s12 = scalar_lea.vmem [#allocation0], 4294967251
    %13 = vst.msk [vmem:[%s12] ss:$8 sm:$0xc0] %vm6, %v5
    %s14 = scalar_lea.vmem %s0, 7
    %s15 = smov 3
    %v16 = vld [vmem:[%s14] ss:$16 sm:%s15]
    %s17 = scalar_lea.vmem %s0, 7
    %s18 = smov 12
    %v19 = vld [vmem:[%s17] ss:$16 sm:%s18]
    %vm20 = vcmask 1043458
    %v21 = vsel %vm20, %v19, %v16
    %s22 = scalar_lea.vmem %s0, 4294967247
    %s23 = smov 48
    %v24 = vld [vmem:[%s22] ss:$16 sm:%s23]
    %vm25 = vcmask 1045508
    %v26 = vsel %vm25, %v24, %v21
    %s27 = scalar_lea.vmem %s0, 4294967247
    %s28 = smov 192
    %v29 = vld [vmem:[%s27] ss:$16 sm:%s28]
    %vm30 = vcmask 1047558
    %v31 = vsel %vm30, %v29, %v26
    %32 = vrot.lane.b32.xlu0 %v31, 112
    %v33 = vpop.permute.xlu0 %32
    %vm34 = vcmask 1048448
    %35 = vst.msk [vmem:[#allocation0] sm:$0xf] %vm34, %v33
    %s36 = scalar_lea.vmem [#allocation0], 4
    %37 = vst.msk [vmem:[%s36] sm:$0xf0] %vm34, %v33
    %s38 = scalar_lea.vmem %s0, 6
    %s39 = smov 3
    %v40 = vld [vmem:[%s38] ss:$16 sm:%s39]
    %s41 = scalar_lea.vmem %s0, 6
    %s42 = smov 12
    %v43 = vld [vmem:[%s41] ss:$16 sm:%s42]
    %vm44 = vcmask 1043458
    %v45 = vsel %vm44, %v43, %v40
    %s46 = scalar_lea.vmem %s0, 4294967246
    %s47 = smov 48
    %v48 = vld [vmem:[%s46] ss:$16 sm:%s47]
    %vm49 = vcmask 1045508
    %v50 = vsel %vm49, %v48, %v45
    %s51 = scalar_lea.vmem %s0, 4294967246
    %s52 = smov 192
    %v53 = vld [vmem:[%s51] ss:$16 sm:%s52]
    %vm54 = vcmask 1047558
    %v55 = vsel %vm54, %v53, %v50
    %56 = vrot.lane.b32.xlu0 %v55, 96
    %v57 = vpop.permute.xlu0 %56
    %vm58 = vcmask 917248
    %59 = vst.msk [vmem:[#allocation0] sm:$0xf] %vm58, %v57
    %s60 = scalar_lea.vmem [#allocation0], 4
    %61 = vst.msk [vmem:[%s60] sm:$0xf0] %vm58, %v57
    %s62 = scalar_lea.vmem %s0, 5
    %s63 = smov 3
    %v64 = vld [vmem:[%s62] ss:$16 sm:%s63]
    %s65 = scalar_lea.vmem %s0, 5
    %s66 = smov 12
    %v67 = vld [vmem:[%s65] ss:$16 sm:%s66]
    %vm68 = vcmask 1043458
    %v69 = vsel %vm68, %v67, %v64
    %s70 = scalar_lea.vmem %s0, 4294967245
    %s71 = smov 48
    %v72 = vld [vmem:[%s70] ss:$16 sm:%s71]
    %vm73 = vcmask 1045508
    %v74 = vsel %vm73, %v72, %v69
    %s75 = scalar_lea.vmem %s0, 4294967245
    %s76 = smov 192
    %v77 = vld [vmem:[%s75] ss:$16 sm:%s76]
    %vm78 = vcmask 1047558
    %v79 = vsel %vm78, %v77, %v74
    %80 = vrot.lane.b32.xlu0 %v79, 80
    %v81 = vpop.permute.xlu0 %80
    %vm82 = vcmask 786048
    %83 = vst.msk [vmem:[#allocation0] sm:$0xf] %vm82, %v81
    %s84 = scalar_lea.vmem [#allocation0], 4
    %85 = vst.msk [vmem:[%s84] sm:$0xf0] %vm82, %v81
    %s86 = scalar_lea.vmem %s0, 4
    %s87 = smov 3
    %v88 = vld [vmem:[%s86] ss:$16 sm:%s87]
    %s89 = scalar_lea.vmem %s0, 4
    %s90 = smov 12
    %v91 = vld [vmem:[%s89] ss:$16 sm:%s90]
    %vm92 = vcmask 1043458
    %v93 = vsel %vm92, %v91, %v88
    %s94 = scalar_lea.vmem %s0, 4294967244
    %s95 = smov 48
    %v96 = vld [vmem:[%s94] ss:$16 sm:%s95]
    %vm97 = vcmask 1045508
    %v98 = vsel %vm97, %v96, %v93
    %s99 = scalar_lea.vmem %s0, 4294967244
    %s100 = smov 192
    %v101 = vld [vmem:[%s99] ss:$16 sm:%s100]
    %vm102 = vcmask 1047558
    %v103 = vsel %vm102, %v101, %v98
    %104 = vrot.lane.b32.xlu0 %v103, 64
    %v105 = vpop.permute.xlu0 %104
    %vm106 = vcmask 654848
    %107 = vst.msk [vmem:[#allocation0] sm:$0xf] %vm106, %v105
    %s108 = scalar_lea.vmem [#allocation0], 4
    %109 = vst.msk [vmem:[%s108] sm:$0xf0] %vm106, %v105
    %s110 = scalar_lea.vmem %s0, 3
    %s111 = smov 3
    %v112 = vld [vmem:[%s110] ss:$16 sm:%s111]
    %s113 = scalar_lea.vmem %s0, 3
    %s114 = smov 12
    %v115 = vld [vmem:[%s113] ss:$16 sm:%s114]
    %vm116 = vcmask 1043458
    %v117 = vsel %vm116, %v115, %v112
    %s118 = scalar_lea.vmem %s0, 4294967243
    %s119 = smov 48
    %v120 = vld [vmem:[%s118] ss:$16 sm:%s119]
    %vm121 = vcmask 1045508
    %v122 = vsel %vm121, %v120, %v117
    %s123 = scalar_lea.vmem %s0, 4294967243
    %s124 = smov 192
    %v125 = vld [vmem:[%s123] ss:$16 sm:%s124]
    %vm126 = vcmask 1047558
    %v127 = vsel %vm126, %v125, %v122
    %128 = vrot.lane.b32.xlu0 %v127, 48
    %v129 = vpop.permute.xlu0 %128
    %vm130 = vcmask 523648
    %131 = vst.msk [vmem:[#allocation0] sm:$0xf] %vm130, %v129
    %s132 = scalar_lea.vmem [#allocation0], 4
    %133 = vst.msk [vmem:[%s132] sm:$0xf0] %vm130, %v129
    %s134 = scalar_lea.vmem %s0, 2
    %s135 = smov 3
    %v136 = vld [vmem:[%s134] ss:$16 sm:%s135]
    %s137 = scalar_lea.vmem %s0, 2
    %s138 = smov 12
    %v139 = vld [vmem:[%s137] ss:$16 sm:%s138]
    %vm140 = vcmask 1043458
    %v141 = vsel %vm140, %v139, %v136
    %s142 = scalar_lea.vmem %s0, 4294967242
    %s143 = smov 48
    %v144 = vld [vmem:[%s142] ss:$16 sm:%s143]
    %vm145 = vcmask 1045508
    %v146 = vsel %vm145, %v144, %v141
    %s147 = scalar_lea.vmem %s0, 4294967242
    %s148 = smov 192
    %v149 = vld [vmem:[%s147] ss:$16 sm:%s148]
    %vm150 = vcmask 1047558
    %v151 = vsel %vm150, %v149, %v146
    %152 = vrot.lane.b32.xlu0 %v151, 32
    %v153 = vpop.permute.xlu0 %152
    %vm154 = vcmask 392448
    %155 = vst.msk [vmem:[#allocation0] sm:$0xf] %vm154, %v153
    %s156 = scalar_lea.vmem [#allocation0], 4
    %157 = vst.msk [vmem:[%s156] sm:$0xf0] %vm154, %v153
    %s158 = scalar_lea.vmem %s0, 1
    %s159 = smov 3
    %v160 = vld [vmem:[%s158] ss:$16 sm:%s159]
    %s161 = scalar_lea.vmem %s0, 1
    %s162 = smov 12
    %v163 = vld [vmem:[%s161] ss:$16 sm:%s162]
    %vm164 = vcmask 1043458
    %v165 = vsel %vm164, %v163, %v160
    %s166 = scalar_lea.vmem %s0, 4294967241
    %s167 = smov 48
    %v168 = vld [vmem:[%s166] ss:$16 sm:%s167]
    %vm169 = vcmask 1045508
    %v170 = vsel %vm169, %v168, %v165
    %s171 = scalar_lea.vmem %s0, 4294967241
    %s172 = smov 192
    %v173 = vld [vmem:[%s171] ss:$16 sm:%s172]
    %vm174 = vcmask 1047558
    %v175 = vsel %vm174, %v173, %v170
    %176 = vrot.lane.b32.xlu0 %v175, 16
    %v177 = vpop.permute.xlu0 %176
    %vm178 = vcmask 261248
    %179 = vst.msk [vmem:[#allocation0] sm:$0xf] %vm178, %v177
    %s180 = scalar_lea.vmem [#allocation0], 4
    %181 = vst.msk [vmem:[%s180] sm:$0xf0] %vm178, %v177
    %s183 = sshll.u32 1, 4
    %s184 = ssub.s32 %s183, 1
    %v186 = vld [vmem:[#allocation0] sm:%s184]
    %s187 = sshll.u32 1, 4
    %s188 = ssub.s32 %s187, 1
    %189 = vst [vmem:[%s1] sm:%s188] %v186
    %s190 = scalar_lea.vmem [#allocation0], 8
    %v191 = vld [vmem:[%s190] sm:%s184]
    %s192 = sshll.u32 1, 4
    %s193 = ssub.s32 %s192, 1
    %s194 = scalar_lea.vmem %s1, 4
    %195 = vst [vmem:[%s194] sm:%s193] %v191

// kernel: skm_block_forward.11
$region0: #{skm_block_forward.11}
  #allocation0 [shape = 'u32[]', space=smem, size = 0x4, offset = 0x4, fixed_abs, tag = 'smem constant byte address 0x4 - core index']
  #allocation1 [shape = 'u32[144,128]{1,0:T(1,128)}', space=vmem, size = 0x12000, scoped, tag = 'internal scratch']
  %s0 = inlined_call_operand.vmem [shape: f32[2,20,320], index: 0, kind: input, shape index: {}]
  %s1 = inlined_call_operand.vmem [shape: f32[9,256], index: 1, kind: input, shape index: {}]
  %s2 = inlined_call_operand.vmem [shape: f32[25,256], index: 2, kind: input, shape index: {}]
  %s3 = inlined_call_operand.vmem [shape: f32[4,256], index: 3, kind: input, shape index: {}]
  %s4 = inlined_call_operand.vmem [shape: bf16[2,16,256], index: 4, kind: output, shape index: {0}]
  %s5 = inlined_call_operand.vmem [shape: bf16[2,16,256], index: 5, kind: output, shape index: {1}]
  %s6 = inlined_call_operand.vmem [shape: f32[2,1,256], index: 6, kind: output, shape index: {2}]
  %7 = xla_tuple %s4, %s5, %s6
  %s8 = sld [smem:[#allocation0]]
  $region65: #{skm_block_forward.11} parent=0
    _
  %s10 = ssub.s32 1, %s8
  %s11 = scalar_select 0, %s10, %s8
  loop: start=0, step=1, limit=4
  $region2: #{skm_block_forward.11} parent=0 // loop_pre_header
    _
  $region3: #{skm_block_forward.11} parent=0 // loop_header
    %s13 = sphi 0, %s17
    %p14 = scmp.ge.s32.totalorder %s13, 4
    %s23 = sphi 0, %s25
    %s26 = sphi 0, %s23
    %s27 = sphi 0, %s26
    %s43 = sphi 0, %s27
    %s47 = sphi 0, %s47
    %s49 = sphi 0, %s47
    %s50 = sphi 0, %s49
    %s64 = sphi 0, %s50
    %s68 = sphi 0, %s68
    %s70 = sphi 0, %s68
    %s71 = sphi 0, %s70
    %s85 = sphi 0, %s71
    %s89 = sphi 0, %s89
    %s91 = sphi 0, %s89
    %s92 = sphi 0, %s91
    %s106 = sphi 0, %s92
    %s112 = sphi 0, %s114
    %s115 = sphi 0, %s112
    %s116 = sphi 0, %s115
    %s132 = sphi 0, %s116
    %s138 = sphi 0, %s140
    %s141 = sphi 0, %s138
    %s142 = sphi 0, %s141
    %s158 = sphi 0, %s142
    %s164 = sphi 0, %s166
    %s167 = sphi 0, %s164
    %s168 = sphi 0, %s167
    %s184 = sphi 0, %s168
  $region4: #{skm_block_forward.11} parent=0 // loop_header_branch
    %16 = sbr.rel (%p14) target = $region8
  $region5: #{skm_block_forward.11} parent=0 // loop_body
    %s18 = ssub.s32 %s13, 1
    %s19 = ssub.s32 %s13, 2
    %s20 = sadd.s32 %s13, 1
    %s21 = ssub.s32 %s13, %s20
    %p22 = scmp.eq.s32.totalorder %s21, 0
    %s24 = sadd.s32 %s23, 1
    %s25 = scalar_select %p22, %s23, %s24
    %p28 = pneg %p22
    %p29 = scmp.eq.s32.totalorder %s13, 1
    %p30 = por %p28, %p29
    %p31 = scmp.ne.s32.totalorder %s23, %s26
    %p32 = scmp.eq.s32.totalorder %s13, 0
    %p33 = por %p31, %p32
    %p34 = scmp.ne.s32.totalorder %s23, %s26
    %p35 = scmp.eq.s32.totalorder %s18, 1
    %p36 = por %p34, %p35
    %p37 = scmp.ne.s32.totalorder %s26, %s27
    %p38 = scmp.eq.s32.totalorder %s18, 0
    %p39 = por %p37, %p38
    %p40 = scmp.ne.s32.totalorder %s26, %s27
    %p41 = scmp.eq.s32.totalorder %s19, 1
    %p42 = por %p40, %p41
    %p44 = scmp.ne.s32.totalorder %s27, %s43
    %p45 = scmp.eq.s32.totalorder %s19, 0
    %p46 = por %p44, %p45
    %s48 = sadd.s32 %s47, 1
    %p51 = scmp.eq.s32.totalorder %s13, 1
    %p52 = scmp.ne.s32.totalorder %s47, %s49
    %p53 = scmp.eq.s32.totalorder %s13, 0
    %p54 = por %p52, %p53
    %p55 = scmp.ne.s32.totalorder %s47, %s49
    %p56 = scmp.eq.s32.totalorder %s18, 1
    %p57 = por %p55, %p56
    %p58 = scmp.ne.s32.totalorder %s49, %s50
    %p59 = scmp.eq.s32.totalorder %s18, 0
    %p60 = por %p58, %p59
    %p61 = scmp.ne.s32.totalorder %s49, %s50
    %p62 = scmp.eq.s32.totalorder %s19, 1
    %p63 = por %p61, %p62
    %p65 = scmp.ne.s32.totalorder %s50, %s64
    %p66 = scmp.eq.s32.totalorder %s19, 0
    %p67 = por %p65, %p66
    %s69 = sadd.s32 %s68, 1
    %p72 = scmp.eq.s32.totalorder %s13, 1
    %p73 = scmp.ne.s32.totalorder %s68, %s70
    %p74 = scmp.eq.s32.totalorder %s13, 0
    %p75 = por %p73, %p74
    %p76 = scmp.ne.s32.totalorder %s68, %s70
    %p77 = scmp.eq.s32.totalorder %s18, 1
    %p78 = por %p76, %p77
    %p79 = scmp.ne.s32.totalorder %s70, %s71
    %p80 = scmp.eq.s32.totalorder %s18, 0
    %p81 = por %p79, %p80
    %p82 = scmp.ne.s32.totalorder %s70, %s71
    %p83 = scmp.eq.s32.totalorder %s19, 1
    %p84 = por %p82, %p83
    %p86 = scmp.ne.s32.totalorder %s71, %s85
    %p87 = scmp.eq.s32.totalorder %s19, 0
    %p88 = por %p86, %p87
    %s90 = sadd.s32 %s89, 1
    %p93 = scmp.eq.s32.totalorder %s13, 1
    %p94 = scmp.ne.s32.totalorder %s89, %s91
    %p95 = scmp.eq.s32.totalorder %s13, 0
    %p96 = por %p94, %p95
    %p97 = scmp.ne.s32.totalorder %s89, %s91
    %p98 = scmp.eq.s32.totalorder %s18, 1
    %p99 = por %p97, %p98
    %p100 = scmp.ne.s32.totalorder %s91, %s92
    %p101 = scmp.eq.s32.totalorder %s18, 0
    %p102 = por %p100, %p101
    %p103 = scmp.ne.s32.totalorder %s91, %s92
    %p104 = scmp.eq.s32.totalorder %s19, 1
    %p105 = por %p103, %p104
    %p107 = scmp.ne.s32.totalorder %s92, %s106
    %p108 = scmp.eq.s32.totalorder %s19, 0
    %p109 = por %p107, %p108
    %s110 = ssub.s32 %s13, %s20
    %p111 = scmp.eq.s32.totalorder %s110, 0
    %s113 = sadd.s32 %s112, 1
    %s114 = scalar_select %p111, %s112, %s113
    %p117 = pneg %p111
    %p118 = scmp.eq.s32.totalorder %s13, 1
    %p119 = por %p117, %p118
    %p120 = scmp.ne.s32.totalorder %s112, %s115
    %p121 = scmp.eq.s32.totalorder %s13, 0
    %p122 = por %p120, %p121
    %p123 = scmp.ne.s32.totalorder %s112, %s115
    %p124 = scmp.eq.s32.totalorder %s18, 1
    %p125 = por %p123, %p124
    %p126 = scmp.ne.s32.totalorder %s115, %s116
    %p127 = scmp.eq.s32.totalorder %s18, 0
    %p128 = por %p126, %p127
    %p129 = scmp.ne.s32.totalorder %s115, %s116
    %p130 = scmp.eq.s32.totalorder %s19, 1
    %p131 = por %p129, %p130
    %p133 = scmp.ne.s32.totalorder %s116, %s132
    %p134 = scmp.eq.s32.totalorder %s19, 0
    %p135 = por %p133, %p134
    %s136 = ssub.s32 %s13, %s20
    %p137 = scmp.eq.s32.totalorder %s136, 0
    %s139 = sadd.s32 %s138, 1
    %s140 = scalar_select %p137, %s138, %s139
    %p143 = pneg %p137
    %p144 = scmp.eq.s32.totalorder %s13, 1
    %p145 = por %p143, %p144
    %p146 = scmp.ne.s32.totalorder %s138, %s141
    %p147 = scmp.eq.s32.totalorder %s13, 0
    %p148 = por %p146, %p147
    %p149 = scmp.ne.s32.totalorder %s138, %s141
    %p150 = scmp.eq.s32.totalorder %s18, 1
    %p151 = por %p149, %p150
    %p152 = scmp.ne.s32.totalorder %s141, %s142
    %p153 = scmp.eq.s32.totalorder %s18, 0
    %p154 = por %p152, %p153
    %p155 = scmp.ne.s32.totalorder %s141, %s142
    %p156 = scmp.eq.s32.totalorder %s19, 1
    %p157 = por %p155, %p156
    %p159 = scmp.ne.s32.totalorder %s142, %s158
    %p160 = scmp.eq.s32.totalorder %s19, 0
    %p161 = por %p159, %p160
    %s162 = ssub.s32 %s13, %s20
    %p163 = scmp.eq.s32.totalorder %s162, 0
    %s165 = sadd.s32 %s164, 1
    %s166 = scalar_select %p163, %s164, %s165
    %p169 = pneg %p163
    %p170 = scmp.eq.s32.totalorder %s13, 1
    %p171 = por %p169, %p170
    %p172 = scmp.ne.s32.totalorder %s164, %s167
    %p173 = scmp.eq.s32.totalorder %s13, 0
    %p174 = por %p172, %p173
    %p175 = scmp.ne.s32.totalorder %s164, %s167
    %p176 = scmp.eq.s32.totalorder %s18, 1
    %p177 = por %p175, %p176
    %p178 = scmp.ne.s32.totalorder %s167, %s168
    %p179 = scmp.eq.s32.totalorder %s18, 0
    %p180 = por %p178, %p179
    %p181 = scmp.ne.s32.totalorder %s167, %s168
    %p182 = scmp.eq.s32.totalorder %s19, 1
    %p183 = por %p181, %p182
    %p185 = scmp.ne.s32.totalorder %s168, %s184
    %p186 = scmp.eq.s32.totalorder %s19, 0
    %p187 = por %p185, %p186
    %p188 = scmp.le.s32.totalorder 1, %s13
    %p189 = scmp.lt.s32.totalorder %s13, 3
    %p190 = pnand %p188, %p189
    %p191 = pneg %p190
    // Predicated region
    $region9: #{skm_block_forward.11} parent=5 // pred_check
      _
    $region10: #{skm_block_forward.11} parent=5 // pred_check_branch
      %193 = sbr.rel (%p190) target = $region12
    $region11: #{skm_block_forward.11} parent=5 // pred_region
      %s194 = ssub.s32 %s13, 1
      // Predicated region
      $region13: #{skm_block_forward.11} parent=11 // pred_check
        %p195 = pneg %p60
      $region14: #{skm_block_forward.11} parent=11 // pred_check_branch
        %197 = sbr.rel (%p195) target = $region16
      $region15: #{skm_block_forward.11} parent=11 // pred_region
        _
      $region16: #{skm_block_forward.11} parent=11 // pred_fallthru
        _
      // Predicated region
      $region17: #{skm_block_forward.11} parent=11 // pred_check
        %p198 = pneg %p81
      $region18: #{skm_block_forward.11} parent=11 // pred_check_branch
        %200 = sbr.rel (%p198) target = $region20
      $region19: #{skm_block_forward.11} parent=11 // pred_region
        _
      $region20: #{skm_block_forward.11} parent=11 // pred_fallthru
        _
      // Predicated region
      $region21: #{skm_block_forward.11} parent=11 // pred_check
        %p201 = pneg %p102
      $region22: #{skm_block_forward.11} parent=11 // pred_check_branch
        %203 = sbr.rel (%p201) target = $region24
      $region23: #{skm_block_forward.11} parent=11 // pred_region
        _
      $region24: #{skm_block_forward.11} parent=11 // pred_fallthru
        _
    $region12: #{skm_block_forward.11} parent=5 // pred_fallthru
      _
    %p204 = scmp.lt.s32.totalorder %s13, 2
    // Predicated region
    $region25: #{skm_block_forward.11} parent=5 // pred_check
      %p205 = pneg %p204
    $region26: #{skm_block_forward.11} parent=5 // pred_check_branch
      %207 = sbr.rel (%p205) target = $region28
    $region27: #{skm_block_forward.11} parent=5 // pred_region
      // Predicated region
      $region29: #{skm_block_forward.11} parent=27 // pred_check
        %p208 = pneg %p33
      $region30: #{skm_block_forward.11} parent=27 // pred_check_branch
        %210 = sbr.rel (%p208) target = $region32
      $region31: #{skm_block_forward.11} parent=27 // pred_region
        %p211 = scmp.lt.s32.totalorder %s13, 1
        %s212 = scalar_select %p211, %s13, 1
        %s213 = smul.addr %s212, 9
        %s214 = smul.addr %s213, 8
        %s215 = scalar_lea.vmem %s0, %s214
      $region32: #{skm_block_forward.11} parent=27 // pred_fallthru
        _
    $region28: #{skm_block_forward.11} parent=5 // pred_fallthru
      _
    %p216 = scmp.le.s32.totalorder 1, %s13
    %p217 = scmp.lt.s32.totalorder %s13, 3
    %p218 = pnand %p216, %p217
    %p219 = pneg %p218
    // Predicated region
    $region33: #{skm_block_forward.11} parent=5 // pred_check
      _
    $region34: #{skm_block_forward.11} parent=5 // pred_check_branch
      %221 = sbr.rel (%p218) target = $region36
    $region35: #{skm_block_forward.11} parent=5 // pred_region
      %s222 = ssub.s32 %s13, 1
      %p223 = scmp.lt.s32.totalorder %s18, 1
      %s224 = scalar_select %p223, %s18, 1
      %s225 = smul.addr %s224, 9
      %s226 = smul.addr %s225, 8
      %s227 = scalar_lea.vmem %s0, %s226
      %p228 = pneg %p39
      %p229 = pneg %p36
      %p230 = pneg %p60
      %p231 = pneg %p57
      %p232 = pneg %p81
      %p233 = pneg %p78
      %p234 = pneg %p102
      %p235 = pneg %p99
      %p236 = pneg %p128
      %p237 = pneg %p125
      %p238 = scmp.lt.s32.totalorder %s18, 1
      %s239 = scalar_select %p238, %s18, 1
      %s240 = smul.addr %s239, 4
      %s241 = smul.addr %s240, 4
      %s242 = scalar_lea.vmem %s4, %s241
      %p243 = pneg %p154
      %p244 = pneg %p151
      %p245 = scmp.lt.s32.totalorder %s18, 1
      %s246 = scalar_select %p245, %s18, 1
      %s247 = smul.addr %s246, 4
      %s248 = smul.addr %s247, 4
      %s249 = scalar_lea.vmem %s5, %s248
      %p250 = pneg %p180
      %p251 = pneg %p177
      %p252 = scmp.lt.s32.totalorder %s18, 1
      %s253 = scalar_select %p252, %s18, 1
      %s254 = smul.addr %s253, 2
      %s255 = scalar_lea.vmem %s6, %s254
      %p256 = scmp.lt.s32.totalorder %s18, 1
      %s257 = scalar_select %p256, %s18, 1
      %s258 = smul.addr %s257, 9
      %s259 = smul.addr %s258, 8
      %s260 = scalar_lea.vmem %s0, %s259
      %p261 = scmp.lt.s32.totalorder %s18, 1
      %s262 = scalar_select %p261, %s18, 1
      %s263 = smul.addr %s262, 4
      %s264 = smul.addr %s263, 4
      %s265 = scalar_lea.vmem %s4, %s264
      %p266 = scmp.lt.s32.totalorder %s18, 1
      %s267 = scalar_select %p266, %s18, 1
      %s268 = smul.addr %s267, 4
      %s269 = smul.addr %s268, 4
      %s270 = scalar_lea.vmem %s5, %s269
      %p271 = scmp.lt.s32.totalorder %s18, 1
      %s272 = scalar_select %p271, %s18, 1
      %s273 = smul.addr %s272, 2
      %s274 = scalar_lea.vmem %s6, %s273
      %v275 = vld [vmem:[%s260] sm:$0xff]
      %v276 = vld [vmem:[%s260 + $0x8] sm:$0xff]
      %v277 = vld [vmem:[%s260 + $0x10] sm:$0xff]
      %v278 = vld [vmem:[%s260 + $0x18] sm:$0xff]
      %v279 = vld [vmem:[%s260 + $0x20] sm:$0xff]
      %v280 = vld [vmem:[%s260 + $0x28] sm:$0xff]
      %v281 = vld [vmem:[%s260 + $0x30] sm:$0xf]
      %v282 = vld [vmem:[%s260 + $0x38] sm:$0xf]
      %v283 = vld [vmem:[%s260 + $0x40] sm:$0xf]
      %v284 = vld [vmem:[%s1] ss:$8 sm:$0x3]
      %v286 = vlaneseq
      %v287 = vshrl.u32 %v286, 7
      %v288 = vsub.s32 0, %v287
      %v289 = vrot.slane %v284, %v288
      %v290 = vlaneseq
      %v291 = vshrl.u32 %v290, 7
      %v292 = vsub.s32 1, %v291
      %v293 = vrot.slane %v284, %v292
      %294 = vrot.lane.b32.xlu0 %v289, 16
      %v295 = vpop.permute.xlu0 %294
      %296 = vrot.lane.b32.xlu0 %v293, 16
      %v297 = vpop.permute.xlu0 %296
      %vm298 = vcmask 130048
      %v299 = vsel %vm298, %v295, %v297
      %v303 = vmul.f32 %v275, %v295
      %v304 = vmul.f32 %v276, %v299
      %v305 = vmul.f32 %v277, %v297
      %v306 = vmul.f32 %v278, %v295
      %v307 = vmul.f32 %v279, %v299
      %v308 = vmul.f32 %v280, %v297
      %v309 = vmul.f32 %v281, %v295
      %v310 = vmul.f32 %v282, %v299
      %v311 = vmul.f32 %v283, %v297
      %v312 = vadd.f32 %v303, 0.0
      %v313 = vadd.f32 %v304, 0.0
      %v314 = vadd.f32 %v305, 0.0
      %v315 = vadd.f32 %v306, 0.0
      %v316 = vadd.f32 %v307, 0.0
      %v317 = vadd.f32 %v308, 0.0
      %v318 = vadd.f32 %v309, 0.0
      %v319 = vadd.f32 %v310, 0.0
      %v320 = vadd.f32 %v311, 0.0
      %s321 = scalar_lea.vmem %s1, 1
      %v322 = vld [vmem:[%s321] ss:$8 sm:$0x3]
      %v324 = vlaneseq
      %v325 = vshrl.u32 %v324, 7
      %v326 = vsub.s32 0, %v325
      %v327 = vrot.slane %v322, %v326
      %v328 = vlaneseq
      %v329 = vshrl.u32 %v328, 7
      %v330 = vsub.s32 1, %v329
      %v331 = vrot.slane %v322, %v330
      %332 = vrot.lane.b32.xlu0 %v327, 32
      %v333 = vpop.permute.xlu0 %332
      %334 = vrot.lane.b32.xlu0 %v331, 32
      %v335 = vpop.permute.xlu0 %334
      %vm336 = vcmask 261120
      %v337 = vsel %vm336, %v333, %v335
      %v341 = vmul.f32 %v275, %v333
      %v342 = vmul.f32 %v276, %v337
      %v343 = vmul.f32 %v277, %v335
      %v344 = vmul.f32 %v278, %v333
      %v345 = vmul.f32 %v279, %v337
      %v346 = vmul.f32 %v280, %v335
      %v347 = vmul.f32 %v281, %v333
      %v348 = vmul.f32 %v282, %v337
      %v349 = vmul.f32 %v283, %v335
      %359 = vrot.lane.b32.xlu0 %v341, 112
      %v360 = vpop.permute.xlu0 %359
      %361 = vrot.lane.b32.xlu0 %v342, 112
      %v362 = vpop.permute.xlu0 %361
      %363 = vrot.lane.b32.xlu0 %v343, 112
      %v364 = vpop.permute.xlu0 %363
      %365 = vrot.lane.b32.xlu0 %v344, 112
      %v366 = vpop.permute.xlu0 %365
      %367 = vrot.lane.b32.xlu0 %v345, 112
      %v368 = vpop.permute.xlu0 %367
      %369 = vrot.lane.b32.xlu0 %v346, 112
      %v370 = vpop.permute.xlu0 %369
      %371 = vrot.lane.b32.xlu0 %v347, 112
      %v372 = vpop.permute.xlu0 %371
      %373 = vrot.lane.b32.xlu0 %v348, 112
      %v374 = vpop.permute.xlu0 %373
      %375 = vrot.lane.b32.xlu0 %v349, 112
      %v376 = vpop.permute.xlu0 %375
      %vm377 = vcmask 916480
      %v378 = vsel %vm377, %v360, %v362
      %v379 = vsel %vm377, %v362, %v364
      %v380 = vsel %vm377, %v366, %v368
      %v381 = vsel %vm377, %v368, %v370
      %v382 = vsel %vm377, %v372, %v374
      %v383 = vsel %vm377, %v374, %v376
      %v393 = vadd.f32 %v312, %v378
      %v394 = vadd.f32 %v313, %v379
      %v395 = vadd.f32 %v314, %v364
      %v396 = vadd.f32 %v315, %v380
      %v397 = vadd.f32 %v316, %v381
      %v398 = vadd.f32 %v317, %v370
      %v399 = vadd.f32 %v318, %v382
      %v400 = vadd.f32 %v319, %v383
      %v401 = vadd.f32 %v320, %v376
      %s402 = scalar_lea.vmem %s1, 2
      %v403 = vld [vmem:[%s402] ss:$8 sm:$0x3]
      %v405 = vlaneseq
      %v406 = vshrl.u32 %v405, 7
      %v407 = vsub.s32 0, %v406
      %v408 = vrot.slane %v403, %v407
      %v409 = vlaneseq
      %v410 = vshrl.u32 %v409, 7
      %v411 = vsub.s32 1, %v410
      %v412 = vrot.slane %v403, %v411
      %413 = vrot.lane.b32.xlu0 %v408, 48
      %v414 = vpop.permute.xlu0 %413
      %415 = vrot.lane.b32.xlu0 %v412, 48
      %v416 = vpop.permute.xlu0 %415
      %vm417 = vcmask 392192
      %v418 = vsel %vm417, %v414, %v416
      %v422 = vmul.f32 %v275, %v414
      %v423 = vmul.f32 %v276, %v418
      %v424 = vmul.f32 %v277, %v416
      %v425 = vmul.f32 %v278, %v414
      %v426 = vmul.f32 %v279, %v418
      %v427 = vmul.f32 %v280, %v416
      %v428 = vmul.f32 %v281, %v414
      %v429 = vmul.f32 %v282, %v418
      %v430 = vmul.f32 %v283, %v416
      %440 = vrot.lane.b32.xlu0 %v422, 96
      %v441 = vpop.permute.xlu0 %440
      %442 = vrot.lane.b32.xlu0 %v423, 96
      %v443 = vpop.permute.xlu0 %442
      %444 = vrot.lane.b32.xlu0 %v424, 96
      %v445 = vpop.permute.xlu0 %444
      %446 = vrot.lane.b32.xlu0 %v425, 96
      %v447 = vpop.permute.xlu0 %446
      %448 = vrot.lane.b32.xlu0 %v426, 96
      %v449 = vpop.permute.xlu0 %448
      %450 = vrot.lane.b32.xlu0 %v427, 96
      %v451 = vpop.permute.xlu0 %450
      %452 = vrot.lane.b32.xlu0 %v428, 96
      %v453 = vpop.permute.xlu0 %452
      %454 = vrot.lane.b32.xlu0 %v429, 96
      %v455 = vpop.permute.xlu0 %454
      %456 = vrot.lane.b32.xlu0 %v430, 96
      %v457 = vpop.permute.xlu0 %456
      %vm458 = vcmask 785408
      %v459 = vsel %vm458, %v441, %v443
      %v460 = vsel %vm458, %v443, %v445
      %v461 = vsel %vm458, %v447, %v449
      %v462 = vsel %vm458, %v449, %v451
      %v463 = vsel %vm458, %v453, %v455
      %v464 = vsel %vm458, %v455, %v457
      %v474 = vadd.f32 %v393, %v459
      %v475 = vadd.f32 %v394, %v460
      %v476 = vadd.f32 %v395, %v445
      %v477 = vadd.f32 %v396, %v461
      %v478 = vadd.f32 %v397, %v462
      %v479 = vadd.f32 %v398, %v451
      %v480 = vadd.f32 %v399, %v463
      %v481 = vadd.f32 %v400, %v464
      %v482 = vadd.f32 %v401, %v457
      %s483 = scalar_lea.vmem %s1, 3
      %v484 = vld [vmem:[%s483] ss:$8 sm:$0x3]
      %v486 = vlaneseq
      %v487 = vshrl.u32 %v486, 7
      %v488 = vsub.s32 0, %v487
      %v489 = vrot.slane %v484, %v488
      %v490 = vlaneseq
      %v491 = vshrl.u32 %v490, 7
      %v492 = vsub.s32 1, %v491
      %v493 = vrot.slane %v484, %v492
      %494 = vrot.lane.b32.xlu0 %v489, 16
      %v495 = vpop.permute.xlu0 %494
      %496 = vrot.lane.b32.xlu0 %v493, 16
      %v497 = vpop.permute.xlu0 %496
      %v498 = vsel %vm298, %v495, %v497
      %v502 = vmul.f32 %v275, %v495
      %v503 = vmul.f32 %v276, %v498
      %v504 = vmul.f32 %v277, %v497
      %v505 = vmul.f32 %v278, %v495
      %v506 = vmul.f32 %v279, %v498
      %v507 = vmul.f32 %v280, %v497
      %v508 = vmul.f32 %v281, %v495
      %v509 = vmul.f32 %v282, %v498
      %v510 = vmul.f32 %v283, %v497
      %vm520 = vcmask 1046528
      %v521 = vrot.slane %v502, 1
      %v522 = vrot.slane %v505, 1
      %v523 = vsel %vm520, %v521, %v522
      %v524 = vrot.slane %v503, 1
      %v525 = vrot.slane %v506, 1
      %v526 = vsel %vm520, %v524, %v525
      %v527 = vrot.slane %v504, 1
      %v528 = vrot.slane %v507, 1
      %v529 = vsel %vm520, %v527, %v528
      %v530 = vrot.slane %v508, 1
      %v531 = vsel %vm520, %v522, %v530
      %v532 = vrot.slane %v509, 1
      %v533 = vsel %vm520, %v525, %v532
      %v534 = vrot.slane %v510, 1
      %v535 = vsel %vm520, %v528, %v534
      %v545 = vadd.f32 %v474, %v523
      %v546 = vadd.f32 %v475, %v526
      %v547 = vadd.f32 %v476, %v529
      %v548 = vadd.f32 %v477, %v531
      %v549 = vadd.f32 %v478, %v533
      %v550 = vadd.f32 %v479, %v535
      %v551 = vadd.f32 %v480, %v530
      %v552 = vadd.f32 %v481, %v532
      %v553 = vadd.f32 %v482, %v534
      %s554 = scalar_lea.vmem %s1, 4
      %v555 = vld [vmem:[%s554] ss:$8 sm:$0x3]
      %v557 = vlaneseq
      %v558 = vshrl.u32 %v557, 7
      %v559 = vsub.s32 0, %v558
      %v560 = vrot.slane %v555, %v559
      %v561 = vlaneseq
      %v562 = vshrl.u32 %v561, 7
      %v563 = vsub.s32 1, %v562
      %v564 = vrot.slane %v555, %v563
      %565 = vrot.lane.b32.xlu0 %v560, 32
      %v566 = vpop.permute.xlu0 %565
      %567 = vrot.lane.b32.xlu0 %v564, 32
      %v568 = vpop.permute.xlu0 %567
      %v569 = vsel %vm336, %v566, %v568
      %v573 = vmul.f32 %v275, %v566
      %v574 = vmul.f32 %v276, %v569
      %v575 = vmul.f32 %v277, %v568
      %v576 = vmul.f32 %v278, %v566
      %v577 = vmul.f32 %v279, %v569
      %v578 = vmul.f32 %v280, %v568
      %v579 = vmul.f32 %v281, %v566
      %v580 = vmul.f32 %v282, %v569
      %v581 = vmul.f32 %v283, %v568
      %v591 = vrot.slane %v573, 1
      %v592 = vrot.slane %v576, 1
      %v593 = vsel %vm520, %v591, %v592
      %v594 = vrot.slane %v574, 1
      %v595 = vrot.slane %v577, 1
      %v596 = vsel %vm520, %v594, %v595
      %v597 = vrot.slane %v575, 1
      %v598 = vrot.slane %v578, 1
      %v599 = vsel %vm520, %v597, %v598
      %v600 = vrot.slane %v579, 1
      %v601 = vsel %vm520, %v592, %v600
      %v602 = vrot.slane %v580, 1
      %v603 = vsel %vm520, %v595, %v602
      %v604 = vrot.slane %v581, 1
      %v605 = vsel %vm520, %v598, %v604
      %606 = vrot.lane.b32.xlu0 %v593, 112
      %v607 = vpop.permute.xlu0 %606
      %608 = vrot.lane.b32.xlu0 %v596, 112
      %v609 = vpop.permute.xlu0 %608
      %610 = vrot.lane.b32.xlu0 %v599, 112
      %v611 = vpop.permute.xlu0 %610
      %612 = vrot.lane.b32.xlu0 %v601, 112
      %v613 = vpop.permute.xlu0 %612
      %614 = vrot.lane.b32.xlu0 %v603, 112
      %v615 = vpop.permute.xlu0 %614
      %616 = vrot.lane.b32.xlu0 %v605, 112
      %v617 = vpop.permute.xlu0 %616
      %618 = vrot.lane.b32.xlu0 %v600, 112
      %v619 = vpop.permute.xlu0 %618
      %620 = vrot.lane.b32.xlu0 %v602, 112
      %v621 = vpop.permute.xlu0 %620
      %622 = vrot.lane.b32.xlu0 %v604, 112
      %v623 = vpop.permute.xlu0 %622
      %v624 = vsel %vm377, %v607, %v609
      %v625 = vsel %vm377, %v609, %v611
      %v626 = vsel %vm377, %v613, %v615
      %v627 = vsel %vm377, %v615, %v617
      %v628 = vsel %vm377, %v619, %v621
      %v629 = vsel %vm377, %v621, %v623
      %v639 = vadd.f32 %v545, %v624
      %v640 = vadd.f32 %v546, %v625
      %v641 = vadd.f32 %v547, %v611
      %v642 = vadd.f32 %v548, %v626
      %v643 = vadd.f32 %v549, %v627
      %v644 = vadd.f32 %v550, %v617
      %v645 = vadd.f32 %v551, %v628
      %v646 = vadd.f32 %v552, %v629
      %v647 = vadd.f32 %v553, %v623
      %s648 = scalar_lea.vmem %s1, 5
      %v649 = vld [vmem:[%s648] ss:$8 sm:$0x3]
      %v651 = vlaneseq
      %v652 = vshrl.u32 %v651, 7
      %v653 = vsub.s32 0, %v652
      %v654 = vrot.slane %v649, %v653
      %v655 = vlaneseq
      %v656 = vshrl.u32 %v655, 7
      %v657 = vsub.s32 1, %v656
      %v658 = vrot.slane %v649, %v657
      %659 = vrot.lane.b32.xlu0 %v654, 48
      %v660 = vpop.permute.xlu0 %659
      %661 = vrot.lane.b32.xlu0 %v658, 48
      %v662 = vpop.permute.xlu0 %661
      %v663 = vsel %vm417, %v660, %v662
      %v667 = vmul.f32 %v275, %v660
      %v668 = vmul.f32 %v276, %v663
      %v669 = vmul.f32 %v277, %v662
      %v670 = vmul.f32 %v278, %v660
      %v671 = vmul.f32 %v279, %v663
      %v672 = vmul.f32 %v280, %v662
      %v673 = vmul.f32 %v281, %v660
      %v674 = vmul.f32 %v282, %v663
      %v675 = vmul.f32 %v283, %v662
      %v685 = vrot.slane %v667, 1
      %v686 = vrot.slane %v670, 1
      %v687 = vsel %vm520, %v685, %v686
      %v688 = vrot.slane %v668, 1
      %v689 = vrot.slane %v671, 1
      %v690 = vsel %vm520, %v688, %v689
      %v691 = vrot.slane %v669, 1
      %v692 = vrot.slane %v672, 1
      %v693 = vsel %vm520, %v691, %v692
      %v694 = vrot.slane %v673, 1
      %v695 = vsel %vm520, %v686, %v694
      %v696 = vrot.slane %v674, 1
      %v697 = vsel %vm520, %v689, %v696
      %v698 = vrot.slane %v675, 1
      %v699 = vsel %vm520, %v692, %v698
      %700 = vrot.lane.b32.xlu0 %v687, 96
      %v701 = vpop.permute.xlu0 %700
      %702 = vrot.lane.b32.xlu0 %v690, 96
      %v703 = vpop.permute.xlu0 %702
      %704 = vrot.lane.b32.xlu0 %v693, 96
      %v705 = vpop.permute.xlu0 %704
      %706 = vrot.lane.b32.xlu0 %v695, 96
      %v707 = vpop.permute.xlu0 %706
      %708 = vrot.lane.b32.xlu0 %v697, 96
      %v709 = vpop.permute.xlu0 %708
      %710 = vrot.lane.b32.xlu0 %v699, 96
      %v711 = vpop.permute.xlu0 %710
      %712 = vrot.lane.b32.xlu0 %v694, 96
      %v713 = vpop.permute.xlu0 %712
      %714 = vrot.lane.b32.xlu0 %v696, 96
      %v715 = vpop.permute.xlu0 %714
      %716 = vrot.lane.b32.xlu0 %v698, 96
      %v717 = vpop.permute.xlu0 %716
      %v718 = vsel %vm458, %v701, %v703
      %v719 = vsel %vm458, %v703, %v705
      %v720 = vsel %vm458, %v707, %v709
      %v721 = vsel %vm458, %v709, %v711
      %v722 = vsel %vm458, %v713, %v715
      %v723 = vsel %vm458, %v715, %v717
      %v733 = vadd.f32 %v639, %v718
      %v734 = vadd.f32 %v640, %v719
      %v735 = vadd.f32 %v641, %v705
      %v736 = vadd.f32 %v642, %v720
      %v737 = vadd.f32 %v643, %v721
      %v738 = vadd.f32 %v644, %v711
      %v739 = vadd.f32 %v645, %v722
      %v740 = vadd.f32 %v646, %v723
      %v741 = vadd.f32 %v647, %v717
      %s742 = scalar_lea.vmem %s1, 6
      %v743 = vld [vmem:[%s742] ss:$8 sm:$0x3]
      %v745 = vlaneseq
      %v746 = vshrl.u32 %v745, 7
      %v747 = vsub.s32 0, %v746
      %v748 = vrot.slane %v743, %v747
      %v749 = vlaneseq
      %v750 = vshrl.u32 %v749, 7
      %v751 = vsub.s32 1, %v750
      %v752 = vrot.slane %v743, %v751
      %753 = vrot.lane.b32.xlu0 %v748, 16
      %v754 = vpop.permute.xlu0 %753
      %755 = vrot.lane.b32.xlu0 %v752, 16
      %v756 = vpop.permute.xlu0 %755
      %v757 = vsel %vm298, %v754, %v756
      %v761 = vmul.f32 %v275, %v754
      %v762 = vmul.f32 %v276, %v757
      %v763 = vmul.f32 %v277, %v756
      %v764 = vmul.f32 %v278, %v754
      %v765 = vmul.f32 %v279, %v757
      %v766 = vmul.f32 %v280, %v756
      %v767 = vmul.f32 %v281, %v754
      %v768 = vmul.f32 %v282, %v757
      %v769 = vmul.f32 %v283, %v756
      %vm779 = vcmask 1045504
      %v780 = vrot.slane %v761, 2
      %v781 = vrot.slane %v764, 2
      %v782 = vsel %vm779, %v780, %v781
      %v783 = vrot.slane %v762, 2
      %v784 = vrot.slane %v765, 2
      %v785 = vsel %vm779, %v783, %v784
      %v786 = vrot.slane %v763, 2
      %v787 = vrot.slane %v766, 2
      %v788 = vsel %vm779, %v786, %v787
      %v789 = vrot.slane %v767, 2
      %v790 = vsel %vm779, %v781, %v789
      %v791 = vrot.slane %v768, 2
      %v792 = vsel %vm779, %v784, %v791
      %v793 = vrot.slane %v769, 2
      %v794 = vsel %vm779, %v787, %v793
      %v804 = vadd.f32 %v733, %v782
      %v805 = vadd.f32 %v734, %v785
      %v806 = vadd.f32 %v735, %v788
      %v807 = vadd.f32 %v736, %v790
      %v808 = vadd.f32 %v737, %v792
      %v809 = vadd.f32 %v738, %v794
      %v810 = vadd.f32 %v739, %v789
      %v811 = vadd.f32 %v740, %v791
      %v812 = vadd.f32 %v741, %v793
      %s813 = scalar_lea.vmem %s1, 7
      %v814 = vld [vmem:[%s813] ss:$8 sm:$0x3]
      %v816 = vlaneseq
      %v817 = vshrl.u32 %v816, 7
      %v818 = vsub.s32 0, %v817
      %v819 = vrot.slane %v814, %v818
      %v820 = vlaneseq
      %v821 = vshrl.u32 %v820, 7
      %v822 = vsub.s32 1, %v821
      %v823 = vrot.slane %v814, %v822
      %824 = vrot.lane.b32.xlu0 %v819, 32
      %v825 = vpop.permute.xlu0 %824
      %826 = vrot.lane.b32.xlu0 %v823, 32
      %v827 = vpop.permute.xlu0 %826
      %v828 = vsel %vm336, %v825, %v827
      %v832 = vmul.f32 %v275, %v825
      %v833 = vmul.f32 %v276, %v828
      %v834 = vmul.f32 %v277, %v827
      %v835 = vmul.f32 %v278, %v825
      %v836 = vmul.f32 %v279, %v828
      %v837 = vmul.f32 %v280, %v827
      %v838 = vmul.f32 %v281, %v825
      %v839 = vmul.f32 %v282, %v828
      %v840 = vmul.f32 %v283, %v827
      %v850 = vrot.slane %v832, 2
      %v851 = vrot.slane %v835, 2
      %v852 = vsel %vm779, %v850, %v851
      %v853 = vrot.slane %v833, 2
      %v854 = vrot.slane %v836, 2
      %v855 = vsel %vm779, %v853, %v854
      %v856 = vrot.slane %v834, 2
      %v857 = vrot.slane %v837, 2
      %v858 = vsel %vm779, %v856, %v857
      %v859 = vrot.slane %v838, 2
      %v860 = vsel %vm779, %v851, %v859
      %v861 = vrot.slane %v839, 2
      %v862 = vsel %vm779, %v854, %v861
      %v863 = vrot.slane %v840, 2
      %v864 = vsel %vm779, %v857, %v863
      %865 = vrot.lane.b32.xlu0 %v852, 112
      %v866 = vpop.permute.xlu0 %865
      %867 = vrot.lane.b32.xlu0 %v855, 112
      %v868 = vpop.permute.xlu0 %867
      %869 = vrot.lane.b32.xlu0 %v858, 112
      %v870 = vpop.permute.xlu0 %869
      %871 = vrot.lane.b32.xlu0 %v860, 112
      %v872 = vpop.permute.xlu0 %871
      %873 = vrot.lane.b32.xlu0 %v862, 112
      %v874 = vpop.permute.xlu0 %873
      %875 = vrot.lane.b32.xlu0 %v864, 112
      %v876 = vpop.permute.xlu0 %875
      %877 = vrot.lane.b32.xlu0 %v859, 112
      %v878 = vpop.permute.xlu0 %877
      %879 = vrot.lane.b32.xlu0 %v861, 112
      %v880 = vpop.permute.xlu0 %879
      %881 = vrot.lane.b32.xlu0 %v863, 112
      %v882 = vpop.permute.xlu0 %881
      %v883 = vsel %vm377, %v866, %v868
      %v884 = vsel %vm377, %v868, %v870
      %v885 = vsel %vm377, %v872, %v874
      %v886 = vsel %vm377, %v874, %v876
      %v887 = vsel %vm377, %v878, %v880
      %v888 = vsel %vm377, %v880, %v882
      %v898 = vadd.f32 %v804, %v883
      %v899 = vadd.f32 %v805, %v884
      %v900 = vadd.f32 %v806, %v870
      %v901 = vadd.f32 %v807, %v885
      %v902 = vadd.f32 %v808, %v886
      %v903 = vadd.f32 %v809, %v876
      %v904 = vadd.f32 %v810, %v887
      %v905 = vadd.f32 %v811, %v888
      %v906 = vadd.f32 %v812, %v882
      %s907 = scalar_lea.vmem %s1, 16
      %v908 = vld [vmem:[%s907] ss:$8 sm:$0x3]
      %v910 = vlaneseq
      %v911 = vshrl.u32 %v910, 7
      %v912 = vsub.s32 0, %v911
      %v913 = vrot.slane %v908, %v912
      %v914 = vlaneseq
      %v915 = vshrl.u32 %v914, 7
      %v916 = vsub.s32 1, %v915
      %v917 = vrot.slane %v908, %v916
      %918 = vrot.lane.b32.xlu0 %v913, 48
      %v919 = vpop.permute.xlu0 %918
      %920 = vrot.lane.b32.xlu0 %v917, 48
      %v921 = vpop.permute.xlu0 %920
      %v922 = vsel %vm417, %v919, %v921
      %v926 = vmul.f32 %v275, %v919
      %v927 = vmul.f32 %v276, %v922
      %v928 = vmul.f32 %v277, %v921
      %v929 = vmul.f32 %v278, %v919
      %v930 = vmul.f32 %v279, %v922
      %v931 = vmul.f32 %v280, %v921
      %v932 = vmul.f32 %v281, %v919
      %v933 = vmul.f32 %v282, %v922
      %v934 = vmul.f32 %v283, %v921
      %v944 = vrot.slane %v926, 2
      %v945 = vrot.slane %v929, 2
      %v946 = vsel %vm779, %v944, %v945
      %v947 = vrot.slane %v927, 2
      %v948 = vrot.slane %v930, 2
      %v949 = vsel %vm779, %v947, %v948
      %v950 = vrot.slane %v928, 2
      %v951 = vrot.slane %v931, 2
      %v952 = vsel %vm779, %v950, %v951
      %v953 = vrot.slane %v932, 2
      %v954 = vsel %vm779, %v945, %v953
      %v955 = vrot.slane %v933, 2
      %v956 = vsel %vm779, %v948, %v955
      %v957 = vrot.slane %v934, 2
      %v958 = vsel %vm779, %v951, %v957
      %959 = vrot.lane.b32.xlu0 %v946, 96
      %v960 = vpop.permute.xlu0 %959
      %961 = vrot.lane.b32.xlu0 %v949, 96
      %v962 = vpop.permute.xlu0 %961
      %963 = vrot.lane.b32.xlu0 %v952, 96
      %v964 = vpop.permute.xlu0 %963
      %965 = vrot.lane.b32.xlu0 %v954, 96
      %v966 = vpop.permute.xlu0 %965
      %967 = vrot.lane.b32.xlu0 %v956, 96
      %v968 = vpop.permute.xlu0 %967
      %969 = vrot.lane.b32.xlu0 %v958, 96
      %v970 = vpop.permute.xlu0 %969
      %971 = vrot.lane.b32.xlu0 %v953, 96
      %v972 = vpop.permute.xlu0 %971
      %973 = vrot.lane.b32.xlu0 %v955, 96
      %v974 = vpop.permute.xlu0 %973
      %975 = vrot.lane.b32.xlu0 %v957, 96
      %v976 = vpop.permute.xlu0 %975
      %v977 = vsel %vm458, %v960, %v962
      %v978 = vsel %vm458, %v962, %v964
      %v979 = vsel %vm458, %v966, %v968
      %v980 = vsel %vm458, %v968, %v970
      %v981 = vsel %vm458, %v972, %v974
      %v982 = vsel %vm458, %v974, %v976
      %v992 = vadd.f32 %v898, %v977
      %v993 = vadd.f32 %v899, %v978
      %v994 = vadd.f32 %v900, %v964
      %v995 = vadd.f32 %v901, %v979
      %v996 = vadd.f32 %v902, %v980
      %v997 = vadd.f32 %v903, %v970
      %v998 = vadd.f32 %v904, %v981
      %v999 = vadd.f32 %v905, %v982
      %v1000 = vadd.f32 %v906, %v976
      %v1001 = vld [vmem:[%s3] ss:$4 sm:$0x3]
      %v1003 = vlaneseq
      %v1004 = vshrl.u32 %v1003, 7
      %v1005 = vsub.s32 0, %v1004
      %v1006 = vrot.slane %v1001, %v1005
      %v1007 = vlaneseq
      %v1008 = vshrl.u32 %v1007, 7
      %v1009 = vsub.s32 1, %v1008
      %v1010 = vrot.slane %v1001, %v1009
      %1011 = vrot.lane.b32.xlu0 %v1006, 16
      %v1012 = vpop.permute.xlu0 %1011
      %1013 = vrot.lane.b32.xlu0 %v1010, 16
      %v1014 = vpop.permute.xlu0 %1013
      %v1015 = vsel %vm298, %v1012, %v1014
      %v1019 = vmul.f32 %v992, %v1012
      %v1020 = vmul.f32 %v993, %v1015
      %v1021 = vmul.f32 %v994, %v1014
      %v1022 = vmul.f32 %v995, %v1012
      %v1023 = vmul.f32 %v996, %v1015
      %v1024 = vmul.f32 %v997, %v1014
      %v1025 = vmul.f32 %v998, %v1012
      %v1026 = vmul.f32 %v999, %v1015
      %v1027 = vmul.f32 %v1000, %v1014
      %s1028 = scalar_lea.vmem %s3, 1
      %v1029 = vld [vmem:[%s1028] ss:$4 sm:$0x3]
      %v1031 = vlaneseq
      %v1032 = vshrl.u32 %v1031, 7
      %v1033 = vsub.s32 0, %v1032
      %v1034 = vrot.slane %v1029, %v1033
      %v1035 = vlaneseq
      %v1036 = vshrl.u32 %v1035, 7
      %v1037 = vsub.s32 1, %v1036
      %v1038 = vrot.slane %v1029, %v1037
      %1039 = vrot.lane.b32.xlu0 %v1034, 16
      %v1040 = vpop.permute.xlu0 %1039
      %1041 = vrot.lane.b32.xlu0 %v1038, 16
      %v1042 = vpop.permute.xlu0 %1041
      %v1043 = vsel %vm298, %v1040, %v1042
      %v1047 = vadd.f32 %v1019, %v1040
      %v1048 = vadd.f32 %v1020, %v1043
      %v1049 = vadd.f32 %v1021, %v1042
      %v1050 = vadd.f32 %v1022, %v1040
      %v1051 = vadd.f32 %v1023, %v1043
      %v1052 = vadd.f32 %v1024, %v1042
      %v1053 = vadd.f32 %v1025, %v1040
      %v1054 = vadd.f32 %v1026, %v1043
      %v1055 = vadd.f32 %v1027, %v1042
      %v1056 = vmax.f32 %v1047, 0.0
      %v1057 = vmax.f32 %v1048, 0.0
      %v1058 = vmax.f32 %v1049, 0.0
      %v1059 = vmax.f32 %v1050, 0.0
      %v1060 = vmax.f32 %v1051, 0.0
      %v1061 = vmax.f32 %v1052, 0.0
      %v1062 = vmax.f32 %v1053, 0.0
      %v1063 = vmax.f32 %v1054, 0.0
      %v1064 = vmax.f32 %v1055, 0.0
      %v1065 = vpack.c.bf16 %v1059, %v1056
      %v1066 = vpack.c.bf16 %v1060, %v1057
      %v1067 = vpack.c.bf16 %v1061, %v1058
      %v1068 = vpack.c.bf16 %v1062, %v1062
      %v1069 = vpack.c.bf16 %v1063, %v1063
      %v1070 = vpack.c.bf16 %v1064, %v1064
      %v1077 = vunpack.c.l.b16 %v1065
      %v1078 = vunpack.c.l.b16 %v1066
      %v1079 = vunpack.c.l.b16 %v1067
      %v1080 = vunpack.c.h.b16 %v1065
      %v1081 = vunpack.c.h.b16 %v1066
      %v1082 = vunpack.c.h.b16 %v1067
      %v1083 = vunpack.c.l.b16 %v1068
      %v1084 = vunpack.c.l.b16 %v1069
      %v1085 = vunpack.c.l.b16 %v1070
      %v1086 = vpack.c.b16 %v1078, %v1077
      %v1087 = vpack.c.b16 %v1079, %v1079
      %v1088 = vpack.c.b16 %v1081, %v1080
      %v1089 = vpack.c.b16 %v1082, %v1082
      %v1090 = vpack.c.b16 %v1084, %v1083
      %v1091 = vpack.c.b16 %v1085, %v1085
      %vm1092 = vsmask.f32 3328
      %vm1093 = vsmask.f32 7440
      %vm1094 = vmor %vm1092, %vm1093
      %v1096 = vshrl.u32 %v1086, 16
      %v1098 = vrot.slane %v1096, 4
      %v1099 = vshll.u32 %v1086, 16
      %v1101 = vrot.slane %v1099, 5
      %v1102 = vor.u32 %v1098, %v1101
      %v1103 = vrot.slane %v1102, 4
      %v1105 = vshll.u32 %v1088, 16
      %v1107 = vrot.slane %v1105, 5
      %v1108 = vsel %vm1094, %v1103, %v1107
      %v1110 = vshrl.u32 %v1087, 16
      %v1112 = vrot.slane %v1110, 4
      %v1113 = vshll.u32 %v1087, 16
      %v1115 = vrot.slane %v1113, 5
      %v1116 = vor.u32 %v1112, %v1115
      %v1117 = vrot.slane %v1116, 4
      %v1119 = vshll.u32 %v1089, 16
      %v1121 = vrot.slane %v1119, 5
      %v1122 = vsel %vm1094, %v1117, %v1121
      %v1123 = vshrl.u32 %v1088, 16
      %v1125 = vrot.slane %v1123, 4
      %v1126 = vor.u32 %v1125, %v1107
      %v1127 = vrot.slane %v1126, 4
      %v1129 = vshll.u32 %v1090, 16
      %v1131 = vrot.slane %v1129, 5
      %v1132 = vsel %vm1094, %v1127, %v1131
      %v1133 = vshrl.u32 %v1089, 16
      %v1135 = vrot.slane %v1133, 4
      %v1136 = vor.u32 %v1135, %v1121
      %v1137 = vrot.slane %v1136, 4
      %v1139 = vshll.u32 %v1091, 16
      %v1141 = vrot.slane %v1139, 5
      %v1142 = vsel %vm1094, %v1137, %v1141
      %1143 = vrot.lane.b32.xlu0 %v1108, 112
      %v1144 = vpop.permute.xlu0 %1143
      %1145 = vrot.lane.b32.xlu0 %v1122, 112
      %v1146 = vpop.permute.xlu0 %1145
      %1147 = vrot.lane.b32.xlu0 %v1132, 112
      %v1148 = vpop.permute.xlu0 %1147
      %1149 = vrot.lane.b32.xlu0 %v1142, 112
      %v1150 = vpop.permute.xlu0 %1149
      %v1151 = vrot.slane %v1144, 4
      %v1152 = vrot.slane %v1146, 4
      %v1153 = vrot.slane %v1148, 4
      %v1154 = vrot.slane %v1150, 4
      %vm1155 = vcmask 1043456
      %v1156 = vsel %vm1155, %v1151, %v1152
      %vm1157 = vcmask 916480
      %v1158 = vsel %vm1157, %v1144, %v1156
      %v1159 = vsel %vm1155, %v1153, %v1154
      %v1160 = vsel %vm1157, %v1148, %v1159
      %1163 = vst [vmem:[%s265] sm:$0xff] %v1158
      %1164 = vst [vmem:[%s265 + $0x8] sm:$0xff] %v1160
      %v1174 = vrot.slane %v1056, 1
      %v1175 = vrot.slane %v1059, 1
      %v1176 = vsel %vm520, %v1174, %v1175
      %v1177 = vrot.slane %v1057, 1
      %v1178 = vrot.slane %v1060, 1
      %v1179 = vsel %vm520, %v1177, %v1178
      %v1180 = vrot.slane %v1058, 1
      %v1181 = vrot.slane %v1061, 1
      %v1182 = vsel %vm520, %v1180, %v1181
      %v1183 = vrot.slane %v1062, 1
      %v1184 = vsel %vm520, %v1175, %v1183
      %v1185 = vrot.slane %v1063, 1
      %v1186 = vsel %vm520, %v1178, %v1185
      %v1187 = vrot.slane %v1064, 1
      %v1188 = vsel %vm520, %v1181, %v1187
      %vm1195 = vcmask 1047680
      %v1196 = vsel %vm1195, %v1176, 0.0
      %v1197 = vsel %vm1195, %v1184, 0.0
      %v1198 = vadd.f32 %v1196, %v1197
      %v1199 = vrot.slane %v1198, 4
      %v1200 = vadd.f32 %v1198, %v1199
      %v1201 = vrot.slane %v1200, 2
      %v1202 = vadd.f32 %v1200, %v1201
      %v1203 = vrot.slane %v1202, 1
      %v1204 = vadd.f32 %v1202, %v1203
      %v1205 = vadd.f32 %v1179, %v1186
      %v1206 = vrot.slane %v1205, 4
      %v1207 = vadd.f32 %v1205, %v1206
      %v1208 = vrot.slane %v1207, 2
      %v1209 = vadd.f32 %v1207, %v1208
      %v1210 = vrot.slane %v1209, 1
      %v1211 = vadd.f32 %v1209, %v1210
      %v1212 = vsel %vm298, %v1182, 0.0
      %v1213 = vsel %vm298, %v1188, 0.0
      %v1214 = vadd.f32 %v1212, %v1213
      %v1215 = vrot.slane %v1214, 4
      %v1216 = vadd.f32 %v1214, %v1215
      %v1217 = vrot.slane %v1216, 2
      %v1218 = vadd.f32 %v1216, %v1217
      %v1219 = vrot.slane %v1218, 1
      %v1220 = vadd.f32 %v1218, %v1219
      %v1221 = vld [vmem:[%s2] ss:$8 sm:$0x3]
      %v1223 = vlaneseq
      %v1224 = vshrl.u32 %v1223, 7
      %v1225 = vsub.s32 0, %v1224
      %v1226 = vrot.slane %v1221, %v1225
      %v1227 = vlaneseq
      %v1228 = vshrl.u32 %v1227, 7
      %v1229 = vsub.s32 1, %v1228
      %v1230 = vrot.slane %v1221, %v1229
      %v1233 = vmul.f32 %v275, %v1226
      %v1234 = vmul.f32 %v276, %v1230
      %v1235 = vmul.f32 %v278, %v1226
      %v1236 = vmul.f32 %v279, %v1230
      %v1237 = vadd.f32 %v1233, 0.0
      %v1238 = vadd.f32 %v1234, 0.0
      %v1239 = vadd.f32 %v1235, 0.0
      %v1240 = vadd.f32 %v1236, 0.0
      %s1241 = scalar_lea.vmem %s2, 1
      %v1242 = vld [vmem:[%s1241] ss:$8 sm:$0x3]
      %v1244 = vlaneseq
      %v1245 = vshrl.u32 %v1244, 7
      %v1246 = vsub.s32 0, %v1245
      %v1247 = vrot.slane %v1242, %v1246
      %v1248 = vlaneseq
      %v1249 = vshrl.u32 %v1248, 7
      %v1250 = vsub.s32 1, %v1249
      %v1251 = vrot.slane %v1242, %v1250
      %1252 = vrot.lane.b32.xlu0 %v1247, 16
      %v1253 = vpop.permute.xlu0 %1252
      %1254 = vrot.lane.b32.xlu0 %v1251, 16
      %v1255 = vpop.permute.xlu0 %1254
      %v1256 = vsel %vm298, %v1253, %v1255
      %v1260 = vmul.f32 %v275, %v1253
      %v1261 = vmul.f32 %v276, %v1256
      %v1262 = vmul.f32 %v277, %v1255
      %v1263 = vmul.f32 %v278, %v1253
      %v1264 = vmul.f32 %v279, %v1256
      %v1265 = vmul.f32 %v280, %v1255
      %1272 = vrot.lane.b32.xlu0 %v1260, 112
      %v1273 = vpop.permute.xlu0 %1272
      %1274 = vrot.lane.b32.xlu0 %v1261, 112
      %v1275 = vpop.permute.xlu0 %1274
      %1276 = vrot.lane.b32.xlu0 %v1262, 112
      %v1277 = vpop.permute.xlu0 %1276
      %1278 = vrot.lane.b32.xlu0 %v1263, 112
      %v1279 = vpop.permute.xlu0 %1278
      %1280 = vrot.lane.b32.xlu0 %v1264, 112
      %v1281 = vpop.permute.xlu0 %1280
      %1282 = vrot.lane.b32.xlu0 %v1265, 112
      %v1283 = vpop.permute.xlu0 %1282
      %v1284 = vsel %vm377, %v1273, %v1275
      %v1285 = vsel %vm377, %v1275, %v1277
      %v1286 = vsel %vm377, %v1279, %v1281
      %v1287 = vsel %vm377, %v1281, %v1283
      %v1292 = vadd.f32 %v1237, %v1284
      %v1293 = vadd.f32 %v1238, %v1285
      %v1294 = vadd.f32 %v1239, %v1286
      %v1295 = vadd.f32 %v1240, %v1287
      %s1296 = scalar_lea.vmem %s2, 2
      %v1297 = vld [vmem:[%s1296] ss:$8 sm:$0x3]
      %v1299 = vlaneseq
      %v1300 = vshrl.u32 %v1299, 7
      %v1301 = vsub.s32 0, %v1300
      %v1302 = vrot.slane %v1297, %v1301
      %v1303 = vlaneseq
      %v1304 = vshrl.u32 %v1303, 7
      %v1305 = vsub.s32 1, %v1304
      %v1306 = vrot.slane %v1297, %v1305
      %1307 = vrot.lane.b32.xlu0 %v1302, 32
      %v1308 = vpop.permute.xlu0 %1307
      %1309 = vrot.lane.b32.xlu0 %v1306, 32
      %v1310 = vpop.permute.xlu0 %1309
      %v1311 = vsel %vm336, %v1308, %v1310
      %v1315 = vmul.f32 %v275, %v1308
      %v1316 = vmul.f32 %v276, %v1311
      %v1317 = vmul.f32 %v277, %v1310
      %v1318 = vmul.f32 %v278, %v1308
      %v1319 = vmul.f32 %v279, %v1311
      %v1320 = vmul.f32 %v280, %v1310
      %1327 = vrot.lane.b32.xlu0 %v1315, 96
      %v1328 = vpop.permute.xlu0 %1327
      %1329 = vrot.lane.b32.xlu0 %v1316, 96
      %v1330 = vpop.permute.xlu0 %1329
      %1331 = vrot.lane.b32.xlu0 %v1317, 96
      %v1332 = vpop.permute.xlu0 %1331
      %1333 = vrot.lane.b32.xlu0 %v1318, 96
      %v1334 = vpop.permute.xlu0 %1333
      %1335 = vrot.lane.b32.xlu0 %v1319, 96
      %v1336 = vpop.permute.xlu0 %1335
      %1337 = vrot.lane.b32.xlu0 %v1320, 96
      %v1338 = vpop.permute.xlu0 %1337
      %v1339 = vsel %vm458, %v1328, %v1330
      %v1340 = vsel %vm458, %v1330, %v1332
      %v1341 = vsel %vm458, %v1334, %v1336
      %v1342 = vsel %vm458, %v1336, %v1338
      %v1347 = vadd.f32 %v1292, %v1339
      %v1348 = vadd.f32 %v1293, %v1340
      %v1349 = vadd.f32 %v1294, %v1341
      %v1350 = vadd.f32 %v1295, %v1342
      %s1351 = scalar_lea.vmem %s2, 3
      %v1352 = vld [vmem:[%s1351] ss:$8 sm:$0x3]
      %v1354 = vlaneseq
      %v1355 = vshrl.u32 %v1354, 7
      %v1356 = vsub.s32 0, %v1355
      %v1357 = vrot.slane %v1352, %v1356
      %v1358 = vlaneseq
      %v1359 = vshrl.u32 %v1358, 7
      %v1360 = vsub.s32 1, %v1359
      %v1361 = vrot.slane %v1352, %v1360
      %1362 = vrot.lane.b32.xlu0 %v1357, 48
      %v1363 = vpop.permute.xlu0 %1362
      %1364 = vrot.lane.b32.xlu0 %v1361, 48
      %v1365 = vpop.permute.xlu0 %1364
      %v1366 = vsel %vm417, %v1363, %v1365
      %v1370 = vmul.f32 %v275, %v1363
      %v1371 = vmul.f32 %v276, %v1366
      %v1372 = vmul.f32 %v277, %v1365
      %v1373 = vmul.f32 %v278, %v1363
      %v1374 = vmul.f32 %v279, %v1366
      %v1375 = vmul.f32 %v280, %v1365
      %1382 = vrot.lane.b32.xlu0 %v1370, 80
      %v1383 = vpop.permute.xlu0 %1382
      %1384 = vrot.lane.b32.xlu0 %v1371, 80
      %v1385 = vpop.permute.xlu0 %1384
      %1386 = vrot.lane.b32.xlu0 %v1372, 80
      %v1387 = vpop.permute.xlu0 %1386
      %1388 = vrot.lane.b32.xlu0 %v1373, 80
      %v1389 = vpop.permute.xlu0 %1388
      %1390 = vrot.lane.b32.xlu0 %v1374, 80
      %v1391 = vpop.permute.xlu0 %1390
      %1392 = vrot.lane.b32.xlu0 %v1375, 80
      %v1393 = vpop.permute.xlu0 %1392
      %vm1394 = vcmask 654336
      %v1395 = vsel %vm1394, %v1383, %v1385
      %v1396 = vsel %vm1394, %v1385, %v1387
      %v1397 = vsel %vm1394, %v1389, %v1391
      %v1398 = vsel %vm1394, %v1391, %v1393
      %v1403 = vadd.f32 %v1347, %v1395
      %v1404 = vadd.f32 %v1348, %v1396
      %v1405 = vadd.f32 %v1349, %v1397
      %v1406 = vadd.f32 %v1350, %v1398
      %s1407 = scalar_lea.vmem %s2, 4
      %v1408 = vld [vmem:[%s1407] ss:$8 sm:$0x3]
      %v1410 = vlaneseq
      %v1411 = vshrl.u32 %v1410, 7
      %v1412 = vsub.s32 0, %v1411
      %v1413 = vrot.slane %v1408, %v1412
      %v1414 = vlaneseq
      %v1415 = vshrl.u32 %v1414, 7
      %v1416 = vsub.s32 1, %v1415
      %v1417 = vrot.slane %v1408, %v1416
      %1418 = vrot.lane.b32.xlu0 %v1413, 64
      %v1419 = vpop.permute.xlu0 %1418
      %1420 = vrot.lane.b32.xlu0 %v1417, 64
      %v1421 = vpop.permute.xlu0 %1420
      %vm1422 = vcmask 523264
      %v1423 = vsel %vm1422, %v1419, %v1421
      %v1427 = vmul.f32 %v275, %v1419
      %v1428 = vmul.f32 %v276, %v1423
      %v1429 = vmul.f32 %v277, %v1421
      %v1430 = vmul.f32 %v278, %v1419
      %v1431 = vmul.f32 %v279, %v1423
      %v1432 = vmul.f32 %v280, %v1421
      %1439 = vrot.lane.b32.xlu0 %v1427, 64
      %v1440 = vpop.permute.xlu0 %1439
      %1441 = vrot.lane.b32.xlu0 %v1428, 64
      %v1442 = vpop.permute.xlu0 %1441
      %1443 = vrot.lane.b32.xlu0 %v1429, 64
      %v1444 = vpop.permute.xlu0 %1443
      %1445 = vrot.lane.b32.xlu0 %v1430, 64
      %v1446 = vpop.permute.xlu0 %1445
      %1447 = vrot.lane.b32.xlu0 %v1431, 64
      %v1448 = vpop.permute.xlu0 %1447
      %1449 = vrot.lane.b32.xlu0 %v1432, 64
      %v1450 = vpop.permute.xlu0 %1449
      %v1451 = vsel %vm1422, %v1440, %v1442
      %v1452 = vsel %vm1422, %v1442, %v1444
      %v1453 = vsel %vm1422, %v1446, %v1448
      %v1454 = vsel %vm1422, %v1448, %v1450
      %v1459 = vadd.f32 %v1403, %v1451
      %v1460 = vadd.f32 %v1404, %v1452
      %v1461 = vadd.f32 %v1405, %v1453
      %v1462 = vadd.f32 %v1406, %v1454
      %s1463 = scalar_lea.vmem %s2, 5
      %v1464 = vld [vmem:[%s1463] ss:$8 sm:$0x3]
      %v1466 = vlaneseq
      %v1467 = vshrl.u32 %v1466, 7
      %v1468 = vsub.s32 0, %v1467
      %v1469 = vrot.slane %v1464, %v1468
      %v1470 = vlaneseq
      %v1471 = vshrl.u32 %v1470, 7
      %v1472 = vsub.s32 1, %v1471
      %v1473 = vrot.slane %v1464, %v1472
      %v1476 = vmul.f32 %v275, %v1469
      %v1477 = vmul.f32 %v276, %v1473
      %v1478 = vmul.f32 %v278, %v1469
      %v1479 = vmul.f32 %v279, %v1473
      %v1480 = vmul.f32 %v281, %v1469
      %v1481 = vmul.f32 %v282, %v1473
      %v1488 = vrot.slane %v1476, 1
      %v1489 = vrot.slane %v1478, 1
      %v1490 = vsel %vm520, %v1488, %v1489
      %v1491 = vrot.slane %v1477, 1
      %v1492 = vrot.slane %v1479, 1
      %v1493 = vsel %vm520, %v1491, %v1492
      %v1494 = vrot.slane %v1480, 1
      %v1495 = vsel %vm520, %v1489, %v1494
      %v1496 = vrot.slane %v1481, 1
      %v1497 = vsel %vm520, %v1492, %v1496
      %v1502 = vadd.f32 %v1459, %v1490
      %v1503 = vadd.f32 %v1460, %v1493
      %v1504 = vadd.f32 %v1461, %v1495
      %v1505 = vadd.f32 %v1462, %v1497
      %s1506 = scalar_lea.vmem %s2, 6
      %v1507 = vld [vmem:[%s1506] ss:$8 sm:$0x3]
      %v1509 = vlaneseq
      %v1510 = vshrl.u32 %v1509, 7
      %v1511 = vsub.s32 0, %v1510
      %v1512 = vrot.slane %v1507, %v1511
      %v1513 = vlaneseq
      %v1514 = vshrl.u32 %v1513, 7
      %v1515 = vsub.s32 1, %v1514
      %v1516 = vrot.slane %v1507, %v1515
      %1517 = vrot.lane.b32.xlu0 %v1512, 16
      %v1518 = vpop.permute.xlu0 %1517
      %1519 = vrot.lane.b32.xlu0 %v1516, 16
      %v1520 = vpop.permute.xlu0 %1519
      %v1521 = vsel %vm298, %v1518, %v1520
      %v1525 = vmul.f32 %v275, %v1518
      %v1526 = vmul.f32 %v276, %v1521
      %v1527 = vmul.f32 %v277, %v1520
      %v1528 = vmul.f32 %v278, %v1518
      %v1529 = vmul.f32 %v279, %v1521
      %v1530 = vmul.f32 %v280, %v1520
      %v1531 = vmul.f32 %v281, %v1518
      %v1532 = vmul.f32 %v282, %v1521
      %v1533 = vmul.f32 %v283, %v1520
      %v1543 = vrot.slane %v1525, 1
      %v1544 = vrot.slane %v1528, 1
      %v1545 = vsel %vm520, %v1543, %v1544
      %v1546 = vrot.slane %v1526, 1
      %v1547 = vrot.slane %v1529, 1
      %v1548 = vsel %vm520, %v1546, %v1547
      %v1549 = vrot.slane %v1527, 1
      %v1550 = vrot.slane %v1530, 1
      %v1551 = vsel %vm520, %v1549, %v1550
      %v1552 = vrot.slane %v1531, 1
      %v1553 = vsel %vm520, %v1544, %v1552
      %v1554 = vrot.slane %v1532, 1
      %v1555 = vsel %vm520, %v1547, %v1554
      %v1556 = vrot.slane %v1533, 1
      %v1557 = vsel %vm520, %v1550, %v1556
      %1558 = vrot.lane.b32.xlu0 %v1545, 112
      %v1559 = vpop.permute.xlu0 %1558
      %1560 = vrot.lane.b32.xlu0 %v1548, 112
      %v1561 = vpop.permute.xlu0 %1560
      %1562 = vrot.lane.b32.xlu0 %v1551, 112
      %v1563 = vpop.permute.xlu0 %1562
      %1564 = vrot.lane.b32.xlu0 %v1553, 112
      %v1565 = vpop.permute.xlu0 %1564
      %1566 = vrot.lane.b32.xlu0 %v1555, 112
      %v1567 = vpop.permute.xlu0 %1566
      %1568 = vrot.lane.b32.xlu0 %v1557, 112
      %v1569 = vpop.permute.xlu0 %1568
      %v1570 = vsel %vm377, %v1559, %v1561
      %v1571 = vsel %vm377, %v1561, %v1563
      %v1572 = vsel %vm377, %v1565, %v1567
      %v1573 = vsel %vm377, %v1567, %v1569
      %v1578 = vadd.f32 %v1502, %v1570
      %v1579 = vadd.f32 %v1503, %v1571
      %v1580 = vadd.f32 %v1504, %v1572
      %v1581 = vadd.f32 %v1505, %v1573
      %s1582 = scalar_lea.vmem %s2, 7
      %v1583 = vld [vmem:[%s1582] ss:$8 sm:$0x3]
      %v1585 = vlaneseq
      %v1586 = vshrl.u32 %v1585, 7
      %v1587 = vsub.s32 0, %v1586
      %v1588 = vrot.slane %v1583, %v1587
      %v1589 = vlaneseq
      %v1590 = vshrl.u32 %v1589, 7
      %v1591 = vsub.s32 1, %v1590
      %v1592 = vrot.slane %v1583, %v1591
      %1593 = vrot.lane.b32.xlu0 %v1588, 32
      %v1594 = vpop.permute.xlu0 %1593
      %1595 = vrot.lane.b32.xlu0 %v1592, 32
      %v1596 = vpop.permute.xlu0 %1595
      %v1597 = vsel %vm336, %v1594, %v1596
      %v1601 = vmul.f32 %v275, %v1594
      %v1602 = vmul.f32 %v276, %v1597
      %v1603 = vmul.f32 %v277, %v1596
      %v1604 = vmul.f32 %v278, %v1594
      %v1605 = vmul.f32 %v279, %v1597
      %v1606 = vmul.f32 %v280, %v1596
      %v1607 = vmul.f32 %v281, %v1594
      %v1608 = vmul.f32 %v282, %v1597
      %v1609 = vmul.f32 %v283, %v1596
      %v1619 = vrot.slane %v1601, 1
      %v1620 = vrot.slane %v1604, 1
      %v1621 = vsel %vm520, %v1619, %v1620
      %v1622 = vrot.slane %v1602, 1
      %v1623 = vrot.slane %v1605, 1
      %v1624 = vsel %vm520, %v1622, %v1623
      %v1625 = vrot.slane %v1603, 1
      %v1626 = vrot.slane %v1606, 1
      %v1627 = vsel %vm520, %v1625, %v1626
      %v1628 = vrot.slane %v1607, 1
      %v1629 = vsel %vm520, %v1620, %v1628
      %v1630 = vrot.slane %v1608, 1
      %v1631 = vsel %vm520, %v1623, %v1630
      %v1632 = vrot.slane %v1609, 1
      %v1633 = vsel %vm520, %v1626, %v1632
      %1634 = vrot.lane.b32.xlu0 %v1621, 96
      %v1635 = vpop.permute.xlu0 %1634
      %1636 = vrot.lane.b32.xlu0 %v1624, 96
      %v1637 = vpop.permute.xlu0 %1636
      %1638 = vrot.lane.b32.xlu0 %v1627, 96
      %v1639 = vpop.permute.xlu0 %1638
      %1640 = vrot.lane.b32.xlu0 %v1629, 96
      %v1641 = vpop.permute.xlu0 %1640
      %1642 = vrot.lane.b32.xlu0 %v1631, 96
      %v1643 = vpop.permute.xlu0 %1642
      %1644 = vrot.lane.b32.xlu0 %v1633, 96
      %v1645 = vpop.permute.xlu0 %1644
      %v1646 = vsel %vm458, %v1635, %v1637
      %v1647 = vsel %vm458, %v1637, %v1639
      %v1648 = vsel %vm458, %v1641, %v1643
      %v1649 = vsel %vm458, %v1643, %v1645
      %v1654 = vadd.f32 %v1578, %v1646
      %v1655 = vadd.f32 %v1579, %v1647
      %v1656 = vadd.f32 %v1580, %v1648
      %v1657 = vadd.f32 %v1581, %v1649
      %s1658 = scalar_lea.vmem %s2, 16
      %v1659 = vld [vmem:[%s1658] ss:$8 sm:$0x3]
      %v1661 = vlaneseq
      %v1662 = vshrl.u32 %v1661, 7
      %v1663 = vsub.s32 0, %v1662
      %v1664 = vrot.slane %v1659, %v1663
      %v1665 = vlaneseq
      %v1666 = vshrl.u32 %v1665, 7
      %v1667 = vsub.s32 1, %v1666
      %v1668 = vrot.slane %v1659, %v1667
      %1669 = vrot.lane.b32.xlu0 %v1664, 48
      %v1670 = vpop.permute.xlu0 %1669
      %1671 = vrot.lane.b32.xlu0 %v1668, 48
      %v1672 = vpop.permute.xlu0 %1671
      %v1673 = vsel %vm417, %v1670, %v1672
      %v1677 = vmul.f32 %v275, %v1670
      %v1678 = vmul.f32 %v276, %v1673
      %v1679 = vmul.f32 %v277, %v1672
      %v1680 = vmul.f32 %v278, %v1670
      %v1681 = vmul.f32 %v279, %v1673
      %v1682 = vmul.f32 %v280, %v1672
      %v1683 = vmul.f32 %v281, %v1670
      %v1684 = vmul.f32 %v282, %v1673
      %v1685 = vmul.f32 %v283, %v1672
      %v1695 = vrot.slane %v1677, 1
      %v1696 = vrot.slane %v1680, 1
      %v1697 = vsel %vm520, %v1695, %v1696
      %v1698 = vrot.slane %v1678, 1
      %v1699 = vrot.slane %v1681, 1
      %v1700 = vsel %vm520, %v1698, %v1699
      %v1701 = vrot.slane %v1679, 1
      %v1702 = vrot.slane %v1682, 1
      %v1703 = vsel %vm520, %v1701, %v1702
      %v1704 = vrot.slane %v1683, 1
      %v1705 = vsel %vm520, %v1696, %v1704
      %v1706 = vrot.slane %v1684, 1
      %v1707 = vsel %vm520, %v1699, %v1706
      %v1708 = vrot.slane %v1685, 1
      %v1709 = vsel %vm520, %v1702, %v1708
      %1710 = vrot.lane.b32.xlu0 %v1697, 80
      %v1711 = vpop.permute.xlu0 %1710
      %1712 = vrot.lane.b32.xlu0 %v1700, 80
      %v1713 = vpop.permute.xlu0 %1712
      %1714 = vrot.lane.b32.xlu0 %v1703, 80
      %v1715 = vpop.permute.xlu0 %1714
      %1716 = vrot.lane.b32.xlu0 %v1705, 80
      %v1717 = vpop.permute.xlu0 %1716
      %1718 = vrot.lane.b32.xlu0 %v1707, 80
      %v1719 = vpop.permute.xlu0 %1718
      %1720 = vrot.lane.b32.xlu0 %v1709, 80
      %v1721 = vpop.permute.xlu0 %1720
      %v1722 = vsel %vm1394, %v1711, %v1713
      %v1723 = vsel %vm1394, %v1713, %v1715
      %v1724 = vsel %vm1394, %v1717, %v1719
      %v1725 = vsel %vm1394, %v1719, %v1721
      %v1730 = vadd.f32 %v1654, %v1722
      %v1731 = vadd.f32 %v1655, %v1723
      %v1732 = vadd.f32 %v1656, %v1724
      %v1733 = vadd.f32 %v1657, %v1725
      %s1734 = scalar_lea.vmem %s2, 17
      %v1735 = vld [vmem:[%s1734] ss:$8 sm:$0x3]
      %v1737 = vlaneseq
      %v1738 = vshrl.u32 %v1737, 7
      %v1739 = vsub.s32 0, %v1738
      %v1740 = vrot.slane %v1735, %v1739
      %v1741 = vlaneseq
      %v1742 = vshrl.u32 %v1741, 7
      %v1743 = vsub.s32 1, %v1742
      %v1744 = vrot.slane %v1735, %v1743
      %1745 = vrot.lane.b32.xlu0 %v1740, 64
      %v1746 = vpop.permute.xlu0 %1745
      %1747 = vrot.lane.b32.xlu0 %v1744, 64
      %v1748 = vpop.permute.xlu0 %1747
      %v1749 = vsel %vm1422, %v1746, %v1748
      %v1753 = vmul.f32 %v275, %v1746
      %v1754 = vmul.f32 %v276, %v1749
      %v1755 = vmul.f32 %v277, %v1748
      %v1756 = vmul.f32 %v278, %v1746
      %v1757 = vmul.f32 %v279, %v1749
      %v1758 = vmul.f32 %v280, %v1748
      %v1759 = vmul.f32 %v281, %v1746
      %v1760 = vmul.f32 %v282, %v1749
      %v1761 = vmul.f32 %v283, %v1748
      %v1771 = vrot.slane %v1753, 1
      %v1772 = vrot.slane %v1756, 1
      %v1773 = vsel %vm520, %v1771, %v1772
      %v1774 = vrot.slane %v1754, 1
      %v1775 = vrot.slane %v1757, 1
      %v1776 = vsel %vm520, %v1774, %v1775
      %v1777 = vrot.slane %v1755, 1
      %v1778 = vrot.slane %v1758, 1
      %v1779 = vsel %vm520, %v1777, %v1778
      %v1780 = vrot.slane %v1759, 1
      %v1781 = vsel %vm520, %v1772, %v1780
      %v1782 = vrot.slane %v1760, 1
      %v1783 = vsel %vm520, %v1775, %v1782
      %v1784 = vrot.slane %v1761, 1
      %v1785 = vsel %vm520, %v1778, %v1784
      %1786 = vrot.lane.b32.xlu0 %v1773, 64
      %v1787 = vpop.permute.xlu0 %1786
      %1788 = vrot.lane.b32.xlu0 %v1776, 64
      %v1789 = vpop.permute.xlu0 %1788
      %1790 = vrot.lane.b32.xlu0 %v1779, 64
      %v1791 = vpop.permute.xlu0 %1790
      %1792 = vrot.lane.b32.xlu0 %v1781, 64
      %v1793 = vpop.permute.xlu0 %1792
      %1794 = vrot.lane.b32.xlu0 %v1783, 64
      %v1795 = vpop.permute.xlu0 %1794
      %1796 = vrot.lane.b32.xlu0 %v1785, 64
      %v1797 = vpop.permute.xlu0 %1796
      %v1798 = vsel %vm1422, %v1787, %v1789
      %v1799 = vsel %vm1422, %v1789, %v1791
      %v1800 = vsel %vm1422, %v1793, %v1795
      %v1801 = vsel %vm1422, %v1795, %v1797
      %v1806 = vadd.f32 %v1730, %v1798
      %v1807 = vadd.f32 %v1731, %v1799
      %v1808 = vadd.f32 %v1732, %v1800
      %v1809 = vadd.f32 %v1733, %v1801
      %s1810 = scalar_lea.vmem %s2, 18
      %v1811 = vld [vmem:[%s1810] ss:$8 sm:$0x3]
      %v1813 = vlaneseq
      %v1814 = vshrl.u32 %v1813, 7
      %v1815 = vsub.s32 0, %v1814
      %v1816 = vrot.slane %v1811, %v1815
      %v1817 = vlaneseq
      %v1818 = vshrl.u32 %v1817, 7
      %v1819 = vsub.s32 1, %v1818
      %v1820 = vrot.slane %v1811, %v1819
      %v1823 = vmul.f32 %v275, %v1816
      %v1824 = vmul.f32 %v276, %v1820
      %v1825 = vmul.f32 %v278, %v1816
      %v1826 = vmul.f32 %v279, %v1820
      %v1827 = vmul.f32 %v281, %v1816
      %v1828 = vmul.f32 %v282, %v1820
      %v1835 = vrot.slane %v1823, 2
      %v1836 = vrot.slane %v1825, 2
      %v1837 = vsel %vm779, %v1835, %v1836
      %v1838 = vrot.slane %v1824, 2
      %v1839 = vrot.slane %v1826, 2
      %v1840 = vsel %vm779, %v1838, %v1839
      %v1841 = vrot.slane %v1827, 2
      %v1842 = vsel %vm779, %v1836, %v1841
      %v1843 = vrot.slane %v1828, 2
      %v1844 = vsel %vm779, %v1839, %v1843
      %v1849 = vadd.f32 %v1806, %v1837
      %v1850 = vadd.f32 %v1807, %v1840
      %v1851 = vadd.f32 %v1808, %v1842
      %v1852 = vadd.f32 %v1809, %v1844
      %s1853 = scalar_lea.vmem %s2, 19
      %v1854 = vld [vmem:[%s1853] ss:$8 sm:$0x3]
      %v1856 = vlaneseq
      %v1857 = vshrl.u32 %v1856, 7
      %v1858 = vsub.s32 0, %v1857
      %v1859 = vrot.slane %v1854, %v1858
      %v1860 = vlaneseq
      %v1861 = vshrl.u32 %v1860, 7
      %v1862 = vsub.s32 1, %v1861
      %v1863 = vrot.slane %v1854, %v1862
      %1864 = vrot.lane.b32.xlu0 %v1859, 16
      %v1865 = vpop.permute.xlu0 %1864
      %1866 = vrot.lane.b32.xlu0 %v1863, 16
      %v1867 = vpop.permute.xlu0 %1866
      %v1868 = vsel %vm298, %v1865, %v1867
      %v1872 = vmul.f32 %v275, %v1865
      %v1873 = vmul.f32 %v276, %v1868
      %v1874 = vmul.f32 %v277, %v1867
      %v1875 = vmul.f32 %v278, %v1865
      %v1876 = vmul.f32 %v279, %v1868
      %v1877 = vmul.f32 %v280, %v1867
      %v1878 = vmul.f32 %v281, %v1865
      %v1879 = vmul.f32 %v282, %v1868
      %v1880 = vmul.f32 %v283, %v1867
      %v1890 = vrot.slane %v1872, 2
      %v1891 = vrot.slane %v1875, 2
      %v1892 = vsel %vm779, %v1890, %v1891
      %v1893 = vrot.slane %v1873, 2
      %v1894 = vrot.slane %v1876, 2
      %v1895 = vsel %vm779, %v1893, %v1894
      %v1896 = vrot.slane %v1874, 2
      %v1897 = vrot.slane %v1877, 2
      %v1898 = vsel %vm779, %v1896, %v1897
      %v1899 = vrot.slane %v1878, 2
      %v1900 = vsel %vm779, %v1891, %v1899
      %v1901 = vrot.slane %v1879, 2
      %v1902 = vsel %vm779, %v1894, %v1901
      %v1903 = vrot.slane %v1880, 2
      %v1904 = vsel %vm779, %v1897, %v1903
      %1905 = vrot.lane.b32.xlu0 %v1892, 112
      %v1906 = vpop.permute.xlu0 %1905
      %1907 = vrot.lane.b32.xlu0 %v1895, 112
      %v1908 = vpop.permute.xlu0 %1907
      %1909 = vrot.lane.b32.xlu0 %v1898, 112
      %v1910 = vpop.permute.xlu0 %1909
      %1911 = vrot.lane.b32.xlu0 %v1900, 112
      %v1912 = vpop.permute.xlu0 %1911
      %1913 = vrot.lane.b32.xlu0 %v1902, 112
      %v1914 = vpop.permute.xlu0 %1913
      %1915 = vrot.lane.b32.xlu0 %v1904, 112
      %v1916 = vpop.permute.xlu0 %1915
      %v1917 = vsel %vm377, %v1906, %v1908
      %v1918 = vsel %vm377, %v1908, %v1910
      %v1919 = vsel %vm377, %v1912, %v1914
      %v1920 = vsel %vm377, %v1914, %v1916
      %v1925 = vadd.f32 %v1849, %v1917
      %v1926 = vadd.f32 %v1850, %v1918
      %v1927 = vadd.f32 %v1851, %v1919
      %v1928 = vadd.f32 %v1852, %v1920
      %s1929 = scalar_lea.vmem %s2, 20
      %v1930 = vld [vmem:[%s1929] ss:$8 sm:$0x3]
      %v1932 = vlaneseq
      %v1933 = vshrl.u32 %v1932, 7
      %v1934 = vsub.s32 0, %v1933
      %v1935 = vrot.slane %v1930, %v1934
      %v1936 = vlaneseq
      %v1937 = vshrl.u32 %v1936, 7
      %v1938 = vsub.s32 1, %v1937
      %v1939 = vrot.slane %v1930, %v1938
      %1940 = vrot.lane.b32.xlu0 %v1935, 32
      %v1941 = vpop.permute.xlu0 %1940
      %1942 = vrot.lane.b32.xlu0 %v1939, 32
      %v1943 = vpop.permute.xlu0 %1942
      %v1944 = vsel %vm336, %v1941, %v1943
      %v1948 = vmul.f32 %v275, %v1941
      %v1949 = vmul.f32 %v276, %v1944
      %v1950 = vmul.f32 %v277, %v1943
      %v1951 = vmul.f32 %v278, %v1941
      %v1952 = vmul.f32 %v279, %v1944
      %v1953 = vmul.f32 %v280, %v1943
      %v1954 = vmul.f32 %v281, %v1941
      %v1955 = vmul.f32 %v282, %v1944
      %v1956 = vmul.f32 %v283, %v1943
      %v1966 = vrot.slane %v1948, 2
      %v1967 = vrot.slane %v1951, 2
      %v1968 = vsel %vm779, %v1966, %v1967
      %v1969 = vrot.slane %v1949, 2
      %v1970 = vrot.slane %v1952, 2
      %v1971 = vsel %vm779, %v1969, %v1970
      %v1972 = vrot.slane %v1950, 2
      %v1973 = vrot.slane %v1953, 2
      %v1974 = vsel %vm779, %v1972, %v1973
      %v1975 = vrot.slane %v1954, 2
      %v1976 = vsel %vm779, %v1967, %v1975
      %v1977 = vrot.slane %v1955, 2
      %v1978 = vsel %vm779, %v1970, %v1977
      %v1979 = vrot.slane %v1956, 2
      %v1980 = vsel %vm779, %v1973, %v1979
      %1981 = vrot.lane.b32.xlu0 %v1968, 96
      %v1982 = vpop.permute.xlu0 %1981
      %1983 = vrot.lane.b32.xlu0 %v1971, 96
      %v1984 = vpop.permute.xlu0 %1983
      %1985 = vrot.lane.b32.xlu0 %v1974, 96
      %v1986 = vpop.permute.xlu0 %1985
      %1987 = vrot.lane.b32.xlu0 %v1976, 96
      %v1988 = vpop.permute.xlu0 %1987
      %1989 = vrot.lane.b32.xlu0 %v1978, 96
      %v1990 = vpop.permute.xlu0 %1989
      %1991 = vrot.lane.b32.xlu0 %v1980, 96
      %v1992 = vpop.permute.xlu0 %1991
      %v1993 = vsel %vm458, %v1982, %v1984
      %v1994 = vsel %vm458, %v1984, %v1986
      %v1995 = vsel %vm458, %v1988, %v1990
      %v1996 = vsel %vm458, %v1990, %v1992
      %v2001 = vadd.f32 %v1925, %v1993
      %v2002 = vadd.f32 %v1926, %v1994
      %v2003 = vadd.f32 %v1927, %v1995
      %v2004 = vadd.f32 %v1928, %v1996
      %s2005 = scalar_lea.vmem %s2, 21
      %v2006 = vld [vmem:[%s2005] ss:$8 sm:$0x3]
      %v2008 = vlaneseq
      %v2009 = vshrl.u32 %v2008, 7
      %v2010 = vsub.s32 0, %v2009
      %v2011 = vrot.slane %v2006, %v2010
      %v2012 = vlaneseq
      %v2013 = vshrl.u32 %v2012, 7
      %v2014 = vsub.s32 1, %v2013
      %v2015 = vrot.slane %v2006, %v2014
      %2016 = vrot.lane.b32.xlu0 %v2011, 48
      %v2017 = vpop.permute.xlu0 %2016
      %2018 = vrot.lane.b32.xlu0 %v2015, 48
      %v2019 = vpop.permute.xlu0 %2018
      %v2020 = vsel %vm417, %v2017, %v2019
      %v2024 = vmul.f32 %v275, %v2017
      %v2025 = vmul.f32 %v276, %v2020
      %v2026 = vmul.f32 %v277, %v2019
      %v2027 = vmul.f32 %v278, %v2017
      %v2028 = vmul.f32 %v279, %v2020
      %v2029 = vmul.f32 %v280, %v2019
      %v2030 = vmul.f32 %v281, %v2017
      %v2031 = vmul.f32 %v282, %v2020
      %v2032 = vmul.f32 %v283, %v2019
      %v2042 = vrot.slane %v2024, 2
      %v2043 = vrot.slane %v2027, 2
      %v2044 = vsel %vm779, %v2042, %v2043
      %v2045 = vrot.slane %v2025, 2
      %v2046 = vrot.slane %v2028, 2
      %v2047 = vsel %vm779, %v2045, %v2046
      %v2048 = vrot.slane %v2026, 2
      %v2049 = vrot.slane %v2029, 2
      %v2050 = vsel %vm779, %v2048, %v2049
      %v2051 = vrot.slane %v2030, 2
      %v2052 = vsel %vm779, %v2043, %v2051
      %v2053 = vrot.slane %v2031, 2
      %v2054 = vsel %vm779, %v2046, %v2053
      %v2055 = vrot.slane %v2032, 2
      %v2056 = vsel %vm779, %v2049, %v2055
      %2057 = vrot.lane.b32.xlu0 %v2044, 80
      %v2058 = vpop.permute.xlu0 %2057
      %2059 = vrot.lane.b32.xlu0 %v2047, 80
      %v2060 = vpop.permute.xlu0 %2059
      %2061 = vrot.lane.b32.xlu0 %v2050, 80
      %v2062 = vpop.permute.xlu0 %2061
      %2063 = vrot.lane.b32.xlu0 %v2052, 80
      %v2064 = vpop.permute.xlu0 %2063
      %2065 = vrot.lane.b32.xlu0 %v2054, 80
      %v2066 = vpop.permute.xlu0 %2065
      %2067 = vrot.lane.b32.xlu0 %v2056, 80
      %v2068 = vpop.permute.xlu0 %2067
      %v2069 = vsel %vm1394, %v2058, %v2060
      %v2070 = vsel %vm1394, %v2060, %v2062
      %v2071 = vsel %vm1394, %v2064, %v2066
      %v2072 = vsel %vm1394, %v2066, %v2068
      %v2077 = vadd.f32 %v2001, %v2069
      %v2078 = vadd.f32 %v2002, %v2070
      %v2079 = vadd.f32 %v2003, %v2071
      %v2080 = vadd.f32 %v2004, %v2072
      %s2081 = scalar_lea.vmem %s2, 22
      %v2082 = vld [vmem:[%s2081] ss:$8 sm:$0x3]
      %v2084 = vlaneseq
      %v2085 = vshrl.u32 %v2084, 7
      %v2086 = vsub.s32 0, %v2085
      %v2087 = vrot.slane %v2082, %v2086
      %v2088 = vlaneseq
      %v2089 = vshrl.u32 %v2088, 7
      %v2090 = vsub.s32 1, %v2089
      %v2091 = vrot.slane %v2082, %v2090
      %2092 = vrot.lane.b32.xlu0 %v2087, 64
      %v2093 = vpop.permute.xlu0 %2092
      %2094 = vrot.lane.b32.xlu0 %v2091, 64
      %v2095 = vpop.permute.xlu0 %2094
      %v2096 = vsel %vm1422, %v2093, %v2095
      %v2100 = vmul.f32 %v275, %v2093
      %v2101 = vmul.f32 %v276, %v2096
      %v2102 = vmul.f32 %v277, %v2095
      %v2103 = vmul.f32 %v278, %v2093
      %v2104 = vmul.f32 %v279, %v2096
      %v2105 = vmul.f32 %v280, %v2095
      %v2106 = vmul.f32 %v281, %v2093
      %v2107 = vmul.f32 %v282, %v2096
      %v2108 = vmul.f32 %v283, %v2095
      %v2118 = vrot.slane %v2100, 2
      %v2119 = vrot.slane %v2103, 2
      %v2120 = vsel %vm779, %v2118, %v2119
      %v2121 = vrot.slane %v2101, 2
      %v2122 = vrot.slane %v2104, 2
      %v2123 = vsel %vm779, %v2121, %v2122
      %v2124 = vrot.slane %v2102, 2
      %v2125 = vrot.slane %v2105, 2
      %v2126 = vsel %vm779, %v2124, %v2125
      %v2127 = vrot.slane %v2106, 2
      %v2128 = vsel %vm779, %v2119, %v2127
      %v2129 = vrot.slane %v2107, 2
      %v2130 = vsel %vm779, %v2122, %v2129
      %v2131 = vrot.slane %v2108, 2
      %v2132 = vsel %vm779, %v2125, %v2131
      %2133 = vrot.lane.b32.xlu0 %v2120, 64
      %v2134 = vpop.permute.xlu0 %2133
      %2135 = vrot.lane.b32.xlu0 %v2123, 64
      %v2136 = vpop.permute.xlu0 %2135
      %2137 = vrot.lane.b32.xlu0 %v2126, 64
      %v2138 = vpop.permute.xlu0 %2137
      %2139 = vrot.lane.b32.xlu0 %v2128, 64
      %v2140 = vpop.permute.xlu0 %2139
      %2141 = vrot.lane.b32.xlu0 %v2130, 64
      %v2142 = vpop.permute.xlu0 %2141
      %2143 = vrot.lane.b32.xlu0 %v2132, 64
      %v2144 = vpop.permute.xlu0 %2143
      %v2145 = vsel %vm1422, %v2134, %v2136
      %v2146 = vsel %vm1422, %v2136, %v2138
      %v2147 = vsel %vm1422, %v2140, %v2142
      %v2148 = vsel %vm1422, %v2142, %v2144
      %v2153 = vadd.f32 %v2077, %v2145
      %v2154 = vadd.f32 %v2078, %v2146
      %v2155 = vadd.f32 %v2079, %v2147
      %v2156 = vadd.f32 %v2080, %v2148
      %s2157 = scalar_lea.vmem %s2, 23
      %v2158 = vld [vmem:[%s2157] ss:$8 sm:$0x3]
      %v2160 = vlaneseq
      %v2161 = vshrl.u32 %v2160, 7
      %v2162 = vsub.s32 0, %v2161
      %v2163 = vrot.slane %v2158, %v2162
      %v2164 = vlaneseq
      %v2165 = vshrl.u32 %v2164, 7
      %v2166 = vsub.s32 1, %v2165
      %v2167 = vrot.slane %v2158, %v2166
      %v2170 = vmul.f32 %v275, %v2163
      %v2171 = vmul.f32 %v276, %v2167
      %v2172 = vmul.f32 %v278, %v2163
      %v2173 = vmul.f32 %v279, %v2167
      %v2174 = vmul.f32 %v281, %v2163
      %v2175 = vmul.f32 %v282, %v2167
      %vm2182 = vcmask 1044480
      %v2183 = vrot.slane %v2170, 3
      %v2184 = vrot.slane %v2172, 3
      %v2185 = vsel %vm2182, %v2183, %v2184
      %v2186 = vrot.slane %v2171, 3
      %v2187 = vrot.slane %v2173, 3
      %v2188 = vsel %vm2182, %v2186, %v2187
      %v2189 = vrot.slane %v2174, 3
      %v2190 = vsel %vm2182, %v2184, %v2189
      %v2191 = vrot.slane %v2175, 3
      %v2192 = vsel %vm2182, %v2187, %v2191
      %v2197 = vadd.f32 %v2153, %v2185
      %v2198 = vadd.f32 %v2154, %v2188
      %v2199 = vadd.f32 %v2155, %v2190
      %v2200 = vadd.f32 %v2156, %v2192
      %s2201 = scalar_lea.vmem %s2, 32
      %v2202 = vld [vmem:[%s2201] ss:$8 sm:$0x3]
      %v2204 = vlaneseq
      %v2205 = vshrl.u32 %v2204, 7
      %v2206 = vsub.s32 0, %v2205
      %v2207 = vrot.slane %v2202, %v2206
      %v2208 = vlaneseq
      %v2209 = vshrl.u32 %v2208, 7
      %v2210 = vsub.s32 1, %v2209
      %v2211 = vrot.slane %v2202, %v2210
      %2212 = vrot.lane.b32.xlu0 %v2207, 16
      %v2213 = vpop.permute.xlu0 %2212
      %2214 = vrot.lane.b32.xlu0 %v2211, 16
      %v2215 = vpop.permute.xlu0 %2214
      %v2216 = vsel %vm298, %v2213, %v2215
      %v2220 = vmul.f32 %v275, %v2213
      %v2221 = vmul.f32 %v276, %v2216
      %v2222 = vmul.f32 %v277, %v2215
      %v2223 = vmul.f32 %v278, %v2213
      %v2224 = vmul.f32 %v279, %v2216
      %v2225 = vmul.f32 %v280, %v2215
      %v2226 = vmul.f32 %v281, %v2213
      %v2227 = vmul.f32 %v282, %v2216
      %v2228 = vmul.f32 %v283, %v2215
      %v2238 = vrot.slane %v2220, 3
      %v2239 = vrot.slane %v2223, 3
      %v2240 = vsel %vm2182, %v2238, %v2239
      %v2241 = vrot.slane %v2221, 3
      %v2242 = vrot.slane %v2224, 3
      %v2243 = vsel %vm2182, %v2241, %v2242
      %v2244 = vrot.slane %v2222, 3
      %v2245 = vrot.slane %v2225, 3
      %v2246 = vsel %vm2182, %v2244, %v2245
      %v2247 = vrot.slane %v2226, 3
      %v2248 = vsel %vm2182, %v2239, %v2247
      %v2249 = vrot.slane %v2227, 3
      %v2250 = vsel %vm2182, %v2242, %v2249
      %v2251 = vrot.slane %v2228, 3
      %v2252 = vsel %vm2182, %v2245, %v2251
      %2253 = vrot.lane.b32.xlu0 %v2240, 112
      %v2254 = vpop.permute.xlu0 %2253
      %2255 = vrot.lane.b32.xlu0 %v2243, 112
      %v2256 = vpop.permute.xlu0 %2255
      %2257 = vrot.lane.b32.xlu0 %v2246, 112
      %v2258 = vpop.permute.xlu0 %2257
      %2259 = vrot.lane.b32.xlu0 %v2248, 112
      %v2260 = vpop.permute.xlu0 %2259
      %2261 = vrot.lane.b32.xlu0 %v2250, 112
      %v2262 = vpop.permute.xlu0 %2261
      %2263 = vrot.lane.b32.xlu0 %v2252, 112
      %v2264 = vpop.permute.xlu0 %2263
      %v2265 = vsel %vm377, %v2254, %v2256
      %v2266 = vsel %vm377, %v2256, %v2258
      %v2267 = vsel %vm377, %v2260, %v2262
      %v2268 = vsel %vm377, %v2262, %v2264
      %v2273 = vadd.f32 %v2197, %v2265
      %v2274 = vadd.f32 %v2198, %v2266
      %v2275 = vadd.f32 %v2199, %v2267
      %v2276 = vadd.f32 %v2200, %v2268
      %s2277 = scalar_lea.vmem %s2, 33
      %v2278 = vld [vmem:[%s2277] ss:$8 sm:$0x3]
      %v2280 = vlaneseq
      %v2281 = vshrl.u32 %v2280, 7
      %v2282 = vsub.s32 0, %v2281
      %v2283 = vrot.slane %v2278, %v2282
      %v2284 = vlaneseq
      %v2285 = vshrl.u32 %v2284, 7
      %v2286 = vsub.s32 1, %v2285
      %v2287 = vrot.slane %v2278, %v2286
      %2288 = vrot.lane.b32.xlu0 %v2283, 32
      %v2289 = vpop.permute.xlu0 %2288
      %2290 = vrot.lane.b32.xlu0 %v2287, 32
      %v2291 = vpop.permute.xlu0 %2290
      %v2292 = vsel %vm336, %v2289, %v2291
      %v2296 = vmul.f32 %v275, %v2289
      %v2297 = vmul.f32 %v276, %v2292
      %v2298 = vmul.f32 %v277, %v2291
      %v2299 = vmul.f32 %v278, %v2289
      %v2300 = vmul.f32 %v279, %v2292
      %v2301 = vmul.f32 %v280, %v2291
      %v2302 = vmul.f32 %v281, %v2289
      %v2303 = vmul.f32 %v282, %v2292
      %v2304 = vmul.f32 %v283, %v2291
      %v2314 = vrot.slane %v2296, 3
      %v2315 = vrot.slane %v2299, 3
      %v2316 = vsel %vm2182, %v2314, %v2315
      %v2317 = vrot.slane %v2297, 3
      %v2318 = vrot.slane %v2300, 3
      %v2319 = vsel %vm2182, %v2317, %v2318
      %v2320 = vrot.slane %v2298, 3
      %v2321 = vrot.slane %v2301, 3
      %v2322 = vsel %vm2182, %v2320, %v2321
      %v2323 = vrot.slane %v2302, 3
      %v2324 = vsel %vm2182, %v2315, %v2323
      %v2325 = vrot.slane %v2303, 3
      %v2326 = vsel %vm2182, %v2318, %v2325
      %v2327 = vrot.slane %v2304, 3
      %v2328 = vsel %vm2182, %v2321, %v2327
      %2329 = vrot.lane.b32.xlu0 %v2316, 96
      %v2330 = vpop.permute.xlu0 %2329
      %2331 = vrot.lane.b32.xlu0 %v2319, 96
      %v2332 = vpop.permute.xlu0 %2331
      %2333 = vrot.lane.b32.xlu0 %v2322, 96
      %v2334 = vpop.permute.xlu0 %2333
      %2335 = vrot.lane.b32.xlu0 %v2324, 96
      %v2336 = vpop.permute.xlu0 %2335
      %2337 = vrot.lane.b32.xlu0 %v2326, 96
      %v2338 = vpop.permute.xlu0 %2337
      %2339 = vrot.lane.b32.xlu0 %v2328, 96
      %v2340 = vpop.permute.xlu0 %2339
      %v2341 = vsel %vm458, %v2330, %v2332
      %v2342 = vsel %vm458, %v2332, %v2334
      %v2343 = vsel %vm458, %v2336, %v2338
      %v2344 = vsel %vm458, %v2338, %v2340
      %v2349 = vadd.f32 %v2273, %v2341
      %v2350 = vadd.f32 %v2274, %v2342
      %v2351 = vadd.f32 %v2275, %v2343
      %v2352 = vadd.f32 %v2276, %v2344
      %s2353 = scalar_lea.vmem %s2, 34
      %v2354 = vld [vmem:[%s2353] ss:$8 sm:$0x3]
      %v2356 = vlaneseq
      %v2357 = vshrl.u32 %v2356, 7
      %v2358 = vsub.s32 0, %v2357
      %v2359 = vrot.slane %v2354, %v2358
      %v2360 = vlaneseq
      %v2361 = vshrl.u32 %v2360, 7
      %v2362 = vsub.s32 1, %v2361
      %v2363 = vrot.slane %v2354, %v2362
      %2364 = vrot.lane.b32.xlu0 %v2359, 48
      %v2365 = vpop.permute.xlu0 %2364
      %2366 = vrot.lane.b32.xlu0 %v2363, 48
      %v2367 = vpop.permute.xlu0 %2366
      %v2368 = vsel %vm417, %v2365, %v2367
      %v2372 = vmul.f32 %v275, %v2365
      %v2373 = vmul.f32 %v276, %v2368
      %v2374 = vmul.f32 %v277, %v2367
      %v2375 = vmul.f32 %v278, %v2365
      %v2376 = vmul.f32 %v279, %v2368
      %v2377 = vmul.f32 %v280, %v2367
      %v2378 = vmul.f32 %v281, %v2365
      %v2379 = vmul.f32 %v282, %v2368
      %v2380 = vmul.f32 %v283, %v2367
      %v2390 = vrot.slane %v2372, 3
      %v2391 = vrot.slane %v2375, 3
      %v2392 = vsel %vm2182, %v2390, %v2391
      %v2393 = vrot.slane %v2373, 3
      %v2394 = vrot.slane %v2376, 3
      %v2395 = vsel %vm2182, %v2393, %v2394
      %v2396 = vrot.slane %v2374, 3
      %v2397 = vrot.slane %v2377, 3
      %v2398 = vsel %vm2182, %v2396, %v2397
      %v2399 = vrot.slane %v2378, 3
      %v2400 = vsel %vm2182, %v2391, %v2399
      %v2401 = vrot.slane %v2379, 3
      %v2402 = vsel %vm2182, %v2394, %v2401
      %v2403 = vrot.slane %v2380, 3
      %v2404 = vsel %vm2182, %v2397, %v2403
      %2405 = vrot.lane.b32.xlu0 %v2392, 80
      %v2406 = vpop.permute.xlu0 %2405
      %2407 = vrot.lane.b32.xlu0 %v2395, 80
      %v2408 = vpop.permute.xlu0 %2407
      %2409 = vrot.lane.b32.xlu0 %v2398, 80
      %v2410 = vpop.permute.xlu0 %2409
      %2411 = vrot.lane.b32.xlu0 %v2400, 80
      %v2412 = vpop.permute.xlu0 %2411
      %2413 = vrot.lane.b32.xlu0 %v2402, 80
      %v2414 = vpop.permute.xlu0 %2413
      %2415 = vrot.lane.b32.xlu0 %v2404, 80
      %v2416 = vpop.permute.xlu0 %2415
      %v2417 = vsel %vm1394, %v2406, %v2408
      %v2418 = vsel %vm1394, %v2408, %v2410
      %v2419 = vsel %vm1394, %v2412, %v2414
      %v2420 = vsel %vm1394, %v2414, %v2416
      %v2425 = vadd.f32 %v2349, %v2417
      %v2426 = vadd.f32 %v2350, %v2418
      %v2427 = vadd.f32 %v2351, %v2419
      %v2428 = vadd.f32 %v2352, %v2420
      %s2429 = scalar_lea.vmem %s2, 35
      %v2430 = vld [vmem:[%s2429] ss:$8 sm:$0x3]
      %v2432 = vlaneseq
      %v2433 = vshrl.u32 %v2432, 7
      %v2434 = vsub.s32 0, %v2433
      %v2435 = vrot.slane %v2430, %v2434
      %v2436 = vlaneseq
      %v2437 = vshrl.u32 %v2436, 7
      %v2438 = vsub.s32 1, %v2437
      %v2439 = vrot.slane %v2430, %v2438
      %2440 = vrot.lane.b32.xlu0 %v2435, 64
      %v2441 = vpop.permute.xlu0 %2440
      %2442 = vrot.lane.b32.xlu0 %v2439, 64
      %v2443 = vpop.permute.xlu0 %2442
      %v2444 = vsel %vm1422, %v2441, %v2443
      %v2448 = vmul.f32 %v275, %v2441
      %v2449 = vmul.f32 %v276, %v2444
      %v2450 = vmul.f32 %v277, %v2443
      %v2451 = vmul.f32 %v278, %v2441
      %v2452 = vmul.f32 %v279, %v2444
      %v2453 = vmul.f32 %v280, %v2443
      %v2454 = vmul.f32 %v281, %v2441
      %v2455 = vmul.f32 %v282, %v2444
      %v2456 = vmul.f32 %v283, %v2443
      %v2466 = vrot.slane %v2448, 3
      %v2467 = vrot.slane %v2451, 3
      %v2468 = vsel %vm2182, %v2466, %v2467
      %v2469 = vrot.slane %v2449, 3
      %v2470 = vrot.slane %v2452, 3
      %v2471 = vsel %vm2182, %v2469, %v2470
      %v2472 = vrot.slane %v2450, 3
      %v2473 = vrot.slane %v2453, 3
      %v2474 = vsel %vm2182, %v2472, %v2473
      %v2475 = vrot.slane %v2454, 3
      %v2476 = vsel %vm2182, %v2467, %v2475
      %v2477 = vrot.slane %v2455, 3
      %v2478 = vsel %vm2182, %v2470, %v2477
      %v2479 = vrot.slane %v2456, 3
      %v2480 = vsel %vm2182, %v2473, %v2479
      %2481 = vrot.lane.b32.xlu0 %v2468, 64
      %v2482 = vpop.permute.xlu0 %2481
      %2483 = vrot.lane.b32.xlu0 %v2471, 64
      %v2484 = vpop.permute.xlu0 %2483
      %2485 = vrot.lane.b32.xlu0 %v2474, 64
      %v2486 = vpop.permute.xlu0 %2485
      %2487 = vrot.lane.b32.xlu0 %v2476, 64
      %v2488 = vpop.permute.xlu0 %2487
      %2489 = vrot.lane.b32.xlu0 %v2478, 64
      %v2490 = vpop.permute.xlu0 %2489
      %2491 = vrot.lane.b32.xlu0 %v2480, 64
      %v2492 = vpop.permute.xlu0 %2491
      %v2493 = vsel %vm1422, %v2482, %v2484
      %v2494 = vsel %vm1422, %v2484, %v2486
      %v2495 = vsel %vm1422, %v2488, %v2490
      %v2496 = vsel %vm1422, %v2490, %v2492
      %v2501 = vadd.f32 %v2425, %v2493
      %v2502 = vadd.f32 %v2426, %v2494
      %v2503 = vadd.f32 %v2427, %v2495
      %v2504 = vadd.f32 %v2428, %v2496
      %s2505 = scalar_lea.vmem %s2, 36
      %v2506 = vld [vmem:[%s2505] ss:$8 sm:$0x3]
      %v2508 = vlaneseq
      %v2509 = vshrl.u32 %v2508, 7
      %v2510 = vsub.s32 0, %v2509
      %v2511 = vrot.slane %v2506, %v2510
      %v2512 = vlaneseq
      %v2513 = vshrl.u32 %v2512, 7
      %v2514 = vsub.s32 1, %v2513
      %v2515 = vrot.slane %v2506, %v2514
      %v2518 = vmul.f32 %v275, %v2511
      %v2519 = vmul.f32 %v276, %v2515
      %v2520 = vmul.f32 %v278, %v2511
      %v2521 = vmul.f32 %v279, %v2515
      %v2522 = vmul.f32 %v281, %v2511
      %v2523 = vmul.f32 %v282, %v2515
      %vm2530 = vcmask 1043456
      %v2531 = vrot.slane %v2518, 4
      %v2532 = vrot.slane %v2520, 4
      %v2533 = vsel %vm2530, %v2531, %v2532
      %v2534 = vrot.slane %v2519, 4
      %v2535 = vrot.slane %v2521, 4
      %v2536 = vsel %vm2530, %v2534, %v2535
      %v2537 = vrot.slane %v2522, 4
      %v2538 = vsel %vm2530, %v2532, %v2537
      %v2539 = vrot.slane %v2523, 4
      %v2540 = vsel %vm2530, %v2535, %v2539
      %v2545 = vadd.f32 %v2501, %v2533
      %v2546 = vadd.f32 %v2502, %v2536
      %v2547 = vadd.f32 %v2503, %v2538
      %v2548 = vadd.f32 %v2504, %v2540
      %s2549 = scalar_lea.vmem %s2, 37
      %v2550 = vld [vmem:[%s2549] ss:$8 sm:$0x3]
      %v2552 = vlaneseq
      %v2553 = vshrl.u32 %v2552, 7
      %v2554 = vsub.s32 0, %v2553
      %v2555 = vrot.slane %v2550, %v2554
      %v2556 = vlaneseq
      %v2557 = vshrl.u32 %v2556, 7
      %v2558 = vsub.s32 1, %v2557
      %v2559 = vrot.slane %v2550, %v2558
      %2560 = vrot.lane.b32.xlu0 %v2555, 16
      %v2561 = vpop.permute.xlu0 %2560
      %2562 = vrot.lane.b32.xlu0 %v2559, 16
      %v2563 = vpop.permute.xlu0 %2562
      %v2564 = vsel %vm298, %v2561, %v2563
      %v2568 = vmul.f32 %v275, %v2561
      %v2569 = vmul.f32 %v276, %v2564
      %v2570 = vmul.f32 %v277, %v2563
      %v2571 = vmul.f32 %v278, %v2561
      %v2572 = vmul.f32 %v279, %v2564
      %v2573 = vmul.f32 %v280, %v2563
      %v2574 = vmul.f32 %v281, %v2561
      %v2575 = vmul.f32 %v282, %v2564
      %v2576 = vmul.f32 %v283, %v2563
      %v2586 = vrot.slane %v2568, 4
      %v2587 = vrot.slane %v2571, 4
      %v2588 = vsel %vm2530, %v2586, %v2587
      %v2589 = vrot.slane %v2569, 4
      %v2590 = vrot.slane %v2572, 4
      %v2591 = vsel %vm2530, %v2589, %v2590
      %v2592 = vrot.slane %v2570, 4
      %v2593 = vrot.slane %v2573, 4
      %v2594 = vsel %vm2530, %v2592, %v2593
      %v2595 = vrot.slane %v2574, 4
      %v2596 = vsel %vm2530, %v2587, %v2595
      %v2597 = vrot.slane %v2575, 4
      %v2598 = vsel %vm2530, %v2590, %v2597
      %v2599 = vrot.slane %v2576, 4
      %v2600 = vsel %vm2530, %v2593, %v2599
      %2601 = vrot.lane.b32.xlu0 %v2588, 112
      %v2602 = vpop.permute.xlu0 %2601
      %2603 = vrot.lane.b32.xlu0 %v2591, 112
      %v2604 = vpop.permute.xlu0 %2603
      %2605 = vrot.lane.b32.xlu0 %v2594, 112
      %v2606 = vpop.permute.xlu0 %2605
      %2607 = vrot.lane.b32.xlu0 %v2596, 112
      %v2608 = vpop.permute.xlu0 %2607
      %2609 = vrot.lane.b32.xlu0 %v2598, 112
      %v2610 = vpop.permute.xlu0 %2609
      %2611 = vrot.lane.b32.xlu0 %v2600, 112
      %v2612 = vpop.permute.xlu0 %2611
      %v2613 = vsel %vm377, %v2602, %v2604
      %v2614 = vsel %vm377, %v2604, %v2606
      %v2615 = vsel %vm377, %v2608, %v2610
      %v2616 = vsel %vm377, %v2610, %v2612
      %v2621 = vadd.f32 %v2545, %v2613
      %v2622 = vadd.f32 %v2546, %v2614
      %v2623 = vadd.f32 %v2547, %v2615
      %v2624 = vadd.f32 %v2548, %v2616
      %s2625 = scalar_lea.vmem %s2, 38
      %v2626 = vld [vmem:[%s2625] ss:$8 sm:$0x3]
      %v2628 = vlaneseq
      %v2629 = vshrl.u32 %v2628, 7
      %v2630 = vsub.s32 0, %v2629
      %v2631 = vrot.slane %v2626, %v2630
      %v2632 = vlaneseq
      %v2633 = vshrl.u32 %v2632, 7
      %v2634 = vsub.s32 1, %v2633
      %v2635 = vrot.slane %v2626, %v2634
      %2636 = vrot.lane.b32.xlu0 %v2631, 32
      %v2637 = vpop.permute.xlu0 %2636
      %2638 = vrot.lane.b32.xlu0 %v2635, 32
      %v2639 = vpop.permute.xlu0 %2638
      %v2640 = vsel %vm336, %v2637, %v2639
      %v2644 = vmul.f32 %v275, %v2637
      %v2645 = vmul.f32 %v276, %v2640
      %v2646 = vmul.f32 %v277, %v2639
      %v2647 = vmul.f32 %v278, %v2637
      %v2648 = vmul.f32 %v279, %v2640
      %v2649 = vmul.f32 %v280, %v2639
      %v2650 = vmul.f32 %v281, %v2637
      %v2651 = vmul.f32 %v282, %v2640
      %v2652 = vmul.f32 %v283, %v2639
      %v2662 = vrot.slane %v2644, 4
      %v2663 = vrot.slane %v2647, 4
      %v2664 = vsel %vm2530, %v2662, %v2663
      %v2665 = vrot.slane %v2645, 4
      %v2666 = vrot.slane %v2648, 4
      %v2667 = vsel %vm2530, %v2665, %v2666
      %v2668 = vrot.slane %v2646, 4
      %v2669 = vrot.slane %v2649, 4
      %v2670 = vsel %vm2530, %v2668, %v2669
      %v2671 = vrot.slane %v2650, 4
      %v2672 = vsel %vm2530, %v2663, %v2671
      %v2673 = vrot.slane %v2651, 4
      %v2674 = vsel %vm2530, %v2666, %v2673
      %v2675 = vrot.slane %v2652, 4
      %v2676 = vsel %vm2530, %v2669, %v2675
      %2677 = vrot.lane.b32.xlu0 %v2664, 96
      %v2678 = vpop.permute.xlu0 %2677
      %2679 = vrot.lane.b32.xlu0 %v2667, 96
      %v2680 = vpop.permute.xlu0 %2679
      %2681 = vrot.lane.b32.xlu0 %v2670, 96
      %v2682 = vpop.permute.xlu0 %2681
      %2683 = vrot.lane.b32.xlu0 %v2672, 96
      %v2684 = vpop.permute.xlu0 %2683
      %2685 = vrot.lane.b32.xlu0 %v2674, 96
      %v2686 = vpop.permute.xlu0 %2685
      %2687 = vrot.lane.b32.xlu0 %v2676, 96
      %v2688 = vpop.permute.xlu0 %2687
      %v2689 = vsel %vm458, %v2678, %v2680
      %v2690 = vsel %vm458, %v2680, %v2682
      %v2691 = vsel %vm458, %v2684, %v2686
      %v2692 = vsel %vm458, %v2686, %v2688
      %v2697 = vadd.f32 %v2621, %v2689
      %v2698 = vadd.f32 %v2622, %v2690
      %v2699 = vadd.f32 %v2623, %v2691
      %v2700 = vadd.f32 %v2624, %v2692
      %s2701 = scalar_lea.vmem %s2, 39
      %v2702 = vld [vmem:[%s2701] ss:$8 sm:$0x3]
      %v2704 = vlaneseq
      %v2705 = vshrl.u32 %v2704, 7
      %v2706 = vsub.s32 0, %v2705
      %v2707 = vrot.slane %v2702, %v2706
      %v2708 = vlaneseq
      %v2709 = vshrl.u32 %v2708, 7
      %v2710 = vsub.s32 1, %v2709
      %v2711 = vrot.slane %v2702, %v2710
      %2712 = vrot.lane.b32.xlu0 %v2707, 48
      %v2713 = vpop.permute.xlu0 %2712
      %2714 = vrot.lane.b32.xlu0 %v2711, 48
      %v2715 = vpop.permute.xlu0 %2714
      %v2716 = vsel %vm417, %v2713, %v2715
      %v2720 = vmul.f32 %v275, %v2713
      %v2721 = vmul.f32 %v276, %v2716
      %v2722 = vmul.f32 %v277, %v2715
      %v2723 = vmul.f32 %v278, %v2713
      %v2724 = vmul.f32 %v279, %v2716
      %v2725 = vmul.f32 %v280, %v2715
      %v2726 = vmul.f32 %v281, %v2713
      %v2727 = vmul.f32 %v282, %v2716
      %v2728 = vmul.f32 %v283, %v2715
      %v2738 = vrot.slane %v2720, 4
      %v2739 = vrot.slane %v2723, 4
      %v2740 = vsel %vm2530, %v2738, %v2739
      %v2741 = vrot.slane %v2721, 4
      %v2742 = vrot.slane %v2724, 4
      %v2743 = vsel %vm2530, %v2741, %v2742
      %v2744 = vrot.slane %v2722, 4
      %v2745 = vrot.slane %v2725, 4
      %v2746 = vsel %vm2530, %v2744, %v2745
      %v2747 = vrot.slane %v2726, 4
      %v2748 = vsel %vm2530, %v2739, %v2747
      %v2749 = vrot.slane %v2727, 4
      %v2750 = vsel %vm2530, %v2742, %v2749
      %v2751 = vrot.slane %v2728, 4
      %v2752 = vsel %vm2530, %v2745, %v2751
      %2753 = vrot.lane.b32.xlu0 %v2740, 80
      %v2754 = vpop.permute.xlu0 %2753
      %2755 = vrot.lane.b32.xlu0 %v2743, 80
      %v2756 = vpop.permute.xlu0 %2755
      %2757 = vrot.lane.b32.xlu0 %v2746, 80
      %v2758 = vpop.permute.xlu0 %2757
      %2759 = vrot.lane.b32.xlu0 %v2748, 80
      %v2760 = vpop.permute.xlu0 %2759
      %2761 = vrot.lane.b32.xlu0 %v2750, 80
      %v2762 = vpop.permute.xlu0 %2761
      %2763 = vrot.lane.b32.xlu0 %v2752, 80
      %v2764 = vpop.permute.xlu0 %2763
      %v2765 = vsel %vm1394, %v2754, %v2756
      %v2766 = vsel %vm1394, %v2756, %v2758
      %v2767 = vsel %vm1394, %v2760, %v2762
      %v2768 = vsel %vm1394, %v2762, %v2764
      %v2773 = vadd.f32 %v2697, %v2765
      %v2774 = vadd.f32 %v2698, %v2766
      %v2775 = vadd.f32 %v2699, %v2767
      %v2776 = vadd.f32 %v2700, %v2768
      %s2777 = scalar_lea.vmem %s2, 48
      %v2778 = vld [vmem:[%s2777] ss:$8 sm:$0x3]
      %v2780 = vlaneseq
      %v2781 = vshrl.u32 %v2780, 7
      %v2782 = vsub.s32 0, %v2781
      %v2783 = vrot.slane %v2778, %v2782
      %v2784 = vlaneseq
      %v2785 = vshrl.u32 %v2784, 7
      %v2786 = vsub.s32 1, %v2785
      %v2787 = vrot.slane %v2778, %v2786
      %2788 = vrot.lane.b32.xlu0 %v2783, 64
      %v2789 = vpop.permute.xlu0 %2788
      %2790 = vrot.lane.b32.xlu0 %v2787, 64
      %v2791 = vpop.permute.xlu0 %2790
      %v2792 = vsel %vm1422, %v2789, %v2791
      %v2796 = vmul.f32 %v275, %v2789
      %v2797 = vmul.f32 %v276, %v2792
      %v2798 = vmul.f32 %v277, %v2791
      %v2799 = vmul.f32 %v278, %v2789
      %v2800 = vmul.f32 %v279, %v2792
      %v2801 = vmul.f32 %v280, %v2791
      %v2802 = vmul.f32 %v281, %v2789
      %v2803 = vmul.f32 %v282, %v2792
      %v2804 = vmul.f32 %v283, %v2791
      %v2814 = vrot.slane %v2796, 4
      %v2815 = vrot.slane %v2799, 4
      %v2816 = vsel %vm2530, %v2814, %v2815
      %v2817 = vrot.slane %v2797, 4
      %v2818 = vrot.slane %v2800, 4
      %v2819 = vsel %vm2530, %v2817, %v2818
      %v2820 = vrot.slane %v2798, 4
      %v2821 = vrot.slane %v2801, 4
      %v2822 = vsel %vm2530, %v2820, %v2821
      %v2823 = vrot.slane %v2802, 4
      %v2824 = vsel %vm2530, %v2815, %v2823
      %v2825 = vrot.slane %v2803, 4
      %v2826 = vsel %vm2530, %v2818, %v2825
      %v2827 = vrot.slane %v2804, 4
      %v2828 = vsel %vm2530, %v2821, %v2827
      %2829 = vrot.lane.b32.xlu0 %v2816, 64
      %v2830 = vpop.permute.xlu0 %2829
      %2831 = vrot.lane.b32.xlu0 %v2819, 64
      %v2832 = vpop.permute.xlu0 %2831
      %2833 = vrot.lane.b32.xlu0 %v2822, 64
      %v2834 = vpop.permute.xlu0 %2833
      %2835 = vrot.lane.b32.xlu0 %v2824, 64
      %v2836 = vpop.permute.xlu0 %2835
      %2837 = vrot.lane.b32.xlu0 %v2826, 64
      %v2838 = vpop.permute.xlu0 %2837
      %2839 = vrot.lane.b32.xlu0 %v2828, 64
      %v2840 = vpop.permute.xlu0 %2839
      %v2841 = vsel %vm1422, %v2830, %v2832
      %v2842 = vsel %vm1422, %v2832, %v2834
      %v2843 = vsel %vm1422, %v2836, %v2838
      %v2844 = vsel %vm1422, %v2838, %v2840
      %v2849 = vadd.f32 %v2773, %v2841
      %v2850 = vadd.f32 %v2774, %v2842
      %v2851 = vadd.f32 %v2775, %v2843
      %v2852 = vadd.f32 %v2776, %v2844
      %s2853 = scalar_lea.vmem %s3, 2
      %v2854 = vld [vmem:[%s2853] ss:$4 sm:$0x3]
      %v2856 = vlaneseq
      %v2857 = vshrl.u32 %v2856, 7
      %v2858 = vsub.s32 0, %v2857
      %v2859 = vrot.slane %v2854, %v2858
      %v2860 = vlaneseq
      %v2861 = vshrl.u32 %v2860, 7
      %v2862 = vsub.s32 1, %v2861
      %v2863 = vrot.slane %v2854, %v2862
      %v2866 = vmul.f32 %v2849, %v2859
      %v2867 = vmul.f32 %v2850, %v2863
      %v2868 = vmul.f32 %v2851, %v2859
      %v2869 = vmul.f32 %v2852, %v2863
      %s2870 = scalar_lea.vmem %s3, 3
      %v2871 = vld [vmem:[%s2870] ss:$4 sm:$0x3]
      %v2873 = vlaneseq
      %v2874 = vshrl.u32 %v2873, 7
      %v2875 = vsub.s32 0, %v2874
      %v2876 = vrot.slane %v2871, %v2875
      %v2877 = vlaneseq
      %v2878 = vshrl.u32 %v2877, 7
      %v2879 = vsub.s32 1, %v2878
      %v2880 = vrot.slane %v2871, %v2879
      %v2883 = vadd.f32 %v2866, %v2876
      %v2884 = vadd.f32 %v2867, %v2880
      %v2885 = vadd.f32 %v2868, %v2876
      %v2886 = vadd.f32 %v2869, %v2880
      %v2887 = vmax.f32 %v2883, 0.0
      %v2888 = vmax.f32 %v2884, 0.0
      %v2889 = vmax.f32 %v2885, 0.0
      %v2890 = vmax.f32 %v2886, 0.0
      %v2891 = vpack.c.bf16 %v2889, %v2887
      %v2892 = vpack.c.bf16 %v2890, %v2888
      %v2895 = vunpack.c.l.b16 %v2891
      %v2896 = vunpack.c.l.b16 %v2892
      %v2897 = vunpack.c.h.b16 %v2891
      %v2898 = vunpack.c.h.b16 %v2892
      %v2899 = vpack.c.b16 %v2896, %v2895
      %v2900 = vpack.c.b16 %v2898, %v2897
      %2903 = vst [vmem:[%s270] sm:$0xff] %v2899
      %2904 = vst [vmem:[%s270 + $0x8] sm:$0xff] %v2900
      %v2905 = vadd.f32 %v2887, %v2889
      %v2906 = vrot.slane %v2905, 4
      %v2907 = vadd.f32 %v2905, %v2906
      %v2908 = vrot.slane %v2907, 2
      %v2909 = vadd.f32 %v2907, %v2908
      %v2910 = vrot.slane %v2909, 1
      %v2911 = vadd.f32 %v2909, %v2910
      %v2912 = vadd.f32 %v2888, %v2890
      %v2913 = vrot.slane %v2912, 4
      %v2914 = vadd.f32 %v2912, %v2913
      %v2915 = vrot.slane %v2914, 2
      %v2916 = vadd.f32 %v2914, %v2915
      %v2917 = vrot.slane %v2916, 1
      %v2918 = vadd.f32 %v2916, %v2917
      %2921 = vrot.lane.b32.xlu0 %v2911, 16
      %v2922 = vpop.permute.xlu0 %2921
      %2923 = vrot.lane.b32.xlu0 %v2918, 16
      %v2924 = vpop.permute.xlu0 %2923
      %v2925 = vsel %vm298, %v2922, %v2924
      %v2929 = vadd.f32 %v1204, %v2922
      %v2930 = vadd.f32 %v1211, %v2925
      %v2931 = vadd.f32 %v1220, %v2924
      %v2935 = vcombine.low %v2929, %v2930
      %v2937 = vunpack.c.l.s4 1966171168
      %v2938 = vunpack.c.0.s8 %v2937
      %v2939 = vlaneseq
      %v2940 = vshrl.u32 %v2939, 7
      %v2941 = vsub.s32 %v2938, %v2940
      %v2942 = vrot.slane %v2935, %v2941
      %v2944 = vunpack.c.l.s4 1966171168
      %v2945 = vunpack.c.0.s8 %v2944
      %v2946 = vlaneseq
      %v2947 = vshrl.u32 %v2946, 7
      %v2948 = vsub.s32 %v2945, %v2947
      %v2949 = vrot.slane %v2931, %v2948
      %v2950 = vcombine.low %v2942, %v2949
      %v2952 = vunpack.c.l.s4 1966171168
      %v2953 = vunpack.c.0.s8 %v2952
      %v2954 = vlaneseq
      %v2955 = vshrl.u32 %v2954, 7
      %v2956 = vsub.s32 %v2953, %v2955
      %v2957 = vrot.slane %v2950, %v2956
      %2958 = vrot.lane.b32.xlu0 %v2957, 112
      %v2959 = vpop.permute.xlu0 %2958
      %v2960 = vrot.slane %v2959, 1
      %v2961 = vsel %vm377, %v2959, %v2960
      %v2963 = vlaneseq
      %vm2964 = vcmp.ge.s32.totalorder %v2963, 0
      %vm2965 = vcmp.lt.s32.totalorder %v2963, 256
      %vm2966 = vmand %vm2964, %vm2965
      %2967 = vst.msk [vmem:[%s274] sm:$0x3] %vm2966, %v2961
      %p2968 = scmp.lt.s32.totalorder %s18, 1
      %s2969 = scalar_select %p2968, %s18, 1
      %s2970 = smul.addr %s2969, 4
      %s2971 = smul.addr %s2970, 4
      %s2972 = scalar_lea.vmem %s4, %s2971
      %p2973 = scmp.lt.s32.totalorder %s18, 1
      %s2974 = scalar_select %p2973, %s18, 1
      %s2975 = smul.addr %s2974, 4
      %s2976 = smul.addr %s2975, 4
      %s2977 = scalar_lea.vmem %s5, %s2976
      %p2978 = scmp.lt.s32.totalorder %s18, 1
      %s2979 = scalar_select %p2978, %s18, 1
      %s2980 = smul.addr %s2979, 2
      %s2981 = scalar_lea.vmem %s6, %s2980
      // Predicated region
      $region37: #{skm_block_forward.11} parent=35 // pred_check
        %p2982 = pneg %p125
      $region38: #{skm_block_forward.11} parent=35 // pred_check_branch
        %2984 = sbr.rel (%p2982) target = $region40
      $region39: #{skm_block_forward.11} parent=35 // pred_region
        _
      $region40: #{skm_block_forward.11} parent=35 // pred_fallthru
        _
      // Predicated region
      $region41: #{skm_block_forward.11} parent=35 // pred_check
        %p2985 = pneg %p151
      $region42: #{skm_block_forward.11} parent=35 // pred_check_branch
        %2987 = sbr.rel (%p2985) target = $region44
      $region43: #{skm_block_forward.11} parent=35 // pred_region
        _
      $region44: #{skm_block_forward.11} parent=35 // pred_fallthru
        _
      // Predicated region
      $region45: #{skm_block_forward.11} parent=35 // pred_check
        %p2988 = pneg %p177
      $region46: #{skm_block_forward.11} parent=35 // pred_check_branch
        %2990 = sbr.rel (%p2988) target = $region48
      $region47: #{skm_block_forward.11} parent=35 // pred_region
        _
      $region48: #{skm_block_forward.11} parent=35 // pred_fallthru
        _
    $region36: #{skm_block_forward.11} parent=5 // pred_fallthru
      _
    %p2991 = scmp.le.s32.totalorder 2, %s13
    // Predicated region
    $region49: #{skm_block_forward.11} parent=5 // pred_check
      %p2992 = pneg %p2991
    $region50: #{skm_block_forward.11} parent=5 // pred_check_branch
      %2994 = sbr.rel (%p2992) target = $region52
    $region51: #{skm_block_forward.11} parent=5 // pred_region
      %s2995 = ssub.s32 %s13, 2
      // Predicated region
      $region53: #{skm_block_forward.11} parent=51 // pred_check
        %p2996 = pneg %p131
      $region54: #{skm_block_forward.11} parent=51 // pred_check_branch
        %2998 = sbr.rel (%p2996) target = $region56
      $region55: #{skm_block_forward.11} parent=51 // pred_region
        %p2999 = scmp.lt.s32.totalorder %s19, 1
        %s3000 = scalar_select %p2999, %s19, 1
        %s3001 = smul.addr %s3000, 4
        %s3002 = smul.addr %s3001, 4
        %s3003 = scalar_lea.vmem %s4, %s3002
      $region56: #{skm_block_forward.11} parent=51 // pred_fallthru
        _
      // Predicated region
      $region57: #{skm_block_forward.11} parent=51 // pred_check
        %p3004 = pneg %p157
      $region58: #{skm_block_forward.11} parent=51 // pred_check_branch
        %3006 = sbr.rel (%p3004) target = $region60
      $region59: #{skm_block_forward.11} parent=51 // pred_region
        %p3007 = scmp.lt.s32.totalorder %s19, 1
        %s3008 = scalar_select %p3007, %s19, 1
        %s3009 = smul.addr %s3008, 4
        %s3010 = smul.addr %s3009, 4
        %s3011 = scalar_lea.vmem %s5, %s3010
      $region60: #{skm_block_forward.11} parent=51 // pred_fallthru
        _
      // Predicated region
      $region61: #{skm_block_forward.11} parent=51 // pred_check
        %p3012 = pneg %p183
      $region62: #{skm_block_forward.11} parent=51 // pred_check_branch
        %3014 = sbr.rel (%p3012) target = $region64
      $region63: #{skm_block_forward.11} parent=51 // pred_region
        %p3015 = scmp.lt.s32.totalorder %s19, 1
        %s3016 = scalar_select %p3015, %s19, 1
        %s3017 = smul.addr %s3016, 2
        %s3018 = scalar_lea.vmem %s6, %s3017
      $region64: #{skm_block_forward.11} parent=51 // pred_fallthru
        _
    $region52: #{skm_block_forward.11} parent=5 // pred_fallthru
      _
  $region6: #{skm_block_forward.11} parent=0 // loop_footer
    %s17 = sadd.s32 1, %s13
  $region7: #{skm_block_forward.11} parent=0 // loop_footer_branch
    %12 = sbr.rel target = $region3
  $region8: #{skm_block_forward.11} parent=0 // loop_exit
    _

// kernel: skm_block_forward.12
$region0: #{skm_block_forward.12}
  #allocation0 [shape = 'u32[]', space=smem, size = 0x4, offset = 0x4, fixed_abs, tag = 'smem constant byte address 0x4 - core index']
  #allocation1 [shape = 'u32[144,128]{1,0:T(1,128)}', space=vmem, size = 0x12000, scoped, tag = 'internal scratch']
  %s0 = inlined_call_operand.vmem [shape: bf16[2,256,16], index: 0, kind: input, shape index: {}]
  %s1 = inlined_call_operand.vmem [shape: bf16[2,256,16], index: 1, kind: input, shape index: {}]
  %s2 = inlined_call_operand.vmem [shape: f32[2,1,32], index: 2, kind: input, shape index: {}]
  %s3 = inlined_call_operand.vmem [shape: bf16[16,128], index: 3, kind: input, shape index: {}]
  %s4 = inlined_call_operand.vmem [shape: f32[1,128], index: 4, kind: input, shape index: {}]
  %s5 = inlined_call_operand.vmem [shape: bf16[2,256,128], index: 5, kind: output, shape index: {}]
  %s6 = sld [smem:[#allocation0]]
  $region53: #{skm_block_forward.12} parent=0
    _
  %s8 = ssub.s32 1, %s6
  %s9 = scalar_select 0, %s8, %s6
  loop: start=0, step=1, limit=4
  $region2: #{skm_block_forward.12} parent=0 // loop_pre_header
    _
  $region3: #{skm_block_forward.12} parent=0 // loop_header
    %s11 = sphi 0, %s15
    %p12 = scmp.ge.s32.totalorder %s11, 4
    %s18 = sphi 0, %s30
    %s19 = sphi 0, %s26
    %s20 = sphi 0, %s18
    %s21 = sphi 0, %s19
    %s22 = sphi 0, %s20
    %s23 = sphi 0, %s21
    %s35 = sphi 0, %s37
    %s38 = sphi 0, %s35
    %s39 = sphi 0, %s38
    %s55 = sphi 0, %s39
    %s63 = sphi 0, %s65
    %s66 = sphi 0, %s63
    %s67 = sphi 0, %s66
    %s83 = sphi 0, %s67
    %s89 = sphi 0, %s91
    %s92 = sphi 0, %s89
    %s93 = sphi 0, %s92
    %s109 = sphi 0, %s93
    %s113 = sphi 0, %s113
    %s115 = sphi 0, %s113
    %s116 = sphi 0, %s115
    %s130 = sphi 0, %s116
    %s134 = sphi 0, %s134
    %s136 = sphi 0, %s134
    %s137 = sphi 0, %s136
    %s151 = sphi 0, %s137
    %s159 = sphi 0, %s161
    %s162 = sphi 0, %s159
    %s163 = sphi 0, %s162
    %s179 = sphi 0, %s163
  $region4: #{skm_block_forward.12} parent=0 // loop_header_branch
    %14 = sbr.rel (%p12) target = $region8
  $region5: #{skm_block_forward.12} parent=0 // loop_body
    %s16 = ssub.s32 %s11, 1
    %s17 = ssub.s32 %s11, 2
    %s24 = sadd.s32 1, %s19
    %p25 = scmp.ge.s32.totalorder %s24, 1
    %s26 = scalar_select %p25, 0, %s24
    %s27 = sadd.s32 1, %s18
    %s28 = scalar_select %p25, %s27, %s18
    %p29 = scmp.ge.s32.totalorder %s28, 2
    %s30 = scalar_select %p29, 0, %s28
    %s31 = ssub.s32 %s18, %s30
    %s32 = ssub.s32 %s19, %s26
    %s33 = sor.u32 %s31, %s32
    %p34 = scmp.eq.s32.totalorder %s33, 0
    %s36 = sadd.s32 %s35, 1
    %s37 = scalar_select %p34, %s35, %s36
    %p40 = pneg %p34
    %p41 = scmp.eq.s32.totalorder %s11, 1
    %p42 = por %p40, %p41
    %p43 = scmp.ne.s32.totalorder %s35, %s38
    %p44 = scmp.eq.s32.totalorder %s11, 0
    %p45 = por %p43, %p44
    %p46 = scmp.ne.s32.totalorder %s35, %s38
    %p47 = scmp.eq.s32.totalorder %s16, 1
    %p48 = por %p46, %p47
    %p49 = scmp.ne.s32.totalorder %s38, %s39
    %p50 = scmp.eq.s32.totalorder %s16, 0
    %p51 = por %p49, %p50
    %p52 = scmp.ne.s32.totalorder %s38, %s39
    %p53 = scmp.eq.s32.totalorder %s17, 1
    %p54 = por %p52, %p53
    %p56 = scmp.ne.s32.totalorder %s39, %s55
    %p57 = scmp.eq.s32.totalorder %s17, 0
    %p58 = por %p56, %p57
    %s59 = ssub.s32 %s18, %s30
    %s60 = ssub.s32 %s19, %s26
    %s61 = sor.u32 %s59, %s60
    %p62 = scmp.eq.s32.totalorder %s61, 0
    %s64 = sadd.s32 %s63, 1
    %s65 = scalar_select %p62, %s63, %s64
    %p68 = pneg %p62
    %p69 = scmp.eq.s32.totalorder %s11, 1
    %p70 = por %p68, %p69
    %p71 = scmp.ne.s32.totalorder %s63, %s66
    %p72 = scmp.eq.s32.totalorder %s11, 0
    %p73 = por %p71, %p72
    %p74 = scmp.ne.s32.totalorder %s63, %s66
    %p75 = scmp.eq.s32.totalorder %s16, 1
    %p76 = por %p74, %p75
    %p77 = scmp.ne.s32.totalorder %s66, %s67
    %p78 = scmp.eq.s32.totalorder %s16, 0
    %p79 = por %p77, %p78
    %p80 = scmp.ne.s32.totalorder %s66, %s67
    %p81 = scmp.eq.s32.totalorder %s17, 1
    %p82 = por %p80, %p81
    %p84 = scmp.ne.s32.totalorder %s67, %s83
    %p85 = scmp.eq.s32.totalorder %s17, 0
    %p86 = por %p84, %p85
    %s87 = ssub.s32 %s18, %s30
    %p88 = scmp.eq.s32.totalorder %s87, 0
    %s90 = sadd.s32 %s89, 1
    %s91 = scalar_select %p88, %s89, %s90
    %p94 = pneg %p88
    %p95 = scmp.eq.s32.totalorder %s11, 1
    %p96 = por %p94, %p95
    %p97 = scmp.ne.s32.totalorder %s89, %s92
    %p98 = scmp.eq.s32.totalorder %s11, 0
    %p99 = por %p97, %p98
    %p100 = scmp.ne.s32.totalorder %s89, %s92
    %p101 = scmp.eq.s32.totalorder %s16, 1
    %p102 = por %p100, %p101
    %p103 = scmp.ne.s32.totalorder %s92, %s93
    %p104 = scmp.eq.s32.totalorder %s16, 0
    %p105 = por %p103, %p104
    %p106 = scmp.ne.s32.totalorder %s92, %s93
    %p107 = scmp.eq.s32.totalorder %s17, 1
    %p108 = por %p106, %p107
    %p110 = scmp.ne.s32.totalorder %s93, %s109
    %p111 = scmp.eq.s32.totalorder %s17, 0
    %p112 = por %p110, %p111
    %s114 = sadd.s32 %s113, 1
    %p117 = scmp.eq.s32.totalorder %s11, 1
    %p118 = scmp.ne.s32.totalorder %s113, %s115
    %p119 = scmp.eq.s32.totalorder %s11, 0
    %p120 = por %p118, %p119
    %p121 = scmp.ne.s32.totalorder %s113, %s115
    %p122 = scmp.eq.s32.totalorder %s16, 1
    %p123 = por %p121, %p122
    %p124 = scmp.ne.s32.totalorder %s115, %s116
    %p125 = scmp.eq.s32.totalorder %s16, 0
    %p126 = por %p124, %p125
    %p127 = scmp.ne.s32.totalorder %s115, %s116
    %p128 = scmp.eq.s32.totalorder %s17, 1
    %p129 = por %p127, %p128
    %p131 = scmp.ne.s32.totalorder %s116, %s130
    %p132 = scmp.eq.s32.totalorder %s17, 0
    %p133 = por %p131, %p132
    %s135 = sadd.s32 %s134, 1
    %p138 = scmp.eq.s32.totalorder %s11, 1
    %p139 = scmp.ne.s32.totalorder %s134, %s136
    %p140 = scmp.eq.s32.totalorder %s11, 0
    %p141 = por %p139, %p140
    %p142 = scmp.ne.s32.totalorder %s134, %s136
    %p143 = scmp.eq.s32.totalorder %s16, 1
    %p144 = por %p142, %p143
    %p145 = scmp.ne.s32.totalorder %s136, %s137
    %p146 = scmp.eq.s32.totalorder %s16, 0
    %p147 = por %p145, %p146
    %p148 = scmp.ne.s32.totalorder %s136, %s137
    %p149 = scmp.eq.s32.totalorder %s17, 1
    %p150 = por %p148, %p149
    %p152 = scmp.ne.s32.totalorder %s137, %s151
    %p153 = scmp.eq.s32.totalorder %s17, 0
    %p154 = por %p152, %p153
    %s155 = ssub.s32 %s18, %s30
    %s156 = ssub.s32 %s19, %s26
    %s157 = sor.u32 %s155, %s156
    %p158 = scmp.eq.s32.totalorder %s157, 0
    %s160 = sadd.s32 %s159, 1
    %s161 = scalar_select %p158, %s159, %s160
    %p164 = pneg %p158
    %p165 = scmp.eq.s32.totalorder %s11, 1
    %p166 = por %p164, %p165
    %p167 = scmp.ne.s32.totalorder %s159, %s162
    %p168 = scmp.eq.s32.totalorder %s11, 0
    %p169 = por %p167, %p168
    %p170 = scmp.ne.s32.totalorder %s159, %s162
    %p171 = scmp.eq.s32.totalorder %s16, 1
    %p172 = por %p170, %p171
    %p173 = scmp.ne.s32.totalorder %s162, %s163
    %p174 = scmp.eq.s32.totalorder %s16, 0
    %p175 = por %p173, %p174
    %p176 = scmp.ne.s32.totalorder %s162, %s163
    %p177 = scmp.eq.s32.totalorder %s17, 1
    %p178 = por %p176, %p177
    %p180 = scmp.ne.s32.totalorder %s163, %s179
    %p181 = scmp.eq.s32.totalorder %s17, 0
    %p182 = por %p180, %p181
    %p183 = scmp.le.s32.totalorder 1, %s11
    %p184 = scmp.lt.s32.totalorder %s11, 3
    %p185 = pnand %p183, %p184
    %p186 = pneg %p185
    // Predicated region
    $region9: #{skm_block_forward.12} parent=5 // pred_check
      _
    $region10: #{skm_block_forward.12} parent=5 // pred_check_branch
      %188 = sbr.rel (%p185) target = $region12
    $region11: #{skm_block_forward.12} parent=5 // pred_region
      %s189 = ssub.s32 %s11, 1
      // Predicated region
      $region13: #{skm_block_forward.12} parent=11 // pred_check
        %p190 = pneg %p126
      $region14: #{skm_block_forward.12} parent=11 // pred_check_branch
        %192 = sbr.rel (%p190) target = $region16
      $region15: #{skm_block_forward.12} parent=11 // pred_region
        _
      $region16: #{skm_block_forward.12} parent=11 // pred_fallthru
        _
      // Predicated region
      $region17: #{skm_block_forward.12} parent=11 // pred_check
        %p193 = pneg %p147
      $region18: #{skm_block_forward.12} parent=11 // pred_check_branch
        %195 = sbr.rel (%p193) target = $region20
      $region19: #{skm_block_forward.12} parent=11 // pred_region
        _
      $region20: #{skm_block_forward.12} parent=11 // pred_fallthru
        _
    $region12: #{skm_block_forward.12} parent=5 // pred_fallthru
      _
    %p196 = scmp.lt.s32.totalorder %s11, 2
    // Predicated region
    $region21: #{skm_block_forward.12} parent=5 // pred_check
      %p197 = pneg %p196
    $region22: #{skm_block_forward.12} parent=5 // pred_check_branch
      %199 = sbr.rel (%p197) target = $region24
    $region23: #{skm_block_forward.12} parent=5 // pred_region
      // Predicated region
      $region25: #{skm_block_forward.12} parent=23 // pred_check
        %p200 = pneg %p45
      $region26: #{skm_block_forward.12} parent=23 // pred_check_branch
        %202 = sbr.rel (%p200) target = $region28
      $region27: #{skm_block_forward.12} parent=23 // pred_region
        %s203 = smul.u32 32, %s19
        %p204 = scmp.lt.s32.totalorder %s18, 1
        %s205 = scalar_select %p204, %s18, 1
        %p206 = scmp.lt.s32.totalorder %s203, 31
        %s207 = scalar_select %p206, %s203, 31
        %s208 = smul.addr %s205, 32
        %s209 = sadd.s32 %s207, %s208
        %s210 = smul.addr %s209, 4
        %s211 = scalar_lea.vmem %s0, %s210
        %s212 = smul.u32 32, %s19
      $region28: #{skm_block_forward.12} parent=23 // pred_fallthru
        _
      // Predicated region
      $region29: #{skm_block_forward.12} parent=23 // pred_check
        %p213 = pneg %p73
      $region30: #{skm_block_forward.12} parent=23 // pred_check_branch
        %215 = sbr.rel (%p213) target = $region32
      $region31: #{skm_block_forward.12} parent=23 // pred_region
        %s216 = smul.u32 32, %s19
        %p217 = scmp.lt.s32.totalorder %s18, 1
        %s218 = scalar_select %p217, %s18, 1
        %p219 = scmp.lt.s32.totalorder %s216, 31
        %s220 = scalar_select %p219, %s216, 31
        %s221 = smul.addr %s218, 32
        %s222 = sadd.s32 %s220, %s221
        %s223 = smul.addr %s222, 4
        %s224 = scalar_lea.vmem %s1, %s223
        %s225 = smul.u32 32, %s19
      $region32: #{skm_block_forward.12} parent=23 // pred_fallthru
        _
      // Predicated region
      $region33: #{skm_block_forward.12} parent=23 // pred_check
        %p226 = pneg %p99
      $region34: #{skm_block_forward.12} parent=23 // pred_check_branch
        %228 = sbr.rel (%p226) target = $region36
      $region35: #{skm_block_forward.12} parent=23 // pred_region
        %p229 = scmp.lt.s32.totalorder %s18, 1
        %s230 = scalar_select %p229, %s18, 1
        %s231 = scalar_lea.vmem %s2, %s230
      $region36: #{skm_block_forward.12} parent=23 // pred_fallthru
        _
    $region24: #{skm_block_forward.12} parent=5 // pred_fallthru
      _
    %p232 = scmp.le.s32.totalorder 1, %s11
    %p233 = scmp.lt.s32.totalorder %s11, 3
    %p234 = pnand %p232, %p233
    %p235 = pneg %p234
    // Predicated region
    $region37: #{skm_block_forward.12} parent=5 // pred_check
      _
    $region38: #{skm_block_forward.12} parent=5 // pred_check_branch
      %237 = sbr.rel (%p234) target = $region40
    $region39: #{skm_block_forward.12} parent=5 // pred_region
      %s238 = ssub.s32 %s11, 1
      %s239 = smul.u32 32, %s21
      %p240 = scmp.lt.s32.totalorder %s20, 1
      %s241 = scalar_select %p240, %s20, 1
      %p242 = scmp.lt.s32.totalorder %s239, 31
      %s243 = scalar_select %p242, %s239, 31
      %s244 = smul.addr %s241, 32
      %s245 = sadd.s32 %s243, %s244
      %s246 = smul.addr %s245, 4
      %s247 = scalar_lea.vmem %s0, %s246
      %p248 = pneg %p51
      %p249 = pneg %p48
      %s250 = smul.u32 32, %s21
      %p251 = scmp.lt.s32.totalorder %s20, 1
      %s252 = scalar_select %p251, %s20, 1
      %p253 = scmp.lt.s32.totalorder %s250, 31
      %s254 = scalar_select %p253, %s250, 31
      %s255 = smul.addr %s252, 32
      %s256 = sadd.s32 %s254, %s255
      %s257 = smul.addr %s256, 4
      %s258 = scalar_lea.vmem %s1, %s257
      %p259 = pneg %p79
      %p260 = pneg %p76
      %p261 = scmp.lt.s32.totalorder %s20, 1
      %s262 = scalar_select %p261, %s20, 1
      %s263 = scalar_lea.vmem %s2, %s262
      %p264 = pneg %p105
      %p265 = pneg %p102
      %p266 = pneg %p126
      %p267 = pneg %p123
      %p268 = pneg %p147
      %p269 = pneg %p144
      %p270 = pneg %p175
      %p271 = pneg %p172
      %s272 = smul.u32 32, %s21
      %p273 = scmp.lt.s32.totalorder %s20, 1
      %s274 = scalar_select %p273, %s20, 1
      %p275 = scmp.lt.s32.totalorder %s272, 31
      %s276 = scalar_select %p275, %s272, 31
      %s277 = smul.addr %s274, 32
      %s278 = sadd.s32 %s276, %s277
      %s279 = smul.addr %s278, 4
      %s280 = scalar_lea.vmem %s5, %s279
      %s281 = smul.u32 32, %s21
      %p282 = scmp.lt.s32.totalorder %s20, 1
      %s283 = scalar_select %p282, %s20, 1
      %p284 = scmp.lt.s32.totalorder %s281, 31
      %s285 = scalar_select %p284, %s281, 31
      %s286 = smul.addr %s283, 32
      %s287 = sadd.s32 %s285, %s286
      %s288 = smul.addr %s287, 4
      %s289 = scalar_lea.vmem %s0, %s288
      %s290 = smul.u32 32, %s21
      %s291 = smul.u32 32, %s21
      %p292 = scmp.lt.s32.totalorder %s20, 1
      %s293 = scalar_select %p292, %s20, 1
      %p294 = scmp.lt.s32.totalorder %s291, 31
      %s295 = scalar_select %p294, %s291, 31
      %s296 = smul.addr %s293, 32
      %s297 = sadd.s32 %s295, %s296
      %s298 = smul.addr %s297, 4
      %s299 = scalar_lea.vmem %s1, %s298
      %s300 = smul.u32 32, %s21
      %p301 = scmp.lt.s32.totalorder %s20, 1
      %s302 = scalar_select %p301, %s20, 1
      %s303 = scalar_lea.vmem %s2, %s302
      %s304 = smul.u32 32, %s21
      %p305 = scmp.lt.s32.totalorder %s20, 1
      %s306 = scalar_select %p305, %s20, 1
      %p307 = scmp.lt.s32.totalorder %s304, 31
      %s308 = scalar_select %p307, %s304, 31
      %s309 = smul.addr %s306, 32
      %s310 = sadd.s32 %s308, %s309
      %s311 = smul.addr %s310, 4
      %s312 = scalar_lea.vmem %s5, %s311
      %s313 = smul.u32 32, %s21
      %v315 = vld [vmem:[%s303] sm:$0x1]
      %v316 = vld [vmem:[%s289] sm:$0xf]
      %v317 = vld [vmem:[%s289 + $0x4] sm:$0xf]
      %v318 = vld [vmem:[%s289 + $0x8] sm:$0xf]
      %v319 = vld [vmem:[%s289 + $0xc] sm:$0xf]
      %v320 = vld [vmem:[%s289 + $0x10] sm:$0xf]
      %v321 = vld [vmem:[%s289 + $0x14] sm:$0xf]
      %v322 = vld [vmem:[%s289 + $0x18] sm:$0xf]
      %v323 = vld [vmem:[%s289 + $0x1c] sm:$0xf]
      %v324 = vld [vmem:[%s289 + $0x20] sm:$0xf]
      %v325 = vld [vmem:[%s289 + $0x24] sm:$0xf]
      %v326 = vld [vmem:[%s289 + $0x28] sm:$0xf]
      %v327 = vld [vmem:[%s289 + $0x2c] sm:$0xf]
      %v328 = vld [vmem:[%s289 + $0x30] sm:$0xf]
      %v329 = vld [vmem:[%s289 + $0x34] sm:$0xf]
      %v330 = vld [vmem:[%s289 + $0x38] sm:$0xf]
      %v331 = vld [vmem:[%s289 + $0x3c] sm:$0xf]
      %v332 = vld [vmem:[%s289 + $0x40] sm:$0xf]
      %v333 = vld [vmem:[%s289 + $0x44] sm:$0xf]
      %v334 = vld [vmem:[%s289 + $0x48] sm:$0xf]
      %v335 = vld [vmem:[%s289 + $0x4c] sm:$0xf]
      %v336 = vld [vmem:[%s289 + $0x50] sm:$0xf]
      %v337 = vld [vmem:[%s289 + $0x54] sm:$0xf]
      %v338 = vld [vmem:[%s289 + $0x58] sm:$0xf]
      %v339 = vld [vmem:[%s289 + $0x5c] sm:$0xf]
      %v340 = vld [vmem:[%s289 + $0x60] sm:$0xf]
      %v341 = vld [vmem:[%s289 + $0x64] sm:$0xf]
      %v342 = vld [vmem:[%s289 + $0x68] sm:$0xf]
      %v343 = vld [vmem:[%s289 + $0x6c] sm:$0xf]
      %v344 = vld [vmem:[%s289 + $0x70] sm:$0xf]
      %v345 = vld [vmem:[%s289 + $0x74] sm:$0xf]
      %v346 = vld [vmem:[%s289 + $0x78] sm:$0xf]
      %v347 = vld [vmem:[%s289 + $0x7c] sm:$0xf]
      %v348 = vunpack.c.l.bf16 %v316
      %v349 = vunpack.c.l.bf16 %v317
      %v350 = vunpack.c.l.bf16 %v318
      %v351 = vunpack.c.l.bf16 %v319
      %v352 = vunpack.c.l.bf16 %v320
      %v353 = vunpack.c.l.bf16 %v321
      %v354 = vunpack.c.l.bf16 %v322
      %v355 = vunpack.c.l.bf16 %v323
      %v356 = vunpack.c.l.bf16 %v324
      %v357 = vunpack.c.l.bf16 %v325
      %v358 = vunpack.c.l.bf16 %v326
      %v359 = vunpack.c.l.bf16 %v327
      %v360 = vunpack.c.l.bf16 %v328
      %v361 = vunpack.c.l.bf16 %v329
      %v362 = vunpack.c.l.bf16 %v330
      %v363 = vunpack.c.l.bf16 %v331
      %v364 = vunpack.c.l.bf16 %v332
      %v365 = vunpack.c.l.bf16 %v333
      %v366 = vunpack.c.l.bf16 %v334
      %v367 = vunpack.c.l.bf16 %v335
      %v368 = vunpack.c.l.bf16 %v336
      %v369 = vunpack.c.l.bf16 %v337
      %v370 = vunpack.c.l.bf16 %v338
      %v371 = vunpack.c.l.bf16 %v339
      %v372 = vunpack.c.l.bf16 %v340
      %v373 = vunpack.c.l.bf16 %v341
      %v374 = vunpack.c.l.bf16 %v342
      %v375 = vunpack.c.l.bf16 %v343
      %v376 = vunpack.c.l.bf16 %v344
      %v377 = vunpack.c.l.bf16 %v345
      %v378 = vunpack.c.l.bf16 %v346
      %v379 = vunpack.c.l.bf16 %v347
      %v381 = vlaneseq
      %v382 = vshrl.u32 %v381, 7
      %v383 = vsub.s32 0, %v382
      %v384 = vrot.slane %v315, %v383
      %v386 = vmul.f32 %v348, %v384
      %v387 = vmul.f32 %v349, %v384
      %v388 = vmul.f32 %v350, %v384
      %v389 = vmul.f32 %v351, %v384
      %v390 = vmul.f32 %v352, %v384
      %v391 = vmul.f32 %v353, %v384
      %v392 = vmul.f32 %v354, %v384
      %v393 = vmul.f32 %v355, %v384
      %v394 = vmul.f32 %v356, %v384
      %v395 = vmul.f32 %v357, %v384
      %v396 = vmul.f32 %v358, %v384
      %v397 = vmul.f32 %v359, %v384
      %v398 = vmul.f32 %v360, %v384
      %v399 = vmul.f32 %v361, %v384
      %v400 = vmul.f32 %v362, %v384
      %v401 = vmul.f32 %v363, %v384
      %v402 = vmul.f32 %v364, %v384
      %v403 = vmul.f32 %v365, %v384
      %v404 = vmul.f32 %v366, %v384
      %v405 = vmul.f32 %v367, %v384
      %v406 = vmul.f32 %v368, %v384
      %v407 = vmul.f32 %v369, %v384
      %v408 = vmul.f32 %v370, %v384
      %v409 = vmul.f32 %v371, %v384
      %v410 = vmul.f32 %v372, %v384
      %v411 = vmul.f32 %v373, %v384
      %v412 = vmul.f32 %v374, %v384
      %v413 = vmul.f32 %v375, %v384
      %v414 = vmul.f32 %v376, %v384
      %v415 = vmul.f32 %v377, %v384
      %v416 = vmul.f32 %v378, %v384
      %v417 = vmul.f32 %v379, %v384
      %v418 = vld [vmem:[%s299] sm:$0xf]
      %v419 = vld [vmem:[%s299 + $0x4] sm:$0xf]
      %v420 = vld [vmem:[%s299 + $0x8] sm:$0xf]
      %v421 = vld [vmem:[%s299 + $0xc] sm:$0xf]
      %v422 = vld [vmem:[%s299 + $0x10] sm:$0xf]
      %v423 = vld [vmem:[%s299 + $0x14] sm:$0xf]
      %v424 = vld [vmem:[%s299 + $0x18] sm:$0xf]
      %v425 = vld [vmem:[%s299 + $0x1c] sm:$0xf]
      %v426 = vld [vmem:[%s299 + $0x20] sm:$0xf]
      %v427 = vld [vmem:[%s299 + $0x24] sm:$0xf]
      %v428 = vld [vmem:[%s299 + $0x28] sm:$0xf]
      %v429 = vld [vmem:[%s299 + $0x2c] sm:$0xf]
      %v430 = vld [vmem:[%s299 + $0x30] sm:$0xf]
      %v431 = vld [vmem:[%s299 + $0x34] sm:$0xf]
      %v432 = vld [vmem:[%s299 + $0x38] sm:$0xf]
      %v433 = vld [vmem:[%s299 + $0x3c] sm:$0xf]
      %v434 = vld [vmem:[%s299 + $0x40] sm:$0xf]
      %v435 = vld [vmem:[%s299 + $0x44] sm:$0xf]
      %v436 = vld [vmem:[%s299 + $0x48] sm:$0xf]
      %v437 = vld [vmem:[%s299 + $0x4c] sm:$0xf]
      %v438 = vld [vmem:[%s299 + $0x50] sm:$0xf]
      %v439 = vld [vmem:[%s299 + $0x54] sm:$0xf]
      %v440 = vld [vmem:[%s299 + $0x58] sm:$0xf]
      %v441 = vld [vmem:[%s299 + $0x5c] sm:$0xf]
      %v442 = vld [vmem:[%s299 + $0x60] sm:$0xf]
      %v443 = vld [vmem:[%s299 + $0x64] sm:$0xf]
      %v444 = vld [vmem:[%s299 + $0x68] sm:$0xf]
      %v445 = vld [vmem:[%s299 + $0x6c] sm:$0xf]
      %v446 = vld [vmem:[%s299 + $0x70] sm:$0xf]
      %v447 = vld [vmem:[%s299 + $0x74] sm:$0xf]
      %v448 = vld [vmem:[%s299 + $0x78] sm:$0xf]
      %v449 = vld [vmem:[%s299 + $0x7c] sm:$0xf]
      %v450 = vunpack.c.l.bf16 %v418
      %v451 = vunpack.c.l.bf16 %v419
      %v452 = vunpack.c.l.bf16 %v420
      %v453 = vunpack.c.l.bf16 %v421
      %v454 = vunpack.c.l.bf16 %v422
      %v455 = vunpack.c.l.bf16 %v423
      %v456 = vunpack.c.l.bf16 %v424
      %v457 = vunpack.c.l.bf16 %v425
      %v458 = vunpack.c.l.bf16 %v426
      %v459 = vunpack.c.l.bf16 %v427
      %v460 = vunpack.c.l.bf16 %v428
      %v461 = vunpack.c.l.bf16 %v429
      %v462 = vunpack.c.l.bf16 %v430
      %v463 = vunpack.c.l.bf16 %v431
      %v464 = vunpack.c.l.bf16 %v432
      %v465 = vunpack.c.l.bf16 %v433
      %v466 = vunpack.c.l.bf16 %v434
      %v467 = vunpack.c.l.bf16 %v435
      %v468 = vunpack.c.l.bf16 %v436
      %v469 = vunpack.c.l.bf16 %v437
      %v470 = vunpack.c.l.bf16 %v438
      %v471 = vunpack.c.l.bf16 %v439
      %v472 = vunpack.c.l.bf16 %v440
      %v473 = vunpack.c.l.bf16 %v441
      %v474 = vunpack.c.l.bf16 %v442
      %v475 = vunpack.c.l.bf16 %v443
      %v476 = vunpack.c.l.bf16 %v444
      %v477 = vunpack.c.l.bf16 %v445
      %v478 = vunpack.c.l.bf16 %v446
      %v479 = vunpack.c.l.bf16 %v447
      %v480 = vunpack.c.l.bf16 %v448
      %v481 = vunpack.c.l.bf16 %v449
      %482 = vrot.lane.b32.xlu0 %v384, 112
      %v483 = vpop.permute.xlu0 %482
      %v485 = vmul.f32 %v450, %v483
      %v486 = vmul.f32 %v451, %v483
      %v487 = vmul.f32 %v452, %v483
      %v488 = vmul.f32 %v453, %v483
      %v489 = vmul.f32 %v454, %v483
      %v490 = vmul.f32 %v455, %v483
      %v491 = vmul.f32 %v456, %v483
      %v492 = vmul.f32 %v457, %v483
      %v493 = vmul.f32 %v458, %v483
      %v494 = vmul.f32 %v459, %v483
      %v495 = vmul.f32 %v460, %v483
      %v496 = vmul.f32 %v461, %v483
      %v497 = vmul.f32 %v462, %v483
      %v498 = vmul.f32 %v463, %v483
      %v499 = vmul.f32 %v464, %v483
      %v500 = vmul.f32 %v465, %v483
      %v501 = vmul.f32 %v466, %v483
      %v502 = vmul.f32 %v467, %v483
      %v503 = vmul.f32 %v468, %v483
      %v504 = vmul.f32 %v469, %v483
      %v505 = vmul.f32 %v470, %v483
      %v506 = vmul.f32 %v471, %v483
      %v507 = vmul.f32 %v472, %v483
      %v508 = vmul.f32 %v473, %v483
      %v509 = vmul.f32 %v474, %v483
      %v510 = vmul.f32 %v475, %v483
      %v511 = vmul.f32 %v476, %v483
      %v512 = vmul.f32 %v477, %v483
      %v513 = vmul.f32 %v478, %v483
      %v514 = vmul.f32 %v479, %v483
      %v515 = vmul.f32 %v480, %v483
      %v516 = vmul.f32 %v481, %v483
      %v517 = vadd.f32 %v386, %v485
      %v518 = vadd.f32 %v387, %v486
      %v519 = vadd.f32 %v388, %v487
      %v520 = vadd.f32 %v389, %v488
      %v521 = vadd.f32 %v390, %v489
      %v522 = vadd.f32 %v391, %v490
      %v523 = vadd.f32 %v392, %v491
      %v524 = vadd.f32 %v393, %v492
      %v525 = vadd.f32 %v394, %v493
      %v526 = vadd.f32 %v395, %v494
      %v527 = vadd.f32 %v396, %v495
      %v528 = vadd.f32 %v397, %v496
      %v529 = vadd.f32 %v398, %v497
      %v530 = vadd.f32 %v399, %v498
      %v531 = vadd.f32 %v400, %v499
      %v532 = vadd.f32 %v401, %v500
      %v533 = vadd.f32 %v402, %v501
      %v534 = vadd.f32 %v403, %v502
      %v535 = vadd.f32 %v404, %v503
      %v536 = vadd.f32 %v405, %v504
      %v537 = vadd.f32 %v406, %v505
      %v538 = vadd.f32 %v407, %v506
      %v539 = vadd.f32 %v408, %v507
      %v540 = vadd.f32 %v409, %v508
      %v541 = vadd.f32 %v410, %v509
      %v542 = vadd.f32 %v411, %v510
      %v543 = vadd.f32 %v412, %v511
      %v544 = vadd.f32 %v413, %v512
      %v545 = vadd.f32 %v414, %v513
      %v546 = vadd.f32 %v415, %v514
      %v547 = vadd.f32 %v416, %v515
      %v548 = vadd.f32 %v417, %v516
      %v549 = vpack.c.bf16 %v518, %v517
      %v550 = vpack.c.bf16 %v520, %v519
      %v551 = vpack.c.bf16 %v522, %v521
      %v552 = vpack.c.bf16 %v524, %v523
      %v553 = vpack.c.bf16 %v526, %v525
      %v554 = vpack.c.bf16 %v528, %v527
      %v555 = vpack.c.bf16 %v530, %v529
      %v556 = vpack.c.bf16 %v532, %v531
      %v557 = vpack.c.bf16 %v534, %v533
      %v558 = vpack.c.bf16 %v536, %v535
      %v559 = vpack.c.bf16 %v538, %v537
      %v560 = vpack.c.bf16 %v540, %v539
      %v561 = vpack.c.bf16 %v542, %v541
      %v562 = vpack.c.bf16 %v544, %v543
      %v563 = vpack.c.bf16 %v546, %v545
      %v564 = vpack.c.bf16 %v548, %v547
      %v565 = vld [vmem:[%s3] sm:$0xf]
      %v566 = vld [vmem:[%s3 + $0x4] sm:$0xf]
      %v567 = vld [vmem:[%s4] sm:$0x1]
      %v569 = vlaneseq
      %v570 = vshrl.u32 %v569, 7
      %v571 = vsub.s32 0, %v570
      %v572 = vrot.slane %v567, %v571
      %v576 = vunpack.c.l.b16 %v565
      %v577 = vunpack.c.l.b16 %v566
      %v578 = vpack.c.b16 %v577, %v576
      %vm580 = vcmask 130048
      %v582 = vsel %vm580, %v549, 0
      %v585 = vsel %vm580, %v550, 0
      %v588 = vsel %vm580, %v551, 0
      %v591 = vsel %vm580, %v552, 0
      %v594 = vsel %vm580, %v553, 0
      %v597 = vsel %vm580, %v554, 0
      %v600 = vsel %vm580, %v555, 0
      %v603 = vsel %vm580, %v556, 0
      %v606 = vsel %vm580, %v557, 0
      %v609 = vsel %vm580, %v558, 0
      %v612 = vsel %vm580, %v559, 0
      %v615 = vsel %vm580, %v560, 0
      %v618 = vsel %vm580, %v561, 0
      %v621 = vsel %vm580, %v562, 0
      %v624 = vsel %vm580, %v563, 0
      %v627 = vsel %vm580, %v564, 0
      %629 = vmatprep.subr.bf16.mxu0 0
      %630 = vmatpush1.bf16.msra.mxu0 0
      %631 = vmatprep.subr.bf16.mxu0 0
      %632 = vmatpush1.bf16.msra.mxu0 0
      %633 = vmatprep.subr.bf16.mxu0 0
      %634 = vmatpush1.bf16.msra.mxu0 0
      %635 = vmatprep.subr.bf16.mxu0 0
      %636 = vmatpush1.bf16.msra.mxu0 0
      %637 = vmatprep.subr.bf16.mxu0 0
      %638 = vmatpush1.bf16.msra.mxu0 0
      %639 = vmatprep.subr.bf16.mxu0 0
      %640 = vmatpush1.bf16.msra.mxu0 0
      %641 = vmatprep.subr.bf16.mxu0 0
      %642 = vmatpush1.bf16.msra.mxu0 0
      %643 = vmatprep.subr.bf16.mxu0 0
      %644 = vmatpush1.bf16.msra.mxu0 %v578
      %645 = vmatprep.subr.bf16.mxu0 0
      %646 = vmatpush2.bf16.msra.mxu0 0
      %647 = vmatprep.subr.bf16.mxu0 0
      %648 = vmatpush2.bf16.msra.mxu0 0
      %649 = vmatprep.subr.bf16.mxu0 0
      %650 = vmatpush2.bf16.msra.mxu0 0
      %651 = vmatprep.subr.bf16.mxu0 0
      %652 = vmatpush2.bf16.msra.mxu0 0
      %653 = vmatprep.subr.bf16.mxu0 0
      %654 = vmatpush2.bf16.msra.mxu0 0
      %655 = vmatprep.subr.bf16.mxu0 0
      %656 = vmatpush2.bf16.msra.mxu0 0
      %657 = vmatprep.subr.bf16.mxu0 0
      %658 = vmatpush2.bf16.msra.mxu0 0
      %659 = vmatprep.subr.bf16.mxu0 0
      %660 = vmatpush2.bf16.msra.mxu0 0
      %661 = vmatprep.mubr.bf16.mxu0 0
      %662 = vmatmul.mubr.bf16.gmra.mxu0 %v582
      %v663 = vpop.f32.mrf.mxu0
      %v664 = vadd.f32 %v572, %v663
      %v665 = vpop.f32.mrf.mxu0
      %v666 = vpop.f32.mrf.mxu0
      %v667 = vadd.f32 %v572, %v666
      %v668 = vpop.f32.mrf.mxu0
      %669 = vmatprep.mubr.bf16.mxu0 0
      %670 = vmatmul.mubr.bf16.gmra.mxu0 %v585
      %v671 = vpop.f32.mrf.mxu0
      %v672 = vadd.f32 %v572, %v671
      %v673 = vpop.f32.mrf.mxu0
      %v674 = vpop.f32.mrf.mxu0
      %v675 = vadd.f32 %v572, %v674
      %v676 = vpop.f32.mrf.mxu0
      %677 = vmatprep.mubr.bf16.mxu0 0
      %678 = vmatmul.mubr.bf16.gmra.mxu0 %v588
      %v679 = vpop.f32.mrf.mxu0
      %v680 = vadd.f32 %v572, %v679
      %v681 = vpop.f32.mrf.mxu0
      %v682 = vpop.f32.mrf.mxu0
      %v683 = vadd.f32 %v572, %v682
      %v684 = vpop.f32.mrf.mxu0
      %685 = vmatprep.mubr.bf16.mxu0 0
      %686 = vmatmul.mubr.bf16.gmra.mxu0 %v591
      %v687 = vpop.f32.mrf.mxu0
      %v688 = vadd.f32 %v572, %v687
      %v689 = vpop.f32.mrf.mxu0
      %v690 = vpop.f32.mrf.mxu0
      %v691 = vadd.f32 %v572, %v690
      %v692 = vpop.f32.mrf.mxu0
      %693 = vmatprep.mubr.bf16.mxu0 0
      %694 = vmatmul.mubr.bf16.gmra.mxu0 %v594
      %v695 = vpop.f32.mrf.mxu0
      %v696 = vadd.f32 %v572, %v695
      %v697 = vpop.f32.mrf.mxu0
      %v698 = vpop.f32.mrf.mxu0
      %v699 = vadd.f32 %v572, %v698
      %v700 = vpop.f32.mrf.mxu0
      %701 = vmatprep.mubr.bf16.mxu0 0
      %702 = vmatmul.mubr.bf16.gmra.mxu0 %v597
      %v703 = vpop.f32.mrf.mxu0
      %v704 = vadd.f32 %v572, %v703
      %v705 = vpop.f32.mrf.mxu0
      %v706 = vpop.f32.mrf.mxu0
      %v707 = vadd.f32 %v572, %v706
      %v708 = vpop.f32.mrf.mxu0
      %709 = vmatprep.mubr.bf16.mxu0 0
      %710 = vmatmul.mubr.bf16.gmra.mxu0 %v600
      %v711 = vpop.f32.mrf.mxu0
      %v712 = vadd.f32 %v572, %v711
      %v713 = vpop.f32.mrf.mxu0
      %v714 = vpop.f32.mrf.mxu0
      %v715 = vadd.f32 %v572, %v714
      %v716 = vpop.f32.mrf.mxu0
      %717 = vmatprep.mubr.bf16.mxu0 0
      %718 = vmatmul.mubr.bf16.gmra.mxu0 %v603
      %v719 = vpop.f32.mrf.mxu0
      %v720 = vadd.f32 %v572, %v719
      %v721 = vpop.f32.mrf.mxu0
      %v722 = vpop.f32.mrf.mxu0
      %v723 = vadd.f32 %v572, %v722
      %v724 = vpop.f32.mrf.mxu0
      %725 = vmatprep.mubr.bf16.mxu0 0
      %726 = vmatmul.mubr.bf16.gmra.mxu0 %v606
      %v727 = vpop.f32.mrf.mxu0
      %v728 = vadd.f32 %v572, %v727
      %v729 = vpop.f32.mrf.mxu0
      %v730 = vpop.f32.mrf.mxu0
      %v731 = vadd.f32 %v572, %v730
      %v732 = vpop.f32.mrf.mxu0
      %733 = vmatprep.mubr.bf16.mxu0 0
      %734 = vmatmul.mubr.bf16.gmra.mxu0 %v609
      %v735 = vpop.f32.mrf.mxu0
      %v736 = vadd.f32 %v572, %v735
      %v737 = vpop.f32.mrf.mxu0
      %v738 = vpop.f32.mrf.mxu0
      %v739 = vadd.f32 %v572, %v738
      %v740 = vpop.f32.mrf.mxu0
      %741 = vmatprep.mubr.bf16.mxu0 0
      %742 = vmatmul.mubr.bf16.gmra.mxu0 %v612
      %v743 = vpop.f32.mrf.mxu0
      %v744 = vadd.f32 %v572, %v743
      %v745 = vpop.f32.mrf.mxu0
      %v746 = vpop.f32.mrf.mxu0
      %v747 = vadd.f32 %v572, %v746
      %v748 = vpop.f32.mrf.mxu0
      %749 = vmatprep.mubr.bf16.mxu0 0
      %750 = vmatmul.mubr.bf16.gmra.mxu0 %v615
      %v751 = vpop.f32.mrf.mxu0
      %v752 = vadd.f32 %v572, %v751
      %v753 = vpop.f32.mrf.mxu0
      %v754 = vpop.f32.mrf.mxu0
      %v755 = vadd.f32 %v572, %v754
      %v756 = vpop.f32.mrf.mxu0
      %757 = vmatprep.mubr.bf16.mxu0 0
      %758 = vmatmul.mubr.bf16.gmra.mxu0 %v618
      %v759 = vpop.f32.mrf.mxu0
      %v760 = vadd.f32 %v572, %v759
      %v761 = vpop.f32.mrf.mxu0
      %v762 = vpop.f32.mrf.mxu0
      %v763 = vadd.f32 %v572, %v762
      %v764 = vpop.f32.mrf.mxu0
      %765 = vmatprep.mubr.bf16.mxu0 0
      %766 = vmatmul.mubr.bf16.gmra.mxu0 %v621
      %v767 = vpop.f32.mrf.mxu0
      %v768 = vadd.f32 %v572, %v767
      %v769 = vpop.f32.mrf.mxu0
      %v770 = vpop.f32.mrf.mxu0
      %v771 = vadd.f32 %v572, %v770
      %v772 = vpop.f32.mrf.mxu0
      %773 = vmatprep.mubr.bf16.mxu0 0
      %774 = vmatmul.mubr.bf16.gmra.mxu0 %v624
      %v775 = vpop.f32.mrf.mxu0
      %v776 = vadd.f32 %v572, %v775
      %v777 = vpop.f32.mrf.mxu0
      %v778 = vpop.f32.mrf.mxu0
      %v779 = vadd.f32 %v572, %v778
      %v780 = vpop.f32.mrf.mxu0
      %781 = vmatprep.mubr.bf16.mxu0 0
      %782 = vmatmul.mubr.bf16.gmra.mxu0 %v627
      %v783 = vpop.f32.mrf.mxu0
      %v784 = vadd.f32 %v572, %v783
      %v785 = vpop.f32.mrf.mxu0
      %v786 = vpop.f32.mrf.mxu0
      %v787 = vadd.f32 %v572, %v786
      %v788 = vpop.f32.mrf.mxu0
      %789 = vdwg.mxu0
      %v790 = vpack.c.bf16 %v667, %v664
      %v791 = vpack.c.bf16 %v675, %v672
      %v792 = vpack.c.bf16 %v683, %v680
      %v793 = vpack.c.bf16 %v691, %v688
      %v794 = vpack.c.bf16 %v699, %v696
      %v795 = vpack.c.bf16 %v707, %v704
      %v796 = vpack.c.bf16 %v715, %v712
      %v797 = vpack.c.bf16 %v723, %v720
      %v798 = vpack.c.bf16 %v731, %v728
      %v799 = vpack.c.bf16 %v739, %v736
      %v800 = vpack.c.bf16 %v747, %v744
      %v801 = vpack.c.bf16 %v755, %v752
      %v802 = vpack.c.bf16 %v763, %v760
      %v803 = vpack.c.bf16 %v771, %v768
      %v804 = vpack.c.bf16 %v779, %v776
      %v805 = vpack.c.bf16 %v787, %v784
      %v822 = vunpack.c.l.b16 %v790
      %v823 = vunpack.c.h.b16 %v790
      %v824 = vunpack.c.l.b16 %v791
      %v825 = vunpack.c.h.b16 %v791
      %v826 = vunpack.c.l.b16 %v792
      %v827 = vunpack.c.h.b16 %v792
      %v828 = vunpack.c.l.b16 %v793
      %v829 = vunpack.c.h.b16 %v793
      %v830 = vunpack.c.l.b16 %v794
      %v831 = vunpack.c.h.b16 %v794
      %v832 = vunpack.c.l.b16 %v795
      %v833 = vunpack.c.h.b16 %v795
      %v834 = vunpack.c.l.b16 %v796
      %v835 = vunpack.c.h.b16 %v796
      %v836 = vunpack.c.l.b16 %v797
      %v837 = vunpack.c.h.b16 %v797
      %v838 = vunpack.c.l.b16 %v798
      %v839 = vunpack.c.h.b16 %v798
      %v840 = vunpack.c.l.b16 %v799
      %v841 = vunpack.c.h.b16 %v799
      %v842 = vunpack.c.l.b16 %v800
      %v843 = vunpack.c.h.b16 %v800
      %v844 = vunpack.c.l.b16 %v801
      %v845 = vunpack.c.h.b16 %v801
      %v846 = vunpack.c.l.b16 %v802
      %v847 = vunpack.c.h.b16 %v802
      %v848 = vunpack.c.l.b16 %v803
      %v849 = vunpack.c.h.b16 %v803
      %v850 = vunpack.c.l.b16 %v804
      %v851 = vunpack.c.h.b16 %v804
      %v852 = vunpack.c.l.b16 %v805
      %v853 = vunpack.c.h.b16 %v805
      %v854 = vpack.c.b16 %v822, %v822
      %v855 = vpack.c.b16 %v823, %v823
      %v856 = vpack.c.b16 %v824, %v824
      %v857 = vpack.c.b16 %v825, %v825
      %v858 = vpack.c.b16 %v826, %v826
      %v859 = vpack.c.b16 %v827, %v827
      %v860 = vpack.c.b16 %v828, %v828
      %v861 = vpack.c.b16 %v829, %v829
      %v862 = vpack.c.b16 %v830, %v830
      %v863 = vpack.c.b16 %v831, %v831
      %v864 = vpack.c.b16 %v832, %v832
      %v865 = vpack.c.b16 %v833, %v833
      %v866 = vpack.c.b16 %v834, %v834
      %v867 = vpack.c.b16 %v835, %v835
      %v868 = vpack.c.b16 %v836, %v836
      %v869 = vpack.c.b16 %v837, %v837
      %v870 = vpack.c.b16 %v838, %v838
      %v871 = vpack.c.b16 %v839, %v839
      %v872 = vpack.c.b16 %v840, %v840
      %v873 = vpack.c.b16 %v841, %v841
      %v874 = vpack.c.b16 %v842, %v842
      %v875 = vpack.c.b16 %v843, %v843
      %v876 = vpack.c.b16 %v844, %v844
      %v877 = vpack.c.b16 %v845, %v845
      %v878 = vpack.c.b16 %v846, %v846
      %v879 = vpack.c.b16 %v847, %v847
      %v880 = vpack.c.b16 %v848, %v848
      %v881 = vpack.c.b16 %v849, %v849
      %v882 = vpack.c.b16 %v850, %v850
      %v883 = vpack.c.b16 %v851, %v851
      %v884 = vpack.c.b16 %v852, %v852
      %v885 = vpack.c.b16 %v853, %v853
      %918 = vst [vmem:[%s312] sm:$0xf] %v854
      %919 = vst [vmem:[%s312 + $0x4] sm:$0xf] %v855
      %920 = vst [vmem:[%s312 + $0x8] sm:$0xf] %v856
      %921 = vst [vmem:[%s312 + $0xc] sm:$0xf] %v857
      %922 = vst [vmem:[%s312 + $0x10] sm:$0xf] %v858
      %923 = vst [vmem:[%s312 + $0x14] sm:$0xf] %v859
      %924 = vst [vmem:[%s312 + $0x18] sm:$0xf] %v860
      %925 = vst [vmem:[%s312 + $0x1c] sm:$0xf] %v861
      %926 = vst [vmem:[%s312 + $0x20] sm:$0xf] %v862
      %927 = vst [vmem:[%s312 + $0x24] sm:$0xf] %v863
      %928 = vst [vmem:[%s312 + $0x28] sm:$0xf] %v864
      %929 = vst [vmem:[%s312 + $0x2c] sm:$0xf] %v865
      %930 = vst [vmem:[%s312 + $0x30] sm:$0xf] %v866
      %931 = vst [vmem:[%s312 + $0x34] sm:$0xf] %v867
      %932 = vst [vmem:[%s312 + $0x38] sm:$0xf] %v868
      %933 = vst [vmem:[%s312 + $0x3c] sm:$0xf] %v869
      %934 = vst [vmem:[%s312 + $0x40] sm:$0xf] %v870
      %935 = vst [vmem:[%s312 + $0x44] sm:$0xf] %v871
      %936 = vst [vmem:[%s312 + $0x48] sm:$0xf] %v872
      %937 = vst [vmem:[%s312 + $0x4c] sm:$0xf] %v873
      %938 = vst [vmem:[%s312 + $0x50] sm:$0xf] %v874
      %939 = vst [vmem:[%s312 + $0x54] sm:$0xf] %v875
      %940 = vst [vmem:[%s312 + $0x58] sm:$0xf] %v876
      %941 = vst [vmem:[%s312 + $0x5c] sm:$0xf] %v877
      %942 = vst [vmem:[%s312 + $0x60] sm:$0xf] %v878
      %943 = vst [vmem:[%s312 + $0x64] sm:$0xf] %v879
      %944 = vst [vmem:[%s312 + $0x68] sm:$0xf] %v880
      %945 = vst [vmem:[%s312 + $0x6c] sm:$0xf] %v881
      %946 = vst [vmem:[%s312 + $0x70] sm:$0xf] %v882
      %947 = vst [vmem:[%s312 + $0x74] sm:$0xf] %v883
      %948 = vst [vmem:[%s312 + $0x78] sm:$0xf] %v884
      %949 = vst [vmem:[%s312 + $0x7c] sm:$0xf] %v885
      %s950 = smul.u32 32, %s21
      %p951 = scmp.lt.s32.totalorder %s20, 1
      %s952 = scalar_select %p951, %s20, 1
      %p953 = scmp.lt.s32.totalorder %s950, 31
      %s954 = scalar_select %p953, %s950, 31
      %s955 = smul.addr %s952, 32
      %s956 = sadd.s32 %s954, %s955
      %s957 = smul.addr %s956, 4
      %s958 = scalar_lea.vmem %s5, %s957
      // Predicated region
      $region41: #{skm_block_forward.12} parent=39 // pred_check
        %p959 = pneg %p172
      $region42: #{skm_block_forward.12} parent=39 // pred_check_branch
        %961 = sbr.rel (%p959) target = $region44
      $region43: #{skm_block_forward.12} parent=39 // pred_region
        %s962 = smul.u32 32, %s21
      $region44: #{skm_block_forward.12} parent=39 // pred_fallthru
        _
    $region40: #{skm_block_forward.12} parent=5 // pred_fallthru
      _
    %p963 = scmp.le.s32.totalorder 2, %s11
    // Predicated region
    $region45: #{skm_block_forward.12} parent=5 // pred_check
      %p964 = pneg %p963
    $region46: #{skm_block_forward.12} parent=5 // pred_check_branch
      %966 = sbr.rel (%p964) target = $region48
    $region47: #{skm_block_forward.12} parent=5 // pred_region
      %s967 = ssub.s32 %s11, 2
      // Predicated region
      $region49: #{skm_block_forward.12} parent=47 // pred_check
        %p968 = pneg %p178
      $region50: #{skm_block_forward.12} parent=47 // pred_check_branch
        %970 = sbr.rel (%p968) target = $region52
      $region51: #{skm_block_forward.12} parent=47 // pred_region
        %s971 = smul.u32 32, %s23
        %p972 = scmp.lt.s32.totalorder %s22, 1
        %s973 = scalar_select %p972, %s22, 1
        %p974 = scmp.lt.s32.totalorder %s971, 31
        %s975 = scalar_select %p974, %s971, 31
        %s976 = smul.addr %s973, 32
        %s977 = sadd.s32 %s975, %s976
        %s978 = smul.addr %s977, 4
        %s979 = scalar_lea.vmem %s5, %s978
      $region52: #{skm_block_forward.12} parent=47 // pred_fallthru
        _
    $region48: #{skm_block_forward.12} parent=5 // pred_fallthru
      _
  $region6: #{skm_block_forward.12} parent=0 // loop_footer
    %s15 = sadd.s32 1, %s11
  $region7: #{skm_block_forward.12} parent=0 // loop_footer_branch
    %10 = sbr.rel target = $region3
  $region8: #{skm_block_forward.12} parent=0 // loop_exit
    _

// kernel: skm_block_forward.13
$region0: #{skm_block_forward.13}
  #allocation0 [shape = 'u32[]', space=smem, size = 0x4, offset = 0x4, fixed_abs, tag = 'smem constant byte address 0x4 - core index']
  #allocation1 [shape = 'u32[144,128]{1,0:T(1,128)}', space=vmem, size = 0x12000, scoped, tag = 'internal scratch']
  %s0 = inlined_call_operand.vmem [shape: bf16[128,576], index: 0, kind: input, shape index: {}]
  %s1 = inlined_call_operand.vmem [shape: bf16[576,128], index: 1, kind: input, shape index: {}]
  %s2 = inlined_call_operand.vmem [shape: f32[1,128], index: 2, kind: input, shape index: {}]
  %s3 = inlined_call_operand.vmem [shape: f32[1,128], index: 3, kind: input, shape index: {}]
  %s4 = inlined_call_operand.vmem [shape: bf16[128,128], index: 4, kind: output, shape index: {}]
  %s5 = sld [smem:[#allocation0]]
  $region49: #{skm_block_forward.13} parent=0
    _
  %s7 = ssub.s32 1, %s5
  %s8 = scalar_select 0, %s7, %s5
  loop: start=0, step=1, limit=4
  $region2: #{skm_block_forward.13} parent=0 // loop_pre_header
    _
  $region3: #{skm_block_forward.13} parent=0 // loop_header
    %s10 = sphi 0, %s14
    %p11 = scmp.ge.s32.totalorder %s10, 4
    %s20 = sphi 0, %s22
    %s23 = sphi 0, %s20
    %s24 = sphi 0, %s23
    %s40 = sphi 0, %s24
    %s44 = sphi 0, %s44
    %s46 = sphi 0, %s44
    %s47 = sphi 0, %s46
    %s61 = sphi 0, %s47
    %s65 = sphi 0, %s65
    %s67 = sphi 0, %s65
    %s68 = sphi 0, %s67
    %s82 = sphi 0, %s68
    %s86 = sphi 0, %s86
    %s88 = sphi 0, %s86
    %s89 = sphi 0, %s88
    %s103 = sphi 0, %s89
    %s109 = sphi 0, %s111
    %s112 = sphi 0, %s109
    %s113 = sphi 0, %s112
    %s129 = sphi 0, %s113
  $region4: #{skm_block_forward.13} parent=0 // loop_header_branch
    %13 = sbr.rel (%p11) target = $region8
  $region5: #{skm_block_forward.13} parent=0 // loop_body
    %s15 = ssub.s32 %s10, 1
    %s16 = ssub.s32 %s10, 2
    %s17 = sadd.s32 %s10, 1
    %s18 = ssub.s32 %s10, %s17
    %p19 = scmp.eq.s32.totalorder %s18, 0
    %s21 = sadd.s32 %s20, 1
    %s22 = scalar_select %p19, %s20, %s21
    %p25 = pneg %p19
    %p26 = scmp.eq.s32.totalorder %s10, 1
    %p27 = por %p25, %p26
    %p28 = scmp.ne.s32.totalorder %s20, %s23
    %p29 = scmp.eq.s32.totalorder %s10, 0
    %p30 = por %p28, %p29
    %p31 = scmp.ne.s32.totalorder %s20, %s23
    %p32 = scmp.eq.s32.totalorder %s15, 1
    %p33 = por %p31, %p32
    %p34 = scmp.ne.s32.totalorder %s23, %s24
    %p35 = scmp.eq.s32.totalorder %s15, 0
    %p36 = por %p34, %p35
    %p37 = scmp.ne.s32.totalorder %s23, %s24
    %p38 = scmp.eq.s32.totalorder %s16, 1
    %p39 = por %p37, %p38
    %p41 = scmp.ne.s32.totalorder %s24, %s40
    %p42 = scmp.eq.s32.totalorder %s16, 0
    %p43 = por %p41, %p42
    %s45 = sadd.s32 %s44, 1
    %p48 = scmp.eq.s32.totalorder %s10, 1
    %p49 = scmp.ne.s32.totalorder %s44, %s46
    %p50 = scmp.eq.s32.totalorder %s10, 0
    %p51 = por %p49, %p50
    %p52 = scmp.ne.s32.totalorder %s44, %s46
    %p53 = scmp.eq.s32.totalorder %s15, 1
    %p54 = por %p52, %p53
    %p55 = scmp.ne.s32.totalorder %s46, %s47
    %p56 = scmp.eq.s32.totalorder %s15, 0
    %p57 = por %p55, %p56
    %p58 = scmp.ne.s32.totalorder %s46, %s47
    %p59 = scmp.eq.s32.totalorder %s16, 1
    %p60 = por %p58, %p59
    %p62 = scmp.ne.s32.totalorder %s47, %s61
    %p63 = scmp.eq.s32.totalorder %s16, 0
    %p64 = por %p62, %p63
    %s66 = sadd.s32 %s65, 1
    %p69 = scmp.eq.s32.totalorder %s10, 1
    %p70 = scmp.ne.s32.totalorder %s65, %s67
    %p71 = scmp.eq.s32.totalorder %s10, 0
    %p72 = por %p70, %p71
    %p73 = scmp.ne.s32.totalorder %s65, %s67
    %p74 = scmp.eq.s32.totalorder %s15, 1
    %p75 = por %p73, %p74
    %p76 = scmp.ne.s32.totalorder %s67, %s68
    %p77 = scmp.eq.s32.totalorder %s15, 0
    %p78 = por %p76, %p77
    %p79 = scmp.ne.s32.totalorder %s67, %s68
    %p80 = scmp.eq.s32.totalorder %s16, 1
    %p81 = por %p79, %p80
    %p83 = scmp.ne.s32.totalorder %s68, %s82
    %p84 = scmp.eq.s32.totalorder %s16, 0
    %p85 = por %p83, %p84
    %s87 = sadd.s32 %s86, 1
    %p90 = scmp.eq.s32.totalorder %s10, 1
    %p91 = scmp.ne.s32.totalorder %s86, %s88
    %p92 = scmp.eq.s32.totalorder %s10, 0
    %p93 = por %p91, %p92
    %p94 = scmp.ne.s32.totalorder %s86, %s88
    %p95 = scmp.eq.s32.totalorder %s15, 1
    %p96 = por %p94, %p95
    %p97 = scmp.ne.s32.totalorder %s88, %s89
    %p98 = scmp.eq.s32.totalorder %s15, 0
    %p99 = por %p97, %p98
    %p100 = scmp.ne.s32.totalorder %s88, %s89
    %p101 = scmp.eq.s32.totalorder %s16, 1
    %p102 = por %p100, %p101
    %p104 = scmp.ne.s32.totalorder %s89, %s103
    %p105 = scmp.eq.s32.totalorder %s16, 0
    %p106 = por %p104, %p105
    %s107 = ssub.s32 %s10, %s17
    %p108 = scmp.eq.s32.totalorder %s107, 0
    %s110 = sadd.s32 %s109, 1
    %s111 = scalar_select %p108, %s109, %s110
    %p114 = pneg %p108
    %p115 = scmp.eq.s32.totalorder %s10, 1
    %p116 = por %p114, %p115
    %p117 = scmp.ne.s32.totalorder %s109, %s112
    %p118 = scmp.eq.s32.totalorder %s10, 0
    %p119 = por %p117, %p118
    %p120 = scmp.ne.s32.totalorder %s109, %s112
    %p121 = scmp.eq.s32.totalorder %s15, 1
    %p122 = por %p120, %p121
    %p123 = scmp.ne.s32.totalorder %s112, %s113
    %p124 = scmp.eq.s32.totalorder %s15, 0
    %p125 = por %p123, %p124
    %p126 = scmp.ne.s32.totalorder %s112, %s113
    %p127 = scmp.eq.s32.totalorder %s16, 1
    %p128 = por %p126, %p127
    %p130 = scmp.ne.s32.totalorder %s113, %s129
    %p131 = scmp.eq.s32.totalorder %s16, 0
    %p132 = por %p130, %p131
    %p133 = scmp.le.s32.totalorder 1, %s10
    %p134 = scmp.lt.s32.totalorder %s10, 3
    %p135 = pnand %p133, %p134
    %p136 = pneg %p135
    // Predicated region
    $region9: #{skm_block_forward.13} parent=5 // pred_check
      _
    $region10: #{skm_block_forward.13} parent=5 // pred_check_branch
      %138 = sbr.rel (%p135) target = $region12
    $region11: #{skm_block_forward.13} parent=5 // pred_region
      %s139 = ssub.s32 %s10, 1
      // Predicated region
      $region13: #{skm_block_forward.13} parent=11 // pred_check
        %p140 = pneg %p57
      $region14: #{skm_block_forward.13} parent=11 // pred_check_branch
        %142 = sbr.rel (%p140) target = $region16
      $region15: #{skm_block_forward.13} parent=11 // pred_region
        _
      $region16: #{skm_block_forward.13} parent=11 // pred_fallthru
        _
      // Predicated region
      $region17: #{skm_block_forward.13} parent=11 // pred_check
        %p143 = pneg %p78
      $region18: #{skm_block_forward.13} parent=11 // pred_check_branch
        %145 = sbr.rel (%p143) target = $region20
      $region19: #{skm_block_forward.13} parent=11 // pred_region
        _
      $region20: #{skm_block_forward.13} parent=11 // pred_fallthru
        _
      // Predicated region
      $region21: #{skm_block_forward.13} parent=11 // pred_check
        %p146 = pneg %p99
      $region22: #{skm_block_forward.13} parent=11 // pred_check_branch
        %148 = sbr.rel (%p146) target = $region24
      $region23: #{skm_block_forward.13} parent=11 // pred_region
        _
      $region24: #{skm_block_forward.13} parent=11 // pred_fallthru
        _
    $region12: #{skm_block_forward.13} parent=5 // pred_fallthru
      _
    %p149 = scmp.lt.s32.totalorder %s10, 2
    // Predicated region
    $region25: #{skm_block_forward.13} parent=5 // pred_check
      %p150 = pneg %p149
    $region26: #{skm_block_forward.13} parent=5 // pred_check_branch
      %152 = sbr.rel (%p150) target = $region28
    $region27: #{skm_block_forward.13} parent=5 // pred_region
      // Predicated region
      $region29: #{skm_block_forward.13} parent=27 // pred_check
        %p153 = pneg %p30
      $region30: #{skm_block_forward.13} parent=27 // pred_check_branch
        %155 = sbr.rel (%p153) target = $region32
      $region31: #{skm_block_forward.13} parent=27 // pred_region
        %s156 = smul.u32 8, %s10
        %p157 = scmp.lt.s32.totalorder %s156, 15
        %s158 = scalar_select %p157, %s156, 15
        %s159 = smul.addr %s158, 5
        %s160 = smul.addr %s159, 4
        %s161 = scalar_lea.vmem %s0, %s160
        %s162 = smul.u32 8, %s10
      $region32: #{skm_block_forward.13} parent=27 // pred_fallthru
        _
    $region28: #{skm_block_forward.13} parent=5 // pred_fallthru
      _
    %p163 = scmp.le.s32.totalorder 1, %s10
    %p164 = scmp.lt.s32.totalorder %s10, 3
    %p165 = pnand %p163, %p164
    %p166 = pneg %p165
    // Predicated region
    $region33: #{skm_block_forward.13} parent=5 // pred_check
      _
    $region34: #{skm_block_forward.13} parent=5 // pred_check_branch
      %168 = sbr.rel (%p165) target = $region36
    $region35: #{skm_block_forward.13} parent=5 // pred_region
      %s169 = ssub.s32 %s10, 1
      %s170 = smul.u32 8, %s15
      %p171 = scmp.lt.s32.totalorder %s170, 15
      %s172 = scalar_select %p171, %s170, 15
      %s173 = smul.addr %s172, 5
      %s174 = smul.addr %s173, 4
      %s175 = scalar_lea.vmem %s0, %s174
      %p176 = pneg %p36
      %p177 = pneg %p33
      %p178 = pneg %p57
      %p179 = pneg %p54
      %p180 = pneg %p78
      %p181 = pneg %p75
      %p182 = pneg %p99
      %p183 = pneg %p96
      %p184 = pneg %p125
      %p185 = pneg %p122
      %s186 = smul.u32 8, %s15
      %p187 = scmp.lt.s32.totalorder %s186, 15
      %s188 = scalar_select %p187, %s186, 15
      %s189 = smul.addr %s188, 4
      %s190 = scalar_lea.vmem %s4, %s189
      %s191 = smul.u32 8, %s15
      %p192 = scmp.lt.s32.totalorder %s191, 15
      %s193 = scalar_select %p192, %s191, 15
      %s194 = smul.addr %s193, 5
      %s195 = smul.addr %s194, 4
      %s196 = scalar_lea.vmem %s0, %s195
      %s197 = smul.u32 8, %s15
      %s198 = smul.u32 8, %s15
      %p199 = scmp.lt.s32.totalorder %s198, 15
      %s200 = scalar_select %p199, %s198, 15
      %s201 = smul.addr %s200, 4
      %s202 = scalar_lea.vmem %s4, %s201
      %s203 = smul.u32 8, %s15
      %v205 = vld [vmem:[%s196] sm:$0xff]
      %v206 = vld [vmem:[%s196 + $0x8] sm:$0xff]
      %v207 = vld [vmem:[%s196 + $0x10] sm:$0xf]
      %v208 = vld [vmem:[%s196 + $0x14] sm:$0xff]
      %v209 = vld [vmem:[%s196 + $0x1c] sm:$0xff]
      %v210 = vld [vmem:[%s196 + $0x24] sm:$0xf]
      %v211 = vld [vmem:[%s196 + $0x28] sm:$0xff]
      %v212 = vld [vmem:[%s196 + $0x30] sm:$0xff]
      %v213 = vld [vmem:[%s196 + $0x38] sm:$0xf]
      %v214 = vld [vmem:[%s196 + $0x3c] sm:$0xff]
      %v215 = vld [vmem:[%s196 + $0x44] sm:$0xff]
      %v216 = vld [vmem:[%s196 + $0x4c] sm:$0xf]
      %v217 = vld [vmem:[%s196 + $0x50] sm:$0xff]
      %v218 = vld [vmem:[%s196 + $0x58] sm:$0xff]
      %v219 = vld [vmem:[%s196 + $0x60] sm:$0xf]
      %v220 = vld [vmem:[%s196 + $0x64] sm:$0xff]
      %v221 = vld [vmem:[%s196 + $0x6c] sm:$0xff]
      %v222 = vld [vmem:[%s196 + $0x74] sm:$0xf]
      %v223 = vld [vmem:[%s196 + $0x78] sm:$0xff]
      %v224 = vld [vmem:[%s196 + $0x80] sm:$0xff]
      %v225 = vld [vmem:[%s196 + $0x88] sm:$0xf]
      %v226 = vld [vmem:[%s196 + $0x8c] sm:$0xff]
      %v227 = vld [vmem:[%s196 + $0x94] sm:$0xff]
      %v228 = vld [vmem:[%s196 + $0x9c] sm:$0xf]
      %v229 = vld [vmem:[%s1] sm:$0xf]
      %v230 = vld [vmem:[%s1 + $0x4] sm:$0xf]
      %v231 = vld [vmem:[%s1 + $0x8] sm:$0xf]
      %v232 = vld [vmem:[%s1 + $0xc] sm:$0xf]
      %v233 = vld [vmem:[%s1 + $0x10] sm:$0xf]
      %v234 = vld [vmem:[%s1 + $0x14] sm:$0xf]
      %v235 = vld [vmem:[%s1 + $0x18] sm:$0xf]
      %v236 = vld [vmem:[%s1 + $0x1c] sm:$0xf]
      %v237 = vld [vmem:[%s1 + $0x20] sm:$0xf]
      %v238 = vld [vmem:[%s1 + $0x24] sm:$0xf]
      %v239 = vld [vmem:[%s1 + $0x28] sm:$0xf]
      %v240 = vld [vmem:[%s1 + $0x2c] sm:$0xf]
      %v241 = vld [vmem:[%s1 + $0x30] sm:$0xf]
      %v242 = vld [vmem:[%s1 + $0x34] sm:$0xf]
      %v243 = vld [vmem:[%s1 + $0x38] sm:$0xf]
      %v244 = vld [vmem:[%s1 + $0x3c] sm:$0xf]
      %v245 = vld [vmem:[%s1 + $0x40] sm:$0xf]
      %v246 = vld [vmem:[%s1 + $0x44] sm:$0xf]
      %v247 = vld [vmem:[%s1 + $0x48] sm:$0xf]
      %v248 = vld [vmem:[%s1 + $0x4c] sm:$0xf]
      %v249 = vld [vmem:[%s1 + $0x50] sm:$0xf]
      %v250 = vld [vmem:[%s1 + $0x54] sm:$0xf]
      %v251 = vld [vmem:[%s1 + $0x58] sm:$0xf]
      %v252 = vld [vmem:[%s1 + $0x5c] sm:$0xf]
      %v253 = vld [vmem:[%s1 + $0x60] sm:$0xf]
      %v254 = vld [vmem:[%s1 + $0x64] sm:$0xf]
      %v255 = vld [vmem:[%s1 + $0x68] sm:$0xf]
      %v256 = vld [vmem:[%s1 + $0x6c] sm:$0xf]
      %v257 = vld [vmem:[%s1 + $0x70] sm:$0xf]
      %v258 = vld [vmem:[%s1 + $0x74] sm:$0xf]
      %v259 = vld [vmem:[%s1 + $0x78] sm:$0xf]
      %v260 = vld [vmem:[%s1 + $0x7c] sm:$0xf]
      %v261 = vld [vmem:[%s1 + $0x80] sm:$0xf]
      %v262 = vld [vmem:[%s1 + $0x84] sm:$0xf]
      %v263 = vld [vmem:[%s1 + $0x88] sm:$0xf]
      %v264 = vld [vmem:[%s1 + $0x8c] sm:$0xf]
      %v265 = vld [vmem:[%s1 + $0x90] sm:$0xf]
      %v266 = vld [vmem:[%s1 + $0x94] sm:$0xf]
      %v267 = vld [vmem:[%s1 + $0x98] sm:$0xf]
      %v268 = vld [vmem:[%s1 + $0x9c] sm:$0xf]
      %v269 = vld [vmem:[%s1 + $0xa0] sm:$0xf]
      %v270 = vld [vmem:[%s1 + $0xa4] sm:$0xf]
      %v271 = vld [vmem:[%s1 + $0xa8] sm:$0xf]
      %v272 = vld [vmem:[%s1 + $0xac] sm:$0xf]
      %v273 = vld [vmem:[%s1 + $0xb0] sm:$0xf]
      %v274 = vld [vmem:[%s1 + $0xb4] sm:$0xf]
      %v275 = vld [vmem:[%s1 + $0xb8] sm:$0xf]
      %v276 = vld [vmem:[%s1 + $0xbc] sm:$0xf]
      %v277 = vld [vmem:[%s1 + $0xc0] sm:$0xf]
      %v278 = vld [vmem:[%s1 + $0xc4] sm:$0xf]
      %v279 = vld [vmem:[%s1 + $0xc8] sm:$0xf]
      %v280 = vld [vmem:[%s1 + $0xcc] sm:$0xf]
      %v281 = vld [vmem:[%s1 + $0xd0] sm:$0xf]
      %v282 = vld [vmem:[%s1 + $0xd4] sm:$0xf]
      %v283 = vld [vmem:[%s1 + $0xd8] sm:$0xf]
      %v284 = vld [vmem:[%s1 + $0xdc] sm:$0xf]
      %v285 = vld [vmem:[%s1 + $0xe0] sm:$0xf]
      %v286 = vld [vmem:[%s1 + $0xe4] sm:$0xf]
      %v287 = vld [vmem:[%s1 + $0xe8] sm:$0xf]
      %v288 = vld [vmem:[%s1 + $0xec] sm:$0xf]
      %v289 = vld [vmem:[%s1 + $0xf0] sm:$0xf]
      %v290 = vld [vmem:[%s1 + $0xf4] sm:$0xf]
      %v291 = vld [vmem:[%s1 + $0xf8] sm:$0xf]
      %v292 = vld [vmem:[%s1 + $0xfc] sm:$0xf]
      %v293 = vld [vmem:[%s1 + $0x100] sm:$0xf]
      %v294 = vld [vmem:[%s1 + $0x104] sm:$0xf]
      %v295 = vld [vmem:[%s1 + $0x108] sm:$0xf]
      %v296 = vld [vmem:[%s1 + $0x10c] sm:$0xf]
      %v297 = vld [vmem:[%s1 + $0x110] sm:$0xf]
      %v298 = vld [vmem:[%s1 + $0x114] sm:$0xf]
      %v299 = vld [vmem:[%s1 + $0x118] sm:$0xf]
      %v300 = vld [vmem:[%s1 + $0x11c] sm:$0xf]
      %v301 = vld [vmem:[%s2] sm:$0x1]
      %v303 = vlaneseq
      %v304 = vshrl.u32 %v303, 7
      %v305 = vsub.s32 0, %v304
      %v306 = vrot.slane %v301, %v305
      %v332 = vunpack.c.l.b16 %v205
      %v333 = vunpack.c.h.b16 %v205
      %v334 = vunpack.c.l.b16 %v206
      %v335 = vunpack.c.h.b16 %v206
      %v336 = vunpack.c.l.b16 %v207
      %v337 = vunpack.c.l.b16 %v208
      %v338 = vunpack.c.h.b16 %v208
      %v339 = vunpack.c.l.b16 %v209
      %v340 = vunpack.c.h.b16 %v209
      %v341 = vunpack.c.l.b16 %v210
      %v342 = vunpack.c.l.b16 %v211
      %v343 = vunpack.c.h.b16 %v211
      %v344 = vunpack.c.l.b16 %v212
      %v345 = vunpack.c.h.b16 %v212
      %v346 = vunpack.c.l.b16 %v213
      %v347 = vunpack.c.l.b16 %v214
      %v348 = vunpack.c.h.b16 %v214
      %v349 = vunpack.c.l.b16 %v215
      %v350 = vunpack.c.h.b16 %v215
      %v351 = vunpack.c.l.b16 %v216
      %v352 = vunpack.c.l.b16 %v217
      %v353 = vunpack.c.h.b16 %v217
      %v354 = vunpack.c.l.b16 %v218
      %v355 = vunpack.c.h.b16 %v218
      %v356 = vunpack.c.l.b16 %v219
      %v357 = vunpack.c.l.b16 %v220
      %v358 = vunpack.c.h.b16 %v220
      %v359 = vunpack.c.l.b16 %v221
      %v360 = vunpack.c.h.b16 %v221
      %v361 = vunpack.c.l.b16 %v222
      %v362 = vunpack.c.l.b16 %v223
      %v363 = vunpack.c.h.b16 %v223
      %v364 = vunpack.c.l.b16 %v224
      %v365 = vunpack.c.h.b16 %v224
      %v366 = vunpack.c.l.b16 %v225
      %v367 = vunpack.c.l.b16 %v226
      %v368 = vunpack.c.h.b16 %v226
      %v369 = vunpack.c.l.b16 %v227
      %v370 = vunpack.c.h.b16 %v227
      %v371 = vunpack.c.l.b16 %v228
      %v372 = vpack.c.b16 %v337, %v332
      %v373 = vpack.c.b16 %v338, %v333
      %v374 = vpack.c.b16 %v339, %v334
      %v375 = vpack.c.b16 %v340, %v335
      %v376 = vpack.c.b16 %v341, %v336
      %v377 = vpack.c.b16 %v347, %v342
      %v378 = vpack.c.b16 %v348, %v343
      %v379 = vpack.c.b16 %v349, %v344
      %v380 = vpack.c.b16 %v350, %v345
      %v381 = vpack.c.b16 %v351, %v346
      %v382 = vpack.c.b16 %v357, %v352
      %v383 = vpack.c.b16 %v358, %v353
      %v384 = vpack.c.b16 %v359, %v354
      %v385 = vpack.c.b16 %v360, %v355
      %v386 = vpack.c.b16 %v361, %v356
      %v387 = vpack.c.b16 %v367, %v362
      %v388 = vpack.c.b16 %v368, %v363
      %v389 = vpack.c.b16 %v369, %v364
      %v390 = vpack.c.b16 %v370, %v365
      %v391 = vpack.c.b16 %v371, %v366
      %v480 = vunpack.c.l.b16 %v229
      %v481 = vunpack.c.l.b16 %v230
      %v482 = vunpack.c.l.b16 %v231
      %v483 = vunpack.c.l.b16 %v232
      %v484 = vunpack.c.l.b16 %v233
      %v485 = vunpack.c.l.b16 %v234
      %v486 = vunpack.c.l.b16 %v235
      %v487 = vunpack.c.l.b16 %v236
      %v488 = vunpack.c.l.b16 %v237
      %v489 = vunpack.c.l.b16 %v238
      %v490 = vunpack.c.l.b16 %v239
      %v491 = vunpack.c.l.b16 %v240
      %v492 = vunpack.c.l.b16 %v241
      %v493 = vunpack.c.l.b16 %v242
      %v494 = vunpack.c.l.b16 %v243
      %v495 = vunpack.c.l.b16 %v244
      %v496 = vunpack.c.l.b16 %v245
      %v497 = vunpack.c.l.b16 %v246
      %v498 = vunpack.c.l.b16 %v247
      %v499 = vunpack.c.l.b16 %v248
      %v500 = vunpack.c.l.b16 %v249
      %v501 = vunpack.c.l.b16 %v250
      %v502 = vunpack.c.l.b16 %v251
      %v503 = vunpack.c.l.b16 %v252
      %v504 = vunpack.c.l.b16 %v253
      %v505 = vunpack.c.l.b16 %v254
      %v506 = vunpack.c.l.b16 %v255
      %v507 = vunpack.c.l.b16 %v256
      %v508 = vunpack.c.l.b16 %v257
      %v509 = vunpack.c.l.b16 %v258
      %v510 = vunpack.c.l.b16 %v259
      %v511 = vunpack.c.l.b16 %v260
      %v512 = vunpack.c.l.b16 %v261
      %v513 = vunpack.c.l.b16 %v262
      %v514 = vunpack.c.l.b16 %v263
      %v515 = vunpack.c.l.b16 %v264
      %v516 = vunpack.c.l.b16 %v265
      %v517 = vunpack.c.l.b16 %v266
      %v518 = vunpack.c.l.b16 %v267
      %v519 = vunpack.c.l.b16 %v268
      %v520 = vunpack.c.l.b16 %v269
      %v521 = vunpack.c.l.b16 %v270
      %v522 = vunpack.c.l.b16 %v271
      %v523 = vunpack.c.l.b16 %v272
      %v524 = vunpack.c.l.b16 %v273
      %v525 = vunpack.c.l.b16 %v274
      %v526 = vunpack.c.l.b16 %v275
      %v527 = vunpack.c.l.b16 %v276
      %v528 = vunpack.c.l.b16 %v277
      %v529 = vunpack.c.l.b16 %v278
      %v530 = vunpack.c.l.b16 %v279
      %v531 = vunpack.c.l.b16 %v280
      %v532 = vunpack.c.l.b16 %v281
      %v533 = vunpack.c.l.b16 %v282
      %v534 = vunpack.c.l.b16 %v283
      %v535 = vunpack.c.l.b16 %v284
      %v536 = vunpack.c.l.b16 %v285
      %v537 = vunpack.c.l.b16 %v286
      %v538 = vunpack.c.l.b16 %v287
      %v539 = vunpack.c.l.b16 %v288
      %v540 = vunpack.c.l.b16 %v289
      %v541 = vunpack.c.l.b16 %v290
      %v542 = vunpack.c.l.b16 %v291
      %v543 = vunpack.c.l.b16 %v292
      %v544 = vunpack.c.l.b16 %v293
      %v545 = vunpack.c.l.b16 %v294
      %v546 = vunpack.c.l.b16 %v295
      %v547 = vunpack.c.l.b16 %v296
      %v548 = vunpack.c.l.b16 %v297
      %v549 = vunpack.c.l.b16 %v298
      %v550 = vunpack.c.l.b16 %v299
      %v551 = vunpack.c.l.b16 %v300
      %v552 = vpack.c.b16 %v481, %v480
      %v553 = vpack.c.b16 %v483, %v482
      %v554 = vpack.c.b16 %v485, %v484
      %v555 = vpack.c.b16 %v487, %v486
      %v556 = vpack.c.b16 %v489, %v488
      %v557 = vpack.c.b16 %v491, %v490
      %v558 = vpack.c.b16 %v493, %v492
      %v559 = vpack.c.b16 %v495, %v494
      %v560 = vpack.c.b16 %v497, %v496
      %v561 = vpack.c.b16 %v499, %v498
      %v562 = vpack.c.b16 %v501, %v500
      %v563 = vpack.c.b16 %v503, %v502
      %v564 = vpack.c.b16 %v505, %v504
      %v565 = vpack.c.b16 %v507, %v506
      %v566 = vpack.c.b16 %v509, %v508
      %v567 = vpack.c.b16 %v511, %v510
      %v568 = vpack.c.b16 %v513, %v512
      %v569 = vpack.c.b16 %v515, %v514
      %v570 = vpack.c.b16 %v517, %v516
      %v571 = vpack.c.b16 %v519, %v518
      %v572 = vpack.c.b16 %v521, %v520
      %v573 = vpack.c.b16 %v523, %v522
      %v574 = vpack.c.b16 %v525, %v524
      %v575 = vpack.c.b16 %v527, %v526
      %v576 = vpack.c.b16 %v529, %v528
      %v577 = vpack.c.b16 %v531, %v530
      %v578 = vpack.c.b16 %v533, %v532
      %v579 = vpack.c.b16 %v535, %v534
      %v580 = vpack.c.b16 %v537, %v536
      %v581 = vpack.c.b16 %v539, %v538
      %v582 = vpack.c.b16 %v541, %v540
      %v583 = vpack.c.b16 %v543, %v542
      %v584 = vpack.c.b16 %v545, %v544
      %v585 = vpack.c.b16 %v547, %v546
      %v586 = vpack.c.b16 %v549, %v548
      %v587 = vpack.c.b16 %v551, %v550
      %vm624 = vcmask 523264
      %v626 = vsel %vm624, %v376, 0
      %v629 = vsel %vm624, %v381, 0
      %v632 = vsel %vm624, %v386, 0
      %v635 = vsel %vm624, %v391, 0
      %637 = vmatprep.subr.bf16.mxu0 0
      %638 = vmatpush1.bf16.msra.mxu0 %v559
      %639 = vmatprep.subr.bf16.mxu0 0
      %640 = vmatpush1.bf16.msra.mxu0 %v558
      %641 = vmatprep.subr.bf16.mxu0 0
      %642 = vmatpush1.bf16.msra.mxu0 %v557
      %643 = vmatprep.subr.bf16.mxu0 0
      %644 = vmatpush1.bf16.msra.mxu0 %v556
      %645 = vmatprep.subr.bf16.mxu0 0
      %646 = vmatpush1.bf16.msra.mxu0 %v555
      %647 = vmatprep.subr.bf16.mxu0 0
      %648 = vmatpush1.bf16.msra.mxu0 %v554
      %649 = vmatprep.subr.bf16.mxu0 0
      %650 = vmatpush1.bf16.msra.mxu0 %v553
      %651 = vmatprep.subr.bf16.mxu0 0
      %652 = vmatpush1.bf16.msra.mxu0 %v552
      %653 = vmatprep.subr.bf16.mxu0 0
      %654 = vmatpush2.bf16.msra.mxu0 %v567
      %655 = vmatprep.subr.bf16.mxu0 0
      %656 = vmatpush2.bf16.msra.mxu0 %v566
      %657 = vmatprep.subr.bf16.mxu0 0
      %658 = vmatpush2.bf16.msra.mxu0 %v565
      %659 = vmatprep.subr.bf16.mxu0 0
      %660 = vmatpush2.bf16.msra.mxu0 %v564
      %661 = vmatprep.subr.bf16.mxu0 0
      %662 = vmatpush2.bf16.msra.mxu0 %v563
      %663 = vmatprep.subr.bf16.mxu0 0
      %664 = vmatpush2.bf16.msra.mxu0 %v562
      %665 = vmatprep.subr.bf16.mxu0 0
      %666 = vmatpush2.bf16.msra.mxu0 %v561
      %667 = vmatprep.subr.bf16.mxu0 0
      %668 = vmatpush2.bf16.msra.mxu0 %v560
      %669 = vmatprep.mubr.bf16.mxu0 %v373
      %670 = vmatmul.mubr.bf16.gmra.mxu0 %v372
      %v671 = vpop.f32.mrf.mxu0
      %v672 = vadd.f32 %v306, %v671
      %v673 = vpop.f32.mrf.mxu0
      %v674 = vpop.f32.mrf.mxu0
      %v675 = vadd.f32 %v306, %v674
      %v676 = vpop.f32.mrf.mxu0
      %677 = vmatprep.mubr.bf16.mxu0 %v378
      %678 = vmatmul.mubr.bf16.gmra.mxu0 %v377
      %v679 = vpop.f32.mrf.mxu0
      %v680 = vadd.f32 %v306, %v679
      %v681 = vpop.f32.mrf.mxu0
      %v682 = vpop.f32.mrf.mxu0
      %v683 = vadd.f32 %v306, %v682
      %v684 = vpop.f32.mrf.mxu0
      %685 = vmatprep.mubr.bf16.mxu0 %v383
      %686 = vmatmul.mubr.bf16.gmra.mxu0 %v382
      %v687 = vpop.f32.mrf.mxu0
      %v688 = vadd.f32 %v306, %v687
      %v689 = vpop.f32.mrf.mxu0
      %v690 = vpop.f32.mrf.mxu0
      %v691 = vadd.f32 %v306, %v690
      %v692 = vpop.f32.mrf.mxu0
      %693 = vmatprep.mubr.bf16.mxu0 %v388
      %694 = vmatmul.mubr.bf16.gmra.mxu0 %v387
      %v695 = vpop.f32.mrf.mxu0
      %v696 = vadd.f32 %v306, %v695
      %v697 = vpop.f32.mrf.mxu0
      %v698 = vpop.f32.mrf.mxu0
      %v699 = vadd.f32 %v306, %v698
      %v700 = vpop.f32.mrf.mxu0
      %701 = vdwg.mxu0
      %702 = vmatprep.subr.bf16.mxu0 0
      %703 = vmatpush1.bf16.msra.mxu0 %v575
      %704 = vmatprep.subr.bf16.mxu0 0
      %705 = vmatpush1.bf16.msra.mxu0 %v574
      %706 = vmatprep.subr.bf16.mxu0 0
      %707 = vmatpush1.bf16.msra.mxu0 %v573
      %708 = vmatprep.subr.bf16.mxu0 0
      %709 = vmatpush1.bf16.msra.mxu0 %v572
      %710 = vmatprep.subr.bf16.mxu0 0
      %711 = vmatpush1.bf16.msra.mxu0 %v571
      %712 = vmatprep.subr.bf16.mxu0 0
      %713 = vmatpush1.bf16.msra.mxu0 %v570
      %714 = vmatprep.subr.bf16.mxu0 0
      %715 = vmatpush1.bf16.msra.mxu0 %v569
      %716 = vmatprep.subr.bf16.mxu0 0
      %717 = vmatpush1.bf16.msra.mxu0 %v568
      %718 = vmatprep.subr.bf16.mxu0 0
      %719 = vmatpush2.bf16.msra.mxu0 %v583
      %720 = vmatprep.subr.bf16.mxu0 0
      %721 = vmatpush2.bf16.msra.mxu0 %v582
      %722 = vmatprep.subr.bf16.mxu0 0
      %723 = vmatpush2.bf16.msra.mxu0 %v581
      %724 = vmatprep.subr.bf16.mxu0 0
      %725 = vmatpush2.bf16.msra.mxu0 %v580
      %726 = vmatprep.subr.bf16.mxu0 0
      %727 = vmatpush2.bf16.msra.mxu0 %v579
      %728 = vmatprep.subr.bf16.mxu0 0
      %729 = vmatpush2.bf16.msra.mxu0 %v578
      %730 = vmatprep.subr.bf16.mxu0 0
      %731 = vmatpush2.bf16.msra.mxu0 %v577
      %732 = vmatprep.subr.bf16.mxu0 0
      %733 = vmatpush2.bf16.msra.mxu0 %v576
      %734 = vmatprep.mubr.bf16.mxu0 %v375
      %735 = vmatmul.mubr.bf16.gmra.mxu0 %v374
      %v736 = vpop.f32.mrf.mxu0
      %v737 = vadd.f32 %v672, %v736
      %v738 = vpop.f32.mrf.mxu0
      %v739 = vpop.f32.mrf.mxu0
      %v740 = vadd.f32 %v675, %v739
      %v741 = vpop.f32.mrf.mxu0
      %742 = vmatprep.mubr.bf16.mxu0 %v380
      %743 = vmatmul.mubr.bf16.gmra.mxu0 %v379
      %v744 = vpop.f32.mrf.mxu0
      %v745 = vadd.f32 %v680, %v744
      %v746 = vpop.f32.mrf.mxu0
      %v747 = vpop.f32.mrf.mxu0
      %v748 = vadd.f32 %v683, %v747
      %v749 = vpop.f32.mrf.mxu0
      %750 = vmatprep.mubr.bf16.mxu0 %v385
      %751 = vmatmul.mubr.bf16.gmra.mxu0 %v384
      %v752 = vpop.f32.mrf.mxu0
      %v753 = vadd.f32 %v688, %v752
      %v754 = vpop.f32.mrf.mxu0
      %v755 = vpop.f32.mrf.mxu0
      %v756 = vadd.f32 %v691, %v755
      %v757 = vpop.f32.mrf.mxu0
      %758 = vmatprep.mubr.bf16.mxu0 %v390
      %759 = vmatmul.mubr.bf16.gmra.mxu0 %v389
      %v760 = vpop.f32.mrf.mxu0
      %v761 = vadd.f32 %v696, %v760
      %v762 = vpop.f32.mrf.mxu0
      %v763 = vpop.f32.mrf.mxu0
      %v764 = vadd.f32 %v699, %v763
      %v765 = vpop.f32.mrf.mxu0
      %766 = vdwg.mxu0
      %767 = vmatprep.subr.bf16.mxu0 0
      %768 = vmatpush1.bf16.msra.mxu0 0
      %769 = vmatprep.subr.bf16.mxu0 0
      %770 = vmatpush1.bf16.msra.mxu0 0
      %771 = vmatprep.subr.bf16.mxu0 0
      %772 = vmatpush1.bf16.msra.mxu0 0
      %773 = vmatprep.subr.bf16.mxu0 0
      %774 = vmatpush1.bf16.msra.mxu0 0
      %775 = vmatprep.subr.bf16.mxu0 0
      %776 = vmatpush1.bf16.msra.mxu0 %v587
      %777 = vmatprep.subr.bf16.mxu0 0
      %778 = vmatpush1.bf16.msra.mxu0 %v586
      %779 = vmatprep.subr.bf16.mxu0 0
      %780 = vmatpush1.bf16.msra.mxu0 %v585
      %781 = vmatprep.subr.bf16.mxu0 0
      %782 = vmatpush1.bf16.msra.mxu0 %v584
      %783 = vmatprep.subr.bf16.mxu0 0
      %784 = vmatpush2.bf16.msra.mxu0 0
      %785 = vmatprep.subr.bf16.mxu0 0
      %786 = vmatpush2.bf16.msra.mxu0 0
      %787 = vmatprep.subr.bf16.mxu0 0
      %788 = vmatpush2.bf16.msra.mxu0 0
      %789 = vmatprep.subr.bf16.mxu0 0
      %790 = vmatpush2.bf16.msra.mxu0 0
      %791 = vmatprep.subr.bf16.mxu0 0
      %792 = vmatpush2.bf16.msra.mxu0 0
      %793 = vmatprep.subr.bf16.mxu0 0
      %794 = vmatpush2.bf16.msra.mxu0 0
      %795 = vmatprep.subr.bf16.mxu0 0
      %796 = vmatpush2.bf16.msra.mxu0 0
      %797 = vmatprep.subr.bf16.mxu0 0
      %798 = vmatpush2.bf16.msra.mxu0 0
      %799 = vmatprep.mubr.bf16.mxu0 0
      %800 = vmatmul.mubr.bf16.gmra.mxu0 %v626
      %v801 = vpop.f32.mrf.mxu0
      %v802 = vadd.f32 %v737, %v801
      %v803 = vpop.f32.mrf.mxu0
      %v804 = vpop.f32.mrf.mxu0
      %v805 = vadd.f32 %v740, %v804
      %v806 = vpop.f32.mrf.mxu0
      %807 = vmatprep.mubr.bf16.mxu0 0
      %808 = vmatmul.mubr.bf16.gmra.mxu0 %v629
      %v809 = vpop.f32.mrf.mxu0
      %v810 = vadd.f32 %v745, %v809
      %v811 = vpop.f32.mrf.mxu0
      %v812 = vpop.f32.mrf.mxu0
      %v813 = vadd.f32 %v748, %v812
      %v814 = vpop.f32.mrf.mxu0
      %815 = vmatprep.mubr.bf16.mxu0 0
      %816 = vmatmul.mubr.bf16.gmra.mxu0 %v632
      %v817 = vpop.f32.mrf.mxu0
      %v818 = vadd.f32 %v753, %v817
      %v819 = vpop.f32.mrf.mxu0
      %v820 = vpop.f32.mrf.mxu0
      %v821 = vadd.f32 %v756, %v820
      %v822 = vpop.f32.mrf.mxu0
      %823 = vmatprep.mubr.bf16.mxu0 0
      %824 = vmatmul.mubr.bf16.gmra.mxu0 %v635
      %v825 = vpop.f32.mrf.mxu0
      %v826 = vadd.f32 %v761, %v825
      %v827 = vpop.f32.mrf.mxu0
      %v828 = vpop.f32.mrf.mxu0
      %v829 = vadd.f32 %v764, %v828
      %v830 = vpop.f32.mrf.mxu0
      %831 = vdwg.mxu0
      %vm832 = vcmp.ge.f32.partialorder %v802, 0.0
      %vm833 = vcmp.ge.f32.partialorder %v805, 0.0
      %vm834 = vcmp.ge.f32.partialorder %v810, 0.0
      %vm835 = vcmp.ge.f32.partialorder %v813, 0.0
      %vm836 = vcmp.ge.f32.partialorder %v818, 0.0
      %vm837 = vcmp.ge.f32.partialorder %v821, 0.0
      %vm838 = vcmp.ge.f32.partialorder %v826, 0.0
      %vm839 = vcmp.ge.f32.partialorder %v829, 0.0
      %v840 = vld [vmem:[%s3] sm:$0x1]
      %v842 = vlaneseq
      %v843 = vshrl.u32 %v842, 7
      %v844 = vsub.s32 0, %v843
      %v845 = vrot.slane %v840, %v844
      %v847 = vmul.f32 %v845, %v802
      %v848 = vmul.f32 %v845, %v805
      %v849 = vmul.f32 %v845, %v810
      %v850 = vmul.f32 %v845, %v813
      %v851 = vmul.f32 %v845, %v818
      %v852 = vmul.f32 %v845, %v821
      %v853 = vmul.f32 %v845, %v826
      %v854 = vmul.f32 %v845, %v829
      %v855 = vsel %vm832, %v802, %v847
      %v856 = vsel %vm833, %v805, %v848
      %v857 = vsel %vm834, %v810, %v849
      %v858 = vsel %vm835, %v813, %v850
      %v859 = vsel %vm836, %v818, %v851
      %v860 = vsel %vm837, %v821, %v852
      %v861 = vsel %vm838, %v826, %v853
      %v862 = vsel %vm839, %v829, %v854
      %v863 = vpack.c.bf16 %v856, %v855
      %v864 = vpack.c.bf16 %v858, %v857
      %v865 = vpack.c.bf16 %v860, %v859
      %v866 = vpack.c.bf16 %v862, %v861
      %v871 = vunpack.c.l.b16 %v863
      %v872 = vunpack.c.h.b16 %v863
      %v873 = vunpack.c.l.b16 %v864
      %v874 = vunpack.c.h.b16 %v864
      %v875 = vunpack.c.l.b16 %v865
      %v876 = vunpack.c.h.b16 %v865
      %v877 = vunpack.c.l.b16 %v866
      %v878 = vunpack.c.h.b16 %v866
      %v879 = vpack.c.b16 %v871, %v871
      %v880 = vpack.c.b16 %v872, %v872
      %v881 = vpack.c.b16 %v873, %v873
      %v882 = vpack.c.b16 %v874, %v874
      %v883 = vpack.c.b16 %v875, %v875
      %v884 = vpack.c.b16 %v876, %v876
      %v885 = vpack.c.b16 %v877, %v877
      %v886 = vpack.c.b16 %v878, %v878
      %895 = vst [vmem:[%s202] sm:$0xf] %v879
      %896 = vst [vmem:[%s202 + $0x4] sm:$0xf] %v880
      %897 = vst [vmem:[%s202 + $0x8] sm:$0xf] %v881
      %898 = vst [vmem:[%s202 + $0xc] sm:$0xf] %v882
      %899 = vst [vmem:[%s202 + $0x10] sm:$0xf] %v883
      %900 = vst [vmem:[%s202 + $0x14] sm:$0xf] %v884
      %901 = vst [vmem:[%s202 + $0x18] sm:$0xf] %v885
      %902 = vst [vmem:[%s202 + $0x1c] sm:$0xf] %v886
      %s903 = smul.u32 8, %s15
      %p904 = scmp.lt.s32.totalorder %s903, 15
      %s905 = scalar_select %p904, %s903, 15
      %s906 = smul.addr %s905, 4
      %s907 = scalar_lea.vmem %s4, %s906
      // Predicated region
      $region37: #{skm_block_forward.13} parent=35 // pred_check
        %p908 = pneg %p122
      $region38: #{skm_block_forward.13} parent=35 // pred_check_branch
        %910 = sbr.rel (%p908) target = $region40
      $region39: #{skm_block_forward.13} parent=35 // pred_region
        %s911 = smul.u32 8, %s15
      $region40: #{skm_block_forward.13} parent=35 // pred_fallthru
        _
    $region36: #{skm_block_forward.13} parent=5 // pred_fallthru
      _
    %p912 = scmp.le.s32.totalorder 2, %s10
    // Predicated region
    $region41: #{skm_block_forward.13} parent=5 // pred_check
      %p913 = pneg %p912
    $region42: #{skm_block_forward.13} parent=5 // pred_check_branch
      %915 = sbr.rel (%p913) target = $region44
    $region43: #{skm_block_forward.13} parent=5 // pred_region
      %s916 = ssub.s32 %s10, 2
      // Predicated region
      $region45: #{skm_block_forward.13} parent=43 // pred_check
        %p917 = pneg %p128
      $region46: #{skm_block_forward.13} parent=43 // pred_check_branch
        %919 = sbr.rel (%p917) target = $region48
      $region47: #{skm_block_forward.13} parent=43 // pred_region
        %s920 = smul.u32 8, %s16
        %p921 = scmp.lt.s32.totalorder %s920, 15
        %s922 = scalar_select %p921, %s920, 15
        %s923 = smul.addr %s922, 4
        %s924 = scalar_lea.vmem %s4, %s923
      $region48: #{skm_block_forward.13} parent=43 // pred_fallthru
        _
    $region44: #{skm_block_forward.13} parent=5 // pred_fallthru
      _
  $region6: #{skm_block_forward.13} parent=0 // loop_footer
    %s14 = sadd.s32 1, %s10
  $region7: #{skm_block_forward.13} parent=0 // loop_footer_branch
    %9 = sbr.rel target = $region3
  $region8: #{skm_block_forward.13} parent=0 // loop_exit
    _

// kernel: tile.48
$region0: #{tile.48}
  #allocation0 [shape = 's32[1]{0}', space=sflag, size = 0x4, scoped, tag = 'scoped memory for tile.48']
  %s0 = inlined_call_operand.vmem [shape: f32[16], index: 0, kind: input, shape index: {}]
  %s1 = inlined_call_operand.vmem [shape: f32[4,16], index: 1, kind: output, shape index: {}]
  // Predicated region
  $region2: #{tile.48} parent=0 // pred_check
    _
  $region3: #{tile.48} parent=0 // pred_check_branch
    %3 = sbr.rel (0) target = $region5
  $region4: #{tile.48} parent=0 // pred_region
    _
  $region5: #{tile.48} parent=0 // pred_fallthru
    _
  %v4 = vld [vmem:[%s0] ss:$0 sm:$0xff]
  %5 = vst [vmem:[%s1] sm:$0xf] %v4

// kernel: tile.49
$region0: #{tile.49}
  %s0 = inlined_call_operand.vmem [shape: f32[4,16], index: 0, kind: input, shape index: {}]
  %s1 = inlined_call_operand.vmem [shape: f32[64], index: 1, kind: output, shape index: {}]
  $region1: #{tile.49} parent=0
    #allocation0 [shape = 'u8[4096]{0}', space=vmem, size = 0x1000, scoped, tag = 'scoped mem for output reshape']
    #allocation1 [shape = 'u8[4096]{0}', space=vmem, size = 0x1000, scoped, tag = 'scoped mem for input reshape']
    %s3 = sshll.u32 1, 4
    %s4 = ssub.s32 %s3, 1
    %v5 = vld [vmem:[%s0] sm:%s4]
    %6 = vst [vmem:[#allocation1] sm:%s4] %v5
    %v7 = vld [vmem:[#allocation1] sm:$0x1]
    %vm8 = vcmask 130048
    %9 = vst.msk [vmem:[#allocation0] sm:$0x1] %vm8, %v7
    %s10 = scalar_lea.vmem [#allocation1], 3
    %v11 = vld [vmem:[%s10] sm:$0x1]
    %12 = vrot.lane.b32.xlu0 %v11, 48
    %v13 = vpop.permute.xlu0 %12
    %vm14 = vcmask 523648
    %15 = vst.msk [vmem:[#allocation0] sm:$0x1] %vm14, %v13
    %s16 = scalar_lea.vmem [#allocation1], 2
    %v17 = vld [vmem:[%s16] sm:$0x1]
    %18 = vrot.lane.b32.xlu0 %v17, 32
    %v19 = vpop.permute.xlu0 %18
    %vm20 = vcmask 392448
    %21 = vst.msk [vmem:[#allocation0] sm:$0x1] %vm20, %v19
    %s22 = scalar_lea.vmem [#allocation1], 1
    %v23 = vld [vmem:[%s22] sm:$0x1]
    %24 = vrot.lane.b32.xlu0 %v23, 16
    %v25 = vpop.permute.xlu0 %24
    %vm26 = vcmask 261248
    %27 = vst.msk [vmem:[#allocation0] sm:$0x1] %vm26, %v25
    %s29 = sshll.u32 1, 1
    %s30 = ssub.s32 %s29, 1
    %v32 = vld [vmem:[#allocation0] sm:%s30]
    %s33 = sshll.u32 1, 1
    %s34 = ssub.s32 %s33, 1
    %35 = vst [vmem:[%s1] sm:%s34] %v32

// kernel: tile.25
$region0: #{tile.25}
  #allocation0 [shape = 's32[1]{0}', space=sflag, size = 0x4, scoped, tag = 'scoped memory for tile.25']
  %s0 = inlined_call_operand.<no memory space> [shape: f32[], index: 0, kind: input, shape index: {}]
  %s1 = inlined_call_operand.vmem [shape: f32[64], index: 1, kind: output, shape index: {}]
  %v2 = vstv %s0
  %3 = vst [vmem:[%s1] sm:$0x1] %v2

// kernel: skm_block_forward.14
$region0: #{skm_block_forward.14}
  #allocation0 [shape = 'u32[]', space=smem, size = 0x4, offset = 0x4, fixed_abs, tag = 'smem constant byte address 0x4 - core index']
  #allocation1 [shape = 'u32[144,128]{1,0:T(1,128)}', space=vmem, size = 0x12000, scoped, tag = 'internal scratch']
  %s0 = inlined_call_operand.vmem [shape: bf16[128,108], index: 0, kind: input, shape index: {}]
  %s1 = inlined_call_operand.vmem [shape: bf16[108,128], index: 1, kind: input, shape index: {}]
  %s2 = inlined_call_operand.vmem [shape: f32[1,128], index: 2, kind: input, shape index: {}]
  %s3 = inlined_call_operand.vmem [shape: f32[1,128], index: 3, kind: input, shape index: {}]
  %s4 = inlined_call_operand.vmem [shape: bf16[128,128], index: 4, kind: output, shape index: {}]
  %s5 = sld [smem:[#allocation0]]
  $region49: #{skm_block_forward.14} parent=0
    _
  %s7 = ssub.s32 1, %s5
  %s8 = scalar_select 0, %s7, %s5
  loop: start=0, step=1, limit=4
  $region2: #{skm_block_forward.14} parent=0 // loop_pre_header
    _
  $region3: #{skm_block_forward.14} parent=0 // loop_header
    %s10 = sphi 0, %s14
    %p11 = scmp.ge.s32.totalorder %s10, 4
    %s20 = sphi 0, %s22
    %s23 = sphi 0, %s20
    %s24 = sphi 0, %s23
    %s40 = sphi 0, %s24
    %s44 = sphi 0, %s44
    %s46 = sphi 0, %s44
    %s47 = sphi 0, %s46
    %s61 = sphi 0, %s47
    %s65 = sphi 0, %s65
    %s67 = sphi 0, %s65
    %s68 = sphi 0, %s67
    %s82 = sphi 0, %s68
    %s86 = sphi 0, %s86
    %s88 = sphi 0, %s86
    %s89 = sphi 0, %s88
    %s103 = sphi 0, %s89
    %s109 = sphi 0, %s111
    %s112 = sphi 0, %s109
    %s113 = sphi 0, %s112
    %s129 = sphi 0, %s113
  $region4: #{skm_block_forward.14} parent=0 // loop_header_branch
    %13 = sbr.rel (%p11) target = $region8
  $region5: #{skm_block_forward.14} parent=0 // loop_body
    %s15 = ssub.s32 %s10, 1
    %s16 = ssub.s32 %s10, 2
    %s17 = sadd.s32 %s10, 1
    %s18 = ssub.s32 %s10, %s17
    %p19 = scmp.eq.s32.totalorder %s18, 0
    %s21 = sadd.s32 %s20, 1
    %s22 = scalar_select %p19, %s20, %s21
    %p25 = pneg %p19
    %p26 = scmp.eq.s32.totalorder %s10, 1
    %p27 = por %p25, %p26
    %p28 = scmp.ne.s32.totalorder %s20, %s23
    %p29 = scmp.eq.s32.totalorder %s10, 0
    %p30 = por %p28, %p29
    %p31 = scmp.ne.s32.totalorder %s20, %s23
    %p32 = scmp.eq.s32.totalorder %s15, 1
    %p33 = por %p31, %p32
    %p34 = scmp.ne.s32.totalorder %s23, %s24
    %p35 = scmp.eq.s32.totalorder %s15, 0
    %p36 = por %p34, %p35
    %p37 = scmp.ne.s32.totalorder %s23, %s24
    %p38 = scmp.eq.s32.totalorder %s16, 1
    %p39 = por %p37, %p38
    %p41 = scmp.ne.s32.totalorder %s24, %s40
    %p42 = scmp.eq.s32.totalorder %s16, 0
    %p43 = por %p41, %p42
    %s45 = sadd.s32 %s44, 1
    %p48 = scmp.eq.s32.totalorder %s10, 1
    %p49 = scmp.ne.s32.totalorder %s44, %s46
    %p50 = scmp.eq.s32.totalorder %s10, 0
    %p51 = por %p49, %p50
    %p52 = scmp.ne.s32.totalorder %s44, %s46
    %p53 = scmp.eq.s32.totalorder %s15, 1
    %p54 = por %p52, %p53
    %p55 = scmp.ne.s32.totalorder %s46, %s47
    %p56 = scmp.eq.s32.totalorder %s15, 0
    %p57 = por %p55, %p56
    %p58 = scmp.ne.s32.totalorder %s46, %s47
    %p59 = scmp.eq.s32.totalorder %s16, 1
    %p60 = por %p58, %p59
    %p62 = scmp.ne.s32.totalorder %s47, %s61
    %p63 = scmp.eq.s32.totalorder %s16, 0
    %p64 = por %p62, %p63
    %s66 = sadd.s32 %s65, 1
    %p69 = scmp.eq.s32.totalorder %s10, 1
    %p70 = scmp.ne.s32.totalorder %s65, %s67
    %p71 = scmp.eq.s32.totalorder %s10, 0
    %p72 = por %p70, %p71
    %p73 = scmp.ne.s32.totalorder %s65, %s67
    %p74 = scmp.eq.s32.totalorder %s15, 1
    %p75 = por %p73, %p74
    %p76 = scmp.ne.s32.totalorder %s67, %s68
    %p77 = scmp.eq.s32.totalorder %s15, 0
    %p78 = por %p76, %p77
    %p79 = scmp.ne.s32.totalorder %s67, %s68
    %p80 = scmp.eq.s32.totalorder %s16, 1
    %p81 = por %p79, %p80
    %p83 = scmp.ne.s32.totalorder %s68, %s82
    %p84 = scmp.eq.s32.totalorder %s16, 0
    %p85 = por %p83, %p84
    %s87 = sadd.s32 %s86, 1
    %p90 = scmp.eq.s32.totalorder %s10, 1
    %p91 = scmp.ne.s32.totalorder %s86, %s88
    %p92 = scmp.eq.s32.totalorder %s10, 0
    %p93 = por %p91, %p92
    %p94 = scmp.ne.s32.totalorder %s86, %s88
    %p95 = scmp.eq.s32.totalorder %s15, 1
    %p96 = por %p94, %p95
    %p97 = scmp.ne.s32.totalorder %s88, %s89
    %p98 = scmp.eq.s32.totalorder %s15, 0
    %p99 = por %p97, %p98
    %p100 = scmp.ne.s32.totalorder %s88, %s89
    %p101 = scmp.eq.s32.totalorder %s16, 1
    %p102 = por %p100, %p101
    %p104 = scmp.ne.s32.totalorder %s89, %s103
    %p105 = scmp.eq.s32.totalorder %s16, 0
    %p106 = por %p104, %p105
    %s107 = ssub.s32 %s10, %s17
    %p108 = scmp.eq.s32.totalorder %s107, 0
    %s110 = sadd.s32 %s109, 1
    %s111 = scalar_select %p108, %s109, %s110
    %p114 = pneg %p108
    %p115 = scmp.eq.s32.totalorder %s10, 1
    %p116 = por %p114, %p115
    %p117 = scmp.ne.s32.totalorder %s109, %s112
    %p118 = scmp.eq.s32.totalorder %s10, 0
    %p119 = por %p117, %p118
    %p120 = scmp.ne.s32.totalorder %s109, %s112
    %p121 = scmp.eq.s32.totalorder %s15, 1
    %p122 = por %p120, %p121
    %p123 = scmp.ne.s32.totalorder %s112, %s113
    %p124 = scmp.eq.s32.totalorder %s15, 0
    %p125 = por %p123, %p124
    %p126 = scmp.ne.s32.totalorder %s112, %s113
    %p127 = scmp.eq.s32.totalorder %s16, 1
    %p128 = por %p126, %p127
    %p130 = scmp.ne.s32.totalorder %s113, %s129
    %p131 = scmp.eq.s32.totalorder %s16, 0
    %p132 = por %p130, %p131
    %p133 = scmp.le.s32.totalorder 1, %s10
    %p134 = scmp.lt.s32.totalorder %s10, 3
    %p135 = pnand %p133, %p134
    %p136 = pneg %p135
    // Predicated region
    $region9: #{skm_block_forward.14} parent=5 // pred_check
      _
    $region10: #{skm_block_forward.14} parent=5 // pred_check_branch
      %138 = sbr.rel (%p135) target = $region12
    $region11: #{skm_block_forward.14} parent=5 // pred_region
      %s139 = ssub.s32 %s10, 1
      // Predicated region
      $region13: #{skm_block_forward.14} parent=11 // pred_check
        %p140 = pneg %p57
      $region14: #{skm_block_forward.14} parent=11 // pred_check_branch
        %142 = sbr.rel (%p140) target = $region16
      $region15: #{skm_block_forward.14} parent=11 // pred_region
        _
      $region16: #{skm_block_forward.14} parent=11 // pred_fallthru
        _
      // Predicated region
      $region17: #{skm_block_forward.14} parent=11 // pred_check
        %p143 = pneg %p78
      $region18: #{skm_block_forward.14} parent=11 // pred_check_branch
        %145 = sbr.rel (%p143) target = $region20
      $region19: #{skm_block_forward.14} parent=11 // pred_region
        _
      $region20: #{skm_block_forward.14} parent=11 // pred_fallthru
        _
      // Predicated region
      $region21: #{skm_block_forward.14} parent=11 // pred_check
        %p146 = pneg %p99
      $region22: #{skm_block_forward.14} parent=11 // pred_check_branch
        %148 = sbr.rel (%p146) target = $region24
      $region23: #{skm_block_forward.14} parent=11 // pred_region
        _
      $region24: #{skm_block_forward.14} parent=11 // pred_fallthru
        _
    $region12: #{skm_block_forward.14} parent=5 // pred_fallthru
      _
    %p149 = scmp.lt.s32.totalorder %s10, 2
    // Predicated region
    $region25: #{skm_block_forward.14} parent=5 // pred_check
      %p150 = pneg %p149
    $region26: #{skm_block_forward.14} parent=5 // pred_check_branch
      %152 = sbr.rel (%p150) target = $region28
    $region27: #{skm_block_forward.14} parent=5 // pred_region
      // Predicated region
      $region29: #{skm_block_forward.14} parent=27 // pred_check
        %p153 = pneg %p30
      $region30: #{skm_block_forward.14} parent=27 // pred_check_branch
        %155 = sbr.rel (%p153) target = $region32
      $region31: #{skm_block_forward.14} parent=27 // pred_region
        %s156 = smul.u32 8, %s10
        %p157 = scmp.lt.s32.totalorder %s156, 15
        %s158 = scalar_select %p157, %s156, 15
        %s159 = smul.addr %s158, 4
        %s160 = scalar_lea.vmem %s0, %s159
        %s161 = smul.u32 8, %s10
      $region32: #{skm_block_forward.14} parent=27 // pred_fallthru
        _
    $region28: #{skm_block_forward.14} parent=5 // pred_fallthru
      _
    %p162 = scmp.le.s32.totalorder 1, %s10
    %p163 = scmp.lt.s32.totalorder %s10, 3
    %p164 = pnand %p162, %p163
    %p165 = pneg %p164
    // Predicated region
    $region33: #{skm_block_forward.14} parent=5 // pred_check
      _
    $region34: #{skm_block_forward.14} parent=5 // pred_check_branch
      %167 = sbr.rel (%p164) target = $region36
    $region35: #{skm_block_forward.14} parent=5 // pred_region
      %s168 = ssub.s32 %s10, 1
      %s169 = smul.u32 8, %s15
      %p170 = scmp.lt.s32.totalorder %s169, 15
      %s171 = scalar_select %p170, %s169, 15
      %s172 = smul.addr %s171, 4
      %s173 = scalar_lea.vmem %s0, %s172
      %p174 = pneg %p36
      %p175 = pneg %p33
      %p176 = pneg %p57
      %p177 = pneg %p54
      %p178 = pneg %p78
      %p179 = pneg %p75
      %p180 = pneg %p99
      %p181 = pneg %p96
      %p182 = pneg %p125
      %p183 = pneg %p122
      %s184 = smul.u32 8, %s15
      %p185 = scmp.lt.s32.totalorder %s184, 15
      %s186 = scalar_select %p185, %s184, 15
      %s187 = smul.addr %s186, 4
      %s188 = scalar_lea.vmem %s4, %s187
      %s189 = smul.u32 8, %s15
      %p190 = scmp.lt.s32.totalorder %s189, 15
      %s191 = scalar_select %p190, %s189, 15
      %s192 = smul.addr %s191, 4
      %s193 = scalar_lea.vmem %s0, %s192
      %s194 = smul.u32 8, %s15
      %s195 = smul.u32 8, %s15
      %p196 = scmp.lt.s32.totalorder %s195, 15
      %s197 = scalar_select %p196, %s195, 15
      %s198 = smul.addr %s197, 4
      %s199 = scalar_lea.vmem %s4, %s198
      %s200 = smul.u32 8, %s15
      %v202 = vld [vmem:[%s193] sm:$0xf]
      %v203 = vld [vmem:[%s193 + $0x4] sm:$0xf]
      %v204 = vld [vmem:[%s193 + $0x8] sm:$0xf]
      %v205 = vld [vmem:[%s193 + $0xc] sm:$0xf]
      %v206 = vld [vmem:[%s193 + $0x10] sm:$0xf]
      %v207 = vld [vmem:[%s193 + $0x14] sm:$0xf]
      %v208 = vld [vmem:[%s193 + $0x18] sm:$0xf]
      %v209 = vld [vmem:[%s193 + $0x1c] sm:$0xf]
      %v210 = vld [vmem:[%s1] sm:$0xf]
      %v211 = vld [vmem:[%s1 + $0x4] sm:$0xf]
      %v212 = vld [vmem:[%s1 + $0x8] sm:$0xf]
      %v213 = vld [vmem:[%s1 + $0xc] sm:$0xf]
      %v214 = vld [vmem:[%s1 + $0x10] sm:$0xf]
      %v215 = vld [vmem:[%s1 + $0x14] sm:$0xf]
      %v216 = vld [vmem:[%s1 + $0x18] sm:$0xf]
      %v217 = vld [vmem:[%s1 + $0x1c] sm:$0xf]
      %v218 = vld [vmem:[%s1 + $0x20] sm:$0xf]
      %v219 = vld [vmem:[%s1 + $0x24] sm:$0xf]
      %v220 = vld [vmem:[%s1 + $0x28] sm:$0xf]
      %v221 = vld [vmem:[%s1 + $0x2c] sm:$0xf]
      %v222 = vld [vmem:[%s1 + $0x30] sm:$0xf]
      %v223 = vld [vmem:[%s1 + $0x34] sm:$0x3]
      %v224 = vld [vmem:[%s2] sm:$0x1]
      %v226 = vlaneseq
      %v227 = vshrl.u32 %v226, 7
      %v228 = vsub.s32 0, %v227
      %v229 = vrot.slane %v224, %v228
      %v239 = vunpack.c.l.b16 %v202
      %v240 = vunpack.c.l.b16 %v203
      %v241 = vunpack.c.l.b16 %v204
      %v242 = vunpack.c.l.b16 %v205
      %v243 = vunpack.c.l.b16 %v206
      %v244 = vunpack.c.l.b16 %v207
      %v245 = vunpack.c.l.b16 %v208
      %v246 = vunpack.c.l.b16 %v209
      %v247 = vpack.c.b16 %v240, %v239
      %v248 = vpack.c.b16 %v242, %v241
      %v249 = vpack.c.b16 %v244, %v243
      %v250 = vpack.c.b16 %v246, %v245
      %v265 = vunpack.c.l.b16 %v210
      %v266 = vunpack.c.l.b16 %v211
      %v267 = vunpack.c.l.b16 %v212
      %v268 = vunpack.c.l.b16 %v213
      %v269 = vunpack.c.l.b16 %v214
      %v270 = vunpack.c.l.b16 %v215
      %v271 = vunpack.c.l.b16 %v216
      %v272 = vunpack.c.l.b16 %v217
      %v273 = vunpack.c.l.b16 %v218
      %v274 = vunpack.c.l.b16 %v219
      %v275 = vunpack.c.l.b16 %v220
      %v276 = vunpack.c.l.b16 %v221
      %v277 = vunpack.c.l.b16 %v222
      %v278 = vunpack.c.l.b16 %v223
      %v279 = vpack.c.b16 %v266, %v265
      %v280 = vpack.c.b16 %v268, %v267
      %v281 = vpack.c.b16 %v270, %v269
      %v282 = vpack.c.b16 %v272, %v271
      %v283 = vpack.c.b16 %v274, %v273
      %v284 = vpack.c.b16 %v276, %v275
      %v285 = vpack.c.b16 %v278, %v277
      %vm292 = vcmask 883712
      %v294 = vsel %vm292, %v247, 0
      %v297 = vsel %vm292, %v248, 0
      %v300 = vsel %vm292, %v249, 0
      %v303 = vsel %vm292, %v250, 0
      %vm305 = vcmask 1045504
      %v307 = vsel %vm305, %v285, 0
      %309 = vmatprep.subr.bf16.mxu0 0
      %310 = vmatpush1.bf16.msra.mxu0 0
      %311 = vmatprep.subr.bf16.mxu0 0
      %312 = vmatpush1.bf16.msra.mxu0 %v307
      %313 = vmatprep.subr.bf16.mxu0 0
      %314 = vmatpush1.bf16.msra.mxu0 %v284
      %315 = vmatprep.subr.bf16.mxu0 0
      %316 = vmatpush1.bf16.msra.mxu0 %v283
      %317 = vmatprep.subr.bf16.mxu0 0
      %318 = vmatpush1.bf16.msra.mxu0 %v282
      %319 = vmatprep.subr.bf16.mxu0 0
      %320 = vmatpush1.bf16.msra.mxu0 %v281
      %321 = vmatprep.subr.bf16.mxu0 0
      %322 = vmatpush1.bf16.msra.mxu0 %v280
      %323 = vmatprep.subr.bf16.mxu0 0
      %324 = vmatpush1.bf16.msra.mxu0 %v279
      %325 = vmatprep.subr.bf16.mxu0 0
      %326 = vmatpush2.bf16.msra.mxu0 0
      %327 = vmatprep.subr.bf16.mxu0 0
      %328 = vmatpush2.bf16.msra.mxu0 0
      %329 = vmatprep.subr.bf16.mxu0 0
      %330 = vmatpush2.bf16.msra.mxu0 0
      %331 = vmatprep.subr.bf16.mxu0 0
      %332 = vmatpush2.bf16.msra.mxu0 0
      %333 = vmatprep.subr.bf16.mxu0 0
      %334 = vmatpush2.bf16.msra.mxu0 0
      %335 = vmatprep.subr.bf16.mxu0 0
      %336 = vmatpush2.bf16.msra.mxu0 0
      %337 = vmatprep.subr.bf16.mxu0 0
      %338 = vmatpush2.bf16.msra.mxu0 0
      %339 = vmatprep.subr.bf16.mxu0 0
      %340 = vmatpush2.bf16.msra.mxu0 0
      %341 = vmatprep.mubr.bf16.mxu0 0
      %342 = vmatmul.mubr.bf16.gmra.mxu0 %v294
      %v343 = vpop.f32.mrf.mxu0
      %v344 = vadd.f32 %v229, %v343
      %v345 = vpop.f32.mrf.mxu0
      %v346 = vpop.f32.mrf.mxu0
      %v347 = vadd.f32 %v229, %v346
      %v348 = vpop.f32.mrf.mxu0
      %349 = vmatprep.mubr.bf16.mxu0 0
      %350 = vmatmul.mubr.bf16.gmra.mxu0 %v297
      %v351 = vpop.f32.mrf.mxu0
      %v352 = vadd.f32 %v229, %v351
      %v353 = vpop.f32.mrf.mxu0
      %v354 = vpop.f32.mrf.mxu0
      %v355 = vadd.f32 %v229, %v354
      %v356 = vpop.f32.mrf.mxu0
      %357 = vmatprep.mubr.bf16.mxu0 0
      %358 = vmatmul.mubr.bf16.gmra.mxu0 %v300
      %v359 = vpop.f32.mrf.mxu0
      %v360 = vadd.f32 %v229, %v359
      %v361 = vpop.f32.mrf.mxu0
      %v362 = vpop.f32.mrf.mxu0
      %v363 = vadd.f32 %v229, %v362
      %v364 = vpop.f32.mrf.mxu0
      %365 = vmatprep.mubr.bf16.mxu0 0
      %366 = vmatmul.mubr.bf16.gmra.mxu0 %v303
      %v367 = vpop.f32.mrf.mxu0
      %v368 = vadd.f32 %v229, %v367
      %v369 = vpop.f32.mrf.mxu0
      %v370 = vpop.f32.mrf.mxu0
      %v371 = vadd.f32 %v229, %v370
      %v372 = vpop.f32.mrf.mxu0
      %373 = vdwg.mxu0
      %vm374 = vcmp.ge.f32.partialorder %v344, 0.0
      %vm375 = vcmp.ge.f32.partialorder %v347, 0.0
      %vm376 = vcmp.ge.f32.partialorder %v352, 0.0
      %vm377 = vcmp.ge.f32.partialorder %v355, 0.0
      %vm378 = vcmp.ge.f32.partialorder %v360, 0.0
      %vm379 = vcmp.ge.f32.partialorder %v363, 0.0
      %vm380 = vcmp.ge.f32.partialorder %v368, 0.0
      %vm381 = vcmp.ge.f32.partialorder %v371, 0.0
      %v382 = vld [vmem:[%s3] sm:$0x1]
      %v384 = vlaneseq
      %v385 = vshrl.u32 %v384, 7
      %v386 = vsub.s32 0, %v385
      %v387 = vrot.slane %v382, %v386
      %v389 = vmul.f32 %v387, %v344
      %v390 = vmul.f32 %v387, %v347
      %v391 = vmul.f32 %v387, %v352
      %v392 = vmul.f32 %v387, %v355
      %v393 = vmul.f32 %v387, %v360
      %v394 = vmul.f32 %v387, %v363
      %v395 = vmul.f32 %v387, %v368
      %v396 = vmul.f32 %v387, %v371
      %v397 = vsel %vm374, %v344, %v389
      %v398 = vsel %vm375, %v347, %v390
      %v399 = vsel %vm376, %v352, %v391
      %v400 = vsel %vm377, %v355, %v392
      %v401 = vsel %vm378, %v360, %v393
      %v402 = vsel %vm379, %v363, %v394
      %v403 = vsel %vm380, %v368, %v395
      %v404 = vsel %vm381, %v371, %v396
      %v405 = vpack.c.bf16 %v398, %v397
      %v406 = vpack.c.bf16 %v400, %v399
      %v407 = vpack.c.bf16 %v402, %v401
      %v408 = vpack.c.bf16 %v404, %v403
      %v413 = vunpack.c.l.b16 %v405
      %v414 = vunpack.c.h.b16 %v405
      %v415 = vunpack.c.l.b16 %v406
      %v416 = vunpack.c.h.b16 %v406
      %v417 = vunpack.c.l.b16 %v407
      %v418 = vunpack.c.h.b16 %v407
      %v419 = vunpack.c.l.b16 %v408
      %v420 = vunpack.c.h.b16 %v408
      %v421 = vpack.c.b16 %v413, %v413
      %v422 = vpack.c.b16 %v414, %v414
      %v423 = vpack.c.b16 %v415, %v415
      %v424 = vpack.c.b16 %v416, %v416
      %v425 = vpack.c.b16 %v417, %v417
      %v426 = vpack.c.b16 %v418, %v418
      %v427 = vpack.c.b16 %v419, %v419
      %v428 = vpack.c.b16 %v420, %v420
      %437 = vst [vmem:[%s199] sm:$0xf] %v421
      %438 = vst [vmem:[%s199 + $0x4] sm:$0xf] %v422
      %439 = vst [vmem:[%s199 + $0x8] sm:$0xf] %v423
      %440 = vst [vmem:[%s199 + $0xc] sm:$0xf] %v424
      %441 = vst [vmem:[%s199 + $0x10] sm:$0xf] %v425
      %442 = vst [vmem:[%s199 + $0x14] sm:$0xf] %v426
      %443 = vst [vmem:[%s199 + $0x18] sm:$0xf] %v427
      %444 = vst [vmem:[%s199 + $0x1c] sm:$0xf] %v428
      %s445 = smul.u32 8, %s15
      %p446 = scmp.lt.s32.totalorder %s445, 15
      %s447 = scalar_select %p446, %s445, 15
      %s448 = smul.addr %s447, 4
      %s449 = scalar_lea.vmem %s4, %s448
      // Predicated region
      $region37: #{skm_block_forward.14} parent=35 // pred_check
        %p450 = pneg %p122
      $region38: #{skm_block_forward.14} parent=35 // pred_check_branch
        %452 = sbr.rel (%p450) target = $region40
      $region39: #{skm_block_forward.14} parent=35 // pred_region
        %s453 = smul.u32 8, %s15
      $region40: #{skm_block_forward.14} parent=35 // pred_fallthru
        _
    $region36: #{skm_block_forward.14} parent=5 // pred_fallthru
      _
    %p454 = scmp.le.s32.totalorder 2, %s10
    // Predicated region
    $region41: #{skm_block_forward.14} parent=5 // pred_check
      %p455 = pneg %p454
    $region42: #{skm_block_forward.14} parent=5 // pred_check_branch
      %457 = sbr.rel (%p455) target = $region44
    $region43: #{skm_block_forward.14} parent=5 // pred_region
      %s458 = ssub.s32 %s10, 2
      // Predicated region
      $region45: #{skm_block_forward.14} parent=43 // pred_check
        %p459 = pneg %p128
      $region46: #{skm_block_forward.14} parent=43 // pred_check_branch
        %461 = sbr.rel (%p459) target = $region48
      $region47: #{skm_block_forward.14} parent=43 // pred_region
        %s462 = smul.u32 8, %s16
        %p463 = scmp.lt.s32.totalorder %s462, 15
        %s464 = scalar_select %p463, %s462, 15
        %s465 = smul.addr %s464, 4
        %s466 = scalar_lea.vmem %s4, %s465
      $region48: #{skm_block_forward.14} parent=43 // pred_fallthru
        _
    $region44: #{skm_block_forward.14} parent=5 // pred_fallthru
      _
  $region6: #{skm_block_forward.14} parent=0 // loop_footer
    %s14 = sadd.s32 1, %s10
  $region7: #{skm_block_forward.14} parent=0 // loop_footer_branch
    %9 = sbr.rel target = $region3
  $region8: #{skm_block_forward.14} parent=0 // loop_exit
    _

</llo_original>
